<compile_context>
chip_gen: v5e
topology: v5e:2x2
jax: 0.10.0
libtpu: 0.0.40
codegen_flags: <defaults>
</compile_context>

<pallas_src>
import jax
import jax.numpy as jnp
from jax.experimental import pallas as pl
from jax.experimental.pallas import tpu as pltpu

CONV_MAT_SIZE = 7                                # conv_mat_size in the reference script
OUTPUT_DIM = CONV_MAT_SIZE * CONV_MAT_SIZE       # 49
LSTM_SIZE = 32                                   # args.lstm_size (unspecified; fixed here)
P_DIM = 8                                        # p_dim
NOISE_STD = 0.01                                 # args.noise (unspecified; fixed here)
PAD = 3                                          # F.conv2d(..., padding=3)
# TODO(synk): args.activation_function is external config; assuming tanh below.


# ---------------------------------------------------------------------------
# Fused kernel: LSTM1 -> LSTM2 (h2 stashed in VMEM) -> batched fc1
#               -> im2col MXU conv (bf16 in, f32 accumulate) + activation.
# All loops are statically unrolled (p_dim=8 and 49 output steps are tiny).
# ---------------------------------------------------------------------------
def fused_hypernet_kernel(p_ref, wih1_ref, whh1_ref, b1_ref,
                          wih2_ref, whh2_ref, b2_ref, fc1_ref, patches_ref,
                          out_ref, h2seq_ref):
    H = whh1_ref.shape[0]
    B, P = p_ref.shape

    # ---------------- implement_W ----------------
    # tanh(p + noise); the gaussian noise is added in the (jitted) wrapper.
    p_t = jnp.tanh(p_ref[...])                                    # (B, P)

    wih1 = wih1_ref[...]        # (1, 4H)   (input_size == 1)
    whh1 = whh1_ref[...]        # (H, 4H)
    b1 = b1_ref[...]            # (1, 4H)   (bias_ih + bias_hh)
    wih2 = wih2_ref[...]        # (H, 4H)
    whh2 = whh2_ref[...]        # (H, 4H)
    b2 = b2_ref[...]            # (1, 4H)

    def lstm_step(xb, h, c, whh):
        # ONE fused (B,H)@(H,4H) gate matmul per step (4H == 128 lanes -> one MXU push)
        # and 3 EUP launches: sigmoid + tanh on the full pre-activation vreg, + tanh(c).
        # Gates picked with static 32-lane slices (PyTorch LSTMCell order: i, f, g, o).
        pre = xb + jnp.dot(h, whh, preferred_element_type=jnp.float32)   # (B, 4H)
        sg = jax.nn.sigmoid(pre)
        tg = jnp.tanh(pre)
        i_g = sg[:, 0 * H:1 * H]
        f_g = sg[:, 1 * H:2 * H]
        g_g = tg[:, 2 * H:3 * H]
        o_g = sg[:, 3 * H:4 * H]
        c_new = f_g * c + i_g * g_g
        h_new = o_g * jnp.tanh(c_new)
        return h_new, c_new

    # ---- LSTM1: scan over the p_dim scalar "timesteps" (input_size == 1) ----
    h1 = jnp.zeros((B, H), jnp.float32)
    c1 = jnp.zeros((B, H), jnp.float32)
    for t in range(P):
        # x_t @ W_ih + bias: depends only on p -> off the recurrent critical path.
        xb = p_t[:, t:t + 1] * wih1 + b1                          # (B, 4H)
        h1, c1 = lstm_step(xb, h1, c1, whh1)

    # ---- LSTM2: 49 steps, each fed the (constant) final h1 ----
    xb2 = jnp.dot(h1, wih2, preferred_element_type=jnp.float32) + b2     # computed once
    h2 = jnp.zeros((B, H), jnp.float32)
    c2 = jnp.zeros((B, H), jnp.float32)
    # TODO(synk): at larger output_dim convert to lax.fori_loop(unroll=4..8) with a
    #             pl.ds scratch store; 49 fully-unrolled steps are fine at this size.
    for t in range(OUTPUT_DIM):
        h2, c2 = lstm_step(xb2, h2, c2, whh2)
        h2seq_ref[:, t, :] = h2          # stash in VMEM scratch; off the recurrent path

    # ---- fc1 projection, batched once -> filters directly in (F=B, 49) orientation ----
    h2all = h2seq_ref[...]                                        # (B, 49, H)
    filters = jnp.sum(h2all * fc1_ref[...][None, :, :], axis=-1)  # (F, 49)

    # ---- conv2d(x, conv_mat, padding=3) as an im2col MXU matmul + activation ----
    # bf16 operands, f32 accumulation; output is lane-dense (512 lanes) -> unmasked stores.
    conv = jnp.dot(filters.astype(jnp.bfloat16), patches_ref[...],
                   preferred_element_type=jnp.float32)            # (F, N*Hi*Wi)
    # TODO(synk): args.activation_function is external config; assuming tanh.
    out_ref[...] = jnp.tanh(conv)


# ---------------------------------------------------------------------------
# Parameter init (deterministic, synthetic — mirrors the shapes in __init__).
# Weights are stored transposed (input_dim, 4H) relative to torch's (4H, input_dim);
# b1/b2 must be bias_ih + bias_hh when porting real PyTorch weights.
# ---------------------------------------------------------------------------
def init_params(key, lstm_size=LSTM_SIZE):
    H = lstm_size
    s = 0.1
    sigma = 0.01
    ks = jax.random.split(key, 7)
    return dict(
        w_ih1=jax.random.normal(ks[0], (1, 4 * H), jnp.float32) * s,   # LSTMCell1 weight_ih^T
        w_hh1=jax.random.normal(ks[1], (H, 4 * H), jnp.float32) * s,   # LSTMCell1 weight_hh^T
        b1=jax.random.normal(ks[2], (1, 4 * H), jnp.float32) * s,      # bias_ih + bias_hh
        w_ih2=jax.random.normal(ks[3], (H, 4 * H), jnp.float32) * s,
        w_hh2=jax.random.normal(ks[4], (H, 4 * H), jnp.float32) * s,
        b2=jax.random.normal(ks[5], (1, 4 * H), jnp.float32) * s,
        fc1=jax.random.normal(ks[6], (H, 1), jnp.float32) * sigma,     # bare parameter, no bias
    )


# ---------------------------------------------------------------------------
# Wrapper: implement_W + conv2d + activation, one fused pallas_call.
# ---------------------------------------------------------------------------
@jax.jit
def hypernet_forward(p, input_data, params, noise_key):
    K = CONV_MAT_SIZE

    # ---- implement_W preamble: view + gaussian noise (redundant_train=True) ----
    assert p.shape[-1] == 1  # p.view(-1, p.shape[-2]) == reshape only when trailing dim is 1
    p2 = p.reshape(-1, p.shape[-2]).astype(jnp.float32)            # (B, p_dim)
    p2 = p2 + NOISE_STD * jax.random.normal(noise_key, p2.shape, jnp.float32)
    B = p2.shape[0]
    H = params["w_hh1"].shape[0]

    # ---- conv input: NCHW (C == 1) -> zero-padded -> im2col patch slab ----
    N, C, Hi, Wi = input_data.shape
    assert C == 1
    xpad = jnp.pad(input_data[:, 0].astype(jnp.float32),
                   ((0, 0), (PAD, PAD), (PAD, PAD)))               # (N, Hi+6, Wi+6)
    # (49, N*Hi*Wi) lane-dense patch slab, cast to bf16 (kernel accumulates in f32).
    # Built with XLA here: doing it in-kernel needs (N,Hi,Wi)->(1,N*Hi*Wi) relayout
    # reshapes per tap, and at ~50 KB the extra HBM round-trip is negligible.
    # TODO(synk): at MNIST scale, grid over N and build patches per-tile in-kernel.
    wins = [xpad[:, ky:ky + Hi, kx:kx + Wi].reshape(1, N * Hi * Wi)
            for ky in range(K) for kx in range(K)]
    patches = jnp.concatenate(wins, axis=0).astype(jnp.bfloat16)   # (49, N*Hi*Wi)

    fc1_row = params["fc1"].T                                      # (1, H)

    vmem = pl.BlockSpec(memory_space=pltpu.MemorySpace.VMEM)       # whole array resident in VMEM
    # Gridless on purpose: total residency << 1 MiB and the LSTM is a serial recurrence.
    # TODO(synk): at real MNIST batch add a "parallel" grid over N (block-tile patches /
    #             output over N) so v7x's second TensorCore is used, and set
    #             vmem_limit_bytes via pltpu.CompilerParams.
    out_flat = pl.pallas_call(
        fused_hypernet_kernel,
        out_shape=jax.ShapeDtypeStruct((B, N * Hi * Wi), jnp.float32),   # lane-dense output
        in_specs=[vmem] * 9,
        out_specs=vmem,
        scratch_shapes=[pltpu.VMEM((B, OUTPUT_DIM, H), jnp.float32)],    # h2 sequence
    )(p2, params["w_ih1"], params["w_hh1"], params["b1"],
      params["w_ih2"], params["w_hh2"], params["b2"], fc1_row, patches)

    # Layout plumbing only: back to NCHW (N, B_filters, Hi, Wi).
    return jnp.transpose(out_flat.reshape(B, N, Hi, Wi), (1, 0, 2, 3))


if __name__ == "__main__":
    key = jax.random.PRNGKey(0)
    k_p, k_x, k_param, k_noise = jax.random.split(key, 4)

    B_filters, p_dim = 4, P_DIM
    N, H_img, W_img = 2, 16, 16

    p = jax.random.normal(k_p, (B_filters, p_dim, 1), jnp.float32)
    input_data = jax.random.normal(k_x, (N, 1, H_img, W_img), jnp.float32)
    params = init_params(k_param)

    out = hypernet_forward(p, input_data, params, k_noise)
    out = jax.block_until_ready(out)

    assert out.shape == (N, B_filters, H_img, W_img), out.shape
    assert bool(jnp.all(jnp.isfinite(out)))
    print("KERNEL_OK")
</pallas_src>

<mosaic_0001>
module attributes {stable_mosaic.version = 11 : i64} {
  func.func @fused_hypernet_kernel(%arg0: memref<4x8xf32, #tpu.memory_space<vmem>>, %arg1: memref<1x128xf32, #tpu.memory_space<vmem>>, %arg2: memref<32x128xf32, #tpu.memory_space<vmem>>, %arg3: memref<1x128xf32, #tpu.memory_space<vmem>>, %arg4: memref<32x128xf32, #tpu.memory_space<vmem>>, %arg5: memref<32x128xf32, #tpu.memory_space<vmem>>, %arg6: memref<1x128xf32, #tpu.memory_space<vmem>>, %arg7: memref<1x32xf32, #tpu.memory_space<vmem>>, %arg8: memref<49x512xbf16, #tpu.memory_space<vmem>>, %arg9: memref<4x512xf32, #tpu.memory_space<vmem>>, %arg10: memref<4x49x32xf32, #tpu.memory_space<vmem>>) attributes {dimension_semantics = [], scalar_prefetch = 0 : i64, scratch_operands = 1 : i64, tpu.core_type = #tpu.core_type<tc>} {
    %c0 = arith.constant 0 : index
    %c0_0 = arith.constant 0 : index
    %0 = vector.load %arg0[%c0, %c0_0] : memref<4x8xf32, #tpu.memory_space<vmem>>, vector<4x8xf32>
    %1 = math.tanh %0 : vector<4x8xf32>
    %c0_1 = arith.constant 0 : index
    %c0_2 = arith.constant 0 : index
    %2 = vector.load %arg1[%c0_1, %c0_2] : memref<1x128xf32, #tpu.memory_space<vmem>>, vector<1x128xf32>
    %c0_3 = arith.constant 0 : index
    %c0_4 = arith.constant 0 : index
    %3 = vector.load %arg2[%c0_3, %c0_4] : memref<32x128xf32, #tpu.memory_space<vmem>>, vector<32x128xf32>
    %c0_5 = arith.constant 0 : index
    %c0_6 = arith.constant 0 : index
    %4 = vector.load %arg3[%c0_5, %c0_6] : memref<1x128xf32, #tpu.memory_space<vmem>>, vector<1x128xf32>
    %c0_7 = arith.constant 0 : index
    %c0_8 = arith.constant 0 : index
    %5 = vector.load %arg4[%c0_7, %c0_8] : memref<32x128xf32, #tpu.memory_space<vmem>>, vector<32x128xf32>
    %c0_9 = arith.constant 0 : index
    %c0_10 = arith.constant 0 : index
    %6 = vector.load %arg5[%c0_9, %c0_10] : memref<32x128xf32, #tpu.memory_space<vmem>>, vector<32x128xf32>
    %c0_11 = arith.constant 0 : index
    %c0_12 = arith.constant 0 : index
    %7 = vector.load %arg6[%c0_11, %c0_12] : memref<1x128xf32, #tpu.memory_space<vmem>>, vector<1x128xf32>
    %cst = arith.constant 0.000000e+00 : f32
    %8 = vector.broadcast %cst : f32 to vector<4x32xf32>
    %cst_13 = arith.constant 0.000000e+00 : f32
    %9 = vector.broadcast %cst_13 : f32 to vector<4x32xf32>
    %10 = vector.extract_strided_slice %1 {offsets = [0, 0], sizes = [4, 1], strides = [1, 1]} : vector<4x8xf32> to vector<4x1xf32>
    %11 = vector.broadcast %10 : vector<4x1xf32> to vector<4x128xf32>
    %12 = vector.broadcast %2 : vector<1x128xf32> to vector<4x128xf32>
    %13 = arith.mulf %11, %12 : vector<4x128xf32>
    %14 = vector.broadcast %4 : vector<1x128xf32> to vector<4x128xf32>
    %15 = arith.addf %13, %14 : vector<4x128xf32>
    %cst_14 = arith.constant dense<0.000000e+00> : vector<4x128xf32>
    %16 = tpu.matmul %8, %3, %cst_14 {dimension_numbers = #tpu.dot_dimension_numbers<[1], [0], [0], [1], [0, 0, 1, 1], [], []>} : vector<4x32xf32>, vector<32x128xf32>, vector<4x128xf32> -> vector<4x128xf32>
    %17 = arith.addf %15, %16 : vector<4x128xf32>
    %18 = arith.negf %17 : vector<4x128xf32>
    %19 = math.exp %18 : vector<4x128xf32>
    %cst_15 = arith.constant 1.000000e+00 : f32
    %20 = vector.broadcast %cst_15 : f32 to vector<4x128xf32>
    %21 = arith.addf %20, %19 : vector<4x128xf32>
    %22 = arith.divf %20, %21 : vector<4x128xf32>
    %23 = math.tanh %17 : vector<4x128xf32>
    %24 = vector.extract_strided_slice %22 {offsets = [0, 0], sizes = [4, 32], strides = [1, 1]} : vector<4x128xf32> to vector<4x32xf32>
    %25 = vector.extract_strided_slice %22 {offsets = [0, 32], sizes = [4, 32], strides = [1, 1]} : vector<4x128xf32> to vector<4x32xf32>
    %26 = vector.extract_strided_slice %23 {offsets = [0, 64], sizes = [4, 32], strides = [1, 1]} : vector<4x128xf32> to vector<4x32xf32>
    %27 = vector.extract_strided_slice %22 {offsets = [0, 96], sizes = [4, 32], strides = [1, 1]} : vector<4x128xf32> to vector<4x32xf32>
    %28 = arith.mulf %25, %9 : vector<4x32xf32>
    %29 = arith.mulf %24, %26 : vector<4x32xf32>
    %30 = arith.addf %28, %29 : vector<4x32xf32>
    %31 = math.tanh %30 : vector<4x32xf32>
    %32 = arith.mulf %27, %31 : vector<4x32xf32>
    %33 = vector.extract_strided_slice %1 {offsets = [0, 1], sizes = [4, 1], strides = [1, 1]} : vector<4x8xf32> to vector<4x1xf32>
    %34 = vector.broadcast %33 : vector<4x1xf32> to vector<4x128xf32>
    %35 = vector.broadcast %2 : vector<1x128xf32> to vector<4x128xf32>
    %36 = arith.mulf %34, %35 : vector<4x128xf32>
    %37 = vector.broadcast %4 : vector<1x128xf32> to vector<4x128xf32>
    %38 = arith.addf %36, %37 : vector<4x128xf32>
    %cst_16 = arith.constant dense<0.000000e+00> : vector<4x128xf32>
    %39 = tpu.matmul %32, %3, %cst_16 {dimension_numbers = #tpu.dot_dimension_numbers<[1], [0], [0], [1], [0, 0, 1, 1], [], []>} : vector<4x32xf32>, vector<32x128xf32>, vector<4x128xf32> -> vector<4x128xf32>
    %40 = arith.addf %38, %39 : vector<4x128xf32>
    %41 = arith.negf %40 : vector<4x128xf32>
    %42 = math.exp %41 : vector<4x128xf32>
    %cst_17 = arith.constant 1.000000e+00 : f32
    %43 = vector.broadcast %cst_17 : f32 to vector<4x128xf32>
    %44 = arith.addf %43, %42 : vector<4x128xf32>
    %45 = arith.divf %43, %44 : vector<4x128xf32>
    %46 = math.tanh %40 : vector<4x128xf32>
    %47 = vector.extract_strided_slice %45 {offsets = [0, 0], sizes = [4, 32], strides = [1, 1]} : vector<4x128xf32> to vector<4x32xf32>
    %48 = vector.extract_strided_slice %45 {offsets = [0, 32], sizes = [4, 32], strides = [1, 1]} : vector<4x128xf32> to vector<4x32xf32>
    %49 = vector.extract_strided_slice %46 {offsets = [0, 64], sizes = [4, 32], strides = [1, 1]} : vector<4x128xf32> to vector<4x32xf32>
    %50 = vector.extract_strided_slice %45 {offsets = [0, 96], sizes = [4, 32], strides = [1, 1]} : vector<4x128xf32> to vector<4x32xf32>
    %51 = arith.mulf %48, %30 : vector<4x32xf32>
    %52 = arith.mulf %47, %49 : vector<4x32xf32>
    %53 = arith.addf %51, %52 : vector<4x32xf32>
    %54 = math.tanh %53 : vector<4x32xf32>
    %55 = arith.mulf %50, %54 : vector<4x32xf32>
    %56 = vector.extract_strided_slice %1 {offsets = [0, 2], sizes = [4, 1], strides = [1, 1]} : vector<4x8xf32> to vector<4x1xf32>
    %57 = vector.broadcast %56 : vector<4x1xf32> to vector<4x128xf32>
    %58 = vector.broadcast %2 : vector<1x128xf32> to vector<4x128xf32>
    %59 = arith.mulf %57, %58 : vector<4x128xf32>
    %60 = vector.broadcast %4 : vector<1x128xf32> to vector<4x128xf32>
    %61 = arith.addf %59, %60 : vector<4x128xf32>
    %cst_18 = arith.constant dense<0.000000e+00> : vector<4x128xf32>
    %62 = tpu.matmul %55, %3, %cst_18 {dimension_numbers = #tpu.dot_dimension_numbers<[1], [0], [0], [1], [0, 0, 1, 1], [], []>} : vector<4x32xf32>, vector<32x128xf32>, vector<4x128xf32> -> vector<4x128xf32>
    %63 = arith.addf %61, %62 : vector<4x128xf32>
    %64 = arith.negf %63 : vector<4x128xf32>
    %65 = math.exp %64 : vector<4x128xf32>
    %cst_19 = arith.constant 1.000000e+00 : f32
    %66 = vector.broadcast %cst_19 : f32 to vector<4x128xf32>
    %67 = arith.addf %66, %65 : vector<4x128xf32>
    %68 = arith.divf %66, %67 : vector<4x128xf32>
    %69 = math.tanh %63 : vector<4x128xf32>
    %70 = vector.extract_strided_slice %68 {offsets = [0, 0], sizes = [4, 32], strides = [1, 1]} : vector<4x128xf32> to vector<4x32xf32>
    %71 = vector.extract_strided_slice %68 {offsets = [0, 32], sizes = [4, 32], strides = [1, 1]} : vector<4x128xf32> to vector<4x32xf32>
    %72 = vector.extract_strided_slice %69 {offsets = [0, 64], sizes = [4, 32], strides = [1, 1]} : vector<4x128xf32> to vector<4x32xf32>
    %73 = vector.extract_strided_slice %68 {offsets = [0, 96], sizes = [4, 32], strides = [1, 1]} : vector<4x128xf32> to vector<4x32xf32>
    %74 = arith.mulf %71, %53 : vector<4x32xf32>
    %75 = arith.mulf %70, %72 : vector<4x32xf32>
    %76 = arith.addf %74, %75 : vector<4x32xf32>
    %77 = math.tanh %76 : vector<4x32xf32>
    %78 = arith.mulf %73, %77 : vector<4x32xf32>
    %79 = vector.extract_strided_slice %1 {offsets = [0, 3], sizes = [4, 1], strides = [1, 1]} : vector<4x8xf32> to vector<4x1xf32>
    %80 = vector.broadcast %79 : vector<4x1xf32> to vector<4x128xf32>
    %81 = vector.broadcast %2 : vector<1x128xf32> to vector<4x128xf32>
    %82 = arith.mulf %80, %81 : vector<4x128xf32>
    %83 = vector.broadcast %4 : vector<1x128xf32> to vector<4x128xf32>
    %84 = arith.addf %82, %83 : vector<4x128xf32>
    %cst_20 = arith.constant dense<0.000000e+00> : vector<4x128xf32>
    %85 = tpu.matmul %78, %3, %cst_20 {dimension_numbers = #tpu.dot_dimension_numbers<[1], [0], [0], [1], [0, 0, 1, 1], [], []>} : vector<4x32xf32>, vector<32x128xf32>, vector<4x128xf32> -> vector<4x128xf32>
    %86 = arith.addf %84, %85 : vector<4x128xf32>
    %87 = arith.negf %86 : vector<4x128xf32>
    %88 = math.exp %87 : vector<4x128xf32>
    %cst_21 = arith.constant 1.000000e+00 : f32
    %89 = vector.broadcast %cst_21 : f32 to vector<4x128xf32>
    %90 = arith.addf %89, %88 : vector<4x128xf32>
    %91 = arith.divf %89, %90 : vector<4x128xf32>
    %92 = math.tanh %86 : vector<4x128xf32>
    %93 = vector.extract_strided_slice %91 {offsets = [0, 0], sizes = [4, 32], strides = [1, 1]} : vector<4x128xf32> to vector<4x32xf32>
    %94 = vector.extract_strided_slice %91 {offsets = [0, 32], sizes = [4, 32], strides = [1, 1]} : vector<4x128xf32> to vector<4x32xf32>
    %95 = vector.extract_strided_slice %92 {offsets = [0, 64], sizes = [4, 32], strides = [1, 1]} : vector<4x128xf32> to vector<4x32xf32>
    %96 = vector.extract_strided_slice %91 {offsets = [0, 96], sizes = [4, 32], strides = [1, 1]} : vector<4x128xf32> to vector<4x32xf32>
    %97 = arith.mulf %94, %76 : vector<4x32xf32>
    %98 = arith.mulf %93, %95 : vector<4x32xf32>
    %99 = arith.addf %97, %98 : vector<4x32xf32>
    %100 = math.tanh %99 : vector<4x32xf32>
    %101 = arith.mulf %96, %100 : vector<4x32xf32>
    %102 = vector.extract_strided_slice %1 {offsets = [0, 4], sizes = [4, 1], strides = [1, 1]} : vector<4x8xf32> to vector<4x1xf32>
    %103 = vector.broadcast %102 : vector<4x1xf32> to vector<4x128xf32>
    %104 = vector.broadcast %2 : vector<1x128xf32> to vector<4x128xf32>
    %105 = arith.mulf %103, %104 : vector<4x128xf32>
    %106 = vector.broadcast %4 : vector<1x128xf32> to vector<4x128xf32>
    %107 = arith.addf %105, %106 : vector<4x128xf32>
    %cst_22 = arith.constant dense<0.000000e+00> : vector<4x128xf32>
    %108 = tpu.matmul %101, %3, %cst_22 {dimension_numbers = #tpu.dot_dimension_numbers<[1], [0], [0], [1], [0, 0, 1, 1], [], []>} : vector<4x32xf32>, vector<32x128xf32>, vector<4x128xf32> -> vector<4x128xf32>
    %109 = arith.addf %107, %108 : vector<4x128xf32>
    %110 = arith.negf %109 : vector<4x128xf32>
    %111 = math.exp %110 : vector<4x128xf32>
    %cst_23 = arith.constant 1.000000e+00 : f32
    %112 = vector.broadcast %cst_23 : f32 to vector<4x128xf32>
    %113 = arith.addf %112, %111 : vector<4x128xf32>
    %114 = arith.divf %112, %113 : vector<4x128xf32>
    %115 = math.tanh %109 : vector<4x128xf32>
    %116 = vector.extract_strided_slice %114 {offsets = [0, 0], sizes = [4, 32], strides = [1, 1]} : vector<4x128xf32> to vector<4x32xf32>
    %117 = vector.extract_strided_slice %114 {offsets = [0, 32], sizes = [4, 32], strides = [1, 1]} : vector<4x128xf32> to vector<4x32xf32>
    %118 = vector.extract_strided_slice %115 {offsets = [0, 64], sizes = [4, 32], strides = [1, 1]} : vector<4x128xf32> to vector<4x32xf32>
    %119 = vector.extract_strided_slice %114 {offsets = [0, 96], sizes = [4, 32], strides = [1, 1]} : vector<4x128xf32> to vector<4x32xf32>
    %120 = arith.mulf %117, %99 : vector<4x32xf32>
    %121 = arith.mulf %116, %118 : vector<4x32xf32>
    %122 = arith.addf %120, %121 : vector<4x32xf32>
    %123 = math.tanh %122 : vector<4x32xf32>
    %124 = arith.mulf %119, %123 : vector<4x32xf32>
    %125 = vector.extract_strided_slice %1 {offsets = [0, 5], sizes = [4, 1], strides = [1, 1]} : vector<4x8xf32> to vector<4x1xf32>
    %126 = vector.broadcast %125 : vector<4x1xf32> to vector<4x128xf32>
    %127 = vector.broadcast %2 : vector<1x128xf32> to vector<4x128xf32>
    %128 = arith.mulf %126, %127 : vector<4x128xf32>
    %129 = vector.broadcast %4 : vector<1x128xf32> to vector<4x128xf32>
    %130 = arith.addf %128, %129 : vector<4x128xf32>
    %cst_24 = arith.constant dense<0.000000e+00> : vector<4x128xf32>
    %131 = tpu.matmul %124, %3, %cst_24 {dimension_numbers = #tpu.dot_dimension_numbers<[1], [0], [0], [1], [0, 0, 1, 1], [], []>} : vector<4x32xf32>, vector<32x128xf32>, vector<4x128xf32> -> vector<4x128xf32>
    %132 = arith.addf %130, %131 : vector<4x128xf32>
    %133 = arith.negf %132 : vector<4x128xf32>
    %134 = math.exp %133 : vector<4x128xf32>
    %cst_25 = arith.constant 1.000000e+00 : f32
    %135 = vector.broadcast %cst_25 : f32 to vector<4x128xf32>
    %136 = arith.addf %135, %134 : vector<4x128xf32>
    %137 = arith.divf %135, %136 : vector<4x128xf32>
    %138 = math.tanh %132 : vector<4x128xf32>
    %139 = vector.extract_strided_slice %137 {offsets = [0, 0], sizes = [4, 32], strides = [1, 1]} : vector<4x128xf32> to vector<4x32xf32>
    %140 = vector.extract_strided_slice %137 {offsets = [0, 32], sizes = [4, 32], strides = [1, 1]} : vector<4x128xf32> to vector<4x32xf32>
    %141 = vector.extract_strided_slice %138 {offsets = [0, 64], sizes = [4, 32], strides = [1, 1]} : vector<4x128xf32> to vector<4x32xf32>
    %142 = vector.extract_strided_slice %137 {offsets = [0, 96], sizes = [4, 32], strides = [1, 1]} : vector<4x128xf32> to vector<4x32xf32>
    %143 = arith.mulf %140, %122 : vector<4x32xf32>
    %144 = arith.mulf %139, %141 : vector<4x32xf32>
    %145 = arith.addf %143, %144 : vector<4x32xf32>
    %146 = math.tanh %145 : vector<4x32xf32>
    %147 = arith.mulf %142, %146 : vector<4x32xf32>
    %148 = vector.extract_strided_slice %1 {offsets = [0, 6], sizes = [4, 1], strides = [1, 1]} : vector<4x8xf32> to vector<4x1xf32>
    %149 = vector.broadcast %148 : vector<4x1xf32> to vector<4x128xf32>
    %150 = vector.broadcast %2 : vector<1x128xf32> to vector<4x128xf32>
    %151 = arith.mulf %149, %150 : vector<4x128xf32>
    %152 = vector.broadcast %4 : vector<1x128xf32> to vector<4x128xf32>
    %153 = arith.addf %151, %152 : vector<4x128xf32>
    %cst_26 = arith.constant dense<0.000000e+00> : vector<4x128xf32>
    %154 = tpu.matmul %147, %3, %cst_26 {dimension_numbers = #tpu.dot_dimension_numbers<[1], [0], [0], [1], [0, 0, 1, 1], [], []>} : vector<4x32xf32>, vector<32x128xf32>, vector<4x128xf32> -> vector<4x128xf32>
    %155 = arith.addf %153, %154 : vector<4x128xf32>
    %156 = arith.negf %155 : vector<4x128xf32>
    %157 = math.exp %156 : vector<4x128xf32>
    %cst_27 = arith.constant 1.000000e+00 : f32
    %158 = vector.broadcast %cst_27 : f32 to vector<4x128xf32>
    %159 = arith.addf %158, %157 : vector<4x128xf32>
    %160 = arith.divf %158, %159 : vector<4x128xf32>
    %161 = math.tanh %155 : vector<4x128xf32>
    %162 = vector.extract_strided_slice %160 {offsets = [0, 0], sizes = [4, 32], strides = [1, 1]} : vector<4x128xf32> to vector<4x32xf32>
    %163 = vector.extract_strided_slice %160 {offsets = [0, 32], sizes = [4, 32], strides = [1, 1]} : vector<4x128xf32> to vector<4x32xf32>
    %164 = vector.extract_strided_slice %161 {offsets = [0, 64], sizes = [4, 32], strides = [1, 1]} : vector<4x128xf32> to vector<4x32xf32>
    %165 = vector.extract_strided_slice %160 {offsets = [0, 96], sizes = [4, 32], strides = [1, 1]} : vector<4x128xf32> to vector<4x32xf32>
    %166 = arith.mulf %163, %145 : vector<4x32xf32>
    %167 = arith.mulf %162, %164 : vector<4x32xf32>
    %168 = arith.addf %166, %167 : vector<4x32xf32>
    %169 = math.tanh %168 : vector<4x32xf32>
    %170 = arith.mulf %165, %169 : vector<4x32xf32>
    %171 = vector.extract_strided_slice %1 {offsets = [0, 7], sizes = [4, 1], strides = [1, 1]} : vector<4x8xf32> to vector<4x1xf32>
    %172 = vector.broadcast %171 : vector<4x1xf32> to vector<4x128xf32>
    %173 = vector.broadcast %2 : vector<1x128xf32> to vector<4x128xf32>
    %174 = arith.mulf %172, %173 : vector<4x128xf32>
    %175 = vector.broadcast %4 : vector<1x128xf32> to vector<4x128xf32>
    %176 = arith.addf %174, %175 : vector<4x128xf32>
    %cst_28 = arith.constant dense<0.000000e+00> : vector<4x128xf32>
    %177 = tpu.matmul %170, %3, %cst_28 {dimension_numbers = #tpu.dot_dimension_numbers<[1], [0], [0], [1], [0, 0, 1, 1], [], []>} : vector<4x32xf32>, vector<32x128xf32>, vector<4x128xf32> -> vector<4x128xf32>
    %178 = arith.addf %176, %177 : vector<4x128xf32>
    %179 = arith.negf %178 : vector<4x128xf32>
    %180 = math.exp %179 : vector<4x128xf32>
    %cst_29 = arith.constant 1.000000e+00 : f32
    %181 = vector.broadcast %cst_29 : f32 to vector<4x128xf32>
    %182 = arith.addf %181, %180 : vector<4x128xf32>
    %183 = arith.divf %181, %182 : vector<4x128xf32>
    %184 = math.tanh %178 : vector<4x128xf32>
    %185 = vector.extract_strided_slice %183 {offsets = [0, 0], sizes = [4, 32], strides = [1, 1]} : vector<4x128xf32> to vector<4x32xf32>
    %186 = vector.extract_strided_slice %183 {offsets = [0, 32], sizes = [4, 32], strides = [1, 1]} : vector<4x128xf32> to vector<4x32xf32>
    %187 = vector.extract_strided_slice %184 {offsets = [0, 64], sizes = [4, 32], strides = [1, 1]} : vector<4x128xf32> to vector<4x32xf32>
    %188 = vector.extract_strided_slice %183 {offsets = [0, 96], sizes = [4, 32], strides = [1, 1]} : vector<4x128xf32> to vector<4x32xf32>
    %189 = arith.mulf %186, %168 : vector<4x32xf32>
    %190 = arith.mulf %185, %187 : vector<4x32xf32>
    %191 = arith.addf %189, %190 : vector<4x32xf32>
    %192 = math.tanh %191 : vector<4x32xf32>
    %193 = arith.mulf %188, %192 : vector<4x32xf32>
    %cst_30 = arith.constant dense<0.000000e+00> : vector<4x128xf32>
    %194 = tpu.matmul %193, %5, %cst_30 {dimension_numbers = #tpu.dot_dimension_numbers<[1], [0], [0], [1], [0, 0, 1, 1], [], []>} : vector<4x32xf32>, vector<32x128xf32>, vector<4x128xf32> -> vector<4x128xf32>
    %195 = vector.broadcast %7 : vector<1x128xf32> to vector<4x128xf32>
    %196 = arith.addf %194, %195 : vector<4x128xf32>
    %cst_31 = arith.constant 0.000000e+00 : f32
    %197 = vector.broadcast %cst_31 : f32 to vector<4x32xf32>
    %cst_32 = arith.constant 0.000000e+00 : f32
    %198 = vector.broadcast %cst_32 : f32 to vector<4x32xf32>
    %cst_33 = arith.constant dense<0.000000e+00> : vector<4x128xf32>
    %199 = tpu.matmul %197, %6, %cst_33 {dimension_numbers = #tpu.dot_dimension_numbers<[1], [0], [0], [1], [0, 0, 1, 1], [], []>} : vector<4x32xf32>, vector<32x128xf32>, vector<4x128xf32> -> vector<4x128xf32>
    %200 = arith.addf %196, %199 : vector<4x128xf32>
    %201 = arith.negf %200 : vector<4x128xf32>
    %202 = math.exp %201 : vector<4x128xf32>
    %cst_34 = arith.constant 1.000000e+00 : f32
    %203 = vector.broadcast %cst_34 : f32 to vector<4x128xf32>
    %204 = arith.addf %203, %202 : vector<4x128xf32>
    %205 = arith.divf %203, %204 : vector<4x128xf32>
    %206 = math.tanh %200 : vector<4x128xf32>
    %207 = vector.extract_strided_slice %205 {offsets = [0, 0], sizes = [4, 32], strides = [1, 1]} : vector<4x128xf32> to vector<4x32xf32>
    %208 = vector.extract_strided_slice %205 {offsets = [0, 32], sizes = [4, 32], strides = [1, 1]} : vector<4x128xf32> to vector<4x32xf32>
    %209 = vector.extract_strided_slice %206 {offsets = [0, 64], sizes = [4, 32], strides = [1, 1]} : vector<4x128xf32> to vector<4x32xf32>
    %210 = vector.extract_strided_slice %205 {offsets = [0, 96], sizes = [4, 32], strides = [1, 1]} : vector<4x128xf32> to vector<4x32xf32>
    %211 = arith.mulf %208, %198 : vector<4x32xf32>
    %212 = arith.mulf %207, %209 : vector<4x32xf32>
    %213 = arith.addf %211, %212 : vector<4x32xf32>
    %214 = math.tanh %213 : vector<4x32xf32>
    %215 = arith.mulf %210, %214 : vector<4x32xf32>
    %c0_35 = arith.constant 0 : index
    %c0_36 = arith.constant 0 : index
    %c0_37 = arith.constant 0 : index
    %216 = vector.load %arg10[%c0_35, %c0_36, %c0_37] : memref<4x49x32xf32, #tpu.memory_space<vmem>>, vector<4x1x32xf32>
    %217 = vector.shape_cast %216 : vector<4x1x32xf32> to vector<4x32xf32>
    %218 = vector.shape_cast %215 : vector<4x32xf32> to vector<4x1x32xf32>
    tpu.vector_store %arg10[%c0_35, %c0_36, %c0_37], %218 {strides = array<i32>} : memref<4x49x32xf32, #tpu.memory_space<vmem>>, vector<4x1x32xf32>,
    %cst_38 = arith.constant dense<0.000000e+00> : vector<4x128xf32>
    %219 = tpu.matmul %215, %6, %cst_38 {dimension_numbers = #tpu.dot_dimension_numbers<[1], [0], [0], [1], [0, 0, 1, 1], [], []>} : vector<4x32xf32>, vector<32x128xf32>, vector<4x128xf32> -> vector<4x128xf32>
    %220 = arith.addf %196, %219 : vector<4x128xf32>
    %221 = arith.negf %220 : vector<4x128xf32>
    %222 = math.exp %221 : vector<4x128xf32>
    %cst_39 = arith.constant 1.000000e+00 : f32
    %223 = vector.broadcast %cst_39 : f32 to vector<4x128xf32>
    %224 = arith.addf %223, %222 : vector<4x128xf32>
    %225 = arith.divf %223, %224 : vector<4x128xf32>
    %226 = math.tanh %220 : vector<4x128xf32>
    %227 = vector.extract_strided_slice %225 {offsets = [0, 0], sizes = [4, 32], strides = [1, 1]} : vector<4x128xf32> to vector<4x32xf32>
    %228 = vector.extract_strided_slice %225 {offsets = [0, 32], sizes = [4, 32], strides = [1, 1]} : vector<4x128xf32> to vector<4x32xf32>
    %229 = vector.extract_strided_slice %226 {offsets = [0, 64], sizes = [4, 32], strides = [1, 1]} : vector<4x128xf32> to vector<4x32xf32>
    %230 = vector.extract_strided_slice %225 {offsets = [0, 96], sizes = [4, 32], strides = [1, 1]} : vector<4x128xf32> to vector<4x32xf32>
    %231 = arith.mulf %228, %213 : vector<4x32xf32>
    %232 = arith.mulf %227, %229 : vector<4x32xf32>
    %233 = arith.addf %231, %232 : vector<4x32xf32>
    %234 = math.tanh %233 : vector<4x32xf32>
    %235 = arith.mulf %230, %234 : vector<4x32xf32>
    %c0_40 = arith.constant 0 : index
    %c1 = arith.constant 1 : index
    %c0_41 = arith.constant 0 : index
    %236 = vector.load %arg10[%c0_40, %c1, %c0_41] : memref<4x49x32xf32, #tpu.memory_space<vmem>>, vector<4x1x32xf32>
    %237 = vector.shape_cast %236 : vector<4x1x32xf32> to vector<4x32xf32>
    %238 = vector.shape_cast %235 : vector<4x32xf32> to vector<4x1x32xf32>
    tpu.vector_store %arg10[%c0_40, %c1, %c0_41], %238 {strides = array<i32>} : memref<4x49x32xf32, #tpu.memory_space<vmem>>, vector<4x1x32xf32>,
    %cst_42 = arith.constant dense<0.000000e+00> : vector<4x128xf32>
    %239 = tpu.matmul %235, %6, %cst_42 {dimension_numbers = #tpu.dot_dimension_numbers<[1], [0], [0], [1], [0, 0, 1, 1], [], []>} : vector<4x32xf32>, vector<32x128xf32>, vector<4x128xf32> -> vector<4x128xf32>
    %240 = arith.addf %196, %239 : vector<4x128xf32>
    %241 = arith.negf %240 : vector<4x128xf32>
    %242 = math.exp %241 : vector<4x128xf32>
    %cst_43 = arith.constant 1.000000e+00 : f32
    %243 = vector.broadcast %cst_43 : f32 to vector<4x128xf32>
    %244 = arith.addf %243, %242 : vector<4x128xf32>
    %245 = arith.divf %243, %244 : vector<4x128xf32>
    %246 = math.tanh %240 : vector<4x128xf32>
    %247 = vector.extract_strided_slice %245 {offsets = [0, 0], sizes = [4, 32], strides = [1, 1]} : vector<4x128xf32> to vector<4x32xf32>
    %248 = vector.extract_strided_slice %245 {offsets = [0, 32], sizes = [4, 32], strides = [1, 1]} : vector<4x128xf32> to vector<4x32xf32>
    %249 = vector.extract_strided_slice %246 {offsets = [0, 64], sizes = [4, 32], strides = [1, 1]} : vector<4x128xf32> to vector<4x32xf32>
    %250 = vector.extract_strided_slice %245 {offsets = [0, 96], sizes = [4, 32], strides = [1, 1]} : vector<4x128xf32> to vector<4x32xf32>
    %251 = arith.mulf %248, %233 : vector<4x32xf32>
    %252 = arith.mulf %247, %249 : vector<4x32xf32>
    %253 = arith.addf %251, %252 : vector<4x32xf32>
    %254 = math.tanh %253 : vector<4x32xf32>
    %255 = arith.mulf %250, %254 : vector<4x32xf32>
    %c0_44 = arith.constant 0 : index
    %c2 = arith.constant 2 : index
    %c0_45 = arith.constant 0 : index
    %256 = vector.load %arg10[%c0_44, %c2, %c0_45] : memref<4x49x32xf32, #tpu.memory_space<vmem>>, vector<4x1x32xf32>
    %257 = vector.shape_cast %256 : vector<4x1x32xf32> to vector<4x32xf32>
    %258 = vector.shape_cast %255 : vector<4x32xf32> to vector<4x1x32xf32>
    tpu.vector_store %arg10[%c0_44, %c2, %c0_45], %258 {strides = array<i32>} : memref<4x49x32xf32, #tpu.memory_space<vmem>>, vector<4x1x32xf32>,
    %cst_46 = arith.constant dense<0.000000e+00> : vector<4x128xf32>
    %259 = tpu.matmul %255, %6, %cst_46 {dimension_numbers = #tpu.dot_dimension_numbers<[1], [0], [0], [1], [0, 0, 1, 1], [], []>} : vector<4x32xf32>, vector<32x128xf32>, vector<4x128xf32> -> vector<4x128xf32>
    %260 = arith.addf %196, %259 : vector<4x128xf32>
    %261 = arith.negf %260 : vector<4x128xf32>
    %262 = math.exp %261 : vector<4x128xf32>
    %cst_47 = arith.constant 1.000000e+00 : f32
    %263 = vector.broadcast %cst_47 : f32 to vector<4x128xf32>
    %264 = arith.addf %263, %262 : vector<4x128xf32>
    %265 = arith.divf %263, %264 : vector<4x128xf32>
    %266 = math.tanh %260 : vector<4x128xf32>
    %267 = vector.extract_strided_slice %265 {offsets = [0, 0], sizes = [4, 32], strides = [1, 1]} : vector<4x128xf32> to vector<4x32xf32>
    %268 = vector.extract_strided_slice %265 {offsets = [0, 32], sizes = [4, 32], strides = [1, 1]} : vector<4x128xf32> to vector<4x32xf32>
    %269 = vector.extract_strided_slice %266 {offsets = [0, 64], sizes = [4, 32], strides = [1, 1]} : vector<4x128xf32> to vector<4x32xf32>
    %270 = vector.extract_strided_slice %265 {offsets = [0, 96], sizes = [4, 32], strides = [1, 1]} : vector<4x128xf32> to vector<4x32xf32>
    %271 = arith.mulf %268, %253 : vector<4x32xf32>
    %272 = arith.mulf %267, %269 : vector<4x32xf32>
    %273 = arith.addf %271, %272 : vector<4x32xf32>
    %274 = math.tanh %273 : vector<4x32xf32>
    %275 = arith.mulf %270, %274 : vector<4x32xf32>
    %c0_48 = arith.constant 0 : index
    %c3 = arith.constant 3 : index
    %c0_49 = arith.constant 0 : index
    %276 = vector.load %arg10[%c0_48, %c3, %c0_49] : memref<4x49x32xf32, #tpu.memory_space<vmem>>, vector<4x1x32xf32>
    %277 = vector.shape_cast %276 : vector<4x1x32xf32> to vector<4x32xf32>
    %278 = vector.shape_cast %275 : vector<4x32xf32> to vector<4x1x32xf32>
    tpu.vector_store %arg10[%c0_48, %c3, %c0_49], %278 {strides = array<i32>} : memref<4x49x32xf32, #tpu.memory_space<vmem>>, vector<4x1x32xf32>,
    %cst_50 = arith.constant dense<0.000000e+00> : vector<4x128xf32>
    %279 = tpu.matmul %275, %6, %cst_50 {dimension_numbers = #tpu.dot_dimension_numbers<[1], [0], [0], [1], [0, 0, 1, 1], [], []>} : vector<4x32xf32>, vector<32x128xf32>, vector<4x128xf32> -> vector<4x128xf32>
    %280 = arith.addf %196, %279 : vector<4x128xf32>
    %281 = arith.negf %280 : vector<4x128xf32>
    %282 = math.exp %281 : vector<4x128xf32>
    %cst_51 = arith.constant 1.000000e+00 : f32
    %283 = vector.broadcast %cst_51 : f32 to vector<4x128xf32>
    %284 = arith.addf %283, %282 : vector<4x128xf32>
    %285 = arith.divf %283, %284 : vector<4x128xf32>
    %286 = math.tanh %280 : vector<4x128xf32>
    %287 = vector.extract_strided_slice %285 {offsets = [0, 0], sizes = [4, 32], strides = [1, 1]} : vector<4x128xf32> to vector<4x32xf32>
    %288 = vector.extract_strided_slice %285 {offsets = [0, 32], sizes = [4, 32], strides = [1, 1]} : vector<4x128xf32> to vector<4x32xf32>
    %289 = vector.extract_strided_slice %286 {offsets = [0, 64], sizes = [4, 32], strides = [1, 1]} : vector<4x128xf32> to vector<4x32xf32>
    %290 = vector.extract_strided_slice %285 {offsets = [0, 96], sizes = [4, 32], strides = [1, 1]} : vector<4x128xf32> to vector<4x32xf32>
    %291 = arith.mulf %288, %273 : vector<4x32xf32>
    %292 = arith.mulf %287, %289 : vector<4x32xf32>
    %293 = arith.addf %291, %292 : vector<4x32xf32>
    %294 = math.tanh %293 : vector<4x32xf32>
    %295 = arith.mulf %290, %294 : vector<4x32xf32>
    %c0_52 = arith.constant 0 : index
    %c4 = arith.constant 4 : index
    %c0_53 = arith.constant 0 : index
    %296 = vector.load %arg10[%c0_52, %c4, %c0_53] : memref<4x49x32xf32, #tpu.memory_space<vmem>>, vector<4x1x32xf32>
    %297 = vector.shape_cast %296 : vector<4x1x32xf32> to vector<4x32xf32>
    %298 = vector.shape_cast %295 : vector<4x32xf32> to vector<4x1x32xf32>
    tpu.vector_store %arg10[%c0_52, %c4, %c0_53], %298 {strides = array<i32>} : memref<4x49x32xf32, #tpu.memory_space<vmem>>, vector<4x1x32xf32>,
    %cst_54 = arith.constant dense<0.000000e+00> : vector<4x128xf32>
    %299 = tpu.matmul %295, %6, %cst_54 {dimension_numbers = #tpu.dot_dimension_numbers<[1], [0], [0], [1], [0, 0, 1, 1], [], []>} : vector<4x32xf32>, vector<32x128xf32>, vector<4x128xf32> -> vector<4x128xf32>
    %300 = arith.addf %196, %299 : vector<4x128xf32>
    %301 = arith.negf %300 : vector<4x128xf32>
    %302 = math.exp %301 : vector<4x128xf32>
    %cst_55 = arith.constant 1.000000e+00 : f32
    %303 = vector.broadcast %cst_55 : f32 to vector<4x128xf32>
    %304 = arith.addf %303, %302 : vector<4x128xf32>
    %305 = arith.divf %303, %304 : vector<4x128xf32>
    %306 = math.tanh %300 : vector<4x128xf32>
    %307 = vector.extract_strided_slice %305 {offsets = [0, 0], sizes = [4, 32], strides = [1, 1]} : vector<4x128xf32> to vector<4x32xf32>
    %308 = vector.extract_strided_slice %305 {offsets = [0, 32], sizes = [4, 32], strides = [1, 1]} : vector<4x128xf32> to vector<4x32xf32>
    %309 = vector.extract_strided_slice %306 {offsets = [0, 64], sizes = [4, 32], strides = [1, 1]} : vector<4x128xf32> to vector<4x32xf32>
    %310 = vector.extract_strided_slice %305 {offsets = [0, 96], sizes = [4, 32], strides = [1, 1]} : vector<4x128xf32> to vector<4x32xf32>
    %311 = arith.mulf %308, %293 : vector<4x32xf32>
    %312 = arith.mulf %307, %309 : vector<4x32xf32>
    %313 = arith.addf %311, %312 : vector<4x32xf32>
    %314 = math.tanh %313 : vector<4x32xf32>
    %315 = arith.mulf %310, %314 : vector<4x32xf32>
    %c0_56 = arith.constant 0 : index
    %c5 = arith.constant 5 : index
    %c0_57 = arith.constant 0 : index
    %316 = vector.load %arg10[%c0_56, %c5, %c0_57] : memref<4x49x32xf32, #tpu.memory_space<vmem>>, vector<4x1x32xf32>
    %317 = vector.shape_cast %316 : vector<4x1x32xf32> to vector<4x32xf32>
    %318 = vector.shape_cast %315 : vector<4x32xf32> to vector<4x1x32xf32>
    tpu.vector_store %arg10[%c0_56, %c5, %c0_57], %318 {strides = array<i32>} : memref<4x49x32xf32, #tpu.memory_space<vmem>>, vector<4x1x32xf32>,
    %cst_58 = arith.constant dense<0.000000e+00> : vector<4x128xf32>
    %319 = tpu.matmul %315, %6, %cst_58 {dimension_numbers = #tpu.dot_dimension_numbers<[1], [0], [0], [1], [0, 0, 1, 1], [], []>} : vector<4x32xf32>, vector<32x128xf32>, vector<4x128xf32> -> vector<4x128xf32>
    %320 = arith.addf %196, %319 : vector<4x128xf32>
    %321 = arith.negf %320 : vector<4x128xf32>
    %322 = math.exp %321 : vector<4x128xf32>
    %cst_59 = arith.constant 1.000000e+00 : f32
    %323 = vector.broadcast %cst_59 : f32 to vector<4x128xf32>
    %324 = arith.addf %323, %322 : vector<4x128xf32>
    %325 = arith.divf %323, %324 : vector<4x128xf32>
    %326 = math.tanh %320 : vector<4x128xf32>
    %327 = vector.extract_strided_slice %325 {offsets = [0, 0], sizes = [4, 32], strides = [1, 1]} : vector<4x128xf32> to vector<4x32xf32>
    %328 = vector.extract_strided_slice %325 {offsets = [0, 32], sizes = [4, 32], strides = [1, 1]} : vector<4x128xf32> to vector<4x32xf32>
    %329 = vector.extract_strided_slice %326 {offsets = [0, 64], sizes = [4, 32], strides = [1, 1]} : vector<4x128xf32> to vector<4x32xf32>
    %330 = vector.extract_strided_slice %325 {offsets = [0, 96], sizes = [4, 32], strides = [1, 1]} : vector<4x128xf32> to vector<4x32xf32>
    %331 = arith.mulf %328, %313 : vector<4x32xf32>
    %332 = arith.mulf %327, %329 : vector<4x32xf32>
    %333 = arith.addf %331, %332 : vector<4x32xf32>
    %334 = math.tanh %333 : vector<4x32xf32>
    %335 = arith.mulf %330, %334 : vector<4x32xf32>
    %c0_60 = arith.constant 0 : index
    %c6 = arith.constant 6 : index
    %c0_61 = arith.constant 0 : index
    %336 = vector.load %arg10[%c0_60, %c6, %c0_61] : memref<4x49x32xf32, #tpu.memory_space<vmem>>, vector<4x1x32xf32>
    %337 = vector.shape_cast %336 : vector<4x1x32xf32> to vector<4x32xf32>
    %338 = vector.shape_cast %335 : vector<4x32xf32> to vector<4x1x32xf32>
    tpu.vector_store %arg10[%c0_60, %c6, %c0_61], %338 {strides = array<i32>} : memref<4x49x32xf32, #tpu.memory_space<vmem>>, vector<4x1x32xf32>,
    %cst_62 = arith.constant dense<0.000000e+00> : vector<4x128xf32>
    %339 = tpu.matmul %335, %6, %cst_62 {dimension_numbers = #tpu.dot_dimension_numbers<[1], [0], [0], [1], [0, 0, 1, 1], [], []>} : vector<4x32xf32>, vector<32x128xf32>, vector<4x128xf32> -> vector<4x128xf32>
    %340 = arith.addf %196, %339 : vector<4x128xf32>
    %341 = arith.negf %340 : vector<4x128xf32>
    %342 = math.exp %341 : vector<4x128xf32>
    %cst_63 = arith.constant 1.000000e+00 : f32
    %343 = vector.broadcast %cst_63 : f32 to vector<4x128xf32>
    %344 = arith.addf %343, %342 : vector<4x128xf32>
    %345 = arith.divf %343, %344 : vector<4x128xf32>
    %346 = math.tanh %340 : vector<4x128xf32>
    %347 = vector.extract_strided_slice %345 {offsets = [0, 0], sizes = [4, 32], strides = [1, 1]} : vector<4x128xf32> to vector<4x32xf32>
    %348 = vector.extract_strided_slice %345 {offsets = [0, 32], sizes = [4, 32], strides = [1, 1]} : vector<4x128xf32> to vector<4x32xf32>
    %349 = vector.extract_strided_slice %346 {offsets = [0, 64], sizes = [4, 32], strides = [1, 1]} : vector<4x128xf32> to vector<4x32xf32>
    %350 = vector.extract_strided_slice %345 {offsets = [0, 96], sizes = [4, 32], strides = [1, 1]} : vector<4x128xf32> to vector<4x32xf32>
    %351 = arith.mulf %348, %333 : vector<4x32xf32>
    %352 = arith.mulf %347, %349 : vector<4x32xf32>
    %353 = arith.addf %351, %352 : vector<4x32xf32>
    %354 = math.tanh %353 : vector<4x32xf32>
    %355 = arith.mulf %350, %354 : vector<4x32xf32>
    %c0_64 = arith.constant 0 : index
    %c7 = arith.constant 7 : index
    %c0_65 = arith.constant 0 : index
    %356 = vector.load %arg10[%c0_64, %c7, %c0_65] : memref<4x49x32xf32, #tpu.memory_space<vmem>>, vector<4x1x32xf32>
    %357 = vector.shape_cast %356 : vector<4x1x32xf32> to vector<4x32xf32>
    %358 = vector.shape_cast %355 : vector<4x32xf32> to vector<4x1x32xf32>
    tpu.vector_store %arg10[%c0_64, %c7, %c0_65], %358 {strides = array<i32>} : memref<4x49x32xf32, #tpu.memory_space<vmem>>, vector<4x1x32xf32>,
    %cst_66 = arith.constant dense<0.000000e+00> : vector<4x128xf32>
    %359 = tpu.matmul %355, %6, %cst_66 {dimension_numbers = #tpu.dot_dimension_numbers<[1], [0], [0], [1], [0, 0, 1, 1], [], []>} : vector<4x32xf32>, vector<32x128xf32>, vector<4x128xf32> -> vector<4x128xf32>
    %360 = arith.addf %196, %359 : vector<4x128xf32>
    %361 = arith.negf %360 : vector<4x128xf32>
    %362 = math.exp %361 : vector<4x128xf32>
    %cst_67 = arith.constant 1.000000e+00 : f32
    %363 = vector.broadcast %cst_67 : f32 to vector<4x128xf32>
    %364 = arith.addf %363, %362 : vector<4x128xf32>
    %365 = arith.divf %363, %364 : vector<4x128xf32>
    %366 = math.tanh %360 : vector<4x128xf32>
    %367 = vector.extract_strided_slice %365 {offsets = [0, 0], sizes = [4, 32], strides = [1, 1]} : vector<4x128xf32> to vector<4x32xf32>
    %368 = vector.extract_strided_slice %365 {offsets = [0, 32], sizes = [4, 32], strides = [1, 1]} : vector<4x128xf32> to vector<4x32xf32>
    %369 = vector.extract_strided_slice %366 {offsets = [0, 64], sizes = [4, 32], strides = [1, 1]} : vector<4x128xf32> to vector<4x32xf32>
    %370 = vector.extract_strided_slice %365 {offsets = [0, 96], sizes = [4, 32], strides = [1, 1]} : vector<4x128xf32> to vector<4x32xf32>
    %371 = arith.mulf %368, %353 : vector<4x32xf32>
    %372 = arith.mulf %367, %369 : vector<4x32xf32>
    %373 = arith.addf %371, %372 : vector<4x32xf32>
    %374 = math.tanh %373 : vector<4x32xf32>
    %375 = arith.mulf %370, %374 : vector<4x32xf32>
    %c0_68 = arith.constant 0 : index
    %c8 = arith.constant 8 : index
    %c0_69 = arith.constant 0 : index
    %376 = vector.load %arg10[%c0_68, %c8, %c0_69] : memref<4x49x32xf32, #tpu.memory_space<vmem>>, vector<4x1x32xf32>
    %377 = vector.shape_cast %376 : vector<4x1x32xf32> to vector<4x32xf32>
    %378 = vector.shape_cast %375 : vector<4x32xf32> to vector<4x1x32xf32>
    tpu.vector_store %arg10[%c0_68, %c8, %c0_69], %378 {strides = array<i32>} : memref<4x49x32xf32, #tpu.memory_space<vmem>>, vector<4x1x32xf32>,
    %cst_70 = arith.constant dense<0.000000e+00> : vector<4x128xf32>
    %379 = tpu.matmul %375, %6, %cst_70 {dimension_numbers = #tpu.dot_dimension_numbers<[1], [0], [0], [1], [0, 0, 1, 1], [], []>} : vector<4x32xf32>, vector<32x128xf32>, vector<4x128xf32> -> vector<4x128xf32>
    %380 = arith.addf %196, %379 : vector<4x128xf32>
    %381 = arith.negf %380 : vector<4x128xf32>
    %382 = math.exp %381 : vector<4x128xf32>
    %cst_71 = arith.constant 1.000000e+00 : f32
    %383 = vector.broadcast %cst_71 : f32 to vector<4x128xf32>
    %384 = arith.addf %383, %382 : vector<4x128xf32>
    %385 = arith.divf %383, %384 : vector<4x128xf32>
    %386 = math.tanh %380 : vector<4x128xf32>
    %387 = vector.extract_strided_slice %385 {offsets = [0, 0], sizes = [4, 32], strides = [1, 1]} : vector<4x128xf32> to vector<4x32xf32>
    %388 = vector.extract_strided_slice %385 {offsets = [0, 32], sizes = [4, 32], strides = [1, 1]} : vector<4x128xf32> to vector<4x32xf32>
    %389 = vector.extract_strided_slice %386 {offsets = [0, 64], sizes = [4, 32], strides = [1, 1]} : vector<4x128xf32> to vector<4x32xf32>
    %390 = vector.extract_strided_slice %385 {offsets = [0, 96], sizes = [4, 32], strides = [1, 1]} : vector<4x128xf32> to vector<4x32xf32>
    %391 = arith.mulf %388, %373 : vector<4x32xf32>
    %392 = arith.mulf %387, %389 : vector<4x32xf32>
    %393 = arith.addf %391, %392 : vector<4x32xf32>
    %394 = math.tanh %393 : vector<4x32xf32>
    %395 = arith.mulf %390, %394 : vector<4x32xf32>
    %c0_72 = arith.constant 0 : index
    %c9 = arith.constant 9 : index
    %c0_73 = arith.constant 0 : index
    %396 = vector.load %arg10[%c0_72, %c9, %c0_73] : memref<4x49x32xf32, #tpu.memory_space<vmem>>, vector<4x1x32xf32>
    %397 = vector.shape_cast %396 : vector<4x1x32xf32> to vector<4x32xf32>
    %398 = vector.shape_cast %395 : vector<4x32xf32> to vector<4x1x32xf32>
    tpu.vector_store %arg10[%c0_72, %c9, %c0_73], %398 {strides = array<i32>} : memref<4x49x32xf32, #tpu.memory_space<vmem>>, vector<4x1x32xf32>,
    %cst_74 = arith.constant dense<0.000000e+00> : vector<4x128xf32>
    %399 = tpu.matmul %395, %6, %cst_74 {dimension_numbers = #tpu.dot_dimension_numbers<[1], [0], [0], [1], [0, 0, 1, 1], [], []>} : vector<4x32xf32>, vector<32x128xf32>, vector<4x128xf32> -> vector<4x128xf32>
    %400 = arith.addf %196, %399 : vector<4x128xf32>
    %401 = arith.negf %400 : vector<4x128xf32>
    %402 = math.exp %401 : vector<4x128xf32>
    %cst_75 = arith.constant 1.000000e+00 : f32
    %403 = vector.broadcast %cst_75 : f32 to vector<4x128xf32>
    %404 = arith.addf %403, %402 : vector<4x128xf32>
    %405 = arith.divf %403, %404 : vector<4x128xf32>
    %406 = math.tanh %400 : vector<4x128xf32>
    %407 = vector.extract_strided_slice %405 {offsets = [0, 0], sizes = [4, 32], strides = [1, 1]} : vector<4x128xf32> to vector<4x32xf32>
    %408 = vector.extract_strided_slice %405 {offsets = [0, 32], sizes = [4, 32], strides = [1, 1]} : vector<4x128xf32> to vector<4x32xf32>
    %409 = vector.extract_strided_slice %406 {offsets = [0, 64], sizes = [4, 32], strides = [1, 1]} : vector<4x128xf32> to vector<4x32xf32>
    %410 = vector.extract_strided_slice %405 {offsets = [0, 96], sizes = [4, 32], strides = [1, 1]} : vector<4x128xf32> to vector<4x32xf32>
    %411 = arith.mulf %408, %393 : vector<4x32xf32>
    %412 = arith.mulf %407, %409 : vector<4x32xf32>
    %413 = arith.addf %411, %412 : vector<4x32xf32>
    %414 = math.tanh %413 : vector<4x32xf32>
    %415 = arith.mulf %410, %414 : vector<4x32xf32>
    %c0_76 = arith.constant 0 : index
    %c10 = arith.constant 10 : index
    %c0_77 = arith.constant 0 : index
    %416 = vector.load %arg10[%c0_76, %c10, %c0_77] : memref<4x49x32xf32, #tpu.memory_space<vmem>>, vector<4x1x32xf32>
    %417 = vector.shape_cast %416 : vector<4x1x32xf32> to vector<4x32xf32>
    %418 = vector.shape_cast %415 : vector<4x32xf32> to vector<4x1x32xf32>
    tpu.vector_store %arg10[%c0_76, %c10, %c0_77], %418 {strides = array<i32>} : memref<4x49x32xf32, #tpu.memory_space<vmem>>, vector<4x1x32xf32>,
    %cst_78 = arith.constant dense<0.000000e+00> : vector<4x128xf32>
    %419 = tpu.matmul %415, %6, %cst_78 {dimension_numbers = #tpu.dot_dimension_numbers<[1], [0], [0], [1], [0, 0, 1, 1], [], []>} : vector<4x32xf32>, vector<32x128xf32>, vector<4x128xf32> -> vector<4x128xf32>
    %420 = arith.addf %196, %419 : vector<4x128xf32>
    %421 = arith.negf %420 : vector<4x128xf32>
    %422 = math.exp %421 : vector<4x128xf32>
    %cst_79 = arith.constant 1.000000e+00 : f32
    %423 = vector.broadcast %cst_79 : f32 to vector<4x128xf32>
    %424 = arith.addf %423, %422 : vector<4x128xf32>
    %425 = arith.divf %423, %424 : vector<4x128xf32>
    %426 = math.tanh %420 : vector<4x128xf32>
    %427 = vector.extract_strided_slice %425 {offsets = [0, 0], sizes = [4, 32], strides = [1, 1]} : vector<4x128xf32> to vector<4x32xf32>
    %428 = vector.extract_strided_slice %425 {offsets = [0, 32], sizes = [4, 32], strides = [1, 1]} : vector<4x128xf32> to vector<4x32xf32>
    %429 = vector.extract_strided_slice %426 {offsets = [0, 64], sizes = [4, 32], strides = [1, 1]} : vector<4x128xf32> to vector<4x32xf32>
    %430 = vector.extract_strided_slice %425 {offsets = [0, 96], sizes = [4, 32], strides = [1, 1]} : vector<4x128xf32> to vector<4x32xf32>
    %431 = arith.mulf %428, %413 : vector<4x32xf32>
    %432 = arith.mulf %427, %429 : vector<4x32xf32>
    %433 = arith.addf %431, %432 : vector<4x32xf32>
    %434 = math.tanh %433 : vector<4x32xf32>
    %435 = arith.mulf %430, %434 : vector<4x32xf32>
    %c0_80 = arith.constant 0 : index
    %c11 = arith.constant 11 : index
    %c0_81 = arith.constant 0 : index
    %436 = vector.load %arg10[%c0_80, %c11, %c0_81] : memref<4x49x32xf32, #tpu.memory_space<vmem>>, vector<4x1x32xf32>
    %437 = vector.shape_cast %436 : vector<4x1x32xf32> to vector<4x32xf32>
    %438 = vector.shape_cast %435 : vector<4x32xf32> to vector<4x1x32xf32>
    tpu.vector_store %arg10[%c0_80, %c11, %c0_81], %438 {strides = array<i32>} : memref<4x49x32xf32, #tpu.memory_space<vmem>>, vector<4x1x32xf32>,
    %cst_82 = arith.constant dense<0.000000e+00> : vector<4x128xf32>
    %439 = tpu.matmul %435, %6, %cst_82 {dimension_numbers = #tpu.dot_dimension_numbers<[1], [0], [0], [1], [0, 0, 1, 1], [], []>} : vector<4x32xf32>, vector<32x128xf32>, vector<4x128xf32> -> vector<4x128xf32>
    %440 = arith.addf %196, %439 : vector<4x128xf32>
    %441 = arith.negf %440 : vector<4x128xf32>
    %442 = math.exp %441 : vector<4x128xf32>
    %cst_83 = arith.constant 1.000000e+00 : f32
    %443 = vector.broadcast %cst_83 : f32 to vector<4x128xf32>
    %444 = arith.addf %443, %442 : vector<4x128xf32>
    %445 = arith.divf %443, %444 : vector<4x128xf32>
    %446 = math.tanh %440 : vector<4x128xf32>
    %447 = vector.extract_strided_slice %445 {offsets = [0, 0], sizes = [4, 32], strides = [1, 1]} : vector<4x128xf32> to vector<4x32xf32>
    %448 = vector.extract_strided_slice %445 {offsets = [0, 32], sizes = [4, 32], strides = [1, 1]} : vector<4x128xf32> to vector<4x32xf32>
    %449 = vector.extract_strided_slice %446 {offsets = [0, 64], sizes = [4, 32], strides = [1, 1]} : vector<4x128xf32> to vector<4x32xf32>
    %450 = vector.extract_strided_slice %445 {offsets = [0, 96], sizes = [4, 32], strides = [1, 1]} : vector<4x128xf32> to vector<4x32xf32>
    %451 = arith.mulf %448, %433 : vector<4x32xf32>
    %452 = arith.mulf %447, %449 : vector<4x32xf32>
    %453 = arith.addf %451, %452 : vector<4x32xf32>
    %454 = math.tanh %453 : vector<4x32xf32>
    %455 = arith.mulf %450, %454 : vector<4x32xf32>
    %c0_84 = arith.constant 0 : index
    %c12 = arith.constant 12 : index
    %c0_85 = arith.constant 0 : index
    %456 = vector.load %arg10[%c0_84, %c12, %c0_85] : memref<4x49x32xf32, #tpu.memory_space<vmem>>, vector<4x1x32xf32>
    %457 = vector.shape_cast %456 : vector<4x1x32xf32> to vector<4x32xf32>
    %458 = vector.shape_cast %455 : vector<4x32xf32> to vector<4x1x32xf32>
    tpu.vector_store %arg10[%c0_84, %c12, %c0_85], %458 {strides = array<i32>} : memref<4x49x32xf32, #tpu.memory_space<vmem>>, vector<4x1x32xf32>,
    %cst_86 = arith.constant dense<0.000000e+00> : vector<4x128xf32>
    %459 = tpu.matmul %455, %6, %cst_86 {dimension_numbers = #tpu.dot_dimension_numbers<[1], [0], [0], [1], [0, 0, 1, 1], [], []>} : vector<4x32xf32>, vector<32x128xf32>, vector<4x128xf32> -> vector<4x128xf32>
    %460 = arith.addf %196, %459 : vector<4x128xf32>
    %461 = arith.negf %460 : vector<4x128xf32>
    %462 = math.exp %461 : vector<4x128xf32>
    %cst_87 = arith.constant 1.000000e+00 : f32
    %463 = vector.broadcast %cst_87 : f32 to vector<4x128xf32>
    %464 = arith.addf %463, %462 : vector<4x128xf32>
    %465 = arith.divf %463, %464 : vector<4x128xf32>
    %466 = math.tanh %460 : vector<4x128xf32>
    %467 = vector.extract_strided_slice %465 {offsets = [0, 0], sizes = [4, 32], strides = [1, 1]} : vector<4x128xf32> to vector<4x32xf32>
    %468 = vector.extract_strided_slice %465 {offsets = [0, 32], sizes = [4, 32], strides = [1, 1]} : vector<4x128xf32> to vector<4x32xf32>
    %469 = vector.extract_strided_slice %466 {offsets = [0, 64], sizes = [4, 32], strides = [1, 1]} : vector<4x128xf32> to vector<4x32xf32>
    %470 = vector.extract_strided_slice %465 {offsets = [0, 96], sizes = [4, 32], strides = [1, 1]} : vector<4x128xf32> to vector<4x32xf32>
    %471 = arith.mulf %468, %453 : vector<4x32xf32>
    %472 = arith.mulf %467, %469 : vector<4x32xf32>
    %473 = arith.addf %471, %472 : vector<4x32xf32>
    %474 = math.tanh %473 : vector<4x32xf32>
    %475 = arith.mulf %470, %474 : vector<4x32xf32>
    %c0_88 = arith.constant 0 : index
    %c13 = arith.constant 13 : index
    %c0_89 = arith.constant 0 : index
    %476 = vector.load %arg10[%c0_88, %c13, %c0_89] : memref<4x49x32xf32, #tpu.memory_space<vmem>>, vector<4x1x32xf32>
    %477 = vector.shape_cast %476 : vector<4x1x32xf32> to vector<4x32xf32>
    %478 = vector.shape_cast %475 : vector<4x32xf32> to vector<4x1x32xf32>
    tpu.vector_store %arg10[%c0_88, %c13, %c0_89], %478 {strides = array<i32>} : memref<4x49x32xf32, #tpu.memory_space<vmem>>, vector<4x1x32xf32>,
    %cst_90 = arith.constant dense<0.000000e+00> : vector<4x128xf32>
    %479 = tpu.matmul %475, %6, %cst_90 {dimension_numbers = #tpu.dot_dimension_numbers<[1], [0], [0], [1], [0, 0, 1, 1], [], []>} : vector<4x32xf32>, vector<32x128xf32>, vector<4x128xf32> -> vector<4x128xf32>
    %480 = arith.addf %196, %479 : vector<4x128xf32>
    %481 = arith.negf %480 : vector<4x128xf32>
    %482 = math.exp %481 : vector<4x128xf32>
    %cst_91 = arith.constant 1.000000e+00 : f32
    %483 = vector.broadcast %cst_91 : f32 to vector<4x128xf32>
    %484 = arith.addf %483, %482 : vector<4x128xf32>
    %485 = arith.divf %483, %484 : vector<4x128xf32>
    %486 = math.tanh %480 : vector<4x128xf32>
    %487 = vector.extract_strided_slice %485 {offsets = [0, 0], sizes = [4, 32], strides = [1, 1]} : vector<4x128xf32> to vector<4x32xf32>
    %488 = vector.extract_strided_slice %485 {offsets = [0, 32], sizes = [4, 32], strides = [1, 1]} : vector<4x128xf32> to vector<4x32xf32>
    %489 = vector.extract_strided_slice %486 {offsets = [0, 64], sizes = [4, 32], strides = [1, 1]} : vector<4x128xf32> to vector<4x32xf32>
    %490 = vector.extract_strided_slice %485 {offsets = [0, 96], sizes = [4, 32], strides = [1, 1]} : vector<4x128xf32> to vector<4x32xf32>
    %491 = arith.mulf %488, %473 : vector<4x32xf32>
    %492 = arith.mulf %487, %489 : vector<4x32xf32>
    %493 = arith.addf %491, %492 : vector<4x32xf32>
    %494 = math.tanh %493 : vector<4x32xf32>
    %495 = arith.mulf %490, %494 : vector<4x32xf32>
    %c0_92 = arith.constant 0 : index
    %c14 = arith.constant 14 : index
    %c0_93 = arith.constant 0 : index
    %496 = vector.load %arg10[%c0_92, %c14, %c0_93] : memref<4x49x32xf32, #tpu.memory_space<vmem>>, vector<4x1x32xf32>
    %497 = vector.shape_cast %496 : vector<4x1x32xf32> to vector<4x32xf32>
    %498 = vector.shape_cast %495 : vector<4x32xf32> to vector<4x1x32xf32>
    tpu.vector_store %arg10[%c0_92, %c14, %c0_93], %498 {strides = array<i32>} : memref<4x49x32xf32, #tpu.memory_space<vmem>>, vector<4x1x32xf32>,
    %cst_94 = arith.constant dense<0.000000e+00> : vector<4x128xf32>
    %499 = tpu.matmul %495, %6, %cst_94 {dimension_numbers = #tpu.dot_dimension_numbers<[1], [0], [0], [1], [0, 0, 1, 1], [], []>} : vector<4x32xf32>, vector<32x128xf32>, vector<4x128xf32> -> vector<4x128xf32>
    %500 = arith.addf %196, %499 : vector<4x128xf32>
    %501 = arith.negf %500 : vector<4x128xf32>
    %502 = math.exp %501 : vector<4x128xf32>
    %cst_95 = arith.constant 1.000000e+00 : f32
    %503 = vector.broadcast %cst_95 : f32 to vector<4x128xf32>
    %504 = arith.addf %503, %502 : vector<4x128xf32>
    %505 = arith.divf %503, %504 : vector<4x128xf32>
    %506 = math.tanh %500 : vector<4x128xf32>
    %507 = vector.extract_strided_slice %505 {offsets = [0, 0], sizes = [4, 32], strides = [1, 1]} : vector<4x128xf32> to vector<4x32xf32>
    %508 = vector.extract_strided_slice %505 {offsets = [0, 32], sizes = [4, 32], strides = [1, 1]} : vector<4x128xf32> to vector<4x32xf32>
    %509 = vector.extract_strided_slice %506 {offsets = [0, 64], sizes = [4, 32], strides = [1, 1]} : vector<4x128xf32> to vector<4x32xf32>
    %510 = vector.extract_strided_slice %505 {offsets = [0, 96], sizes = [4, 32], strides = [1, 1]} : vector<4x128xf32> to vector<4x32xf32>
    %511 = arith.mulf %508, %493 : vector<4x32xf32>
    %512 = arith.mulf %507, %509 : vector<4x32xf32>
    %513 = arith.addf %511, %512 : vector<4x32xf32>
    %514 = math.tanh %513 : vector<4x32xf32>
    %515 = arith.mulf %510, %514 : vector<4x32xf32>
    %c0_96 = arith.constant 0 : index
    %c15 = arith.constant 15 : index
    %c0_97 = arith.constant 0 : index
    %516 = vector.load %arg10[%c0_96, %c15, %c0_97] : memref<4x49x32xf32, #tpu.memory_space<vmem>>, vector<4x1x32xf32>
    %517 = vector.shape_cast %516 : vector<4x1x32xf32> to vector<4x32xf32>
    %518 = vector.shape_cast %515 : vector<4x32xf32> to vector<4x1x32xf32>
    tpu.vector_store %arg10[%c0_96, %c15, %c0_97], %518 {strides = array<i32>} : memref<4x49x32xf32, #tpu.memory_space<vmem>>, vector<4x1x32xf32>,
    %cst_98 = arith.constant dense<0.000000e+00> : vector<4x128xf32>
    %519 = tpu.matmul %515, %6, %cst_98 {dimension_numbers = #tpu.dot_dimension_numbers<[1], [0], [0], [1], [0, 0, 1, 1], [], []>} : vector<4x32xf32>, vector<32x128xf32>, vector<4x128xf32> -> vector<4x128xf32>
    %520 = arith.addf %196, %519 : vector<4x128xf32>
    %521 = arith.negf %520 : vector<4x128xf32>
    %522 = math.exp %521 : vector<4x128xf32>
    %cst_99 = arith.constant 1.000000e+00 : f32
    %523 = vector.broadcast %cst_99 : f32 to vector<4x128xf32>
    %524 = arith.addf %523, %522 : vector<4x128xf32>
    %525 = arith.divf %523, %524 : vector<4x128xf32>
    %526 = math.tanh %520 : vector<4x128xf32>
    %527 = vector.extract_strided_slice %525 {offsets = [0, 0], sizes = [4, 32], strides = [1, 1]} : vector<4x128xf32> to vector<4x32xf32>
    %528 = vector.extract_strided_slice %525 {offsets = [0, 32], sizes = [4, 32], strides = [1, 1]} : vector<4x128xf32> to vector<4x32xf32>
    %529 = vector.extract_strided_slice %526 {offsets = [0, 64], sizes = [4, 32], strides = [1, 1]} : vector<4x128xf32> to vector<4x32xf32>
    %530 = vector.extract_strided_slice %525 {offsets = [0, 96], sizes = [4, 32], strides = [1, 1]} : vector<4x128xf32> to vector<4x32xf32>
    %531 = arith.mulf %528, %513 : vector<4x32xf32>
    %532 = arith.mulf %527, %529 : vector<4x32xf32>
    %533 = arith.addf %531, %532 : vector<4x32xf32>
    %534 = math.tanh %533 : vector<4x32xf32>
    %535 = arith.mulf %530, %534 : vector<4x32xf32>
    %c0_100 = arith.constant 0 : index
    %c16 = arith.constant 16 : index
    %c0_101 = arith.constant 0 : index
    %536 = vector.load %arg10[%c0_100, %c16, %c0_101] : memref<4x49x32xf32, #tpu.memory_space<vmem>>, vector<4x1x32xf32>
    %537 = vector.shape_cast %536 : vector<4x1x32xf32> to vector<4x32xf32>
    %538 = vector.shape_cast %535 : vector<4x32xf32> to vector<4x1x32xf32>
    tpu.vector_store %arg10[%c0_100, %c16, %c0_101], %538 {strides = array<i32>} : memref<4x49x32xf32, #tpu.memory_space<vmem>>, vector<4x1x32xf32>,
    %cst_102 = arith.constant dense<0.000000e+00> : vector<4x128xf32>
    %539 = tpu.matmul %535, %6, %cst_102 {dimension_numbers = #tpu.dot_dimension_numbers<[1], [0], [0], [1], [0, 0, 1, 1], [], []>} : vector<4x32xf32>, vector<32x128xf32>, vector<4x128xf32> -> vector<4x128xf32>
    %540 = arith.addf %196, %539 : vector<4x128xf32>
    %541 = arith.negf %540 : vector<4x128xf32>
    %542 = math.exp %541 : vector<4x128xf32>
    %cst_103 = arith.constant 1.000000e+00 : f32
    %543 = vector.broadcast %cst_103 : f32 to vector<4x128xf32>
    %544 = arith.addf %543, %542 : vector<4x128xf32>
    %545 = arith.divf %543, %544 : vector<4x128xf32>
    %546 = math.tanh %540 : vector<4x128xf32>
    %547 = vector.extract_strided_slice %545 {offsets = [0, 0], sizes = [4, 32], strides = [1, 1]} : vector<4x128xf32> to vector<4x32xf32>
    %548 = vector.extract_strided_slice %545 {offsets = [0, 32], sizes = [4, 32], strides = [1, 1]} : vector<4x128xf32> to vector<4x32xf32>
    %549 = vector.extract_strided_slice %546 {offsets = [0, 64], sizes = [4, 32], strides = [1, 1]} : vector<4x128xf32> to vector<4x32xf32>
    %550 = vector.extract_strided_slice %545 {offsets = [0, 96], sizes = [4, 32], strides = [1, 1]} : vector<4x128xf32> to vector<4x32xf32>
    %551 = arith.mulf %548, %533 : vector<4x32xf32>
    %552 = arith.mulf %547, %549 : vector<4x32xf32>
    %553 = arith.addf %551, %552 : vector<4x32xf32>
    %554 = math.tanh %553 : vector<4x32xf32>
    %555 = arith.mulf %550, %554 : vector<4x32xf32>
    %c0_104 = arith.constant 0 : index
    %c17 = arith.constant 17 : index
    %c0_105 = arith.constant 0 : index
    %556 = vector.load %arg10[%c0_104, %c17, %c0_105] : memref<4x49x32xf32, #tpu.memory_space<vmem>>, vector<4x1x32xf32>
    %557 = vector.shape_cast %556 : vector<4x1x32xf32> to vector<4x32xf32>
    %558 = vector.shape_cast %555 : vector<4x32xf32> to vector<4x1x32xf32>
    tpu.vector_store %arg10[%c0_104, %c17, %c0_105], %558 {strides = array<i32>} : memref<4x49x32xf32, #tpu.memory_space<vmem>>, vector<4x1x32xf32>,
    %cst_106 = arith.constant dense<0.000000e+00> : vector<4x128xf32>
    %559 = tpu.matmul %555, %6, %cst_106 {dimension_numbers = #tpu.dot_dimension_numbers<[1], [0], [0], [1], [0, 0, 1, 1], [], []>} : vector<4x32xf32>, vector<32x128xf32>, vector<4x128xf32> -> vector<4x128xf32>
    %560 = arith.addf %196, %559 : vector<4x128xf32>
    %561 = arith.negf %560 : vector<4x128xf32>
    %562 = math.exp %561 : vector<4x128xf32>
    %cst_107 = arith.constant 1.000000e+00 : f32
    %563 = vector.broadcast %cst_107 : f32 to vector<4x128xf32>
    %564 = arith.addf %563, %562 : vector<4x128xf32>
    %565 = arith.divf %563, %564 : vector<4x128xf32>
    %566 = math.tanh %560 : vector<4x128xf32>
    %567 = vector.extract_strided_slice %565 {offsets = [0, 0], sizes = [4, 32], strides = [1, 1]} : vector<4x128xf32> to vector<4x32xf32>
    %568 = vector.extract_strided_slice %565 {offsets = [0, 32], sizes = [4, 32], strides = [1, 1]} : vector<4x128xf32> to vector<4x32xf32>
    %569 = vector.extract_strided_slice %566 {offsets = [0, 64], sizes = [4, 32], strides = [1, 1]} : vector<4x128xf32> to vector<4x32xf32>
    %570 = vector.extract_strided_slice %565 {offsets = [0, 96], sizes = [4, 32], strides = [1, 1]} : vector<4x128xf32> to vector<4x32xf32>
    %571 = arith.mulf %568, %553 : vector<4x32xf32>
    %572 = arith.mulf %567, %569 : vector<4x32xf32>
    %573 = arith.addf %571, %572 : vector<4x32xf32>
    %574 = math.tanh %573 : vector<4x32xf32>
    %575 = arith.mulf %570, %574 : vector<4x32xf32>
    %c0_108 = arith.constant 0 : index
    %c18 = arith.constant 18 : index
    %c0_109 = arith.constant 0 : index
    %576 = vector.load %arg10[%c0_108, %c18, %c0_109] : memref<4x49x32xf32, #tpu.memory_space<vmem>>, vector<4x1x32xf32>
    %577 = vector.shape_cast %576 : vector<4x1x32xf32> to vector<4x32xf32>
    %578 = vector.shape_cast %575 : vector<4x32xf32> to vector<4x1x32xf32>
    tpu.vector_store %arg10[%c0_108, %c18, %c0_109], %578 {strides = array<i32>} : memref<4x49x32xf32, #tpu.memory_space<vmem>>, vector<4x1x32xf32>,
    %cst_110 = arith.constant dense<0.000000e+00> : vector<4x128xf32>
    %579 = tpu.matmul %575, %6, %cst_110 {dimension_numbers = #tpu.dot_dimension_numbers<[1], [0], [0], [1], [0, 0, 1, 1], [], []>} : vector<4x32xf32>, vector<32x128xf32>, vector<4x128xf32> -> vector<4x128xf32>
    %580 = arith.addf %196, %579 : vector<4x128xf32>
    %581 = arith.negf %580 : vector<4x128xf32>
    %582 = math.exp %581 : vector<4x128xf32>
    %cst_111 = arith.constant 1.000000e+00 : f32
    %583 = vector.broadcast %cst_111 : f32 to vector<4x128xf32>
    %584 = arith.addf %583, %582 : vector<4x128xf32>
    %585 = arith.divf %583, %584 : vector<4x128xf32>
    %586 = math.tanh %580 : vector<4x128xf32>
    %587 = vector.extract_strided_slice %585 {offsets = [0, 0], sizes = [4, 32], strides = [1, 1]} : vector<4x128xf32> to vector<4x32xf32>
    %588 = vector.extract_strided_slice %585 {offsets = [0, 32], sizes = [4, 32], strides = [1, 1]} : vector<4x128xf32> to vector<4x32xf32>
    %589 = vector.extract_strided_slice %586 {offsets = [0, 64], sizes = [4, 32], strides = [1, 1]} : vector<4x128xf32> to vector<4x32xf32>
    %590 = vector.extract_strided_slice %585 {offsets = [0, 96], sizes = [4, 32], strides = [1, 1]} : vector<4x128xf32> to vector<4x32xf32>
    %591 = arith.mulf %588, %573 : vector<4x32xf32>
    %592 = arith.mulf %587, %589 : vector<4x32xf32>
    %593 = arith.addf %591, %592 : vector<4x32xf32>
    %594 = math.tanh %593 : vector<4x32xf32>
    %595 = arith.mulf %590, %594 : vector<4x32xf32>
    %c0_112 = arith.constant 0 : index
    %c19 = arith.constant 19 : index
    %c0_113 = arith.constant 0 : index
    %596 = vector.load %arg10[%c0_112, %c19, %c0_113] : memref<4x49x32xf32, #tpu.memory_space<vmem>>, vector<4x1x32xf32>
    %597 = vector.shape_cast %596 : vector<4x1x32xf32> to vector<4x32xf32>
    %598 = vector.shape_cast %595 : vector<4x32xf32> to vector<4x1x32xf32>
    tpu.vector_store %arg10[%c0_112, %c19, %c0_113], %598 {strides = array<i32>} : memref<4x49x32xf32, #tpu.memory_space<vmem>>, vector<4x1x32xf32>,
    %cst_114 = arith.constant dense<0.000000e+00> : vector<4x128xf32>
    %599 = tpu.matmul %595, %6, %cst_114 {dimension_numbers = #tpu.dot_dimension_numbers<[1], [0], [0], [1], [0, 0, 1, 1], [], []>} : vector<4x32xf32>, vector<32x128xf32>, vector<4x128xf32> -> vector<4x128xf32>
    %600 = arith.addf %196, %599 : vector<4x128xf32>
    %601 = arith.negf %600 : vector<4x128xf32>
    %602 = math.exp %601 : vector<4x128xf32>
    %cst_115 = arith.constant 1.000000e+00 : f32
    %603 = vector.broadcast %cst_115 : f32 to vector<4x128xf32>
    %604 = arith.addf %603, %602 : vector<4x128xf32>
    %605 = arith.divf %603, %604 : vector<4x128xf32>
    %606 = math.tanh %600 : vector<4x128xf32>
    %607 = vector.extract_strided_slice %605 {offsets = [0, 0], sizes = [4, 32], strides = [1, 1]} : vector<4x128xf32> to vector<4x32xf32>
    %608 = vector.extract_strided_slice %605 {offsets = [0, 32], sizes = [4, 32], strides = [1, 1]} : vector<4x128xf32> to vector<4x32xf32>
    %609 = vector.extract_strided_slice %606 {offsets = [0, 64], sizes = [4, 32], strides = [1, 1]} : vector<4x128xf32> to vector<4x32xf32>
    %610 = vector.extract_strided_slice %605 {offsets = [0, 96], sizes = [4, 32], strides = [1, 1]} : vector<4x128xf32> to vector<4x32xf32>
    %611 = arith.mulf %608, %593 : vector<4x32xf32>
    %612 = arith.mulf %607, %609 : vector<4x32xf32>
    %613 = arith.addf %611, %612 : vector<4x32xf32>
    %614 = math.tanh %613 : vector<4x32xf32>
    %615 = arith.mulf %610, %614 : vector<4x32xf32>
    %c0_116 = arith.constant 0 : index
    %c20 = arith.constant 20 : index
    %c0_117 = arith.constant 0 : index
    %616 = vector.load %arg10[%c0_116, %c20, %c0_117] : memref<4x49x32xf32, #tpu.memory_space<vmem>>, vector<4x1x32xf32>
    %617 = vector.shape_cast %616 : vector<4x1x32xf32> to vector<4x32xf32>
    %618 = vector.shape_cast %615 : vector<4x32xf32> to vector<4x1x32xf32>
    tpu.vector_store %arg10[%c0_116, %c20, %c0_117], %618 {strides = array<i32>} : memref<4x49x32xf32, #tpu.memory_space<vmem>>, vector<4x1x32xf32>,
    %cst_118 = arith.constant dense<0.000000e+00> : vector<4x128xf32>
    %619 = tpu.matmul %615, %6, %cst_118 {dimension_numbers = #tpu.dot_dimension_numbers<[1], [0], [0], [1], [0, 0, 1, 1], [], []>} : vector<4x32xf32>, vector<32x128xf32>, vector<4x128xf32> -> vector<4x128xf32>
    %620 = arith.addf %196, %619 : vector<4x128xf32>
    %621 = arith.negf %620 : vector<4x128xf32>
    %622 = math.exp %621 : vector<4x128xf32>
    %cst_119 = arith.constant 1.000000e+00 : f32
    %623 = vector.broadcast %cst_119 : f32 to vector<4x128xf32>
    %624 = arith.addf %623, %622 : vector<4x128xf32>
    %625 = arith.divf %623, %624 : vector<4x128xf32>
    %626 = math.tanh %620 : vector<4x128xf32>
    %627 = vector.extract_strided_slice %625 {offsets = [0, 0], sizes = [4, 32], strides = [1, 1]} : vector<4x128xf32> to vector<4x32xf32>
    %628 = vector.extract_strided_slice %625 {offsets = [0, 32], sizes = [4, 32], strides = [1, 1]} : vector<4x128xf32> to vector<4x32xf32>
    %629 = vector.extract_strided_slice %626 {offsets = [0, 64], sizes = [4, 32], strides = [1, 1]} : vector<4x128xf32> to vector<4x32xf32>
    %630 = vector.extract_strided_slice %625 {offsets = [0, 96], sizes = [4, 32], strides = [1, 1]} : vector<4x128xf32> to vector<4x32xf32>
    %631 = arith.mulf %628, %613 : vector<4x32xf32>
    %632 = arith.mulf %627, %629 : vector<4x32xf32>
    %633 = arith.addf %631, %632 : vector<4x32xf32>
    %634 = math.tanh %633 : vector<4x32xf32>
    %635 = arith.mulf %630, %634 : vector<4x32xf32>
    %c0_120 = arith.constant 0 : index
    %c21 = arith.constant 21 : index
    %c0_121 = arith.constant 0 : index
    %636 = vector.load %arg10[%c0_120, %c21, %c0_121] : memref<4x49x32xf32, #tpu.memory_space<vmem>>, vector<4x1x32xf32>
    %637 = vector.shape_cast %636 : vector<4x1x32xf32> to vector<4x32xf32>
    %638 = vector.shape_cast %635 : vector<4x32xf32> to vector<4x1x32xf32>
    tpu.vector_store %arg10[%c0_120, %c21, %c0_121], %638 {strides = array<i32>} : memref<4x49x32xf32, #tpu.memory_space<vmem>>, vector<4x1x32xf32>,
    %cst_122 = arith.constant dense<0.000000e+00> : vector<4x128xf32>
    %639 = tpu.matmul %635, %6, %cst_122 {dimension_numbers = #tpu.dot_dimension_numbers<[1], [0], [0], [1], [0, 0, 1, 1], [], []>} : vector<4x32xf32>, vector<32x128xf32>, vector<4x128xf32> -> vector<4x128xf32>
    %640 = arith.addf %196, %639 : vector<4x128xf32>
    %641 = arith.negf %640 : vector<4x128xf32>
    %642 = math.exp %641 : vector<4x128xf32>
    %cst_123 = arith.constant 1.000000e+00 : f32
    %643 = vector.broadcast %cst_123 : f32 to vector<4x128xf32>
    %644 = arith.addf %643, %642 : vector<4x128xf32>
    %645 = arith.divf %643, %644 : vector<4x128xf32>
    %646 = math.tanh %640 : vector<4x128xf32>
    %647 = vector.extract_strided_slice %645 {offsets = [0, 0], sizes = [4, 32], strides = [1, 1]} : vector<4x128xf32> to vector<4x32xf32>
    %648 = vector.extract_strided_slice %645 {offsets = [0, 32], sizes = [4, 32], strides = [1, 1]} : vector<4x128xf32> to vector<4x32xf32>
    %649 = vector.extract_strided_slice %646 {offsets = [0, 64], sizes = [4, 32], strides = [1, 1]} : vector<4x128xf32> to vector<4x32xf32>
    %650 = vector.extract_strided_slice %645 {offsets = [0, 96], sizes = [4, 32], strides = [1, 1]} : vector<4x128xf32> to vector<4x32xf32>
    %651 = arith.mulf %648, %633 : vector<4x32xf32>
    %652 = arith.mulf %647, %649 : vector<4x32xf32>
    %653 = arith.addf %651, %652 : vector<4x32xf32>
    %654 = math.tanh %653 : vector<4x32xf32>
    %655 = arith.mulf %650, %654 : vector<4x32xf32>
    %c0_124 = arith.constant 0 : index
    %c22 = arith.constant 22 : index
    %c0_125 = arith.constant 0 : index
    %656 = vector.load %arg10[%c0_124, %c22, %c0_125] : memref<4x49x32xf32, #tpu.memory_space<vmem>>, vector<4x1x32xf32>
    %657 = vector.shape_cast %656 : vector<4x1x32xf32> to vector<4x32xf32>
    %658 = vector.shape_cast %655 : vector<4x32xf32> to vector<4x1x32xf32>
    tpu.vector_store %arg10[%c0_124, %c22, %c0_125], %658 {strides = array<i32>} : memref<4x49x32xf32, #tpu.memory_space<vmem>>, vector<4x1x32xf32>,
    %cst_126 = arith.constant dense<0.000000e+00> : vector<4x128xf32>
    %659 = tpu.matmul %655, %6, %cst_126 {dimension_numbers = #tpu.dot_dimension_numbers<[1], [0], [0], [1], [0, 0, 1, 1], [], []>} : vector<4x32xf32>, vector<32x128xf32>, vector<4x128xf32> -> vector<4x128xf32>
    %660 = arith.addf %196, %659 : vector<4x128xf32>
    %661 = arith.negf %660 : vector<4x128xf32>
    %662 = math.exp %661 : vector<4x128xf32>
    %cst_127 = arith.constant 1.000000e+00 : f32
    %663 = vector.broadcast %cst_127 : f32 to vector<4x128xf32>
    %664 = arith.addf %663, %662 : vector<4x128xf32>
    %665 = arith.divf %663, %664 : vector<4x128xf32>
    %666 = math.tanh %660 : vector<4x128xf32>
    %667 = vector.extract_strided_slice %665 {offsets = [0, 0], sizes = [4, 32], strides = [1, 1]} : vector<4x128xf32> to vector<4x32xf32>
    %668 = vector.extract_strided_slice %665 {offsets = [0, 32], sizes = [4, 32], strides = [1, 1]} : vector<4x128xf32> to vector<4x32xf32>
    %669 = vector.extract_strided_slice %666 {offsets = [0, 64], sizes = [4, 32], strides = [1, 1]} : vector<4x128xf32> to vector<4x32xf32>
    %670 = vector.extract_strided_slice %665 {offsets = [0, 96], sizes = [4, 32], strides = [1, 1]} : vector<4x128xf32> to vector<4x32xf32>
    %671 = arith.mulf %668, %653 : vector<4x32xf32>
    %672 = arith.mulf %667, %669 : vector<4x32xf32>
    %673 = arith.addf %671, %672 : vector<4x32xf32>
    %674 = math.tanh %673 : vector<4x32xf32>
    %675 = arith.mulf %670, %674 : vector<4x32xf32>
    %c0_128 = arith.constant 0 : index
    %c23 = arith.constant 23 : index
    %c0_129 = arith.constant 0 : index
    %676 = vector.load %arg10[%c0_128, %c23, %c0_129] : memref<4x49x32xf32, #tpu.memory_space<vmem>>, vector<4x1x32xf32>
    %677 = vector.shape_cast %676 : vector<4x1x32xf32> to vector<4x32xf32>
    %678 = vector.shape_cast %675 : vector<4x32xf32> to vector<4x1x32xf32>
    tpu.vector_store %arg10[%c0_128, %c23, %c0_129], %678 {strides = array<i32>} : memref<4x49x32xf32, #tpu.memory_space<vmem>>, vector<4x1x32xf32>,
    %cst_130 = arith.constant dense<0.000000e+00> : vector<4x128xf32>
    %679 = tpu.matmul %675, %6, %cst_130 {dimension_numbers = #tpu.dot_dimension_numbers<[1], [0], [0], [1], [0, 0, 1, 1], [], []>} : vector<4x32xf32>, vector<32x128xf32>, vector<4x128xf32> -> vector<4x128xf32>
    %680 = arith.addf %196, %679 : vector<4x128xf32>
    %681 = arith.negf %680 : vector<4x128xf32>
    %682 = math.exp %681 : vector<4x128xf32>
    %cst_131 = arith.constant 1.000000e+00 : f32
    %683 = vector.broadcast %cst_131 : f32 to vector<4x128xf32>
    %684 = arith.addf %683, %682 : vector<4x128xf32>
    %685 = arith.divf %683, %684 : vector<4x128xf32>
    %686 = math.tanh %680 : vector<4x128xf32>
    %687 = vector.extract_strided_slice %685 {offsets = [0, 0], sizes = [4, 32], strides = [1, 1]} : vector<4x128xf32> to vector<4x32xf32>
    %688 = vector.extract_strided_slice %685 {offsets = [0, 32], sizes = [4, 32], strides = [1, 1]} : vector<4x128xf32> to vector<4x32xf32>
    %689 = vector.extract_strided_slice %686 {offsets = [0, 64], sizes = [4, 32], strides = [1, 1]} : vector<4x128xf32> to vector<4x32xf32>
    %690 = vector.extract_strided_slice %685 {offsets = [0, 96], sizes = [4, 32], strides = [1, 1]} : vector<4x128xf32> to vector<4x32xf32>
    %691 = arith.mulf %688, %673 : vector<4x32xf32>
    %692 = arith.mulf %687, %689 : vector<4x32xf32>
    %693 = arith.addf %691, %692 : vector<4x32xf32>
    %694 = math.tanh %693 : vector<4x32xf32>
    %695 = arith.mulf %690, %694 : vector<4x32xf32>
    %c0_132 = arith.constant 0 : index
    %c24 = arith.constant 24 : index
    %c0_133 = arith.constant 0 : index
    %696 = vector.load %arg10[%c0_132, %c24, %c0_133] : memref<4x49x32xf32, #tpu.memory_space<vmem>>, vector<4x1x32xf32>
    %697 = vector.shape_cast %696 : vector<4x1x32xf32> to vector<4x32xf32>
    %698 = vector.shape_cast %695 : vector<4x32xf32> to vector<4x1x32xf32>
    tpu.vector_store %arg10[%c0_132, %c24, %c0_133], %698 {strides = array<i32>} : memref<4x49x32xf32, #tpu.memory_space<vmem>>, vector<4x1x32xf32>,
    %cst_134 = arith.constant dense<0.000000e+00> : vector<4x128xf32>
    %699 = tpu.matmul %695, %6, %cst_134 {dimension_numbers = #tpu.dot_dimension_numbers<[1], [0], [0], [1], [0, 0, 1, 1], [], []>} : vector<4x32xf32>, vector<32x128xf32>, vector<4x128xf32> -> vector<4x128xf32>
    %700 = arith.addf %196, %699 : vector<4x128xf32>
    %701 = arith.negf %700 : vector<4x128xf32>
    %702 = math.exp %701 : vector<4x128xf32>
    %cst_135 = arith.constant 1.000000e+00 : f32
    %703 = vector.broadcast %cst_135 : f32 to vector<4x128xf32>
    %704 = arith.addf %703, %702 : vector<4x128xf32>
    %705 = arith.divf %703, %704 : vector<4x128xf32>
    %706 = math.tanh %700 : vector<4x128xf32>
    %707 = vector.extract_strided_slice %705 {offsets = [0, 0], sizes = [4, 32], strides = [1, 1]} : vector<4x128xf32> to vector<4x32xf32>
    %708 = vector.extract_strided_slice %705 {offsets = [0, 32], sizes = [4, 32], strides = [1, 1]} : vector<4x128xf32> to vector<4x32xf32>
    %709 = vector.extract_strided_slice %706 {offsets = [0, 64], sizes = [4, 32], strides = [1, 1]} : vector<4x128xf32> to vector<4x32xf32>
    %710 = vector.extract_strided_slice %705 {offsets = [0, 96], sizes = [4, 32], strides = [1, 1]} : vector<4x128xf32> to vector<4x32xf32>
    %711 = arith.mulf %708, %693 : vector<4x32xf32>
    %712 = arith.mulf %707, %709 : vector<4x32xf32>
    %713 = arith.addf %711, %712 : vector<4x32xf32>
    %714 = math.tanh %713 : vector<4x32xf32>
    %715 = arith.mulf %710, %714 : vector<4x32xf32>
    %c0_136 = arith.constant 0 : index
    %c25 = arith.constant 25 : index
    %c0_137 = arith.constant 0 : index
    %716 = vector.load %arg10[%c0_136, %c25, %c0_137] : memref<4x49x32xf32, #tpu.memory_space<vmem>>, vector<4x1x32xf32>
    %717 = vector.shape_cast %716 : vector<4x1x32xf32> to vector<4x32xf32>
    %718 = vector.shape_cast %715 : vector<4x32xf32> to vector<4x1x32xf32>
    tpu.vector_store %arg10[%c0_136, %c25, %c0_137], %718 {strides = array<i32>} : memref<4x49x32xf32, #tpu.memory_space<vmem>>, vector<4x1x32xf32>,
    %cst_138 = arith.constant dense<0.000000e+00> : vector<4x128xf32>
    %719 = tpu.matmul %715, %6, %cst_138 {dimension_numbers = #tpu.dot_dimension_numbers<[1], [0], [0], [1], [0, 0, 1, 1], [], []>} : vector<4x32xf32>, vector<32x128xf32>, vector<4x128xf32> -> vector<4x128xf32>
    %720 = arith.addf %196, %719 : vector<4x128xf32>
    %721 = arith.negf %720 : vector<4x128xf32>
    %722 = math.exp %721 : vector<4x128xf32>
    %cst_139 = arith.constant 1.000000e+00 : f32
    %723 = vector.broadcast %cst_139 : f32 to vector<4x128xf32>
    %724 = arith.addf %723, %722 : vector<4x128xf32>
    %725 = arith.divf %723, %724 : vector<4x128xf32>
    %726 = math.tanh %720 : vector<4x128xf32>
    %727 = vector.extract_strided_slice %725 {offsets = [0, 0], sizes = [4, 32], strides = [1, 1]} : vector<4x128xf32> to vector<4x32xf32>
    %728 = vector.extract_strided_slice %725 {offsets = [0, 32], sizes = [4, 32], strides = [1, 1]} : vector<4x128xf32> to vector<4x32xf32>
    %729 = vector.extract_strided_slice %726 {offsets = [0, 64], sizes = [4, 32], strides = [1, 1]} : vector<4x128xf32> to vector<4x32xf32>
    %730 = vector.extract_strided_slice %725 {offsets = [0, 96], sizes = [4, 32], strides = [1, 1]} : vector<4x128xf32> to vector<4x32xf32>
    %731 = arith.mulf %728, %713 : vector<4x32xf32>
    %732 = arith.mulf %727, %729 : vector<4x32xf32>
    %733 = arith.addf %731, %732 : vector<4x32xf32>
    %734 = math.tanh %733 : vector<4x32xf32>
    %735 = arith.mulf %730, %734 : vector<4x32xf32>
    %c0_140 = arith.constant 0 : index
    %c26 = arith.constant 26 : index
    %c0_141 = arith.constant 0 : index
    %736 = vector.load %arg10[%c0_140, %c26, %c0_141] : memref<4x49x32xf32, #tpu.memory_space<vmem>>, vector<4x1x32xf32>
    %737 = vector.shape_cast %736 : vector<4x1x32xf32> to vector<4x32xf32>
    %738 = vector.shape_cast %735 : vector<4x32xf32> to vector<4x1x32xf32>
    tpu.vector_store %arg10[%c0_140, %c26, %c0_141], %738 {strides = array<i32>} : memref<4x49x32xf32, #tpu.memory_space<vmem>>, vector<4x1x32xf32>,
    %cst_142 = arith.constant dense<0.000000e+00> : vector<4x128xf32>
    %739 = tpu.matmul %735, %6, %cst_142 {dimension_numbers = #tpu.dot_dimension_numbers<[1], [0], [0], [1], [0, 0, 1, 1], [], []>} : vector<4x32xf32>, vector<32x128xf32>, vector<4x128xf32> -> vector<4x128xf32>
    %740 = arith.addf %196, %739 : vector<4x128xf32>
    %741 = arith.negf %740 : vector<4x128xf32>
    %742 = math.exp %741 : vector<4x128xf32>
    %cst_143 = arith.constant 1.000000e+00 : f32
    %743 = vector.broadcast %cst_143 : f32 to vector<4x128xf32>
    %744 = arith.addf %743, %742 : vector<4x128xf32>
    %745 = arith.divf %743, %744 : vector<4x128xf32>
    %746 = math.tanh %740 : vector<4x128xf32>
    %747 = vector.extract_strided_slice %745 {offsets = [0, 0], sizes = [4, 32], strides = [1, 1]} : vector<4x128xf32> to vector<4x32xf32>
    %748 = vector.extract_strided_slice %745 {offsets = [0, 32], sizes = [4, 32], strides = [1, 1]} : vector<4x128xf32> to vector<4x32xf32>
    %749 = vector.extract_strided_slice %746 {offsets = [0, 64], sizes = [4, 32], strides = [1, 1]} : vector<4x128xf32> to vector<4x32xf32>
    %750 = vector.extract_strided_slice %745 {offsets = [0, 96], sizes = [4, 32], strides = [1, 1]} : vector<4x128xf32> to vector<4x32xf32>
    %751 = arith.mulf %748, %733 : vector<4x32xf32>
    %752 = arith.mulf %747, %749 : vector<4x32xf32>
    %753 = arith.addf %751, %752 : vector<4x32xf32>
    %754 = math.tanh %753 : vector<4x32xf32>
    %755 = arith.mulf %750, %754 : vector<4x32xf32>
    %c0_144 = arith.constant 0 : index
    %c27 = arith.constant 27 : index
    %c0_145 = arith.constant 0 : index
    %756 = vector.load %arg10[%c0_144, %c27, %c0_145] : memref<4x49x32xf32, #tpu.memory_space<vmem>>, vector<4x1x32xf32>
    %757 = vector.shape_cast %756 : vector<4x1x32xf32> to vector<4x32xf32>
    %758 = vector.shape_cast %755 : vector<4x32xf32> to vector<4x1x32xf32>
    tpu.vector_store %arg10[%c0_144, %c27, %c0_145], %758 {strides = array<i32>} : memref<4x49x32xf32, #tpu.memory_space<vmem>>, vector<4x1x32xf32>,
    %cst_146 = arith.constant dense<0.000000e+00> : vector<4x128xf32>
    %759 = tpu.matmul %755, %6, %cst_146 {dimension_numbers = #tpu.dot_dimension_numbers<[1], [0], [0], [1], [0, 0, 1, 1], [], []>} : vector<4x32xf32>, vector<32x128xf32>, vector<4x128xf32> -> vector<4x128xf32>
    %760 = arith.addf %196, %759 : vector<4x128xf32>
    %761 = arith.negf %760 : vector<4x128xf32>
    %762 = math.exp %761 : vector<4x128xf32>
    %cst_147 = arith.constant 1.000000e+00 : f32
    %763 = vector.broadcast %cst_147 : f32 to vector<4x128xf32>
    %764 = arith.addf %763, %762 : vector<4x128xf32>
    %765 = arith.divf %763, %764 : vector<4x128xf32>
    %766 = math.tanh %760 : vector<4x128xf32>
    %767 = vector.extract_strided_slice %765 {offsets = [0, 0], sizes = [4, 32], strides = [1, 1]} : vector<4x128xf32> to vector<4x32xf32>
    %768 = vector.extract_strided_slice %765 {offsets = [0, 32], sizes = [4, 32], strides = [1, 1]} : vector<4x128xf32> to vector<4x32xf32>
    %769 = vector.extract_strided_slice %766 {offsets = [0, 64], sizes = [4, 32], strides = [1, 1]} : vector<4x128xf32> to vector<4x32xf32>
    %770 = vector.extract_strided_slice %765 {offsets = [0, 96], sizes = [4, 32], strides = [1, 1]} : vector<4x128xf32> to vector<4x32xf32>
    %771 = arith.mulf %768, %753 : vector<4x32xf32>
    %772 = arith.mulf %767, %769 : vector<4x32xf32>
    %773 = arith.addf %771, %772 : vector<4x32xf32>
    %774 = math.tanh %773 : vector<4x32xf32>
    %775 = arith.mulf %770, %774 : vector<4x32xf32>
    %c0_148 = arith.constant 0 : index
    %c28 = arith.constant 28 : index
    %c0_149 = arith.constant 0 : index
    %776 = vector.load %arg10[%c0_148, %c28, %c0_149] : memref<4x49x32xf32, #tpu.memory_space<vmem>>, vector<4x1x32xf32>
    %777 = vector.shape_cast %776 : vector<4x1x32xf32> to vector<4x32xf32>
    %778 = vector.shape_cast %775 : vector<4x32xf32> to vector<4x1x32xf32>
    tpu.vector_store %arg10[%c0_148, %c28, %c0_149], %778 {strides = array<i32>} : memref<4x49x32xf32, #tpu.memory_space<vmem>>, vector<4x1x32xf32>,
    %cst_150 = arith.constant dense<0.000000e+00> : vector<4x128xf32>
    %779 = tpu.matmul %775, %6, %cst_150 {dimension_numbers = #tpu.dot_dimension_numbers<[1], [0], [0], [1], [0, 0, 1, 1], [], []>} : vector<4x32xf32>, vector<32x128xf32>, vector<4x128xf32> -> vector<4x128xf32>
    %780 = arith.addf %196, %779 : vector<4x128xf32>
    %781 = arith.negf %780 : vector<4x128xf32>
    %782 = math.exp %781 : vector<4x128xf32>
    %cst_151 = arith.constant 1.000000e+00 : f32
    %783 = vector.broadcast %cst_151 : f32 to vector<4x128xf32>
    %784 = arith.addf %783, %782 : vector<4x128xf32>
    %785 = arith.divf %783, %784 : vector<4x128xf32>
    %786 = math.tanh %780 : vector<4x128xf32>
    %787 = vector.extract_strided_slice %785 {offsets = [0, 0], sizes = [4, 32], strides = [1, 1]} : vector<4x128xf32> to vector<4x32xf32>
    %788 = vector.extract_strided_slice %785 {offsets = [0, 32], sizes = [4, 32], strides = [1, 1]} : vector<4x128xf32> to vector<4x32xf32>
    %789 = vector.extract_strided_slice %786 {offsets = [0, 64], sizes = [4, 32], strides = [1, 1]} : vector<4x128xf32> to vector<4x32xf32>
    %790 = vector.extract_strided_slice %785 {offsets = [0, 96], sizes = [4, 32], strides = [1, 1]} : vector<4x128xf32> to vector<4x32xf32>
    %791 = arith.mulf %788, %773 : vector<4x32xf32>
    %792 = arith.mulf %787, %789 : vector<4x32xf32>
    %793 = arith.addf %791, %792 : vector<4x32xf32>
    %794 = math.tanh %793 : vector<4x32xf32>
    %795 = arith.mulf %790, %794 : vector<4x32xf32>
    %c0_152 = arith.constant 0 : index
    %c29 = arith.constant 29 : index
    %c0_153 = arith.constant 0 : index
    %796 = vector.load %arg10[%c0_152, %c29, %c0_153] : memref<4x49x32xf32, #tpu.memory_space<vmem>>, vector<4x1x32xf32>
    %797 = vector.shape_cast %796 : vector<4x1x32xf32> to vector<4x32xf32>
    %798 = vector.shape_cast %795 : vector<4x32xf32> to vector<4x1x32xf32>
    tpu.vector_store %arg10[%c0_152, %c29, %c0_153], %798 {strides = array<i32>} : memref<4x49x32xf32, #tpu.memory_space<vmem>>, vector<4x1x32xf32>,
    %cst_154 = arith.constant dense<0.000000e+00> : vector<4x128xf32>
    %799 = tpu.matmul %795, %6, %cst_154 {dimension_numbers = #tpu.dot_dimension_numbers<[1], [0], [0], [1], [0, 0, 1, 1], [], []>} : vector<4x32xf32>, vector<32x128xf32>, vector<4x128xf32> -> vector<4x128xf32>
    %800 = arith.addf %196, %799 : vector<4x128xf32>
    %801 = arith.negf %800 : vector<4x128xf32>
    %802 = math.exp %801 : vector<4x128xf32>
    %cst_155 = arith.constant 1.000000e+00 : f32
    %803 = vector.broadcast %cst_155 : f32 to vector<4x128xf32>
    %804 = arith.addf %803, %802 : vector<4x128xf32>
    %805 = arith.divf %803, %804 : vector<4x128xf32>
    %806 = math.tanh %800 : vector<4x128xf32>
    %807 = vector.extract_strided_slice %805 {offsets = [0, 0], sizes = [4, 32], strides = [1, 1]} : vector<4x128xf32> to vector<4x32xf32>
    %808 = vector.extract_strided_slice %805 {offsets = [0, 32], sizes = [4, 32], strides = [1, 1]} : vector<4x128xf32> to vector<4x32xf32>
    %809 = vector.extract_strided_slice %806 {offsets = [0, 64], sizes = [4, 32], strides = [1, 1]} : vector<4x128xf32> to vector<4x32xf32>
    %810 = vector.extract_strided_slice %805 {offsets = [0, 96], sizes = [4, 32], strides = [1, 1]} : vector<4x128xf32> to vector<4x32xf32>
    %811 = arith.mulf %808, %793 : vector<4x32xf32>
    %812 = arith.mulf %807, %809 : vector<4x32xf32>
    %813 = arith.addf %811, %812 : vector<4x32xf32>
    %814 = math.tanh %813 : vector<4x32xf32>
    %815 = arith.mulf %810, %814 : vector<4x32xf32>
    %c0_156 = arith.constant 0 : index
    %c30 = arith.constant 30 : index
    %c0_157 = arith.constant 0 : index
    %816 = vector.load %arg10[%c0_156, %c30, %c0_157] : memref<4x49x32xf32, #tpu.memory_space<vmem>>, vector<4x1x32xf32>
    %817 = vector.shape_cast %816 : vector<4x1x32xf32> to vector<4x32xf32>
    %818 = vector.shape_cast %815 : vector<4x32xf32> to vector<4x1x32xf32>
    tpu.vector_store %arg10[%c0_156, %c30, %c0_157], %818 {strides = array<i32>} : memref<4x49x32xf32, #tpu.memory_space<vmem>>, vector<4x1x32xf32>,
    %cst_158 = arith.constant dense<0.000000e+00> : vector<4x128xf32>
    %819 = tpu.matmul %815, %6, %cst_158 {dimension_numbers = #tpu.dot_dimension_numbers<[1], [0], [0], [1], [0, 0, 1, 1], [], []>} : vector<4x32xf32>, vector<32x128xf32>, vector<4x128xf32> -> vector<4x128xf32>
    %820 = arith.addf %196, %819 : vector<4x128xf32>
    %821 = arith.negf %820 : vector<4x128xf32>
    %822 = math.exp %821 : vector<4x128xf32>
    %cst_159 = arith.constant 1.000000e+00 : f32
    %823 = vector.broadcast %cst_159 : f32 to vector<4x128xf32>
    %824 = arith.addf %823, %822 : vector<4x128xf32>
    %825 = arith.divf %823, %824 : vector<4x128xf32>
    %826 = math.tanh %820 : vector<4x128xf32>
    %827 = vector.extract_strided_slice %825 {offsets = [0, 0], sizes = [4, 32], strides = [1, 1]} : vector<4x128xf32> to vector<4x32xf32>
    %828 = vector.extract_strided_slice %825 {offsets = [0, 32], sizes = [4, 32], strides = [1, 1]} : vector<4x128xf32> to vector<4x32xf32>
    %829 = vector.extract_strided_slice %826 {offsets = [0, 64], sizes = [4, 32], strides = [1, 1]} : vector<4x128xf32> to vector<4x32xf32>
    %830 = vector.extract_strided_slice %825 {offsets = [0, 96], sizes = [4, 32], strides = [1, 1]} : vector<4x128xf32> to vector<4x32xf32>
    %831 = arith.mulf %828, %813 : vector<4x32xf32>
    %832 = arith.mulf %827, %829 : vector<4x32xf32>
    %833 = arith.addf %831, %832 : vector<4x32xf32>
    %834 = math.tanh %833 : vector<4x32xf32>
    %835 = arith.mulf %830, %834 : vector<4x32xf32>
    %c0_160 = arith.constant 0 : index
    %c31 = arith.constant 31 : index
    %c0_161 = arith.constant 0 : index
    %836 = vector.load %arg10[%c0_160, %c31, %c0_161] : memref<4x49x32xf32, #tpu.memory_space<vmem>>, vector<4x1x32xf32>
    %837 = vector.shape_cast %836 : vector<4x1x32xf32> to vector<4x32xf32>
    %838 = vector.shape_cast %835 : vector<4x32xf32> to vector<4x1x32xf32>
    tpu.vector_store %arg10[%c0_160, %c31, %c0_161], %838 {strides = array<i32>} : memref<4x49x32xf32, #tpu.memory_space<vmem>>, vector<4x1x32xf32>,
    %cst_162 = arith.constant dense<0.000000e+00> : vector<4x128xf32>
    %839 = tpu.matmul %835, %6, %cst_162 {dimension_numbers = #tpu.dot_dimension_numbers<[1], [0], [0], [1], [0, 0, 1, 1], [], []>} : vector<4x32xf32>, vector<32x128xf32>, vector<4x128xf32> -> vector<4x128xf32>
    %840 = arith.addf %196, %839 : vector<4x128xf32>
    %841 = arith.negf %840 : vector<4x128xf32>
    %842 = math.exp %841 : vector<4x128xf32>
    %cst_163 = arith.constant 1.000000e+00 : f32
    %843 = vector.broadcast %cst_163 : f32 to vector<4x128xf32>
    %844 = arith.addf %843, %842 : vector<4x128xf32>
    %845 = arith.divf %843, %844 : vector<4x128xf32>
    %846 = math.tanh %840 : vector<4x128xf32>
    %847 = vector.extract_strided_slice %845 {offsets = [0, 0], sizes = [4, 32], strides = [1, 1]} : vector<4x128xf32> to vector<4x32xf32>
    %848 = vector.extract_strided_slice %845 {offsets = [0, 32], sizes = [4, 32], strides = [1, 1]} : vector<4x128xf32> to vector<4x32xf32>
    %849 = vector.extract_strided_slice %846 {offsets = [0, 64], sizes = [4, 32], strides = [1, 1]} : vector<4x128xf32> to vector<4x32xf32>
    %850 = vector.extract_strided_slice %845 {offsets = [0, 96], sizes = [4, 32], strides = [1, 1]} : vector<4x128xf32> to vector<4x32xf32>
    %851 = arith.mulf %848, %833 : vector<4x32xf32>
    %852 = arith.mulf %847, %849 : vector<4x32xf32>
    %853 = arith.addf %851, %852 : vector<4x32xf32>
    %854 = math.tanh %853 : vector<4x32xf32>
    %855 = arith.mulf %850, %854 : vector<4x32xf32>
    %c0_164 = arith.constant 0 : index
    %c32 = arith.constant 32 : index
    %c0_165 = arith.constant 0 : index
    %856 = vector.load %arg10[%c0_164, %c32, %c0_165] : memref<4x49x32xf32, #tpu.memory_space<vmem>>, vector<4x1x32xf32>
    %857 = vector.shape_cast %856 : vector<4x1x32xf32> to vector<4x32xf32>
    %858 = vector.shape_cast %855 : vector<4x32xf32> to vector<4x1x32xf32>
    tpu.vector_store %arg10[%c0_164, %c32, %c0_165], %858 {strides = array<i32>} : memref<4x49x32xf32, #tpu.memory_space<vmem>>, vector<4x1x32xf32>,
    %cst_166 = arith.constant dense<0.000000e+00> : vector<4x128xf32>
    %859 = tpu.matmul %855, %6, %cst_166 {dimension_numbers = #tpu.dot_dimension_numbers<[1], [0], [0], [1], [0, 0, 1, 1], [], []>} : vector<4x32xf32>, vector<32x128xf32>, vector<4x128xf32> -> vector<4x128xf32>
    %860 = arith.addf %196, %859 : vector<4x128xf32>
    %861 = arith.negf %860 : vector<4x128xf32>
    %862 = math.exp %861 : vector<4x128xf32>
    %cst_167 = arith.constant 1.000000e+00 : f32
    %863 = vector.broadcast %cst_167 : f32 to vector<4x128xf32>
    %864 = arith.addf %863, %862 : vector<4x128xf32>
    %865 = arith.divf %863, %864 : vector<4x128xf32>
    %866 = math.tanh %860 : vector<4x128xf32>
    %867 = vector.extract_strided_slice %865 {offsets = [0, 0], sizes = [4, 32], strides = [1, 1]} : vector<4x128xf32> to vector<4x32xf32>
    %868 = vector.extract_strided_slice %865 {offsets = [0, 32], sizes = [4, 32], strides = [1, 1]} : vector<4x128xf32> to vector<4x32xf32>
    %869 = vector.extract_strided_slice %866 {offsets = [0, 64], sizes = [4, 32], strides = [1, 1]} : vector<4x128xf32> to vector<4x32xf32>
    %870 = vector.extract_strided_slice %865 {offsets = [0, 96], sizes = [4, 32], strides = [1, 1]} : vector<4x128xf32> to vector<4x32xf32>
    %871 = arith.mulf %868, %853 : vector<4x32xf32>
    %872 = arith.mulf %867, %869 : vector<4x32xf32>
    %873 = arith.addf %871, %872 : vector<4x32xf32>
    %874 = math.tanh %873 : vector<4x32xf32>
    %875 = arith.mulf %870, %874 : vector<4x32xf32>
    %c0_168 = arith.constant 0 : index
    %c33 = arith.constant 33 : index
    %c0_169 = arith.constant 0 : index
    %876 = vector.load %arg10[%c0_168, %c33, %c0_169] : memref<4x49x32xf32, #tpu.memory_space<vmem>>, vector<4x1x32xf32>
    %877 = vector.shape_cast %876 : vector<4x1x32xf32> to vector<4x32xf32>
    %878 = vector.shape_cast %875 : vector<4x32xf32> to vector<4x1x32xf32>
    tpu.vector_store %arg10[%c0_168, %c33, %c0_169], %878 {strides = array<i32>} : memref<4x49x32xf32, #tpu.memory_space<vmem>>, vector<4x1x32xf32>,
    %cst_170 = arith.constant dense<0.000000e+00> : vector<4x128xf32>
    %879 = tpu.matmul %875, %6, %cst_170 {dimension_numbers = #tpu.dot_dimension_numbers<[1], [0], [0], [1], [0, 0, 1, 1], [], []>} : vector<4x32xf32>, vector<32x128xf32>, vector<4x128xf32> -> vector<4x128xf32>
    %880 = arith.addf %196, %879 : vector<4x128xf32>
    %881 = arith.negf %880 : vector<4x128xf32>
    %882 = math.exp %881 : vector<4x128xf32>
    %cst_171 = arith.constant 1.000000e+00 : f32
    %883 = vector.broadcast %cst_171 : f32 to vector<4x128xf32>
    %884 = arith.addf %883, %882 : vector<4x128xf32>
    %885 = arith.divf %883, %884 : vector<4x128xf32>
    %886 = math.tanh %880 : vector<4x128xf32>
    %887 = vector.extract_strided_slice %885 {offsets = [0, 0], sizes = [4, 32], strides = [1, 1]} : vector<4x128xf32> to vector<4x32xf32>
    %888 = vector.extract_strided_slice %885 {offsets = [0, 32], sizes = [4, 32], strides = [1, 1]} : vector<4x128xf32> to vector<4x32xf32>
    %889 = vector.extract_strided_slice %886 {offsets = [0, 64], sizes = [4, 32], strides = [1, 1]} : vector<4x128xf32> to vector<4x32xf32>
    %890 = vector.extract_strided_slice %885 {offsets = [0, 96], sizes = [4, 32], strides = [1, 1]} : vector<4x128xf32> to vector<4x32xf32>
    %891 = arith.mulf %888, %873 : vector<4x32xf32>
    %892 = arith.mulf %887, %889 : vector<4x32xf32>
    %893 = arith.addf %891, %892 : vector<4x32xf32>
    %894 = math.tanh %893 : vector<4x32xf32>
    %895 = arith.mulf %890, %894 : vector<4x32xf32>
    %c0_172 = arith.constant 0 : index
    %c34 = arith.constant 34 : index
    %c0_173 = arith.constant 0 : index
    %896 = vector.load %arg10[%c0_172, %c34, %c0_173] : memref<4x49x32xf32, #tpu.memory_space<vmem>>, vector<4x1x32xf32>
    %897 = vector.shape_cast %896 : vector<4x1x32xf32> to vector<4x32xf32>
    %898 = vector.shape_cast %895 : vector<4x32xf32> to vector<4x1x32xf32>
    tpu.vector_store %arg10[%c0_172, %c34, %c0_173], %898 {strides = array<i32>} : memref<4x49x32xf32, #tpu.memory_space<vmem>>, vector<4x1x32xf32>,
    %cst_174 = arith.constant dense<0.000000e+00> : vector<4x128xf32>
    %899 = tpu.matmul %895, %6, %cst_174 {dimension_numbers = #tpu.dot_dimension_numbers<[1], [0], [0], [1], [0, 0, 1, 1], [], []>} : vector<4x32xf32>, vector<32x128xf32>, vector<4x128xf32> -> vector<4x128xf32>
    %900 = arith.addf %196, %899 : vector<4x128xf32>
    %901 = arith.negf %900 : vector<4x128xf32>
    %902 = math.exp %901 : vector<4x128xf32>
    %cst_175 = arith.constant 1.000000e+00 : f32
    %903 = vector.broadcast %cst_175 : f32 to vector<4x128xf32>
    %904 = arith.addf %903, %902 : vector<4x128xf32>
    %905 = arith.divf %903, %904 : vector<4x128xf32>
    %906 = math.tanh %900 : vector<4x128xf32>
    %907 = vector.extract_strided_slice %905 {offsets = [0, 0], sizes = [4, 32], strides = [1, 1]} : vector<4x128xf32> to vector<4x32xf32>
    %908 = vector.extract_strided_slice %905 {offsets = [0, 32], sizes = [4, 32], strides = [1, 1]} : vector<4x128xf32> to vector<4x32xf32>
    %909 = vector.extract_strided_slice %906 {offsets = [0, 64], sizes = [4, 32], strides = [1, 1]} : vector<4x128xf32> to vector<4x32xf32>
    %910 = vector.extract_strided_slice %905 {offsets = [0, 96], sizes = [4, 32], strides = [1, 1]} : vector<4x128xf32> to vector<4x32xf32>
    %911 = arith.mulf %908, %893 : vector<4x32xf32>
    %912 = arith.mulf %907, %909 : vector<4x32xf32>
    %913 = arith.addf %911, %912 : vector<4x32xf32>
    %914 = math.tanh %913 : vector<4x32xf32>
    %915 = arith.mulf %910, %914 : vector<4x32xf32>
    %c0_176 = arith.constant 0 : index
    %c35 = arith.constant 35 : index
    %c0_177 = arith.constant 0 : index
    %916 = vector.load %arg10[%c0_176, %c35, %c0_177] : memref<4x49x32xf32, #tpu.memory_space<vmem>>, vector<4x1x32xf32>
    %917 = vector.shape_cast %916 : vector<4x1x32xf32> to vector<4x32xf32>
    %918 = vector.shape_cast %915 : vector<4x32xf32> to vector<4x1x32xf32>
    tpu.vector_store %arg10[%c0_176, %c35, %c0_177], %918 {strides = array<i32>} : memref<4x49x32xf32, #tpu.memory_space<vmem>>, vector<4x1x32xf32>,
    %cst_178 = arith.constant dense<0.000000e+00> : vector<4x128xf32>
    %919 = tpu.matmul %915, %6, %cst_178 {dimension_numbers = #tpu.dot_dimension_numbers<[1], [0], [0], [1], [0, 0, 1, 1], [], []>} : vector<4x32xf32>, vector<32x128xf32>, vector<4x128xf32> -> vector<4x128xf32>
    %920 = arith.addf %196, %919 : vector<4x128xf32>
    %921 = arith.negf %920 : vector<4x128xf32>
    %922 = math.exp %921 : vector<4x128xf32>
    %cst_179 = arith.constant 1.000000e+00 : f32
    %923 = vector.broadcast %cst_179 : f32 to vector<4x128xf32>
    %924 = arith.addf %923, %922 : vector<4x128xf32>
    %925 = arith.divf %923, %924 : vector<4x128xf32>
    %926 = math.tanh %920 : vector<4x128xf32>
    %927 = vector.extract_strided_slice %925 {offsets = [0, 0], sizes = [4, 32], strides = [1, 1]} : vector<4x128xf32> to vector<4x32xf32>
    %928 = vector.extract_strided_slice %925 {offsets = [0, 32], sizes = [4, 32], strides = [1, 1]} : vector<4x128xf32> to vector<4x32xf32>
    %929 = vector.extract_strided_slice %926 {offsets = [0, 64], sizes = [4, 32], strides = [1, 1]} : vector<4x128xf32> to vector<4x32xf32>
    %930 = vector.extract_strided_slice %925 {offsets = [0, 96], sizes = [4, 32], strides = [1, 1]} : vector<4x128xf32> to vector<4x32xf32>
    %931 = arith.mulf %928, %913 : vector<4x32xf32>
    %932 = arith.mulf %927, %929 : vector<4x32xf32>
    %933 = arith.addf %931, %932 : vector<4x32xf32>
    %934 = math.tanh %933 : vector<4x32xf32>
    %935 = arith.mulf %930, %934 : vector<4x32xf32>
    %c0_180 = arith.constant 0 : index
    %c36 = arith.constant 36 : index
    %c0_181 = arith.constant 0 : index
    %936 = vector.load %arg10[%c0_180, %c36, %c0_181] : memref<4x49x32xf32, #tpu.memory_space<vmem>>, vector<4x1x32xf32>
    %937 = vector.shape_cast %936 : vector<4x1x32xf32> to vector<4x32xf32>
    %938 = vector.shape_cast %935 : vector<4x32xf32> to vector<4x1x32xf32>
    tpu.vector_store %arg10[%c0_180, %c36, %c0_181], %938 {strides = array<i32>} : memref<4x49x32xf32, #tpu.memory_space<vmem>>, vector<4x1x32xf32>,
    %cst_182 = arith.constant dense<0.000000e+00> : vector<4x128xf32>
    %939 = tpu.matmul %935, %6, %cst_182 {dimension_numbers = #tpu.dot_dimension_numbers<[1], [0], [0], [1], [0, 0, 1, 1], [], []>} : vector<4x32xf32>, vector<32x128xf32>, vector<4x128xf32> -> vector<4x128xf32>
    %940 = arith.addf %196, %939 : vector<4x128xf32>
    %941 = arith.negf %940 : vector<4x128xf32>
    %942 = math.exp %941 : vector<4x128xf32>
    %cst_183 = arith.constant 1.000000e+00 : f32
    %943 = vector.broadcast %cst_183 : f32 to vector<4x128xf32>
    %944 = arith.addf %943, %942 : vector<4x128xf32>
    %945 = arith.divf %943, %944 : vector<4x128xf32>
    %946 = math.tanh %940 : vector<4x128xf32>
    %947 = vector.extract_strided_slice %945 {offsets = [0, 0], sizes = [4, 32], strides = [1, 1]} : vector<4x128xf32> to vector<4x32xf32>
    %948 = vector.extract_strided_slice %945 {offsets = [0, 32], sizes = [4, 32], strides = [1, 1]} : vector<4x128xf32> to vector<4x32xf32>
    %949 = vector.extract_strided_slice %946 {offsets = [0, 64], sizes = [4, 32], strides = [1, 1]} : vector<4x128xf32> to vector<4x32xf32>
    %950 = vector.extract_strided_slice %945 {offsets = [0, 96], sizes = [4, 32], strides = [1, 1]} : vector<4x128xf32> to vector<4x32xf32>
    %951 = arith.mulf %948, %933 : vector<4x32xf32>
    %952 = arith.mulf %947, %949 : vector<4x32xf32>
    %953 = arith.addf %951, %952 : vector<4x32xf32>
    %954 = math.tanh %953 : vector<4x32xf32>
    %955 = arith.mulf %950, %954 : vector<4x32xf32>
    %c0_184 = arith.constant 0 : index
    %c37 = arith.constant 37 : index
    %c0_185 = arith.constant 0 : index
    %956 = vector.load %arg10[%c0_184, %c37, %c0_185] : memref<4x49x32xf32, #tpu.memory_space<vmem>>, vector<4x1x32xf32>
    %957 = vector.shape_cast %956 : vector<4x1x32xf32> to vector<4x32xf32>
    %958 = vector.shape_cast %955 : vector<4x32xf32> to vector<4x1x32xf32>
    tpu.vector_store %arg10[%c0_184, %c37, %c0_185], %958 {strides = array<i32>} : memref<4x49x32xf32, #tpu.memory_space<vmem>>, vector<4x1x32xf32>,
    %cst_186 = arith.constant dense<0.000000e+00> : vector<4x128xf32>
    %959 = tpu.matmul %955, %6, %cst_186 {dimension_numbers = #tpu.dot_dimension_numbers<[1], [0], [0], [1], [0, 0, 1, 1], [], []>} : vector<4x32xf32>, vector<32x128xf32>, vector<4x128xf32> -> vector<4x128xf32>
    %960 = arith.addf %196, %959 : vector<4x128xf32>
    %961 = arith.negf %960 : vector<4x128xf32>
    %962 = math.exp %961 : vector<4x128xf32>
    %cst_187 = arith.constant 1.000000e+00 : f32
    %963 = vector.broadcast %cst_187 : f32 to vector<4x128xf32>
    %964 = arith.addf %963, %962 : vector<4x128xf32>
    %965 = arith.divf %963, %964 : vector<4x128xf32>
    %966 = math.tanh %960 : vector<4x128xf32>
    %967 = vector.extract_strided_slice %965 {offsets = [0, 0], sizes = [4, 32], strides = [1, 1]} : vector<4x128xf32> to vector<4x32xf32>
    %968 = vector.extract_strided_slice %965 {offsets = [0, 32], sizes = [4, 32], strides = [1, 1]} : vector<4x128xf32> to vector<4x32xf32>
    %969 = vector.extract_strided_slice %966 {offsets = [0, 64], sizes = [4, 32], strides = [1, 1]} : vector<4x128xf32> to vector<4x32xf32>
    %970 = vector.extract_strided_slice %965 {offsets = [0, 96], sizes = [4, 32], strides = [1, 1]} : vector<4x128xf32> to vector<4x32xf32>
    %971 = arith.mulf %968, %953 : vector<4x32xf32>
    %972 = arith.mulf %967, %969 : vector<4x32xf32>
    %973 = arith.addf %971, %972 : vector<4x32xf32>
    %974 = math.tanh %973 : vector<4x32xf32>
    %975 = arith.mulf %970, %974 : vector<4x32xf32>
    %c0_188 = arith.constant 0 : index
    %c38 = arith.constant 38 : index
    %c0_189 = arith.constant 0 : index
    %976 = vector.load %arg10[%c0_188, %c38, %c0_189] : memref<4x49x32xf32, #tpu.memory_space<vmem>>, vector<4x1x32xf32>
    %977 = vector.shape_cast %976 : vector<4x1x32xf32> to vector<4x32xf32>
    %978 = vector.shape_cast %975 : vector<4x32xf32> to vector<4x1x32xf32>
    tpu.vector_store %arg10[%c0_188, %c38, %c0_189], %978 {strides = array<i32>} : memref<4x49x32xf32, #tpu.memory_space<vmem>>, vector<4x1x32xf32>,
    %cst_190 = arith.constant dense<0.000000e+00> : vector<4x128xf32>
    %979 = tpu.matmul %975, %6, %cst_190 {dimension_numbers = #tpu.dot_dimension_numbers<[1], [0], [0], [1], [0, 0, 1, 1], [], []>} : vector<4x32xf32>, vector<32x128xf32>, vector<4x128xf32> -> vector<4x128xf32>
    %980 = arith.addf %196, %979 : vector<4x128xf32>
    %981 = arith.negf %980 : vector<4x128xf32>
    %982 = math.exp %981 : vector<4x128xf32>
    %cst_191 = arith.constant 1.000000e+00 : f32
    %983 = vector.broadcast %cst_191 : f32 to vector<4x128xf32>
    %984 = arith.addf %983, %982 : vector<4x128xf32>
    %985 = arith.divf %983, %984 : vector<4x128xf32>
    %986 = math.tanh %980 : vector<4x128xf32>
    %987 = vector.extract_strided_slice %985 {offsets = [0, 0], sizes = [4, 32], strides = [1, 1]} : vector<4x128xf32> to vector<4x32xf32>
    %988 = vector.extract_strided_slice %985 {offsets = [0, 32], sizes = [4, 32], strides = [1, 1]} : vector<4x128xf32> to vector<4x32xf32>
    %989 = vector.extract_strided_slice %986 {offsets = [0, 64], sizes = [4, 32], strides = [1, 1]} : vector<4x128xf32> to vector<4x32xf32>
    %990 = vector.extract_strided_slice %985 {offsets = [0, 96], sizes = [4, 32], strides = [1, 1]} : vector<4x128xf32> to vector<4x32xf32>
    %991 = arith.mulf %988, %973 : vector<4x32xf32>
    %992 = arith.mulf %987, %989 : vector<4x32xf32>
    %993 = arith.addf %991, %992 : vector<4x32xf32>
    %994 = math.tanh %993 : vector<4x32xf32>
    %995 = arith.mulf %990, %994 : vector<4x32xf32>
    %c0_192 = arith.constant 0 : index
    %c39 = arith.constant 39 : index
    %c0_193 = arith.constant 0 : index
    %996 = vector.load %arg10[%c0_192, %c39, %c0_193] : memref<4x49x32xf32, #tpu.memory_space<vmem>>, vector<4x1x32xf32>
    %997 = vector.shape_cast %996 : vector<4x1x32xf32> to vector<4x32xf32>
    %998 = vector.shape_cast %995 : vector<4x32xf32> to vector<4x1x32xf32>
    tpu.vector_store %arg10[%c0_192, %c39, %c0_193], %998 {strides = array<i32>} : memref<4x49x32xf32, #tpu.memory_space<vmem>>, vector<4x1x32xf32>,
    %cst_194 = arith.constant dense<0.000000e+00> : vector<4x128xf32>
    %999 = tpu.matmul %995, %6, %cst_194 {dimension_numbers = #tpu.dot_dimension_numbers<[1], [0], [0], [1], [0, 0, 1, 1], [], []>} : vector<4x32xf32>, vector<32x128xf32>, vector<4x128xf32> -> vector<4x128xf32>
    %1000 = arith.addf %196, %999 : vector<4x128xf32>
    %1001 = arith.negf %1000 : vector<4x128xf32>
    %1002 = math.exp %1001 : vector<4x128xf32>
    %cst_195 = arith.constant 1.000000e+00 : f32
    %1003 = vector.broadcast %cst_195 : f32 to vector<4x128xf32>
    %1004 = arith.addf %1003, %1002 : vector<4x128xf32>
    %1005 = arith.divf %1003, %1004 : vector<4x128xf32>
    %1006 = math.tanh %1000 : vector<4x128xf32>
    %1007 = vector.extract_strided_slice %1005 {offsets = [0, 0], sizes = [4, 32], strides = [1, 1]} : vector<4x128xf32> to vector<4x32xf32>
    %1008 = vector.extract_strided_slice %1005 {offsets = [0, 32], sizes = [4, 32], strides = [1, 1]} : vector<4x128xf32> to vector<4x32xf32>
    %1009 = vector.extract_strided_slice %1006 {offsets = [0, 64], sizes = [4, 32], strides = [1, 1]} : vector<4x128xf32> to vector<4x32xf32>
    %1010 = vector.extract_strided_slice %1005 {offsets = [0, 96], sizes = [4, 32], strides = [1, 1]} : vector<4x128xf32> to vector<4x32xf32>
    %1011 = arith.mulf %1008, %993 : vector<4x32xf32>
    %1012 = arith.mulf %1007, %1009 : vector<4x32xf32>
    %1013 = arith.addf %1011, %1012 : vector<4x32xf32>
    %1014 = math.tanh %1013 : vector<4x32xf32>
    %1015 = arith.mulf %1010, %1014 : vector<4x32xf32>
    %c0_196 = arith.constant 0 : index
    %c40 = arith.constant 40 : index
    %c0_197 = arith.constant 0 : index
    %1016 = vector.load %arg10[%c0_196, %c40, %c0_197] : memref<4x49x32xf32, #tpu.memory_space<vmem>>, vector<4x1x32xf32>
    %1017 = vector.shape_cast %1016 : vector<4x1x32xf32> to vector<4x32xf32>
    %1018 = vector.shape_cast %1015 : vector<4x32xf32> to vector<4x1x32xf32>
    tpu.vector_store %arg10[%c0_196, %c40, %c0_197], %1018 {strides = array<i32>} : memref<4x49x32xf32, #tpu.memory_space<vmem>>, vector<4x1x32xf32>,
    %cst_198 = arith.constant dense<0.000000e+00> : vector<4x128xf32>
    %1019 = tpu.matmul %1015, %6, %cst_198 {dimension_numbers = #tpu.dot_dimension_numbers<[1], [0], [0], [1], [0, 0, 1, 1], [], []>} : vector<4x32xf32>, vector<32x128xf32>, vector<4x128xf32> -> vector<4x128xf32>
    %1020 = arith.addf %196, %1019 : vector<4x128xf32>
    %1021 = arith.negf %1020 : vector<4x128xf32>
    %1022 = math.exp %1021 : vector<4x128xf32>
    %cst_199 = arith.constant 1.000000e+00 : f32
    %1023 = vector.broadcast %cst_199 : f32 to vector<4x128xf32>
    %1024 = arith.addf %1023, %1022 : vector<4x128xf32>
    %1025 = arith.divf %1023, %1024 : vector<4x128xf32>
    %1026 = math.tanh %1020 : vector<4x128xf32>
    %1027 = vector.extract_strided_slice %1025 {offsets = [0, 0], sizes = [4, 32], strides = [1, 1]} : vector<4x128xf32> to vector<4x32xf32>
    %1028 = vector.extract_strided_slice %1025 {offsets = [0, 32], sizes = [4, 32], strides = [1, 1]} : vector<4x128xf32> to vector<4x32xf32>
    %1029 = vector.extract_strided_slice %1026 {offsets = [0, 64], sizes = [4, 32], strides = [1, 1]} : vector<4x128xf32> to vector<4x32xf32>
    %1030 = vector.extract_strided_slice %1025 {offsets = [0, 96], sizes = [4, 32], strides = [1, 1]} : vector<4x128xf32> to vector<4x32xf32>
    %1031 = arith.mulf %1028, %1013 : vector<4x32xf32>
    %1032 = arith.mulf %1027, %1029 : vector<4x32xf32>
    %1033 = arith.addf %1031, %1032 : vector<4x32xf32>
    %1034 = math.tanh %1033 : vector<4x32xf32>
    %1035 = arith.mulf %1030, %1034 : vector<4x32xf32>
    %c0_200 = arith.constant 0 : index
    %c41 = arith.constant 41 : index
    %c0_201 = arith.constant 0 : index
    %1036 = vector.load %arg10[%c0_200, %c41, %c0_201] : memref<4x49x32xf32, #tpu.memory_space<vmem>>, vector<4x1x32xf32>
    %1037 = vector.shape_cast %1036 : vector<4x1x32xf32> to vector<4x32xf32>
    %1038 = vector.shape_cast %1035 : vector<4x32xf32> to vector<4x1x32xf32>
    tpu.vector_store %arg10[%c0_200, %c41, %c0_201], %1038 {strides = array<i32>} : memref<4x49x32xf32, #tpu.memory_space<vmem>>, vector<4x1x32xf32>,
    %cst_202 = arith.constant dense<0.000000e+00> : vector<4x128xf32>
    %1039 = tpu.matmul %1035, %6, %cst_202 {dimension_numbers = #tpu.dot_dimension_numbers<[1], [0], [0], [1], [0, 0, 1, 1], [], []>} : vector<4x32xf32>, vector<32x128xf32>, vector<4x128xf32> -> vector<4x128xf32>
    %1040 = arith.addf %196, %1039 : vector<4x128xf32>
    %1041 = arith.negf %1040 : vector<4x128xf32>
    %1042 = math.exp %1041 : vector<4x128xf32>
    %cst_203 = arith.constant 1.000000e+00 : f32
    %1043 = vector.broadcast %cst_203 : f32 to vector<4x128xf32>
    %1044 = arith.addf %1043, %1042 : vector<4x128xf32>
    %1045 = arith.divf %1043, %1044 : vector<4x128xf32>
    %1046 = math.tanh %1040 : vector<4x128xf32>
    %1047 = vector.extract_strided_slice %1045 {offsets = [0, 0], sizes = [4, 32], strides = [1, 1]} : vector<4x128xf32> to vector<4x32xf32>
    %1048 = vector.extract_strided_slice %1045 {offsets = [0, 32], sizes = [4, 32], strides = [1, 1]} : vector<4x128xf32> to vector<4x32xf32>
    %1049 = vector.extract_strided_slice %1046 {offsets = [0, 64], sizes = [4, 32], strides = [1, 1]} : vector<4x128xf32> to vector<4x32xf32>
    %1050 = vector.extract_strided_slice %1045 {offsets = [0, 96], sizes = [4, 32], strides = [1, 1]} : vector<4x128xf32> to vector<4x32xf32>
    %1051 = arith.mulf %1048, %1033 : vector<4x32xf32>
    %1052 = arith.mulf %1047, %1049 : vector<4x32xf32>
    %1053 = arith.addf %1051, %1052 : vector<4x32xf32>
    %1054 = math.tanh %1053 : vector<4x32xf32>
    %1055 = arith.mulf %1050, %1054 : vector<4x32xf32>
    %c0_204 = arith.constant 0 : index
    %c42 = arith.constant 42 : index
    %c0_205 = arith.constant 0 : index
    %1056 = vector.load %arg10[%c0_204, %c42, %c0_205] : memref<4x49x32xf32, #tpu.memory_space<vmem>>, vector<4x1x32xf32>
    %1057 = vector.shape_cast %1056 : vector<4x1x32xf32> to vector<4x32xf32>
    %1058 = vector.shape_cast %1055 : vector<4x32xf32> to vector<4x1x32xf32>
    tpu.vector_store %arg10[%c0_204, %c42, %c0_205], %1058 {strides = array<i32>} : memref<4x49x32xf32, #tpu.memory_space<vmem>>, vector<4x1x32xf32>,
    %cst_206 = arith.constant dense<0.000000e+00> : vector<4x128xf32>
    %1059 = tpu.matmul %1055, %6, %cst_206 {dimension_numbers = #tpu.dot_dimension_numbers<[1], [0], [0], [1], [0, 0, 1, 1], [], []>} : vector<4x32xf32>, vector<32x128xf32>, vector<4x128xf32> -> vector<4x128xf32>
    %1060 = arith.addf %196, %1059 : vector<4x128xf32>
    %1061 = arith.negf %1060 : vector<4x128xf32>
    %1062 = math.exp %1061 : vector<4x128xf32>
    %cst_207 = arith.constant 1.000000e+00 : f32
    %1063 = vector.broadcast %cst_207 : f32 to vector<4x128xf32>
    %1064 = arith.addf %1063, %1062 : vector<4x128xf32>
    %1065 = arith.divf %1063, %1064 : vector<4x128xf32>
    %1066 = math.tanh %1060 : vector<4x128xf32>
    %1067 = vector.extract_strided_slice %1065 {offsets = [0, 0], sizes = [4, 32], strides = [1, 1]} : vector<4x128xf32> to vector<4x32xf32>
    %1068 = vector.extract_strided_slice %1065 {offsets = [0, 32], sizes = [4, 32], strides = [1, 1]} : vector<4x128xf32> to vector<4x32xf32>
    %1069 = vector.extract_strided_slice %1066 {offsets = [0, 64], sizes = [4, 32], strides = [1, 1]} : vector<4x128xf32> to vector<4x32xf32>
    %1070 = vector.extract_strided_slice %1065 {offsets = [0, 96], sizes = [4, 32], strides = [1, 1]} : vector<4x128xf32> to vector<4x32xf32>
    %1071 = arith.mulf %1068, %1053 : vector<4x32xf32>
    %1072 = arith.mulf %1067, %1069 : vector<4x32xf32>
    %1073 = arith.addf %1071, %1072 : vector<4x32xf32>
    %1074 = math.tanh %1073 : vector<4x32xf32>
    %1075 = arith.mulf %1070, %1074 : vector<4x32xf32>
    %c0_208 = arith.constant 0 : index
    %c43 = arith.constant 43 : index
    %c0_209 = arith.constant 0 : index
    %1076 = vector.load %arg10[%c0_208, %c43, %c0_209] : memref<4x49x32xf32, #tpu.memory_space<vmem>>, vector<4x1x32xf32>
    %1077 = vector.shape_cast %1076 : vector<4x1x32xf32> to vector<4x32xf32>
    %1078 = vector.shape_cast %1075 : vector<4x32xf32> to vector<4x1x32xf32>
    tpu.vector_store %arg10[%c0_208, %c43, %c0_209], %1078 {strides = array<i32>} : memref<4x49x32xf32, #tpu.memory_space<vmem>>, vector<4x1x32xf32>,
    %cst_210 = arith.constant dense<0.000000e+00> : vector<4x128xf32>
    %1079 = tpu.matmul %1075, %6, %cst_210 {dimension_numbers = #tpu.dot_dimension_numbers<[1], [0], [0], [1], [0, 0, 1, 1], [], []>} : vector<4x32xf32>, vector<32x128xf32>, vector<4x128xf32> -> vector<4x128xf32>
    %1080 = arith.addf %196, %1079 : vector<4x128xf32>
    %1081 = arith.negf %1080 : vector<4x128xf32>
    %1082 = math.exp %1081 : vector<4x128xf32>
    %cst_211 = arith.constant 1.000000e+00 : f32
    %1083 = vector.broadcast %cst_211 : f32 to vector<4x128xf32>
    %1084 = arith.addf %1083, %1082 : vector<4x128xf32>
    %1085 = arith.divf %1083, %1084 : vector<4x128xf32>
    %1086 = math.tanh %1080 : vector<4x128xf32>
    %1087 = vector.extract_strided_slice %1085 {offsets = [0, 0], sizes = [4, 32], strides = [1, 1]} : vector<4x128xf32> to vector<4x32xf32>
    %1088 = vector.extract_strided_slice %1085 {offsets = [0, 32], sizes = [4, 32], strides = [1, 1]} : vector<4x128xf32> to vector<4x32xf32>
    %1089 = vector.extract_strided_slice %1086 {offsets = [0, 64], sizes = [4, 32], strides = [1, 1]} : vector<4x128xf32> to vector<4x32xf32>
    %1090 = vector.extract_strided_slice %1085 {offsets = [0, 96], sizes = [4, 32], strides = [1, 1]} : vector<4x128xf32> to vector<4x32xf32>
    %1091 = arith.mulf %1088, %1073 : vector<4x32xf32>
    %1092 = arith.mulf %1087, %1089 : vector<4x32xf32>
    %1093 = arith.addf %1091, %1092 : vector<4x32xf32>
    %1094 = math.tanh %1093 : vector<4x32xf32>
    %1095 = arith.mulf %1090, %1094 : vector<4x32xf32>
    %c0_212 = arith.constant 0 : index
    %c44 = arith.constant 44 : index
    %c0_213 = arith.constant 0 : index
    %1096 = vector.load %arg10[%c0_212, %c44, %c0_213] : memref<4x49x32xf32, #tpu.memory_space<vmem>>, vector<4x1x32xf32>
    %1097 = vector.shape_cast %1096 : vector<4x1x32xf32> to vector<4x32xf32>
    %1098 = vector.shape_cast %1095 : vector<4x32xf32> to vector<4x1x32xf32>
    tpu.vector_store %arg10[%c0_212, %c44, %c0_213], %1098 {strides = array<i32>} : memref<4x49x32xf32, #tpu.memory_space<vmem>>, vector<4x1x32xf32>,
    %cst_214 = arith.constant dense<0.000000e+00> : vector<4x128xf32>
    %1099 = tpu.matmul %1095, %6, %cst_214 {dimension_numbers = #tpu.dot_dimension_numbers<[1], [0], [0], [1], [0, 0, 1, 1], [], []>} : vector<4x32xf32>, vector<32x128xf32>, vector<4x128xf32> -> vector<4x128xf32>
    %1100 = arith.addf %196, %1099 : vector<4x128xf32>
    %1101 = arith.negf %1100 : vector<4x128xf32>
    %1102 = math.exp %1101 : vector<4x128xf32>
    %cst_215 = arith.constant 1.000000e+00 : f32
    %1103 = vector.broadcast %cst_215 : f32 to vector<4x128xf32>
    %1104 = arith.addf %1103, %1102 : vector<4x128xf32>
    %1105 = arith.divf %1103, %1104 : vector<4x128xf32>
    %1106 = math.tanh %1100 : vector<4x128xf32>
    %1107 = vector.extract_strided_slice %1105 {offsets = [0, 0], sizes = [4, 32], strides = [1, 1]} : vector<4x128xf32> to vector<4x32xf32>
    %1108 = vector.extract_strided_slice %1105 {offsets = [0, 32], sizes = [4, 32], strides = [1, 1]} : vector<4x128xf32> to vector<4x32xf32>
    %1109 = vector.extract_strided_slice %1106 {offsets = [0, 64], sizes = [4, 32], strides = [1, 1]} : vector<4x128xf32> to vector<4x32xf32>
    %1110 = vector.extract_strided_slice %1105 {offsets = [0, 96], sizes = [4, 32], strides = [1, 1]} : vector<4x128xf32> to vector<4x32xf32>
    %1111 = arith.mulf %1108, %1093 : vector<4x32xf32>
    %1112 = arith.mulf %1107, %1109 : vector<4x32xf32>
    %1113 = arith.addf %1111, %1112 : vector<4x32xf32>
    %1114 = math.tanh %1113 : vector<4x32xf32>
    %1115 = arith.mulf %1110, %1114 : vector<4x32xf32>
    %c0_216 = arith.constant 0 : index
    %c45 = arith.constant 45 : index
    %c0_217 = arith.constant 0 : index
    %1116 = vector.load %arg10[%c0_216, %c45, %c0_217] : memref<4x49x32xf32, #tpu.memory_space<vmem>>, vector<4x1x32xf32>
    %1117 = vector.shape_cast %1116 : vector<4x1x32xf32> to vector<4x32xf32>
    %1118 = vector.shape_cast %1115 : vector<4x32xf32> to vector<4x1x32xf32>
    tpu.vector_store %arg10[%c0_216, %c45, %c0_217], %1118 {strides = array<i32>} : memref<4x49x32xf32, #tpu.memory_space<vmem>>, vector<4x1x32xf32>,
    %cst_218 = arith.constant dense<0.000000e+00> : vector<4x128xf32>
    %1119 = tpu.matmul %1115, %6, %cst_218 {dimension_numbers = #tpu.dot_dimension_numbers<[1], [0], [0], [1], [0, 0, 1, 1], [], []>} : vector<4x32xf32>, vector<32x128xf32>, vector<4x128xf32> -> vector<4x128xf32>
    %1120 = arith.addf %196, %1119 : vector<4x128xf32>
    %1121 = arith.negf %1120 : vector<4x128xf32>
    %1122 = math.exp %1121 : vector<4x128xf32>
    %cst_219 = arith.constant 1.000000e+00 : f32
    %1123 = vector.broadcast %cst_219 : f32 to vector<4x128xf32>
    %1124 = arith.addf %1123, %1122 : vector<4x128xf32>
    %1125 = arith.divf %1123, %1124 : vector<4x128xf32>
    %1126 = math.tanh %1120 : vector<4x128xf32>
    %1127 = vector.extract_strided_slice %1125 {offsets = [0, 0], sizes = [4, 32], strides = [1, 1]} : vector<4x128xf32> to vector<4x32xf32>
    %1128 = vector.extract_strided_slice %1125 {offsets = [0, 32], sizes = [4, 32], strides = [1, 1]} : vector<4x128xf32> to vector<4x32xf32>
    %1129 = vector.extract_strided_slice %1126 {offsets = [0, 64], sizes = [4, 32], strides = [1, 1]} : vector<4x128xf32> to vector<4x32xf32>
    %1130 = vector.extract_strided_slice %1125 {offsets = [0, 96], sizes = [4, 32], strides = [1, 1]} : vector<4x128xf32> to vector<4x32xf32>
    %1131 = arith.mulf %1128, %1113 : vector<4x32xf32>
    %1132 = arith.mulf %1127, %1129 : vector<4x32xf32>
    %1133 = arith.addf %1131, %1132 : vector<4x32xf32>
    %1134 = math.tanh %1133 : vector<4x32xf32>
    %1135 = arith.mulf %1130, %1134 : vector<4x32xf32>
    %c0_220 = arith.constant 0 : index
    %c46 = arith.constant 46 : index
    %c0_221 = arith.constant 0 : index
    %1136 = vector.load %arg10[%c0_220, %c46, %c0_221] : memref<4x49x32xf32, #tpu.memory_space<vmem>>, vector<4x1x32xf32>
    %1137 = vector.shape_cast %1136 : vector<4x1x32xf32> to vector<4x32xf32>
    %1138 = vector.shape_cast %1135 : vector<4x32xf32> to vector<4x1x32xf32>
    tpu.vector_store %arg10[%c0_220, %c46, %c0_221], %1138 {strides = array<i32>} : memref<4x49x32xf32, #tpu.memory_space<vmem>>, vector<4x1x32xf32>,
    %cst_222 = arith.constant dense<0.000000e+00> : vector<4x128xf32>
    %1139 = tpu.matmul %1135, %6, %cst_222 {dimension_numbers = #tpu.dot_dimension_numbers<[1], [0], [0], [1], [0, 0, 1, 1], [], []>} : vector<4x32xf32>, vector<32x128xf32>, vector<4x128xf32> -> vector<4x128xf32>
    %1140 = arith.addf %196, %1139 : vector<4x128xf32>
    %1141 = arith.negf %1140 : vector<4x128xf32>
    %1142 = math.exp %1141 : vector<4x128xf32>
    %cst_223 = arith.constant 1.000000e+00 : f32
    %1143 = vector.broadcast %cst_223 : f32 to vector<4x128xf32>
    %1144 = arith.addf %1143, %1142 : vector<4x128xf32>
    %1145 = arith.divf %1143, %1144 : vector<4x128xf32>
    %1146 = math.tanh %1140 : vector<4x128xf32>
    %1147 = vector.extract_strided_slice %1145 {offsets = [0, 0], sizes = [4, 32], strides = [1, 1]} : vector<4x128xf32> to vector<4x32xf32>
    %1148 = vector.extract_strided_slice %1145 {offsets = [0, 32], sizes = [4, 32], strides = [1, 1]} : vector<4x128xf32> to vector<4x32xf32>
    %1149 = vector.extract_strided_slice %1146 {offsets = [0, 64], sizes = [4, 32], strides = [1, 1]} : vector<4x128xf32> to vector<4x32xf32>
    %1150 = vector.extract_strided_slice %1145 {offsets = [0, 96], sizes = [4, 32], strides = [1, 1]} : vector<4x128xf32> to vector<4x32xf32>
    %1151 = arith.mulf %1148, %1133 : vector<4x32xf32>
    %1152 = arith.mulf %1147, %1149 : vector<4x32xf32>
    %1153 = arith.addf %1151, %1152 : vector<4x32xf32>
    %1154 = math.tanh %1153 : vector<4x32xf32>
    %1155 = arith.mulf %1150, %1154 : vector<4x32xf32>
    %c0_224 = arith.constant 0 : index
    %c47 = arith.constant 47 : index
    %c0_225 = arith.constant 0 : index
    %1156 = vector.load %arg10[%c0_224, %c47, %c0_225] : memref<4x49x32xf32, #tpu.memory_space<vmem>>, vector<4x1x32xf32>
    %1157 = vector.shape_cast %1156 : vector<4x1x32xf32> to vector<4x32xf32>
    %1158 = vector.shape_cast %1155 : vector<4x32xf32> to vector<4x1x32xf32>
    tpu.vector_store %arg10[%c0_224, %c47, %c0_225], %1158 {strides = array<i32>} : memref<4x49x32xf32, #tpu.memory_space<vmem>>, vector<4x1x32xf32>,
    %cst_226 = arith.constant dense<0.000000e+00> : vector<4x128xf32>
    %1159 = tpu.matmul %1155, %6, %cst_226 {dimension_numbers = #tpu.dot_dimension_numbers<[1], [0], [0], [1], [0, 0, 1, 1], [], []>} : vector<4x32xf32>, vector<32x128xf32>, vector<4x128xf32> -> vector<4x128xf32>
    %1160 = arith.addf %196, %1159 : vector<4x128xf32>
    %1161 = arith.negf %1160 : vector<4x128xf32>
    %1162 = math.exp %1161 : vector<4x128xf32>
    %cst_227 = arith.constant 1.000000e+00 : f32
    %1163 = vector.broadcast %cst_227 : f32 to vector<4x128xf32>
    %1164 = arith.addf %1163, %1162 : vector<4x128xf32>
    %1165 = arith.divf %1163, %1164 : vector<4x128xf32>
    %1166 = math.tanh %1160 : vector<4x128xf32>
    %1167 = vector.extract_strided_slice %1165 {offsets = [0, 0], sizes = [4, 32], strides = [1, 1]} : vector<4x128xf32> to vector<4x32xf32>
    %1168 = vector.extract_strided_slice %1165 {offsets = [0, 32], sizes = [4, 32], strides = [1, 1]} : vector<4x128xf32> to vector<4x32xf32>
    %1169 = vector.extract_strided_slice %1166 {offsets = [0, 64], sizes = [4, 32], strides = [1, 1]} : vector<4x128xf32> to vector<4x32xf32>
    %1170 = vector.extract_strided_slice %1165 {offsets = [0, 96], sizes = [4, 32], strides = [1, 1]} : vector<4x128xf32> to vector<4x32xf32>
    %1171 = arith.mulf %1168, %1153 : vector<4x32xf32>
    %1172 = arith.mulf %1167, %1169 : vector<4x32xf32>
    %1173 = arith.addf %1171, %1172 : vector<4x32xf32>
    %1174 = math.tanh %1173 : vector<4x32xf32>
    %1175 = arith.mulf %1170, %1174 : vector<4x32xf32>
    %c0_228 = arith.constant 0 : index
    %c48 = arith.constant 48 : index
    %c0_229 = arith.constant 0 : index
    %1176 = vector.load %arg10[%c0_228, %c48, %c0_229] : memref<4x49x32xf32, #tpu.memory_space<vmem>>, vector<4x1x32xf32>
    %1177 = vector.shape_cast %1176 : vector<4x1x32xf32> to vector<4x32xf32>
    %1178 = vector.shape_cast %1175 : vector<4x32xf32> to vector<4x1x32xf32>
    tpu.vector_store %arg10[%c0_228, %c48, %c0_229], %1178 {strides = array<i32>} : memref<4x49x32xf32, #tpu.memory_space<vmem>>, vector<4x1x32xf32>,
    %c0_230 = arith.constant 0 : index
    %c0_231 = arith.constant 0 : index
    %c0_232 = arith.constant 0 : index
    %1179 = vector.load %arg10[%c0_230, %c0_231, %c0_232] : memref<4x49x32xf32, #tpu.memory_space<vmem>>, vector<4x49x32xf32>
    %c0_233 = arith.constant 0 : index
    %c0_234 = arith.constant 0 : index
    %1180 = vector.load %arg7[%c0_233, %c0_234] : memref<1x32xf32, #tpu.memory_space<vmem>>, vector<1x32xf32>
    %1181 = vector.shape_cast %1180 : vector<1x32xf32> to vector<1x1x32xf32>
    %1182 = vector.broadcast %1181 : vector<1x1x32xf32> to vector<4x49x32xf32>
    %1183 = arith.mulf %1179, %1182 : vector<4x49x32xf32>
    %cst_235 = arith.constant dense<0.000000e+00> : vector<4x49xf32>
    %1184 = vector.multi_reduction <add>, %1183, %cst_235 [2] : vector<4x49x32xf32> to vector<4x49xf32>
    %1185 = arith.truncf %1184 : vector<4x49xf32> to vector<4x49xbf16>
    %c0_236 = arith.constant 0 : index
    %c0_237 = arith.constant 0 : index
    %1186 = vector.load %arg8[%c0_236, %c0_237] : memref<49x512xbf16, #tpu.memory_space<vmem>>, vector<49x512xbf16>
    %cst_238 = arith.constant dense<0.000000e+00> : vector<4x512xf32>
    %1187 = tpu.matmul %1185, %1186, %cst_238 {dimension_numbers = #tpu.dot_dimension_numbers<[1], [0], [0], [1], [0, 0, 1, 1], [], []>} : vector<4x49xbf16>, vector<49x512xbf16>, vector<4x512xf32> -> vector<4x512xf32>
    %1188 = math.tanh %1187 : vector<4x512xf32>
    %c0_239 = arith.constant 0 : index
    %c0_240 = arith.constant 0 : index
    %1189 = vector.load %arg9[%c0_239, %c0_240] : memref<4x512xf32, #tpu.memory_space<vmem>>, vector<4x512xf32>
    tpu.vector_store %arg9[%c0_239, %c0_240], %1188 {strides = array<i32>} : memref<4x512xf32, #tpu.memory_space<vmem>>, vector<4x512xf32>,
    return
  }
}

</mosaic_0001>

<llo_original>
// kernel: hypernet_forward.1
$region0: #{hypernet_forward.1}
  #allocation0 [shape = 'u32[]', space=smem, size = 0x4, offset = 0x4, fixed_abs, tag = 'smem constant byte address 0x4 - core index']
  #allocation1 [shape = 'u32[72,128]{1,0:T(1,128)}', space=vmem, size = 0x9000, scoped, tag = 'internal scratch']
  #allocation2 [shape = 'f32[4,49,32]{2,1,0:T(8,128)}', space=vmem, size = 0x1c000, scoped, tag = 'scratch operand']
  %s0 = inlined_call_operand.vmem [shape: f32[4,8], index: 0, kind: input, shape index: {}]
  %s1 = inlined_call_operand.vmem [shape: f32[1,128], index: 1, kind: input, shape index: {}]
  %s2 = inlined_call_operand.vmem [shape: f32[32,128], index: 2, kind: input, shape index: {}]
  %s3 = inlined_call_operand.vmem [shape: f32[1,128], index: 3, kind: input, shape index: {}]
  %s4 = inlined_call_operand.vmem [shape: f32[32,128], index: 4, kind: input, shape index: {}]
  %s5 = inlined_call_operand.vmem [shape: f32[32,128], index: 5, kind: input, shape index: {}]
  %s6 = inlined_call_operand.vmem [shape: f32[1,128], index: 6, kind: input, shape index: {}]
  %s7 = inlined_call_operand.vmem [shape: f32[1,32], index: 7, kind: input, shape index: {}]
  %s8 = inlined_call_operand.vmem [shape: bf16[49,512], index: 8, kind: input, shape index: {}]
  %s9 = inlined_call_operand.vmem [shape: f32[4,512], index: 9, kind: output, shape index: {}]
  %s10 = sld [smem:[#allocation0]]
  $region46: #{hypernet_forward.1} parent=0
    _
  %s12 = ssub.s32 1, %s10
  %s13 = scalar_select 0, %s12, %s10
  // Predicated region
  $region2: #{hypernet_forward.1} parent=0 // pred_check
    _
  $region3: #{hypernet_forward.1} parent=0 // pred_check_branch
    %15 = sbr.rel (0) target = $region5
  $region4: #{hypernet_forward.1} parent=0 // pred_region
    _
  $region5: #{hypernet_forward.1} parent=0 // pred_fallthru
    _
  // Predicated region
  $region6: #{hypernet_forward.1} parent=0 // pred_check
    _
  $region7: #{hypernet_forward.1} parent=0 // pred_check_branch
    %17 = sbr.rel (0) target = $region9
  $region8: #{hypernet_forward.1} parent=0 // pred_region
    _
  $region9: #{hypernet_forward.1} parent=0 // pred_fallthru
    _
  // Predicated region
  $region10: #{hypernet_forward.1} parent=0 // pred_check
    _
  $region11: #{hypernet_forward.1} parent=0 // pred_check_branch
    %19 = sbr.rel (0) target = $region13
  $region12: #{hypernet_forward.1} parent=0 // pred_region
    _
  $region13: #{hypernet_forward.1} parent=0 // pred_fallthru
    _
  // Predicated region
  $region14: #{hypernet_forward.1} parent=0 // pred_check
    _
  $region15: #{hypernet_forward.1} parent=0 // pred_check_branch
    %21 = sbr.rel (0) target = $region17
  $region16: #{hypernet_forward.1} parent=0 // pred_region
    _
  $region17: #{hypernet_forward.1} parent=0 // pred_fallthru
    _
  // Predicated region
  $region18: #{hypernet_forward.1} parent=0 // pred_check
    _
  $region19: #{hypernet_forward.1} parent=0 // pred_check_branch
    %23 = sbr.rel (0) target = $region21
  $region20: #{hypernet_forward.1} parent=0 // pred_region
    _
  $region21: #{hypernet_forward.1} parent=0 // pred_fallthru
    _
  // Predicated region
  $region22: #{hypernet_forward.1} parent=0 // pred_check
    _
  $region23: #{hypernet_forward.1} parent=0 // pred_check_branch
    %25 = sbr.rel (0) target = $region25
  $region24: #{hypernet_forward.1} parent=0 // pred_region
    _
  $region25: #{hypernet_forward.1} parent=0 // pred_fallthru
    _
  // Predicated region
  $region26: #{hypernet_forward.1} parent=0 // pred_check
    _
  $region27: #{hypernet_forward.1} parent=0 // pred_check_branch
    %27 = sbr.rel (0) target = $region29
  $region28: #{hypernet_forward.1} parent=0 // pred_region
    _
  $region29: #{hypernet_forward.1} parent=0 // pred_fallthru
    _
  // Predicated region
  $region30: #{hypernet_forward.1} parent=0 // pred_check
    _
  $region31: #{hypernet_forward.1} parent=0 // pred_check_branch
    %29 = sbr.rel (0) target = $region33
  $region32: #{hypernet_forward.1} parent=0 // pred_region
    _
  $region33: #{hypernet_forward.1} parent=0 // pred_fallthru
    _
  // Predicated region
  $region34: #{hypernet_forward.1} parent=0 // pred_check
    _
  $region35: #{hypernet_forward.1} parent=0 // pred_check_branch
    %31 = sbr.rel (0) target = $region37
  $region36: #{hypernet_forward.1} parent=0 // pred_region
    _
  $region37: #{hypernet_forward.1} parent=0 // pred_fallthru
    _
  %v33 = vld [vmem:[%s0] sm:$0xf]
  %v34 = vtanh.pop %v33
  %v35 = vld [vmem:[%s1] sm:$0x1]
  %v36 = vld [vmem:[%s2] sm:$0xff]
  %v37 = vld [vmem:[%s2 + $0x8] sm:$0xff]
  %v38 = vld [vmem:[%s2 + $0x10] sm:$0xff]
  %v39 = vld [vmem:[%s2 + $0x18] sm:$0xff]
  %v40 = vld [vmem:[%s3] sm:$0x1]
  %v41 = vld [vmem:[%s4] sm:$0xff]
  %v42 = vld [vmem:[%s4 + $0x8] sm:$0xff]
  %v43 = vld [vmem:[%s4 + $0x10] sm:$0xff]
  %v44 = vld [vmem:[%s4 + $0x18] sm:$0xff]
  %v45 = vld [vmem:[%s5] sm:$0xff]
  %v46 = vld [vmem:[%s5 + $0x8] sm:$0xff]
  %v47 = vld [vmem:[%s5 + $0x10] sm:$0xff]
  %v48 = vld [vmem:[%s5 + $0x18] sm:$0xff]
  %v49 = vld [vmem:[%s6] sm:$0x1]
  %51 = vset.pattern.permute.xlu0 0
  %52 = vperm.xlu0 %51, %v34
  %v53 = vpop.permute.xlu0 %52
  %v56 = vperm.slane %v35, 0
  %v58 = vmul.f32 %v53, %v56
  %v60 = vperm.slane %v40, 0
  %v62 = vadd.f32 %v58, %v60
  %vm63 = vcmask 261120
  %v65 = vsel %vm63, 0.0, 0
  %67 = vmatpush.msra.mxu0 0.0
  %68 = vmatpush.msra.mxu0 0.0
  %69 = vmatpush.msra.mxu0 0.0
  %70 = vmatpush.msra.mxu0 0.0
  %71 = vmatpush.msra.mxu0 0.0
  %72 = vmatpush.msra.mxu0 0.0
  %73 = vmatpush.msra.mxu0 0.0
  %74 = vmatpush.msra.mxu0 0.0
  %75 = vmatpush.msra.mxu0 0.0
  %76 = vmatpush.msra.mxu0 0.0
  %77 = vmatpush.msra.mxu0 0.0
  %78 = vmatpush.msra.mxu0 0.0
  %79 = vmatpush.msra.mxu0 %v39
  %80 = vmatpush.msra.mxu0 %v38
  %81 = vmatpush.msra.mxu0 %v37
  %82 = vmatpush.msra.mxu0 %v36
  %83 = vmatmul.f32.gmra.mxu0 %v65
  %v84 = vpop.f32.mrf.mxu0
  %v85 = vadd.f32 0.0, %v84
  %86 = vdwg.mxu0
  %v87 = vadd.f32 %v62, %v85
  %v88 = vxor.u32 %v87, 2147483648
  %v89 = vmul.f32 %v88, 1.442695
  %v90 = vpow.pop %v89
  %v91 = vadd.f32 %v90, 1.0
  %v92 = vrcp.pop %v91
  %v93 = vmul.f32 %v91, %v92
  %v94 = vsub.f32 1.0, %v93
  %v95 = vmul.f32 %v92, %v94
  %v96 = vadd.f32 %v92, %v95
  %vm97 = vweird.f32 %v91
  %vm98 = vweird.f32 %v92
  %vm99 = vmor %vm97, %vm98
  %v100 = vsel %vm99, %v92, %v96
  %v101 = vand.u32 2147483647, %v91
  %vm102 = vcmp.eq.f32.partialorder %v101, 8.507059e+37
  %v103 = vand.u32 %v91, 2147483648
  %v104 = vor.u32 1.1754944e-38, %v103
  %v105 = vsel %vm102, %v104, %v100
  %v106 = vmul.f32 1.0, %v105
  %v107 = vtanh.pop %v87
  %v108 = vmul.f32 %v106, 0.0
  %110 = vrot.lane.b32.xlu0 %v107, 64
  %v111 = vpop.permute.xlu0 %110
  %v113 = vmul.f32 %v106, %v111
  %115 = vrot.lane.b32.xlu0 %v113, 32
  %v116 = vpop.permute.xlu0 %115
  %v118 = vadd.f32 %v108, %v116
  %v119 = vtanh.pop %v118
  %121 = vrot.lane.b32.xlu0 %v119, 64
  %v122 = vpop.permute.xlu0 %121
  %v124 = vmul.f32 %v106, %v122
  %125 = vset.pattern.permute.xlu0 1
  %126 = vperm.xlu0 %125, %v34
  %v127 = vpop.permute.xlu0 %126
  %v129 = vmul.f32 %v127, %v56
  %v130 = vadd.f32 %v129, %v60
  %132 = vrot.lane.b32.xlu0 %v124, 32
  %v133 = vpop.permute.xlu0 %132
  %v134 = vsel %vm63, %v133, 0
  %136 = vmatpush.msra.mxu0 0.0
  %137 = vmatpush.msra.mxu0 0.0
  %138 = vmatpush.msra.mxu0 0.0
  %139 = vmatpush.msra.mxu0 0.0
  %140 = vmatpush.msra.mxu0 0.0
  %141 = vmatpush.msra.mxu0 0.0
  %142 = vmatpush.msra.mxu0 0.0
  %143 = vmatpush.msra.mxu0 0.0
  %144 = vmatpush.msra.mxu0 0.0
  %145 = vmatpush.msra.mxu0 0.0
  %146 = vmatpush.msra.mxu0 0.0
  %147 = vmatpush.msra.mxu0 0.0
  %148 = vmatpush.msra.mxu0 %v39
  %149 = vmatpush.msra.mxu0 %v38
  %150 = vmatpush.msra.mxu0 %v37
  %151 = vmatpush.msra.mxu0 %v36
  %152 = vmatmul.f32.gmra.mxu0 %v134
  %v153 = vpop.f32.mrf.mxu0
  %v154 = vadd.f32 0.0, %v153
  %155 = vdwg.mxu0
  %v156 = vadd.f32 %v130, %v154
  %v157 = vxor.u32 %v156, 2147483648
  %v158 = vmul.f32 %v157, 1.442695
  %v159 = vpow.pop %v158
  %v160 = vadd.f32 %v159, 1.0
  %v161 = vrcp.pop %v160
  %v162 = vmul.f32 %v160, %v161
  %v163 = vsub.f32 1.0, %v162
  %v164 = vmul.f32 %v161, %v163
  %v165 = vadd.f32 %v161, %v164
  %vm166 = vweird.f32 %v160
  %vm167 = vweird.f32 %v161
  %vm168 = vmor %vm166, %vm167
  %v169 = vsel %vm168, %v161, %v165
  %v170 = vand.u32 2147483647, %v160
  %vm171 = vcmp.eq.f32.partialorder %v170, 8.507059e+37
  %v172 = vand.u32 %v160, 2147483648
  %v173 = vor.u32 1.1754944e-38, %v172
  %v174 = vsel %vm171, %v173, %v169
  %v175 = vmul.f32 1.0, %v174
  %v176 = vtanh.pop %v156
  %v177 = vmul.f32 %v175, %v118
  %179 = vrot.lane.b32.xlu0 %v176, 64
  %v180 = vpop.permute.xlu0 %179
  %v182 = vmul.f32 %v175, %v180
  %184 = vrot.lane.b32.xlu0 %v182, 32
  %v185 = vpop.permute.xlu0 %184
  %v187 = vadd.f32 %v177, %v185
  %v188 = vtanh.pop %v187
  %190 = vrot.lane.b32.xlu0 %v188, 64
  %v191 = vpop.permute.xlu0 %190
  %v193 = vmul.f32 %v175, %v191
  %194 = vset.pattern.permute.xlu0 2
  %195 = vperm.xlu0 %194, %v34
  %v196 = vpop.permute.xlu0 %195
  %v198 = vmul.f32 %v196, %v56
  %v199 = vadd.f32 %v198, %v60
  %201 = vrot.lane.b32.xlu0 %v193, 32
  %v202 = vpop.permute.xlu0 %201
  %v203 = vsel %vm63, %v202, 0
  %205 = vmatpush.msra.mxu0 0.0
  %206 = vmatpush.msra.mxu0 0.0
  %207 = vmatpush.msra.mxu0 0.0
  %208 = vmatpush.msra.mxu0 0.0
  %209 = vmatpush.msra.mxu0 0.0
  %210 = vmatpush.msra.mxu0 0.0
  %211 = vmatpush.msra.mxu0 0.0
  %212 = vmatpush.msra.mxu0 0.0
  %213 = vmatpush.msra.mxu0 0.0
  %214 = vmatpush.msra.mxu0 0.0
  %215 = vmatpush.msra.mxu0 0.0
  %216 = vmatpush.msra.mxu0 0.0
  %217 = vmatpush.msra.mxu0 %v39
  %218 = vmatpush.msra.mxu0 %v38
  %219 = vmatpush.msra.mxu0 %v37
  %220 = vmatpush.msra.mxu0 %v36
  %221 = vmatmul.f32.gmra.mxu0 %v203
  %v222 = vpop.f32.mrf.mxu0
  %v223 = vadd.f32 0.0, %v222
  %224 = vdwg.mxu0
  %v225 = vadd.f32 %v199, %v223
  %v226 = vxor.u32 %v225, 2147483648
  %v227 = vmul.f32 %v226, 1.442695
  %v228 = vpow.pop %v227
  %v229 = vadd.f32 %v228, 1.0
  %v230 = vrcp.pop %v229
  %v231 = vmul.f32 %v229, %v230
  %v232 = vsub.f32 1.0, %v231
  %v233 = vmul.f32 %v230, %v232
  %v234 = vadd.f32 %v230, %v233
  %vm235 = vweird.f32 %v229
  %vm236 = vweird.f32 %v230
  %vm237 = vmor %vm235, %vm236
  %v238 = vsel %vm237, %v230, %v234
  %v239 = vand.u32 2147483647, %v229
  %vm240 = vcmp.eq.f32.partialorder %v239, 8.507059e+37
  %v241 = vand.u32 %v229, 2147483648
  %v242 = vor.u32 1.1754944e-38, %v241
  %v243 = vsel %vm240, %v242, %v238
  %v244 = vmul.f32 1.0, %v243
  %v245 = vtanh.pop %v225
  %v246 = vmul.f32 %v244, %v187
  %248 = vrot.lane.b32.xlu0 %v245, 64
  %v249 = vpop.permute.xlu0 %248
  %v251 = vmul.f32 %v244, %v249
  %253 = vrot.lane.b32.xlu0 %v251, 32
  %v254 = vpop.permute.xlu0 %253
  %v256 = vadd.f32 %v246, %v254
  %v257 = vtanh.pop %v256
  %259 = vrot.lane.b32.xlu0 %v257, 64
  %v260 = vpop.permute.xlu0 %259
  %v262 = vmul.f32 %v244, %v260
  %263 = vset.pattern.permute.xlu0 3
  %264 = vperm.xlu0 %263, %v34
  %v265 = vpop.permute.xlu0 %264
  %v267 = vmul.f32 %v265, %v56
  %v268 = vadd.f32 %v267, %v60
  %270 = vrot.lane.b32.xlu0 %v262, 32
  %v271 = vpop.permute.xlu0 %270
  %v272 = vsel %vm63, %v271, 0
  %274 = vmatpush.msra.mxu0 0.0
  %275 = vmatpush.msra.mxu0 0.0
  %276 = vmatpush.msra.mxu0 0.0
  %277 = vmatpush.msra.mxu0 0.0
  %278 = vmatpush.msra.mxu0 0.0
  %279 = vmatpush.msra.mxu0 0.0
  %280 = vmatpush.msra.mxu0 0.0
  %281 = vmatpush.msra.mxu0 0.0
  %282 = vmatpush.msra.mxu0 0.0
  %283 = vmatpush.msra.mxu0 0.0
  %284 = vmatpush.msra.mxu0 0.0
  %285 = vmatpush.msra.mxu0 0.0
  %286 = vmatpush.msra.mxu0 %v39
  %287 = vmatpush.msra.mxu0 %v38
  %288 = vmatpush.msra.mxu0 %v37
  %289 = vmatpush.msra.mxu0 %v36
  %290 = vmatmul.f32.gmra.mxu0 %v272
  %v291 = vpop.f32.mrf.mxu0
  %v292 = vadd.f32 0.0, %v291
  %293 = vdwg.mxu0
  %v294 = vadd.f32 %v268, %v292
  %v295 = vxor.u32 %v294, 2147483648
  %v296 = vmul.f32 %v295, 1.442695
  %v297 = vpow.pop %v296
  %v298 = vadd.f32 %v297, 1.0
  %v299 = vrcp.pop %v298
  %v300 = vmul.f32 %v298, %v299
  %v301 = vsub.f32 1.0, %v300
  %v302 = vmul.f32 %v299, %v301
  %v303 = vadd.f32 %v299, %v302
  %vm304 = vweird.f32 %v298
  %vm305 = vweird.f32 %v299
  %vm306 = vmor %vm304, %vm305
  %v307 = vsel %vm306, %v299, %v303
  %v308 = vand.u32 2147483647, %v298
  %vm309 = vcmp.eq.f32.partialorder %v308, 8.507059e+37
  %v310 = vand.u32 %v298, 2147483648
  %v311 = vor.u32 1.1754944e-38, %v310
  %v312 = vsel %vm309, %v311, %v307
  %v313 = vmul.f32 1.0, %v312
  %v314 = vtanh.pop %v294
  %v315 = vmul.f32 %v313, %v256
  %317 = vrot.lane.b32.xlu0 %v314, 64
  %v318 = vpop.permute.xlu0 %317
  %v320 = vmul.f32 %v313, %v318
  %322 = vrot.lane.b32.xlu0 %v320, 32
  %v323 = vpop.permute.xlu0 %322
  %v325 = vadd.f32 %v315, %v323
  %v326 = vtanh.pop %v325
  %328 = vrot.lane.b32.xlu0 %v326, 64
  %v329 = vpop.permute.xlu0 %328
  %v331 = vmul.f32 %v313, %v329
  %332 = vset.pattern.permute.xlu0 4
  %333 = vperm.xlu0 %332, %v34
  %v334 = vpop.permute.xlu0 %333
  %v336 = vmul.f32 %v334, %v56
  %v337 = vadd.f32 %v336, %v60
  %339 = vrot.lane.b32.xlu0 %v331, 32
  %v340 = vpop.permute.xlu0 %339
  %v341 = vsel %vm63, %v340, 0
  %343 = vmatpush.msra.mxu0 0.0
  %344 = vmatpush.msra.mxu0 0.0
  %345 = vmatpush.msra.mxu0 0.0
  %346 = vmatpush.msra.mxu0 0.0
  %347 = vmatpush.msra.mxu0 0.0
  %348 = vmatpush.msra.mxu0 0.0
  %349 = vmatpush.msra.mxu0 0.0
  %350 = vmatpush.msra.mxu0 0.0
  %351 = vmatpush.msra.mxu0 0.0
  %352 = vmatpush.msra.mxu0 0.0
  %353 = vmatpush.msra.mxu0 0.0
  %354 = vmatpush.msra.mxu0 0.0
  %355 = vmatpush.msra.mxu0 %v39
  %356 = vmatpush.msra.mxu0 %v38
  %357 = vmatpush.msra.mxu0 %v37
  %358 = vmatpush.msra.mxu0 %v36
  %359 = vmatmul.f32.gmra.mxu0 %v341
  %v360 = vpop.f32.mrf.mxu0
  %v361 = vadd.f32 0.0, %v360
  %362 = vdwg.mxu0
  %v363 = vadd.f32 %v337, %v361
  %v364 = vxor.u32 %v363, 2147483648
  %v365 = vmul.f32 %v364, 1.442695
  %v366 = vpow.pop %v365
  %v367 = vadd.f32 %v366, 1.0
  %v368 = vrcp.pop %v367
  %v369 = vmul.f32 %v367, %v368
  %v370 = vsub.f32 1.0, %v369
  %v371 = vmul.f32 %v368, %v370
  %v372 = vadd.f32 %v368, %v371
  %vm373 = vweird.f32 %v367
  %vm374 = vweird.f32 %v368
  %vm375 = vmor %vm373, %vm374
  %v376 = vsel %vm375, %v368, %v372
  %v377 = vand.u32 2147483647, %v367
  %vm378 = vcmp.eq.f32.partialorder %v377, 8.507059e+37
  %v379 = vand.u32 %v367, 2147483648
  %v380 = vor.u32 1.1754944e-38, %v379
  %v381 = vsel %vm378, %v380, %v376
  %v382 = vmul.f32 1.0, %v381
  %v383 = vtanh.pop %v363
  %v384 = vmul.f32 %v382, %v325
  %386 = vrot.lane.b32.xlu0 %v383, 64
  %v387 = vpop.permute.xlu0 %386
  %v389 = vmul.f32 %v382, %v387
  %391 = vrot.lane.b32.xlu0 %v389, 32
  %v392 = vpop.permute.xlu0 %391
  %v394 = vadd.f32 %v384, %v392
  %v395 = vtanh.pop %v394
  %397 = vrot.lane.b32.xlu0 %v395, 64
  %v398 = vpop.permute.xlu0 %397
  %v400 = vmul.f32 %v382, %v398
  %401 = vset.pattern.permute.xlu0 5
  %402 = vperm.xlu0 %401, %v34
  %v403 = vpop.permute.xlu0 %402
  %v405 = vmul.f32 %v403, %v56
  %v406 = vadd.f32 %v405, %v60
  %408 = vrot.lane.b32.xlu0 %v400, 32
  %v409 = vpop.permute.xlu0 %408
  %v410 = vsel %vm63, %v409, 0
  %412 = vmatpush.msra.mxu0 0.0
  %413 = vmatpush.msra.mxu0 0.0
  %414 = vmatpush.msra.mxu0 0.0
  %415 = vmatpush.msra.mxu0 0.0
  %416 = vmatpush.msra.mxu0 0.0
  %417 = vmatpush.msra.mxu0 0.0
  %418 = vmatpush.msra.mxu0 0.0
  %419 = vmatpush.msra.mxu0 0.0
  %420 = vmatpush.msra.mxu0 0.0
  %421 = vmatpush.msra.mxu0 0.0
  %422 = vmatpush.msra.mxu0 0.0
  %423 = vmatpush.msra.mxu0 0.0
  %424 = vmatpush.msra.mxu0 %v39
  %425 = vmatpush.msra.mxu0 %v38
  %426 = vmatpush.msra.mxu0 %v37
  %427 = vmatpush.msra.mxu0 %v36
  %428 = vmatmul.f32.gmra.mxu0 %v410
  %v429 = vpop.f32.mrf.mxu0
  %v430 = vadd.f32 0.0, %v429
  %431 = vdwg.mxu0
  %v432 = vadd.f32 %v406, %v430
  %v433 = vxor.u32 %v432, 2147483648
  %v434 = vmul.f32 %v433, 1.442695
  %v435 = vpow.pop %v434
  %v436 = vadd.f32 %v435, 1.0
  %v437 = vrcp.pop %v436
  %v438 = vmul.f32 %v436, %v437
  %v439 = vsub.f32 1.0, %v438
  %v440 = vmul.f32 %v437, %v439
  %v441 = vadd.f32 %v437, %v440
  %vm442 = vweird.f32 %v436
  %vm443 = vweird.f32 %v437
  %vm444 = vmor %vm442, %vm443
  %v445 = vsel %vm444, %v437, %v441
  %v446 = vand.u32 2147483647, %v436
  %vm447 = vcmp.eq.f32.partialorder %v446, 8.507059e+37
  %v448 = vand.u32 %v436, 2147483648
  %v449 = vor.u32 1.1754944e-38, %v448
  %v450 = vsel %vm447, %v449, %v445
  %v451 = vmul.f32 1.0, %v450
  %v452 = vtanh.pop %v432
  %v453 = vmul.f32 %v451, %v394
  %455 = vrot.lane.b32.xlu0 %v452, 64
  %v456 = vpop.permute.xlu0 %455
  %v458 = vmul.f32 %v451, %v456
  %460 = vrot.lane.b32.xlu0 %v458, 32
  %v461 = vpop.permute.xlu0 %460
  %v463 = vadd.f32 %v453, %v461
  %v464 = vtanh.pop %v463
  %466 = vrot.lane.b32.xlu0 %v464, 64
  %v467 = vpop.permute.xlu0 %466
  %v469 = vmul.f32 %v451, %v467
  %470 = vset.pattern.permute.xlu0 6
  %471 = vperm.xlu0 %470, %v34
  %v472 = vpop.permute.xlu0 %471
  %v474 = vmul.f32 %v472, %v56
  %v475 = vadd.f32 %v474, %v60
  %477 = vrot.lane.b32.xlu0 %v469, 32
  %v478 = vpop.permute.xlu0 %477
  %v479 = vsel %vm63, %v478, 0
  %481 = vmatpush.msra.mxu0 0.0
  %482 = vmatpush.msra.mxu0 0.0
  %483 = vmatpush.msra.mxu0 0.0
  %484 = vmatpush.msra.mxu0 0.0
  %485 = vmatpush.msra.mxu0 0.0
  %486 = vmatpush.msra.mxu0 0.0
  %487 = vmatpush.msra.mxu0 0.0
  %488 = vmatpush.msra.mxu0 0.0
  %489 = vmatpush.msra.mxu0 0.0
  %490 = vmatpush.msra.mxu0 0.0
  %491 = vmatpush.msra.mxu0 0.0
  %492 = vmatpush.msra.mxu0 0.0
  %493 = vmatpush.msra.mxu0 %v39
  %494 = vmatpush.msra.mxu0 %v38
  %495 = vmatpush.msra.mxu0 %v37
  %496 = vmatpush.msra.mxu0 %v36
  %497 = vmatmul.f32.gmra.mxu0 %v479
  %v498 = vpop.f32.mrf.mxu0
  %v499 = vadd.f32 0.0, %v498
  %500 = vdwg.mxu0
  %v501 = vadd.f32 %v475, %v499
  %v502 = vxor.u32 %v501, 2147483648
  %v503 = vmul.f32 %v502, 1.442695
  %v504 = vpow.pop %v503
  %v505 = vadd.f32 %v504, 1.0
  %v506 = vrcp.pop %v505
  %v507 = vmul.f32 %v505, %v506
  %v508 = vsub.f32 1.0, %v507
  %v509 = vmul.f32 %v506, %v508
  %v510 = vadd.f32 %v506, %v509
  %vm511 = vweird.f32 %v505
  %vm512 = vweird.f32 %v506
  %vm513 = vmor %vm511, %vm512
  %v514 = vsel %vm513, %v506, %v510
  %v515 = vand.u32 2147483647, %v505
  %vm516 = vcmp.eq.f32.partialorder %v515, 8.507059e+37
  %v517 = vand.u32 %v505, 2147483648
  %v518 = vor.u32 1.1754944e-38, %v517
  %v519 = vsel %vm516, %v518, %v514
  %v520 = vmul.f32 1.0, %v519
  %v521 = vtanh.pop %v501
  %v522 = vmul.f32 %v520, %v463
  %524 = vrot.lane.b32.xlu0 %v521, 64
  %v525 = vpop.permute.xlu0 %524
  %v527 = vmul.f32 %v520, %v525
  %529 = vrot.lane.b32.xlu0 %v527, 32
  %v530 = vpop.permute.xlu0 %529
  %v532 = vadd.f32 %v522, %v530
  %v533 = vtanh.pop %v532
  %535 = vrot.lane.b32.xlu0 %v533, 64
  %v536 = vpop.permute.xlu0 %535
  %v538 = vmul.f32 %v520, %v536
  %539 = vset.pattern.permute.xlu0 7
  %540 = vperm.xlu0 %539, %v34
  %v541 = vpop.permute.xlu0 %540
  %v543 = vmul.f32 %v541, %v56
  %v544 = vadd.f32 %v543, %v60
  %546 = vrot.lane.b32.xlu0 %v538, 32
  %v547 = vpop.permute.xlu0 %546
  %v548 = vsel %vm63, %v547, 0
  %550 = vmatpush.msra.mxu0 0.0
  %551 = vmatpush.msra.mxu0 0.0
  %552 = vmatpush.msra.mxu0 0.0
  %553 = vmatpush.msra.mxu0 0.0
  %554 = vmatpush.msra.mxu0 0.0
  %555 = vmatpush.msra.mxu0 0.0
  %556 = vmatpush.msra.mxu0 0.0
  %557 = vmatpush.msra.mxu0 0.0
  %558 = vmatpush.msra.mxu0 0.0
  %559 = vmatpush.msra.mxu0 0.0
  %560 = vmatpush.msra.mxu0 0.0
  %561 = vmatpush.msra.mxu0 0.0
  %562 = vmatpush.msra.mxu0 %v39
  %563 = vmatpush.msra.mxu0 %v38
  %564 = vmatpush.msra.mxu0 %v37
  %565 = vmatpush.msra.mxu0 %v36
  %566 = vmatmul.f32.gmra.mxu0 %v548
  %v567 = vpop.f32.mrf.mxu0
  %v568 = vadd.f32 0.0, %v567
  %569 = vdwg.mxu0
  %v570 = vadd.f32 %v544, %v568
  %v571 = vxor.u32 %v570, 2147483648
  %v572 = vmul.f32 %v571, 1.442695
  %v573 = vpow.pop %v572
  %v574 = vadd.f32 %v573, 1.0
  %v575 = vrcp.pop %v574
  %v576 = vmul.f32 %v574, %v575
  %v577 = vsub.f32 1.0, %v576
  %v578 = vmul.f32 %v575, %v577
  %v579 = vadd.f32 %v575, %v578
  %vm580 = vweird.f32 %v574
  %vm581 = vweird.f32 %v575
  %vm582 = vmor %vm580, %vm581
  %v583 = vsel %vm582, %v575, %v579
  %v584 = vand.u32 2147483647, %v574
  %vm585 = vcmp.eq.f32.partialorder %v584, 8.507059e+37
  %v586 = vand.u32 %v574, 2147483648
  %v587 = vor.u32 1.1754944e-38, %v586
  %v588 = vsel %vm585, %v587, %v583
  %v589 = vmul.f32 1.0, %v588
  %v590 = vtanh.pop %v570
  %v591 = vmul.f32 %v589, %v532
  %593 = vrot.lane.b32.xlu0 %v590, 64
  %v594 = vpop.permute.xlu0 %593
  %v596 = vmul.f32 %v589, %v594
  %598 = vrot.lane.b32.xlu0 %v596, 32
  %v599 = vpop.permute.xlu0 %598
  %v601 = vadd.f32 %v591, %v599
  %v602 = vtanh.pop %v601
  %604 = vrot.lane.b32.xlu0 %v602, 64
  %v605 = vpop.permute.xlu0 %604
  %v607 = vmul.f32 %v589, %v605
  %v609 = vperm.slane %v49, 0
  %612 = vrot.lane.b32.xlu0 %v607, 32
  %v613 = vpop.permute.xlu0 %612
  %v614 = vsel %vm63, %v613, 0
  %616 = vmatpush.msra.mxu0 0.0
  %617 = vmatpush.msra.mxu0 0.0
  %618 = vmatpush.msra.mxu0 0.0
  %619 = vmatpush.msra.mxu0 0.0
  %620 = vmatpush.msra.mxu0 0.0
  %621 = vmatpush.msra.mxu0 0.0
  %622 = vmatpush.msra.mxu0 0.0
  %623 = vmatpush.msra.mxu0 0.0
  %624 = vmatpush.msra.mxu0 0.0
  %625 = vmatpush.msra.mxu0 0.0
  %626 = vmatpush.msra.mxu0 0.0
  %627 = vmatpush.msra.mxu0 0.0
  %628 = vmatpush.msra.mxu0 %v44
  %629 = vmatpush.msra.mxu0 %v43
  %630 = vmatpush.msra.mxu0 %v42
  %631 = vmatpush.msra.mxu0 %v41
  %632 = vmatmul.f32.gmra.mxu0 %v614
  %v633 = vpop.f32.mrf.mxu0
  %v634 = vadd.f32 %v609, %v633
  %635 = vdwg.mxu0
  %636 = vmatpush.msra.mxu0 0.0
  %637 = vmatpush.msra.mxu0 0.0
  %638 = vmatpush.msra.mxu0 0.0
  %639 = vmatpush.msra.mxu0 0.0
  %640 = vmatpush.msra.mxu0 0.0
  %641 = vmatpush.msra.mxu0 0.0
  %642 = vmatpush.msra.mxu0 0.0
  %643 = vmatpush.msra.mxu0 0.0
  %644 = vmatpush.msra.mxu0 0.0
  %645 = vmatpush.msra.mxu0 0.0
  %646 = vmatpush.msra.mxu0 0.0
  %647 = vmatpush.msra.mxu0 0.0
  %648 = vmatpush.msra.mxu0 %v48
  %649 = vmatpush.msra.mxu0 %v47
  %650 = vmatpush.msra.mxu0 %v46
  %651 = vmatpush.msra.mxu0 %v45
  %652 = vmatmul.f32.gmra.mxu0 %v65
  %v653 = vpop.f32.mrf.mxu0
  %v654 = vadd.f32 0.0, %v653
  %655 = vdwg.mxu0
  %v656 = vadd.f32 %v634, %v654
  %v657 = vxor.u32 %v656, 2147483648
  %v658 = vmul.f32 %v657, 1.442695
  %v659 = vpow.pop %v658
  %v660 = vadd.f32 %v659, 1.0
  %v661 = vrcp.pop %v660
  %v662 = vmul.f32 %v660, %v661
  %v663 = vsub.f32 1.0, %v662
  %v664 = vmul.f32 %v661, %v663
  %v665 = vadd.f32 %v661, %v664
  %vm666 = vweird.f32 %v660
  %vm667 = vweird.f32 %v661
  %vm668 = vmor %vm666, %vm667
  %v669 = vsel %vm668, %v661, %v665
  %v670 = vand.u32 2147483647, %v660
  %vm671 = vcmp.eq.f32.partialorder %v670, 8.507059e+37
  %v672 = vand.u32 %v660, 2147483648
  %v673 = vor.u32 1.1754944e-38, %v672
  %v674 = vsel %vm671, %v673, %v669
  %v675 = vmul.f32 1.0, %v674
  %v676 = vtanh.pop %v656
  %v677 = vmul.f32 %v675, 0.0
  %679 = vrot.lane.b32.xlu0 %v676, 64
  %v680 = vpop.permute.xlu0 %679
  %v682 = vmul.f32 %v675, %v680
  %684 = vrot.lane.b32.xlu0 %v682, 32
  %v685 = vpop.permute.xlu0 %684
  %v687 = vadd.f32 %v677, %v685
  %v688 = vtanh.pop %v687
  %690 = vrot.lane.b32.xlu0 %v688, 64
  %v691 = vpop.permute.xlu0 %690
  %v693 = vmul.f32 %v675, %v691
  %v695 = vrot.slane %v693, 1
  %v696 = vrot.slane %v693, 2
  %v697 = vrot.slane %v693, 3
  %v698 = vperm.slane %v693, 0
  %v699 = vperm.slane %v695, 0
  %v700 = vperm.slane %v696, 0
  %v701 = vperm.slane %v697, 0
  %702 = vrot.lane.b32.xlu0 %v698, 32
  %v703 = vpop.permute.xlu0 %702
  %704 = vrot.lane.b32.xlu0 %v699, 32
  %v705 = vpop.permute.xlu0 %704
  %706 = vrot.lane.b32.xlu0 %v700, 32
  %v707 = vpop.permute.xlu0 %706
  %708 = vrot.lane.b32.xlu0 %v701, 32
  %v709 = vpop.permute.xlu0 %708
  %vm714 = vcmask 253952
  %715 = vst.msk [vmem:[#allocation2] sm:$0x1] %vm714, %v703
  %716 = vst.msk [vmem:[#allocation2 + $0x38] sm:$0x1] %vm714, %v705
  %717 = vst.msk [vmem:[#allocation2 + $0x70] sm:$0x1] %vm714, %v707
  %718 = vst.msk [vmem:[#allocation2 + $0xa8] sm:$0x1] %vm714, %v709
  %719 = vrot.lane.b32.xlu0 %v693, 32
  %v720 = vpop.permute.xlu0 %719
  %v721 = vsel %vm63, %v720, 0
  %723 = vmatpush.msra.mxu0 0.0
  %724 = vmatpush.msra.mxu0 0.0
  %725 = vmatpush.msra.mxu0 0.0
  %726 = vmatpush.msra.mxu0 0.0
  %727 = vmatpush.msra.mxu0 0.0
  %728 = vmatpush.msra.mxu0 0.0
  %729 = vmatpush.msra.mxu0 0.0
  %730 = vmatpush.msra.mxu0 0.0
  %731 = vmatpush.msra.mxu0 0.0
  %732 = vmatpush.msra.mxu0 0.0
  %733 = vmatpush.msra.mxu0 0.0
  %734 = vmatpush.msra.mxu0 0.0
  %735 = vmatpush.msra.mxu0 %v48
  %736 = vmatpush.msra.mxu0 %v47
  %737 = vmatpush.msra.mxu0 %v46
  %738 = vmatpush.msra.mxu0 %v45
  %739 = vmatmul.f32.gmra.mxu0 %v721
  %v740 = vpop.f32.mrf.mxu0
  %v741 = vadd.f32 0.0, %v740
  %742 = vdwg.mxu0
  %v743 = vadd.f32 %v634, %v741
  %v744 = vxor.u32 %v743, 2147483648
  %v745 = vmul.f32 %v744, 1.442695
  %v746 = vpow.pop %v745
  %v747 = vadd.f32 %v746, 1.0
  %v748 = vrcp.pop %v747
  %v749 = vmul.f32 %v747, %v748
  %v750 = vsub.f32 1.0, %v749
  %v751 = vmul.f32 %v748, %v750
  %v752 = vadd.f32 %v748, %v751
  %vm753 = vweird.f32 %v747
  %vm754 = vweird.f32 %v748
  %vm755 = vmor %vm753, %vm754
  %v756 = vsel %vm755, %v748, %v752
  %v757 = vand.u32 2147483647, %v747
  %vm758 = vcmp.eq.f32.partialorder %v757, 8.507059e+37
  %v759 = vand.u32 %v747, 2147483648
  %v760 = vor.u32 1.1754944e-38, %v759
  %v761 = vsel %vm758, %v760, %v756
  %v762 = vmul.f32 1.0, %v761
  %v763 = vtanh.pop %v743
  %v764 = vmul.f32 %v762, %v687
  %766 = vrot.lane.b32.xlu0 %v763, 64
  %v767 = vpop.permute.xlu0 %766
  %v769 = vmul.f32 %v762, %v767
  %771 = vrot.lane.b32.xlu0 %v769, 32
  %v772 = vpop.permute.xlu0 %771
  %v774 = vadd.f32 %v764, %v772
  %v775 = vtanh.pop %v774
  %777 = vrot.lane.b32.xlu0 %v775, 64
  %v778 = vpop.permute.xlu0 %777
  %v780 = vmul.f32 %v762, %v778
  %v782 = vrot.slane %v780, 1
  %v783 = vrot.slane %v780, 2
  %v784 = vrot.slane %v780, 3
  %v785 = vperm.slane %v780, 0
  %v786 = vperm.slane %v782, 0
  %v787 = vperm.slane %v783, 0
  %v788 = vperm.slane %v784, 0
  %789 = vrot.lane.b32.xlu0 %v785, 32
  %v790 = vpop.permute.xlu0 %789
  %791 = vrot.lane.b32.xlu0 %v786, 32
  %v792 = vpop.permute.xlu0 %791
  %793 = vrot.lane.b32.xlu0 %v787, 32
  %v794 = vpop.permute.xlu0 %793
  %795 = vrot.lane.b32.xlu0 %v788, 32
  %v796 = vpop.permute.xlu0 %795
  %801 = vst.msk [vmem:[#allocation2 + $0x1] sm:$0x1] %vm714, %v790
  %802 = vst.msk [vmem:[#allocation2 + $0x39] sm:$0x1] %vm714, %v792
  %803 = vst.msk [vmem:[#allocation2 + $0x71] sm:$0x1] %vm714, %v794
  %804 = vst.msk [vmem:[#allocation2 + $0xa9] sm:$0x1] %vm714, %v796
  %805 = vrot.lane.b32.xlu0 %v780, 32
  %v806 = vpop.permute.xlu0 %805
  %v807 = vsel %vm63, %v806, 0
  %809 = vmatpush.msra.mxu0 0.0
  %810 = vmatpush.msra.mxu0 0.0
  %811 = vmatpush.msra.mxu0 0.0
  %812 = vmatpush.msra.mxu0 0.0
  %813 = vmatpush.msra.mxu0 0.0
  %814 = vmatpush.msra.mxu0 0.0
  %815 = vmatpush.msra.mxu0 0.0
  %816 = vmatpush.msra.mxu0 0.0
  %817 = vmatpush.msra.mxu0 0.0
  %818 = vmatpush.msra.mxu0 0.0
  %819 = vmatpush.msra.mxu0 0.0
  %820 = vmatpush.msra.mxu0 0.0
  %821 = vmatpush.msra.mxu0 %v48
  %822 = vmatpush.msra.mxu0 %v47
  %823 = vmatpush.msra.mxu0 %v46
  %824 = vmatpush.msra.mxu0 %v45
  %825 = vmatmul.f32.gmra.mxu0 %v807
  %v826 = vpop.f32.mrf.mxu0
  %v827 = vadd.f32 0.0, %v826
  %828 = vdwg.mxu0
  %v829 = vadd.f32 %v634, %v827
  %v830 = vxor.u32 %v829, 2147483648
  %v831 = vmul.f32 %v830, 1.442695
  %v832 = vpow.pop %v831
  %v833 = vadd.f32 %v832, 1.0
  %v834 = vrcp.pop %v833
  %v835 = vmul.f32 %v833, %v834
  %v836 = vsub.f32 1.0, %v835
  %v837 = vmul.f32 %v834, %v836
  %v838 = vadd.f32 %v834, %v837
  %vm839 = vweird.f32 %v833
  %vm840 = vweird.f32 %v834
  %vm841 = vmor %vm839, %vm840
  %v842 = vsel %vm841, %v834, %v838
  %v843 = vand.u32 2147483647, %v833
  %vm844 = vcmp.eq.f32.partialorder %v843, 8.507059e+37
  %v845 = vand.u32 %v833, 2147483648
  %v846 = vor.u32 1.1754944e-38, %v845
  %v847 = vsel %vm844, %v846, %v842
  %v848 = vmul.f32 1.0, %v847
  %v849 = vtanh.pop %v829
  %v850 = vmul.f32 %v848, %v774
  %852 = vrot.lane.b32.xlu0 %v849, 64
  %v853 = vpop.permute.xlu0 %852
  %v855 = vmul.f32 %v848, %v853
  %857 = vrot.lane.b32.xlu0 %v855, 32
  %v858 = vpop.permute.xlu0 %857
  %v860 = vadd.f32 %v850, %v858
  %v861 = vtanh.pop %v860
  %863 = vrot.lane.b32.xlu0 %v861, 64
  %v864 = vpop.permute.xlu0 %863
  %v866 = vmul.f32 %v848, %v864
  %v868 = vrot.slane %v866, 1
  %v869 = vrot.slane %v866, 2
  %v870 = vrot.slane %v866, 3
  %v871 = vperm.slane %v866, 0
  %v872 = vperm.slane %v868, 0
  %v873 = vperm.slane %v869, 0
  %v874 = vperm.slane %v870, 0
  %875 = vrot.lane.b32.xlu0 %v871, 32
  %v876 = vpop.permute.xlu0 %875
  %877 = vrot.lane.b32.xlu0 %v872, 32
  %v878 = vpop.permute.xlu0 %877
  %879 = vrot.lane.b32.xlu0 %v873, 32
  %v880 = vpop.permute.xlu0 %879
  %881 = vrot.lane.b32.xlu0 %v874, 32
  %v882 = vpop.permute.xlu0 %881
  %887 = vst.msk [vmem:[#allocation2 + $0x2] sm:$0x1] %vm714, %v876
  %888 = vst.msk [vmem:[#allocation2 + $0x3a] sm:$0x1] %vm714, %v878
  %889 = vst.msk [vmem:[#allocation2 + $0x72] sm:$0x1] %vm714, %v880
  %890 = vst.msk [vmem:[#allocation2 + $0xaa] sm:$0x1] %vm714, %v882
  %891 = vrot.lane.b32.xlu0 %v866, 32
  %v892 = vpop.permute.xlu0 %891
  %v893 = vsel %vm63, %v892, 0
  %895 = vmatpush.msra.mxu0 0.0
  %896 = vmatpush.msra.mxu0 0.0
  %897 = vmatpush.msra.mxu0 0.0
  %898 = vmatpush.msra.mxu0 0.0
  %899 = vmatpush.msra.mxu0 0.0
  %900 = vmatpush.msra.mxu0 0.0
  %901 = vmatpush.msra.mxu0 0.0
  %902 = vmatpush.msra.mxu0 0.0
  %903 = vmatpush.msra.mxu0 0.0
  %904 = vmatpush.msra.mxu0 0.0
  %905 = vmatpush.msra.mxu0 0.0
  %906 = vmatpush.msra.mxu0 0.0
  %907 = vmatpush.msra.mxu0 %v48
  %908 = vmatpush.msra.mxu0 %v47
  %909 = vmatpush.msra.mxu0 %v46
  %910 = vmatpush.msra.mxu0 %v45
  %911 = vmatmul.f32.gmra.mxu0 %v893
  %v912 = vpop.f32.mrf.mxu0
  %v913 = vadd.f32 0.0, %v912
  %914 = vdwg.mxu0
  %v915 = vadd.f32 %v634, %v913
  %v916 = vxor.u32 %v915, 2147483648
  %v917 = vmul.f32 %v916, 1.442695
  %v918 = vpow.pop %v917
  %v919 = vadd.f32 %v918, 1.0
  %v920 = vrcp.pop %v919
  %v921 = vmul.f32 %v919, %v920
  %v922 = vsub.f32 1.0, %v921
  %v923 = vmul.f32 %v920, %v922
  %v924 = vadd.f32 %v920, %v923
  %vm925 = vweird.f32 %v919
  %vm926 = vweird.f32 %v920
  %vm927 = vmor %vm925, %vm926
  %v928 = vsel %vm927, %v920, %v924
  %v929 = vand.u32 2147483647, %v919
  %vm930 = vcmp.eq.f32.partialorder %v929, 8.507059e+37
  %v931 = vand.u32 %v919, 2147483648
  %v932 = vor.u32 1.1754944e-38, %v931
  %v933 = vsel %vm930, %v932, %v928
  %v934 = vmul.f32 1.0, %v933
  %v935 = vtanh.pop %v915
  %v936 = vmul.f32 %v934, %v860
  %938 = vrot.lane.b32.xlu0 %v935, 64
  %v939 = vpop.permute.xlu0 %938
  %v941 = vmul.f32 %v934, %v939
  %943 = vrot.lane.b32.xlu0 %v941, 32
  %v944 = vpop.permute.xlu0 %943
  %v946 = vadd.f32 %v936, %v944
  %v947 = vtanh.pop %v946
  %949 = vrot.lane.b32.xlu0 %v947, 64
  %v950 = vpop.permute.xlu0 %949
  %v952 = vmul.f32 %v934, %v950
  %v954 = vrot.slane %v952, 1
  %v955 = vrot.slane %v952, 2
  %v956 = vrot.slane %v952, 3
  %v957 = vperm.slane %v952, 0
  %v958 = vperm.slane %v954, 0
  %v959 = vperm.slane %v955, 0
  %v960 = vperm.slane %v956, 0
  %961 = vrot.lane.b32.xlu0 %v957, 32
  %v962 = vpop.permute.xlu0 %961
  %963 = vrot.lane.b32.xlu0 %v958, 32
  %v964 = vpop.permute.xlu0 %963
  %965 = vrot.lane.b32.xlu0 %v959, 32
  %v966 = vpop.permute.xlu0 %965
  %967 = vrot.lane.b32.xlu0 %v960, 32
  %v968 = vpop.permute.xlu0 %967
  %973 = vst.msk [vmem:[#allocation2 + $0x3] sm:$0x1] %vm714, %v962
  %974 = vst.msk [vmem:[#allocation2 + $0x3b] sm:$0x1] %vm714, %v964
  %975 = vst.msk [vmem:[#allocation2 + $0x73] sm:$0x1] %vm714, %v966
  %976 = vst.msk [vmem:[#allocation2 + $0xab] sm:$0x1] %vm714, %v968
  %977 = vrot.lane.b32.xlu0 %v952, 32
  %v978 = vpop.permute.xlu0 %977
  %v979 = vsel %vm63, %v978, 0
  %981 = vmatpush.msra.mxu0 0.0
  %982 = vmatpush.msra.mxu0 0.0
  %983 = vmatpush.msra.mxu0 0.0
  %984 = vmatpush.msra.mxu0 0.0
  %985 = vmatpush.msra.mxu0 0.0
  %986 = vmatpush.msra.mxu0 0.0
  %987 = vmatpush.msra.mxu0 0.0
  %988 = vmatpush.msra.mxu0 0.0
  %989 = vmatpush.msra.mxu0 0.0
  %990 = vmatpush.msra.mxu0 0.0
  %991 = vmatpush.msra.mxu0 0.0
  %992 = vmatpush.msra.mxu0 0.0
  %993 = vmatpush.msra.mxu0 %v48
  %994 = vmatpush.msra.mxu0 %v47
  %995 = vmatpush.msra.mxu0 %v46
  %996 = vmatpush.msra.mxu0 %v45
  %997 = vmatmul.f32.gmra.mxu0 %v979
  %v998 = vpop.f32.mrf.mxu0
  %v999 = vadd.f32 0.0, %v998
  %1000 = vdwg.mxu0
  %v1001 = vadd.f32 %v634, %v999
  %v1002 = vxor.u32 %v1001, 2147483648
  %v1003 = vmul.f32 %v1002, 1.442695
  %v1004 = vpow.pop %v1003
  %v1005 = vadd.f32 %v1004, 1.0
  %v1006 = vrcp.pop %v1005
  %v1007 = vmul.f32 %v1005, %v1006
  %v1008 = vsub.f32 1.0, %v1007
  %v1009 = vmul.f32 %v1006, %v1008
  %v1010 = vadd.f32 %v1006, %v1009
  %vm1011 = vweird.f32 %v1005
  %vm1012 = vweird.f32 %v1006
  %vm1013 = vmor %vm1011, %vm1012
  %v1014 = vsel %vm1013, %v1006, %v1010
  %v1015 = vand.u32 2147483647, %v1005
  %vm1016 = vcmp.eq.f32.partialorder %v1015, 8.507059e+37
  %v1017 = vand.u32 %v1005, 2147483648
  %v1018 = vor.u32 1.1754944e-38, %v1017
  %v1019 = vsel %vm1016, %v1018, %v1014
  %v1020 = vmul.f32 1.0, %v1019
  %v1021 = vtanh.pop %v1001
  %v1022 = vmul.f32 %v1020, %v946
  %1024 = vrot.lane.b32.xlu0 %v1021, 64
  %v1025 = vpop.permute.xlu0 %1024
  %v1027 = vmul.f32 %v1020, %v1025
  %1029 = vrot.lane.b32.xlu0 %v1027, 32
  %v1030 = vpop.permute.xlu0 %1029
  %v1032 = vadd.f32 %v1022, %v1030
  %v1033 = vtanh.pop %v1032
  %1035 = vrot.lane.b32.xlu0 %v1033, 64
  %v1036 = vpop.permute.xlu0 %1035
  %v1038 = vmul.f32 %v1020, %v1036
  %v1040 = vrot.slane %v1038, 1
  %v1041 = vrot.slane %v1038, 2
  %v1042 = vrot.slane %v1038, 3
  %v1043 = vperm.slane %v1038, 0
  %v1044 = vperm.slane %v1040, 0
  %v1045 = vperm.slane %v1041, 0
  %v1046 = vperm.slane %v1042, 0
  %1047 = vrot.lane.b32.xlu0 %v1043, 32
  %v1048 = vpop.permute.xlu0 %1047
  %1049 = vrot.lane.b32.xlu0 %v1044, 32
  %v1050 = vpop.permute.xlu0 %1049
  %1051 = vrot.lane.b32.xlu0 %v1045, 32
  %v1052 = vpop.permute.xlu0 %1051
  %1053 = vrot.lane.b32.xlu0 %v1046, 32
  %v1054 = vpop.permute.xlu0 %1053
  %1059 = vst.msk [vmem:[#allocation2 + $0x4] sm:$0x1] %vm714, %v1048
  %1060 = vst.msk [vmem:[#allocation2 + $0x3c] sm:$0x1] %vm714, %v1050
  %1061 = vst.msk [vmem:[#allocation2 + $0x74] sm:$0x1] %vm714, %v1052
  %1062 = vst.msk [vmem:[#allocation2 + $0xac] sm:$0x1] %vm714, %v1054
  %1063 = vrot.lane.b32.xlu0 %v1038, 32
  %v1064 = vpop.permute.xlu0 %1063
  %v1065 = vsel %vm63, %v1064, 0
  %1067 = vmatpush.msra.mxu0 0.0
  %1068 = vmatpush.msra.mxu0 0.0
  %1069 = vmatpush.msra.mxu0 0.0
  %1070 = vmatpush.msra.mxu0 0.0
  %1071 = vmatpush.msra.mxu0 0.0
  %1072 = vmatpush.msra.mxu0 0.0
  %1073 = vmatpush.msra.mxu0 0.0
  %1074 = vmatpush.msra.mxu0 0.0
  %1075 = vmatpush.msra.mxu0 0.0
  %1076 = vmatpush.msra.mxu0 0.0
  %1077 = vmatpush.msra.mxu0 0.0
  %1078 = vmatpush.msra.mxu0 0.0
  %1079 = vmatpush.msra.mxu0 %v48
  %1080 = vmatpush.msra.mxu0 %v47
  %1081 = vmatpush.msra.mxu0 %v46
  %1082 = vmatpush.msra.mxu0 %v45
  %1083 = vmatmul.f32.gmra.mxu0 %v1065
  %v1084 = vpop.f32.mrf.mxu0
  %v1085 = vadd.f32 0.0, %v1084
  %1086 = vdwg.mxu0
  %v1087 = vadd.f32 %v634, %v1085
  %v1088 = vxor.u32 %v1087, 2147483648
  %v1089 = vmul.f32 %v1088, 1.442695
  %v1090 = vpow.pop %v1089
  %v1091 = vadd.f32 %v1090, 1.0
  %v1092 = vrcp.pop %v1091
  %v1093 = vmul.f32 %v1091, %v1092
  %v1094 = vsub.f32 1.0, %v1093
  %v1095 = vmul.f32 %v1092, %v1094
  %v1096 = vadd.f32 %v1092, %v1095
  %vm1097 = vweird.f32 %v1091
  %vm1098 = vweird.f32 %v1092
  %vm1099 = vmor %vm1097, %vm1098
  %v1100 = vsel %vm1099, %v1092, %v1096
  %v1101 = vand.u32 2147483647, %v1091
  %vm1102 = vcmp.eq.f32.partialorder %v1101, 8.507059e+37
  %v1103 = vand.u32 %v1091, 2147483648
  %v1104 = vor.u32 1.1754944e-38, %v1103
  %v1105 = vsel %vm1102, %v1104, %v1100
  %v1106 = vmul.f32 1.0, %v1105
  %v1107 = vtanh.pop %v1087
  %v1108 = vmul.f32 %v1106, %v1032
  %1110 = vrot.lane.b32.xlu0 %v1107, 64
  %v1111 = vpop.permute.xlu0 %1110
  %v1113 = vmul.f32 %v1106, %v1111
  %1115 = vrot.lane.b32.xlu0 %v1113, 32
  %v1116 = vpop.permute.xlu0 %1115
  %v1118 = vadd.f32 %v1108, %v1116
  %v1119 = vtanh.pop %v1118
  %1121 = vrot.lane.b32.xlu0 %v1119, 64
  %v1122 = vpop.permute.xlu0 %1121
  %v1124 = vmul.f32 %v1106, %v1122
  %v1126 = vrot.slane %v1124, 1
  %v1127 = vrot.slane %v1124, 2
  %v1128 = vrot.slane %v1124, 3
  %v1129 = vperm.slane %v1124, 0
  %v1130 = vperm.slane %v1126, 0
  %v1131 = vperm.slane %v1127, 0
  %v1132 = vperm.slane %v1128, 0
  %1133 = vrot.lane.b32.xlu0 %v1129, 32
  %v1134 = vpop.permute.xlu0 %1133
  %1135 = vrot.lane.b32.xlu0 %v1130, 32
  %v1136 = vpop.permute.xlu0 %1135
  %1137 = vrot.lane.b32.xlu0 %v1131, 32
  %v1138 = vpop.permute.xlu0 %1137
  %1139 = vrot.lane.b32.xlu0 %v1132, 32
  %v1140 = vpop.permute.xlu0 %1139
  %1145 = vst.msk [vmem:[#allocation2 + $0x5] sm:$0x1] %vm714, %v1134
  %1146 = vst.msk [vmem:[#allocation2 + $0x3d] sm:$0x1] %vm714, %v1136
  %1147 = vst.msk [vmem:[#allocation2 + $0x75] sm:$0x1] %vm714, %v1138
  %1148 = vst.msk [vmem:[#allocation2 + $0xad] sm:$0x1] %vm714, %v1140
  %1149 = vrot.lane.b32.xlu0 %v1124, 32
  %v1150 = vpop.permute.xlu0 %1149
  %v1151 = vsel %vm63, %v1150, 0
  %1153 = vmatpush.msra.mxu0 0.0
  %1154 = vmatpush.msra.mxu0 0.0
  %1155 = vmatpush.msra.mxu0 0.0
  %1156 = vmatpush.msra.mxu0 0.0
  %1157 = vmatpush.msra.mxu0 0.0
  %1158 = vmatpush.msra.mxu0 0.0
  %1159 = vmatpush.msra.mxu0 0.0
  %1160 = vmatpush.msra.mxu0 0.0
  %1161 = vmatpush.msra.mxu0 0.0
  %1162 = vmatpush.msra.mxu0 0.0
  %1163 = vmatpush.msra.mxu0 0.0
  %1164 = vmatpush.msra.mxu0 0.0
  %1165 = vmatpush.msra.mxu0 %v48
  %1166 = vmatpush.msra.mxu0 %v47
  %1167 = vmatpush.msra.mxu0 %v46
  %1168 = vmatpush.msra.mxu0 %v45
  %1169 = vmatmul.f32.gmra.mxu0 %v1151
  %v1170 = vpop.f32.mrf.mxu0
  %v1171 = vadd.f32 0.0, %v1170
  %1172 = vdwg.mxu0
  %v1173 = vadd.f32 %v634, %v1171
  %v1174 = vxor.u32 %v1173, 2147483648
  %v1175 = vmul.f32 %v1174, 1.442695
  %v1176 = vpow.pop %v1175
  %v1177 = vadd.f32 %v1176, 1.0
  %v1178 = vrcp.pop %v1177
  %v1179 = vmul.f32 %v1177, %v1178
  %v1180 = vsub.f32 1.0, %v1179
  %v1181 = vmul.f32 %v1178, %v1180
  %v1182 = vadd.f32 %v1178, %v1181
  %vm1183 = vweird.f32 %v1177
  %vm1184 = vweird.f32 %v1178
  %vm1185 = vmor %vm1183, %vm1184
  %v1186 = vsel %vm1185, %v1178, %v1182
  %v1187 = vand.u32 2147483647, %v1177
  %vm1188 = vcmp.eq.f32.partialorder %v1187, 8.507059e+37
  %v1189 = vand.u32 %v1177, 2147483648
  %v1190 = vor.u32 1.1754944e-38, %v1189
  %v1191 = vsel %vm1188, %v1190, %v1186
  %v1192 = vmul.f32 1.0, %v1191
  %v1193 = vtanh.pop %v1173
  %v1194 = vmul.f32 %v1192, %v1118
  %1196 = vrot.lane.b32.xlu0 %v1193, 64
  %v1197 = vpop.permute.xlu0 %1196
  %v1199 = vmul.f32 %v1192, %v1197
  %1201 = vrot.lane.b32.xlu0 %v1199, 32
  %v1202 = vpop.permute.xlu0 %1201
  %v1204 = vadd.f32 %v1194, %v1202
  %v1205 = vtanh.pop %v1204
  %1207 = vrot.lane.b32.xlu0 %v1205, 64
  %v1208 = vpop.permute.xlu0 %1207
  %v1210 = vmul.f32 %v1192, %v1208
  %v1212 = vrot.slane %v1210, 1
  %v1213 = vrot.slane %v1210, 2
  %v1214 = vrot.slane %v1210, 3
  %v1215 = vperm.slane %v1210, 0
  %v1216 = vperm.slane %v1212, 0
  %v1217 = vperm.slane %v1213, 0
  %v1218 = vperm.slane %v1214, 0
  %1219 = vrot.lane.b32.xlu0 %v1215, 32
  %v1220 = vpop.permute.xlu0 %1219
  %1221 = vrot.lane.b32.xlu0 %v1216, 32
  %v1222 = vpop.permute.xlu0 %1221
  %1223 = vrot.lane.b32.xlu0 %v1217, 32
  %v1224 = vpop.permute.xlu0 %1223
  %1225 = vrot.lane.b32.xlu0 %v1218, 32
  %v1226 = vpop.permute.xlu0 %1225
  %1231 = vst.msk [vmem:[#allocation2 + $0x6] sm:$0x1] %vm714, %v1220
  %1232 = vst.msk [vmem:[#allocation2 + $0x3e] sm:$0x1] %vm714, %v1222
  %1233 = vst.msk [vmem:[#allocation2 + $0x76] sm:$0x1] %vm714, %v1224
  %1234 = vst.msk [vmem:[#allocation2 + $0xae] sm:$0x1] %vm714, %v1226
  %1235 = vrot.lane.b32.xlu0 %v1210, 32
  %v1236 = vpop.permute.xlu0 %1235
  %v1237 = vsel %vm63, %v1236, 0
  %1239 = vmatpush.msra.mxu0 0.0
  %1240 = vmatpush.msra.mxu0 0.0
  %1241 = vmatpush.msra.mxu0 0.0
  %1242 = vmatpush.msra.mxu0 0.0
  %1243 = vmatpush.msra.mxu0 0.0
  %1244 = vmatpush.msra.mxu0 0.0
  %1245 = vmatpush.msra.mxu0 0.0
  %1246 = vmatpush.msra.mxu0 0.0
  %1247 = vmatpush.msra.mxu0 0.0
  %1248 = vmatpush.msra.mxu0 0.0
  %1249 = vmatpush.msra.mxu0 0.0
  %1250 = vmatpush.msra.mxu0 0.0
  %1251 = vmatpush.msra.mxu0 %v48
  %1252 = vmatpush.msra.mxu0 %v47
  %1253 = vmatpush.msra.mxu0 %v46
  %1254 = vmatpush.msra.mxu0 %v45
  %1255 = vmatmul.f32.gmra.mxu0 %v1237
  %v1256 = vpop.f32.mrf.mxu0
  %v1257 = vadd.f32 0.0, %v1256
  %1258 = vdwg.mxu0
  %v1259 = vadd.f32 %v634, %v1257
  %v1260 = vxor.u32 %v1259, 2147483648
  %v1261 = vmul.f32 %v1260, 1.442695
  %v1262 = vpow.pop %v1261
  %v1263 = vadd.f32 %v1262, 1.0
  %v1264 = vrcp.pop %v1263
  %v1265 = vmul.f32 %v1263, %v1264
  %v1266 = vsub.f32 1.0, %v1265
  %v1267 = vmul.f32 %v1264, %v1266
  %v1268 = vadd.f32 %v1264, %v1267
  %vm1269 = vweird.f32 %v1263
  %vm1270 = vweird.f32 %v1264
  %vm1271 = vmor %vm1269, %vm1270
  %v1272 = vsel %vm1271, %v1264, %v1268
  %v1273 = vand.u32 2147483647, %v1263
  %vm1274 = vcmp.eq.f32.partialorder %v1273, 8.507059e+37
  %v1275 = vand.u32 %v1263, 2147483648
  %v1276 = vor.u32 1.1754944e-38, %v1275
  %v1277 = vsel %vm1274, %v1276, %v1272
  %v1278 = vmul.f32 1.0, %v1277
  %v1279 = vtanh.pop %v1259
  %v1280 = vmul.f32 %v1278, %v1204
  %1282 = vrot.lane.b32.xlu0 %v1279, 64
  %v1283 = vpop.permute.xlu0 %1282
  %v1285 = vmul.f32 %v1278, %v1283
  %1287 = vrot.lane.b32.xlu0 %v1285, 32
  %v1288 = vpop.permute.xlu0 %1287
  %v1290 = vadd.f32 %v1280, %v1288
  %v1291 = vtanh.pop %v1290
  %1293 = vrot.lane.b32.xlu0 %v1291, 64
  %v1294 = vpop.permute.xlu0 %1293
  %v1296 = vmul.f32 %v1278, %v1294
  %v1298 = vrot.slane %v1296, 1
  %v1299 = vrot.slane %v1296, 2
  %v1300 = vrot.slane %v1296, 3
  %v1301 = vperm.slane %v1296, 0
  %v1302 = vperm.slane %v1298, 0
  %v1303 = vperm.slane %v1299, 0
  %v1304 = vperm.slane %v1300, 0
  %1305 = vrot.lane.b32.xlu0 %v1301, 32
  %v1306 = vpop.permute.xlu0 %1305
  %1307 = vrot.lane.b32.xlu0 %v1302, 32
  %v1308 = vpop.permute.xlu0 %1307
  %1309 = vrot.lane.b32.xlu0 %v1303, 32
  %v1310 = vpop.permute.xlu0 %1309
  %1311 = vrot.lane.b32.xlu0 %v1304, 32
  %v1312 = vpop.permute.xlu0 %1311
  %1317 = vst.msk [vmem:[#allocation2 + $0x7] sm:$0x1] %vm714, %v1306
  %1318 = vst.msk [vmem:[#allocation2 + $0x3f] sm:$0x1] %vm714, %v1308
  %1319 = vst.msk [vmem:[#allocation2 + $0x77] sm:$0x1] %vm714, %v1310
  %1320 = vst.msk [vmem:[#allocation2 + $0xaf] sm:$0x1] %vm714, %v1312
  %1321 = vrot.lane.b32.xlu0 %v1296, 32
  %v1322 = vpop.permute.xlu0 %1321
  %v1323 = vsel %vm63, %v1322, 0
  %1325 = vmatpush.msra.mxu0 0.0
  %1326 = vmatpush.msra.mxu0 0.0
  %1327 = vmatpush.msra.mxu0 0.0
  %1328 = vmatpush.msra.mxu0 0.0
  %1329 = vmatpush.msra.mxu0 0.0
  %1330 = vmatpush.msra.mxu0 0.0
  %1331 = vmatpush.msra.mxu0 0.0
  %1332 = vmatpush.msra.mxu0 0.0
  %1333 = vmatpush.msra.mxu0 0.0
  %1334 = vmatpush.msra.mxu0 0.0
  %1335 = vmatpush.msra.mxu0 0.0
  %1336 = vmatpush.msra.mxu0 0.0
  %1337 = vmatpush.msra.mxu0 %v48
  %1338 = vmatpush.msra.mxu0 %v47
  %1339 = vmatpush.msra.mxu0 %v46
  %1340 = vmatpush.msra.mxu0 %v45
  %1341 = vmatmul.f32.gmra.mxu0 %v1323
  %v1342 = vpop.f32.mrf.mxu0
  %v1343 = vadd.f32 0.0, %v1342
  %1344 = vdwg.mxu0
  %v1345 = vadd.f32 %v634, %v1343
  %v1346 = vxor.u32 %v1345, 2147483648
  %v1347 = vmul.f32 %v1346, 1.442695
  %v1348 = vpow.pop %v1347
  %v1349 = vadd.f32 %v1348, 1.0
  %v1350 = vrcp.pop %v1349
  %v1351 = vmul.f32 %v1349, %v1350
  %v1352 = vsub.f32 1.0, %v1351
  %v1353 = vmul.f32 %v1350, %v1352
  %v1354 = vadd.f32 %v1350, %v1353
  %vm1355 = vweird.f32 %v1349
  %vm1356 = vweird.f32 %v1350
  %vm1357 = vmor %vm1355, %vm1356
  %v1358 = vsel %vm1357, %v1350, %v1354
  %v1359 = vand.u32 2147483647, %v1349
  %vm1360 = vcmp.eq.f32.partialorder %v1359, 8.507059e+37
  %v1361 = vand.u32 %v1349, 2147483648
  %v1362 = vor.u32 1.1754944e-38, %v1361
  %v1363 = vsel %vm1360, %v1362, %v1358
  %v1364 = vmul.f32 1.0, %v1363
  %v1365 = vtanh.pop %v1345
  %v1366 = vmul.f32 %v1364, %v1290
  %1368 = vrot.lane.b32.xlu0 %v1365, 64
  %v1369 = vpop.permute.xlu0 %1368
  %v1371 = vmul.f32 %v1364, %v1369
  %1373 = vrot.lane.b32.xlu0 %v1371, 32
  %v1374 = vpop.permute.xlu0 %1373
  %v1376 = vadd.f32 %v1366, %v1374
  %v1377 = vtanh.pop %v1376
  %1379 = vrot.lane.b32.xlu0 %v1377, 64
  %v1380 = vpop.permute.xlu0 %1379
  %v1382 = vmul.f32 %v1364, %v1380
  %v1384 = vrot.slane %v1382, 1
  %v1385 = vrot.slane %v1382, 2
  %v1386 = vrot.slane %v1382, 3
  %v1387 = vperm.slane %v1382, 0
  %v1388 = vperm.slane %v1384, 0
  %v1389 = vperm.slane %v1385, 0
  %v1390 = vperm.slane %v1386, 0
  %1391 = vrot.lane.b32.xlu0 %v1387, 32
  %v1392 = vpop.permute.xlu0 %1391
  %1393 = vrot.lane.b32.xlu0 %v1388, 32
  %v1394 = vpop.permute.xlu0 %1393
  %1395 = vrot.lane.b32.xlu0 %v1389, 32
  %v1396 = vpop.permute.xlu0 %1395
  %1397 = vrot.lane.b32.xlu0 %v1390, 32
  %v1398 = vpop.permute.xlu0 %1397
  %1403 = vst.msk [vmem:[#allocation2 + $0x8] sm:$0x1] %vm714, %v1392
  %1404 = vst.msk [vmem:[#allocation2 + $0x40] sm:$0x1] %vm714, %v1394
  %1405 = vst.msk [vmem:[#allocation2 + $0x78] sm:$0x1] %vm714, %v1396
  %1406 = vst.msk [vmem:[#allocation2 + $0xb0] sm:$0x1] %vm714, %v1398
  %1407 = vrot.lane.b32.xlu0 %v1382, 32
  %v1408 = vpop.permute.xlu0 %1407
  %v1409 = vsel %vm63, %v1408, 0
  %1411 = vmatpush.msra.mxu0 0.0
  %1412 = vmatpush.msra.mxu0 0.0
  %1413 = vmatpush.msra.mxu0 0.0
  %1414 = vmatpush.msra.mxu0 0.0
  %1415 = vmatpush.msra.mxu0 0.0
  %1416 = vmatpush.msra.mxu0 0.0
  %1417 = vmatpush.msra.mxu0 0.0
  %1418 = vmatpush.msra.mxu0 0.0
  %1419 = vmatpush.msra.mxu0 0.0
  %1420 = vmatpush.msra.mxu0 0.0
  %1421 = vmatpush.msra.mxu0 0.0
  %1422 = vmatpush.msra.mxu0 0.0
  %1423 = vmatpush.msra.mxu0 %v48
  %1424 = vmatpush.msra.mxu0 %v47
  %1425 = vmatpush.msra.mxu0 %v46
  %1426 = vmatpush.msra.mxu0 %v45
  %1427 = vmatmul.f32.gmra.mxu0 %v1409
  %v1428 = vpop.f32.mrf.mxu0
  %v1429 = vadd.f32 0.0, %v1428
  %1430 = vdwg.mxu0
  %v1431 = vadd.f32 %v634, %v1429
  %v1432 = vxor.u32 %v1431, 2147483648
  %v1433 = vmul.f32 %v1432, 1.442695
  %v1434 = vpow.pop %v1433
  %v1435 = vadd.f32 %v1434, 1.0
  %v1436 = vrcp.pop %v1435
  %v1437 = vmul.f32 %v1435, %v1436
  %v1438 = vsub.f32 1.0, %v1437
  %v1439 = vmul.f32 %v1436, %v1438
  %v1440 = vadd.f32 %v1436, %v1439
  %vm1441 = vweird.f32 %v1435
  %vm1442 = vweird.f32 %v1436
  %vm1443 = vmor %vm1441, %vm1442
  %v1444 = vsel %vm1443, %v1436, %v1440
  %v1445 = vand.u32 2147483647, %v1435
  %vm1446 = vcmp.eq.f32.partialorder %v1445, 8.507059e+37
  %v1447 = vand.u32 %v1435, 2147483648
  %v1448 = vor.u32 1.1754944e-38, %v1447
  %v1449 = vsel %vm1446, %v1448, %v1444
  %v1450 = vmul.f32 1.0, %v1449
  %v1451 = vtanh.pop %v1431
  %v1452 = vmul.f32 %v1450, %v1376
  %1454 = vrot.lane.b32.xlu0 %v1451, 64
  %v1455 = vpop.permute.xlu0 %1454
  %v1457 = vmul.f32 %v1450, %v1455
  %1459 = vrot.lane.b32.xlu0 %v1457, 32
  %v1460 = vpop.permute.xlu0 %1459
  %v1462 = vadd.f32 %v1452, %v1460
  %v1463 = vtanh.pop %v1462
  %1465 = vrot.lane.b32.xlu0 %v1463, 64
  %v1466 = vpop.permute.xlu0 %1465
  %v1468 = vmul.f32 %v1450, %v1466
  %v1470 = vrot.slane %v1468, 1
  %v1471 = vrot.slane %v1468, 2
  %v1472 = vrot.slane %v1468, 3
  %v1473 = vperm.slane %v1468, 0
  %v1474 = vperm.slane %v1470, 0
  %v1475 = vperm.slane %v1471, 0
  %v1476 = vperm.slane %v1472, 0
  %1477 = vrot.lane.b32.xlu0 %v1473, 32
  %v1478 = vpop.permute.xlu0 %1477
  %1479 = vrot.lane.b32.xlu0 %v1474, 32
  %v1480 = vpop.permute.xlu0 %1479
  %1481 = vrot.lane.b32.xlu0 %v1475, 32
  %v1482 = vpop.permute.xlu0 %1481
  %1483 = vrot.lane.b32.xlu0 %v1476, 32
  %v1484 = vpop.permute.xlu0 %1483
  %1489 = vst.msk [vmem:[#allocation2 + $0x9] sm:$0x1] %vm714, %v1478
  %1490 = vst.msk [vmem:[#allocation2 + $0x41] sm:$0x1] %vm714, %v1480
  %1491 = vst.msk [vmem:[#allocation2 + $0x79] sm:$0x1] %vm714, %v1482
  %1492 = vst.msk [vmem:[#allocation2 + $0xb1] sm:$0x1] %vm714, %v1484
  %1493 = vrot.lane.b32.xlu0 %v1468, 32
  %v1494 = vpop.permute.xlu0 %1493
  %v1495 = vsel %vm63, %v1494, 0
  %1497 = vmatpush.msra.mxu0 0.0
  %1498 = vmatpush.msra.mxu0 0.0
  %1499 = vmatpush.msra.mxu0 0.0
  %1500 = vmatpush.msra.mxu0 0.0
  %1501 = vmatpush.msra.mxu0 0.0
  %1502 = vmatpush.msra.mxu0 0.0
  %1503 = vmatpush.msra.mxu0 0.0
  %1504 = vmatpush.msra.mxu0 0.0
  %1505 = vmatpush.msra.mxu0 0.0
  %1506 = vmatpush.msra.mxu0 0.0
  %1507 = vmatpush.msra.mxu0 0.0
  %1508 = vmatpush.msra.mxu0 0.0
  %1509 = vmatpush.msra.mxu0 %v48
  %1510 = vmatpush.msra.mxu0 %v47
  %1511 = vmatpush.msra.mxu0 %v46
  %1512 = vmatpush.msra.mxu0 %v45
  %1513 = vmatmul.f32.gmra.mxu0 %v1495
  %v1514 = vpop.f32.mrf.mxu0
  %v1515 = vadd.f32 0.0, %v1514
  %1516 = vdwg.mxu0
  %v1517 = vadd.f32 %v634, %v1515
  %v1518 = vxor.u32 %v1517, 2147483648
  %v1519 = vmul.f32 %v1518, 1.442695
  %v1520 = vpow.pop %v1519
  %v1521 = vadd.f32 %v1520, 1.0
  %v1522 = vrcp.pop %v1521
  %v1523 = vmul.f32 %v1521, %v1522
  %v1524 = vsub.f32 1.0, %v1523
  %v1525 = vmul.f32 %v1522, %v1524
  %v1526 = vadd.f32 %v1522, %v1525
  %vm1527 = vweird.f32 %v1521
  %vm1528 = vweird.f32 %v1522
  %vm1529 = vmor %vm1527, %vm1528
  %v1530 = vsel %vm1529, %v1522, %v1526
  %v1531 = vand.u32 2147483647, %v1521
  %vm1532 = vcmp.eq.f32.partialorder %v1531, 8.507059e+37
  %v1533 = vand.u32 %v1521, 2147483648
  %v1534 = vor.u32 1.1754944e-38, %v1533
  %v1535 = vsel %vm1532, %v1534, %v1530
  %v1536 = vmul.f32 1.0, %v1535
  %v1537 = vtanh.pop %v1517
  %v1538 = vmul.f32 %v1536, %v1462
  %1540 = vrot.lane.b32.xlu0 %v1537, 64
  %v1541 = vpop.permute.xlu0 %1540
  %v1543 = vmul.f32 %v1536, %v1541
  %1545 = vrot.lane.b32.xlu0 %v1543, 32
  %v1546 = vpop.permute.xlu0 %1545
  %v1548 = vadd.f32 %v1538, %v1546
  %v1549 = vtanh.pop %v1548
  %1551 = vrot.lane.b32.xlu0 %v1549, 64
  %v1552 = vpop.permute.xlu0 %1551
  %v1554 = vmul.f32 %v1536, %v1552
  %v1556 = vrot.slane %v1554, 1
  %v1557 = vrot.slane %v1554, 2
  %v1558 = vrot.slane %v1554, 3
  %v1559 = vperm.slane %v1554, 0
  %v1560 = vperm.slane %v1556, 0
  %v1561 = vperm.slane %v1557, 0
  %v1562 = vperm.slane %v1558, 0
  %1563 = vrot.lane.b32.xlu0 %v1559, 32
  %v1564 = vpop.permute.xlu0 %1563
  %1565 = vrot.lane.b32.xlu0 %v1560, 32
  %v1566 = vpop.permute.xlu0 %1565
  %1567 = vrot.lane.b32.xlu0 %v1561, 32
  %v1568 = vpop.permute.xlu0 %1567
  %1569 = vrot.lane.b32.xlu0 %v1562, 32
  %v1570 = vpop.permute.xlu0 %1569
  %1575 = vst.msk [vmem:[#allocation2 + $0xa] sm:$0x1] %vm714, %v1564
  %1576 = vst.msk [vmem:[#allocation2 + $0x42] sm:$0x1] %vm714, %v1566
  %1577 = vst.msk [vmem:[#allocation2 + $0x7a] sm:$0x1] %vm714, %v1568
  %1578 = vst.msk [vmem:[#allocation2 + $0xb2] sm:$0x1] %vm714, %v1570
  %1579 = vrot.lane.b32.xlu0 %v1554, 32
  %v1580 = vpop.permute.xlu0 %1579
  %v1581 = vsel %vm63, %v1580, 0
  %1583 = vmatpush.msra.mxu0 0.0
  %1584 = vmatpush.msra.mxu0 0.0
  %1585 = vmatpush.msra.mxu0 0.0
  %1586 = vmatpush.msra.mxu0 0.0
  %1587 = vmatpush.msra.mxu0 0.0
  %1588 = vmatpush.msra.mxu0 0.0
  %1589 = vmatpush.msra.mxu0 0.0
  %1590 = vmatpush.msra.mxu0 0.0
  %1591 = vmatpush.msra.mxu0 0.0
  %1592 = vmatpush.msra.mxu0 0.0
  %1593 = vmatpush.msra.mxu0 0.0
  %1594 = vmatpush.msra.mxu0 0.0
  %1595 = vmatpush.msra.mxu0 %v48
  %1596 = vmatpush.msra.mxu0 %v47
  %1597 = vmatpush.msra.mxu0 %v46
  %1598 = vmatpush.msra.mxu0 %v45
  %1599 = vmatmul.f32.gmra.mxu0 %v1581
  %v1600 = vpop.f32.mrf.mxu0
  %v1601 = vadd.f32 0.0, %v1600
  %1602 = vdwg.mxu0
  %v1603 = vadd.f32 %v634, %v1601
  %v1604 = vxor.u32 %v1603, 2147483648
  %v1605 = vmul.f32 %v1604, 1.442695
  %v1606 = vpow.pop %v1605
  %v1607 = vadd.f32 %v1606, 1.0
  %v1608 = vrcp.pop %v1607
  %v1609 = vmul.f32 %v1607, %v1608
  %v1610 = vsub.f32 1.0, %v1609
  %v1611 = vmul.f32 %v1608, %v1610
  %v1612 = vadd.f32 %v1608, %v1611
  %vm1613 = vweird.f32 %v1607
  %vm1614 = vweird.f32 %v1608
  %vm1615 = vmor %vm1613, %vm1614
  %v1616 = vsel %vm1615, %v1608, %v1612
  %v1617 = vand.u32 2147483647, %v1607
  %vm1618 = vcmp.eq.f32.partialorder %v1617, 8.507059e+37
  %v1619 = vand.u32 %v1607, 2147483648
  %v1620 = vor.u32 1.1754944e-38, %v1619
  %v1621 = vsel %vm1618, %v1620, %v1616
  %v1622 = vmul.f32 1.0, %v1621
  %v1623 = vtanh.pop %v1603
  %v1624 = vmul.f32 %v1622, %v1548
  %1626 = vrot.lane.b32.xlu0 %v1623, 64
  %v1627 = vpop.permute.xlu0 %1626
  %v1629 = vmul.f32 %v1622, %v1627
  %1631 = vrot.lane.b32.xlu0 %v1629, 32
  %v1632 = vpop.permute.xlu0 %1631
  %v1634 = vadd.f32 %v1624, %v1632
  %v1635 = vtanh.pop %v1634
  %1637 = vrot.lane.b32.xlu0 %v1635, 64
  %v1638 = vpop.permute.xlu0 %1637
  %v1640 = vmul.f32 %v1622, %v1638
  %v1642 = vrot.slane %v1640, 1
  %v1643 = vrot.slane %v1640, 2
  %v1644 = vrot.slane %v1640, 3
  %v1645 = vperm.slane %v1640, 0
  %v1646 = vperm.slane %v1642, 0
  %v1647 = vperm.slane %v1643, 0
  %v1648 = vperm.slane %v1644, 0
  %1649 = vrot.lane.b32.xlu0 %v1645, 32
  %v1650 = vpop.permute.xlu0 %1649
  %1651 = vrot.lane.b32.xlu0 %v1646, 32
  %v1652 = vpop.permute.xlu0 %1651
  %1653 = vrot.lane.b32.xlu0 %v1647, 32
  %v1654 = vpop.permute.xlu0 %1653
  %1655 = vrot.lane.b32.xlu0 %v1648, 32
  %v1656 = vpop.permute.xlu0 %1655
  %1661 = vst.msk [vmem:[#allocation2 + $0xb] sm:$0x1] %vm714, %v1650
  %1662 = vst.msk [vmem:[#allocation2 + $0x43] sm:$0x1] %vm714, %v1652
  %1663 = vst.msk [vmem:[#allocation2 + $0x7b] sm:$0x1] %vm714, %v1654
  %1664 = vst.msk [vmem:[#allocation2 + $0xb3] sm:$0x1] %vm714, %v1656
  %1665 = vrot.lane.b32.xlu0 %v1640, 32
  %v1666 = vpop.permute.xlu0 %1665
  %v1667 = vsel %vm63, %v1666, 0
  %1669 = vmatpush.msra.mxu0 0.0
  %1670 = vmatpush.msra.mxu0 0.0
  %1671 = vmatpush.msra.mxu0 0.0
  %1672 = vmatpush.msra.mxu0 0.0
  %1673 = vmatpush.msra.mxu0 0.0
  %1674 = vmatpush.msra.mxu0 0.0
  %1675 = vmatpush.msra.mxu0 0.0
  %1676 = vmatpush.msra.mxu0 0.0
  %1677 = vmatpush.msra.mxu0 0.0
  %1678 = vmatpush.msra.mxu0 0.0
  %1679 = vmatpush.msra.mxu0 0.0
  %1680 = vmatpush.msra.mxu0 0.0
  %1681 = vmatpush.msra.mxu0 %v48
  %1682 = vmatpush.msra.mxu0 %v47
  %1683 = vmatpush.msra.mxu0 %v46
  %1684 = vmatpush.msra.mxu0 %v45
  %1685 = vmatmul.f32.gmra.mxu0 %v1667
  %v1686 = vpop.f32.mrf.mxu0
  %v1687 = vadd.f32 0.0, %v1686
  %1688 = vdwg.mxu0
  %v1689 = vadd.f32 %v634, %v1687
  %v1690 = vxor.u32 %v1689, 2147483648
  %v1691 = vmul.f32 %v1690, 1.442695
  %v1692 = vpow.pop %v1691
  %v1693 = vadd.f32 %v1692, 1.0
  %v1694 = vrcp.pop %v1693
  %v1695 = vmul.f32 %v1693, %v1694
  %v1696 = vsub.f32 1.0, %v1695
  %v1697 = vmul.f32 %v1694, %v1696
  %v1698 = vadd.f32 %v1694, %v1697
  %vm1699 = vweird.f32 %v1693
  %vm1700 = vweird.f32 %v1694
  %vm1701 = vmor %vm1699, %vm1700
  %v1702 = vsel %vm1701, %v1694, %v1698
  %v1703 = vand.u32 2147483647, %v1693
  %vm1704 = vcmp.eq.f32.partialorder %v1703, 8.507059e+37
  %v1705 = vand.u32 %v1693, 2147483648
  %v1706 = vor.u32 1.1754944e-38, %v1705
  %v1707 = vsel %vm1704, %v1706, %v1702
  %v1708 = vmul.f32 1.0, %v1707
  %v1709 = vtanh.pop %v1689
  %v1710 = vmul.f32 %v1708, %v1634
  %1712 = vrot.lane.b32.xlu0 %v1709, 64
  %v1713 = vpop.permute.xlu0 %1712
  %v1715 = vmul.f32 %v1708, %v1713
  %1717 = vrot.lane.b32.xlu0 %v1715, 32
  %v1718 = vpop.permute.xlu0 %1717
  %v1720 = vadd.f32 %v1710, %v1718
  %v1721 = vtanh.pop %v1720
  %1723 = vrot.lane.b32.xlu0 %v1721, 64
  %v1724 = vpop.permute.xlu0 %1723
  %v1726 = vmul.f32 %v1708, %v1724
  %v1728 = vrot.slane %v1726, 1
  %v1729 = vrot.slane %v1726, 2
  %v1730 = vrot.slane %v1726, 3
  %v1731 = vperm.slane %v1726, 0
  %v1732 = vperm.slane %v1728, 0
  %v1733 = vperm.slane %v1729, 0
  %v1734 = vperm.slane %v1730, 0
  %1735 = vrot.lane.b32.xlu0 %v1731, 32
  %v1736 = vpop.permute.xlu0 %1735
  %1737 = vrot.lane.b32.xlu0 %v1732, 32
  %v1738 = vpop.permute.xlu0 %1737
  %1739 = vrot.lane.b32.xlu0 %v1733, 32
  %v1740 = vpop.permute.xlu0 %1739
  %1741 = vrot.lane.b32.xlu0 %v1734, 32
  %v1742 = vpop.permute.xlu0 %1741
  %1747 = vst.msk [vmem:[#allocation2 + $0xc] sm:$0x1] %vm714, %v1736
  %1748 = vst.msk [vmem:[#allocation2 + $0x44] sm:$0x1] %vm714, %v1738
  %1749 = vst.msk [vmem:[#allocation2 + $0x7c] sm:$0x1] %vm714, %v1740
  %1750 = vst.msk [vmem:[#allocation2 + $0xb4] sm:$0x1] %vm714, %v1742
  %1751 = vrot.lane.b32.xlu0 %v1726, 32
  %v1752 = vpop.permute.xlu0 %1751
  %v1753 = vsel %vm63, %v1752, 0
  %1755 = vmatpush.msra.mxu0 0.0
  %1756 = vmatpush.msra.mxu0 0.0
  %1757 = vmatpush.msra.mxu0 0.0
  %1758 = vmatpush.msra.mxu0 0.0
  %1759 = vmatpush.msra.mxu0 0.0
  %1760 = vmatpush.msra.mxu0 0.0
  %1761 = vmatpush.msra.mxu0 0.0
  %1762 = vmatpush.msra.mxu0 0.0
  %1763 = vmatpush.msra.mxu0 0.0
  %1764 = vmatpush.msra.mxu0 0.0
  %1765 = vmatpush.msra.mxu0 0.0
  %1766 = vmatpush.msra.mxu0 0.0
  %1767 = vmatpush.msra.mxu0 %v48
  %1768 = vmatpush.msra.mxu0 %v47
  %1769 = vmatpush.msra.mxu0 %v46
  %1770 = vmatpush.msra.mxu0 %v45
  %1771 = vmatmul.f32.gmra.mxu0 %v1753
  %v1772 = vpop.f32.mrf.mxu0
  %v1773 = vadd.f32 0.0, %v1772
  %1774 = vdwg.mxu0
  %v1775 = vadd.f32 %v634, %v1773
  %v1776 = vxor.u32 %v1775, 2147483648
  %v1777 = vmul.f32 %v1776, 1.442695
  %v1778 = vpow.pop %v1777
  %v1779 = vadd.f32 %v1778, 1.0
  %v1780 = vrcp.pop %v1779
  %v1781 = vmul.f32 %v1779, %v1780
  %v1782 = vsub.f32 1.0, %v1781
  %v1783 = vmul.f32 %v1780, %v1782
  %v1784 = vadd.f32 %v1780, %v1783
  %vm1785 = vweird.f32 %v1779
  %vm1786 = vweird.f32 %v1780
  %vm1787 = vmor %vm1785, %vm1786
  %v1788 = vsel %vm1787, %v1780, %v1784
  %v1789 = vand.u32 2147483647, %v1779
  %vm1790 = vcmp.eq.f32.partialorder %v1789, 8.507059e+37
  %v1791 = vand.u32 %v1779, 2147483648
  %v1792 = vor.u32 1.1754944e-38, %v1791
  %v1793 = vsel %vm1790, %v1792, %v1788
  %v1794 = vmul.f32 1.0, %v1793
  %v1795 = vtanh.pop %v1775
  %v1796 = vmul.f32 %v1794, %v1720
  %1798 = vrot.lane.b32.xlu0 %v1795, 64
  %v1799 = vpop.permute.xlu0 %1798
  %v1801 = vmul.f32 %v1794, %v1799
  %1803 = vrot.lane.b32.xlu0 %v1801, 32
  %v1804 = vpop.permute.xlu0 %1803
  %v1806 = vadd.f32 %v1796, %v1804
  %v1807 = vtanh.pop %v1806
  %1809 = vrot.lane.b32.xlu0 %v1807, 64
  %v1810 = vpop.permute.xlu0 %1809
  %v1812 = vmul.f32 %v1794, %v1810
  %v1814 = vrot.slane %v1812, 1
  %v1815 = vrot.slane %v1812, 2
  %v1816 = vrot.slane %v1812, 3
  %v1817 = vperm.slane %v1812, 0
  %v1818 = vperm.slane %v1814, 0
  %v1819 = vperm.slane %v1815, 0
  %v1820 = vperm.slane %v1816, 0
  %1821 = vrot.lane.b32.xlu0 %v1817, 32
  %v1822 = vpop.permute.xlu0 %1821
  %1823 = vrot.lane.b32.xlu0 %v1818, 32
  %v1824 = vpop.permute.xlu0 %1823
  %1825 = vrot.lane.b32.xlu0 %v1819, 32
  %v1826 = vpop.permute.xlu0 %1825
  %1827 = vrot.lane.b32.xlu0 %v1820, 32
  %v1828 = vpop.permute.xlu0 %1827
  %1833 = vst.msk [vmem:[#allocation2 + $0xd] sm:$0x1] %vm714, %v1822
  %1834 = vst.msk [vmem:[#allocation2 + $0x45] sm:$0x1] %vm714, %v1824
  %1835 = vst.msk [vmem:[#allocation2 + $0x7d] sm:$0x1] %vm714, %v1826
  %1836 = vst.msk [vmem:[#allocation2 + $0xb5] sm:$0x1] %vm714, %v1828
  %1837 = vrot.lane.b32.xlu0 %v1812, 32
  %v1838 = vpop.permute.xlu0 %1837
  %v1839 = vsel %vm63, %v1838, 0
  %1841 = vmatpush.msra.mxu0 0.0
  %1842 = vmatpush.msra.mxu0 0.0
  %1843 = vmatpush.msra.mxu0 0.0
  %1844 = vmatpush.msra.mxu0 0.0
  %1845 = vmatpush.msra.mxu0 0.0
  %1846 = vmatpush.msra.mxu0 0.0
  %1847 = vmatpush.msra.mxu0 0.0
  %1848 = vmatpush.msra.mxu0 0.0
  %1849 = vmatpush.msra.mxu0 0.0
  %1850 = vmatpush.msra.mxu0 0.0
  %1851 = vmatpush.msra.mxu0 0.0
  %1852 = vmatpush.msra.mxu0 0.0
  %1853 = vmatpush.msra.mxu0 %v48
  %1854 = vmatpush.msra.mxu0 %v47
  %1855 = vmatpush.msra.mxu0 %v46
  %1856 = vmatpush.msra.mxu0 %v45
  %1857 = vmatmul.f32.gmra.mxu0 %v1839
  %v1858 = vpop.f32.mrf.mxu0
  %v1859 = vadd.f32 0.0, %v1858
  %1860 = vdwg.mxu0
  %v1861 = vadd.f32 %v634, %v1859
  %v1862 = vxor.u32 %v1861, 2147483648
  %v1863 = vmul.f32 %v1862, 1.442695
  %v1864 = vpow.pop %v1863
  %v1865 = vadd.f32 %v1864, 1.0
  %v1866 = vrcp.pop %v1865
  %v1867 = vmul.f32 %v1865, %v1866
  %v1868 = vsub.f32 1.0, %v1867
  %v1869 = vmul.f32 %v1866, %v1868
  %v1870 = vadd.f32 %v1866, %v1869
  %vm1871 = vweird.f32 %v1865
  %vm1872 = vweird.f32 %v1866
  %vm1873 = vmor %vm1871, %vm1872
  %v1874 = vsel %vm1873, %v1866, %v1870
  %v1875 = vand.u32 2147483647, %v1865
  %vm1876 = vcmp.eq.f32.partialorder %v1875, 8.507059e+37
  %v1877 = vand.u32 %v1865, 2147483648
  %v1878 = vor.u32 1.1754944e-38, %v1877
  %v1879 = vsel %vm1876, %v1878, %v1874
  %v1880 = vmul.f32 1.0, %v1879
  %v1881 = vtanh.pop %v1861
  %v1882 = vmul.f32 %v1880, %v1806
  %1884 = vrot.lane.b32.xlu0 %v1881, 64
  %v1885 = vpop.permute.xlu0 %1884
  %v1887 = vmul.f32 %v1880, %v1885
  %1889 = vrot.lane.b32.xlu0 %v1887, 32
  %v1890 = vpop.permute.xlu0 %1889
  %v1892 = vadd.f32 %v1882, %v1890
  %v1893 = vtanh.pop %v1892
  %1895 = vrot.lane.b32.xlu0 %v1893, 64
  %v1896 = vpop.permute.xlu0 %1895
  %v1898 = vmul.f32 %v1880, %v1896
  %v1900 = vrot.slane %v1898, 1
  %v1901 = vrot.slane %v1898, 2
  %v1902 = vrot.slane %v1898, 3
  %v1903 = vperm.slane %v1898, 0
  %v1904 = vperm.slane %v1900, 0
  %v1905 = vperm.slane %v1901, 0
  %v1906 = vperm.slane %v1902, 0
  %1907 = vrot.lane.b32.xlu0 %v1903, 32
  %v1908 = vpop.permute.xlu0 %1907
  %1909 = vrot.lane.b32.xlu0 %v1904, 32
  %v1910 = vpop.permute.xlu0 %1909
  %1911 = vrot.lane.b32.xlu0 %v1905, 32
  %v1912 = vpop.permute.xlu0 %1911
  %1913 = vrot.lane.b32.xlu0 %v1906, 32
  %v1914 = vpop.permute.xlu0 %1913
  %1919 = vst.msk [vmem:[#allocation2 + $0xe] sm:$0x1] %vm714, %v1908
  %1920 = vst.msk [vmem:[#allocation2 + $0x46] sm:$0x1] %vm714, %v1910
  %1921 = vst.msk [vmem:[#allocation2 + $0x7e] sm:$0x1] %vm714, %v1912
  %1922 = vst.msk [vmem:[#allocation2 + $0xb6] sm:$0x1] %vm714, %v1914
  %1923 = vrot.lane.b32.xlu0 %v1898, 32
  %v1924 = vpop.permute.xlu0 %1923
  %v1925 = vsel %vm63, %v1924, 0
  %1927 = vmatpush.msra.mxu0 0.0
  %1928 = vmatpush.msra.mxu0 0.0
  %1929 = vmatpush.msra.mxu0 0.0
  %1930 = vmatpush.msra.mxu0 0.0
  %1931 = vmatpush.msra.mxu0 0.0
  %1932 = vmatpush.msra.mxu0 0.0
  %1933 = vmatpush.msra.mxu0 0.0
  %1934 = vmatpush.msra.mxu0 0.0
  %1935 = vmatpush.msra.mxu0 0.0
  %1936 = vmatpush.msra.mxu0 0.0
  %1937 = vmatpush.msra.mxu0 0.0
  %1938 = vmatpush.msra.mxu0 0.0
  %1939 = vmatpush.msra.mxu0 %v48
  %1940 = vmatpush.msra.mxu0 %v47
  %1941 = vmatpush.msra.mxu0 %v46
  %1942 = vmatpush.msra.mxu0 %v45
  %1943 = vmatmul.f32.gmra.mxu0 %v1925
  %v1944 = vpop.f32.mrf.mxu0
  %v1945 = vadd.f32 0.0, %v1944
  %1946 = vdwg.mxu0
  %v1947 = vadd.f32 %v634, %v1945
  %v1948 = vxor.u32 %v1947, 2147483648
  %v1949 = vmul.f32 %v1948, 1.442695
  %v1950 = vpow.pop %v1949
  %v1951 = vadd.f32 %v1950, 1.0
  %v1952 = vrcp.pop %v1951
  %v1953 = vmul.f32 %v1951, %v1952
  %v1954 = vsub.f32 1.0, %v1953
  %v1955 = vmul.f32 %v1952, %v1954
  %v1956 = vadd.f32 %v1952, %v1955
  %vm1957 = vweird.f32 %v1951
  %vm1958 = vweird.f32 %v1952
  %vm1959 = vmor %vm1957, %vm1958
  %v1960 = vsel %vm1959, %v1952, %v1956
  %v1961 = vand.u32 2147483647, %v1951
  %vm1962 = vcmp.eq.f32.partialorder %v1961, 8.507059e+37
  %v1963 = vand.u32 %v1951, 2147483648
  %v1964 = vor.u32 1.1754944e-38, %v1963
  %v1965 = vsel %vm1962, %v1964, %v1960
  %v1966 = vmul.f32 1.0, %v1965
  %v1967 = vtanh.pop %v1947
  %v1968 = vmul.f32 %v1966, %v1892
  %1970 = vrot.lane.b32.xlu0 %v1967, 64
  %v1971 = vpop.permute.xlu0 %1970
  %v1973 = vmul.f32 %v1966, %v1971
  %1975 = vrot.lane.b32.xlu0 %v1973, 32
  %v1976 = vpop.permute.xlu0 %1975
  %v1978 = vadd.f32 %v1968, %v1976
  %v1979 = vtanh.pop %v1978
  %1981 = vrot.lane.b32.xlu0 %v1979, 64
  %v1982 = vpop.permute.xlu0 %1981
  %v1984 = vmul.f32 %v1966, %v1982
  %v1986 = vrot.slane %v1984, 1
  %v1987 = vrot.slane %v1984, 2
  %v1988 = vrot.slane %v1984, 3
  %v1989 = vperm.slane %v1984, 0
  %v1990 = vperm.slane %v1986, 0
  %v1991 = vperm.slane %v1987, 0
  %v1992 = vperm.slane %v1988, 0
  %1993 = vrot.lane.b32.xlu0 %v1989, 32
  %v1994 = vpop.permute.xlu0 %1993
  %1995 = vrot.lane.b32.xlu0 %v1990, 32
  %v1996 = vpop.permute.xlu0 %1995
  %1997 = vrot.lane.b32.xlu0 %v1991, 32
  %v1998 = vpop.permute.xlu0 %1997
  %1999 = vrot.lane.b32.xlu0 %v1992, 32
  %v2000 = vpop.permute.xlu0 %1999
  %2005 = vst.msk [vmem:[#allocation2 + $0xf] sm:$0x1] %vm714, %v1994
  %2006 = vst.msk [vmem:[#allocation2 + $0x47] sm:$0x1] %vm714, %v1996
  %2007 = vst.msk [vmem:[#allocation2 + $0x7f] sm:$0x1] %vm714, %v1998
  %2008 = vst.msk [vmem:[#allocation2 + $0xb7] sm:$0x1] %vm714, %v2000
  %2009 = vrot.lane.b32.xlu0 %v1984, 32
  %v2010 = vpop.permute.xlu0 %2009
  %v2011 = vsel %vm63, %v2010, 0
  %2013 = vmatpush.msra.mxu0 0.0
  %2014 = vmatpush.msra.mxu0 0.0
  %2015 = vmatpush.msra.mxu0 0.0
  %2016 = vmatpush.msra.mxu0 0.0
  %2017 = vmatpush.msra.mxu0 0.0
  %2018 = vmatpush.msra.mxu0 0.0
  %2019 = vmatpush.msra.mxu0 0.0
  %2020 = vmatpush.msra.mxu0 0.0
  %2021 = vmatpush.msra.mxu0 0.0
  %2022 = vmatpush.msra.mxu0 0.0
  %2023 = vmatpush.msra.mxu0 0.0
  %2024 = vmatpush.msra.mxu0 0.0
  %2025 = vmatpush.msra.mxu0 %v48
  %2026 = vmatpush.msra.mxu0 %v47
  %2027 = vmatpush.msra.mxu0 %v46
  %2028 = vmatpush.msra.mxu0 %v45
  %2029 = vmatmul.f32.gmra.mxu0 %v2011
  %v2030 = vpop.f32.mrf.mxu0
  %v2031 = vadd.f32 0.0, %v2030
  %2032 = vdwg.mxu0
  %v2033 = vadd.f32 %v634, %v2031
  %v2034 = vxor.u32 %v2033, 2147483648
  %v2035 = vmul.f32 %v2034, 1.442695
  %v2036 = vpow.pop %v2035
  %v2037 = vadd.f32 %v2036, 1.0
  %v2038 = vrcp.pop %v2037
  %v2039 = vmul.f32 %v2037, %v2038
  %v2040 = vsub.f32 1.0, %v2039
  %v2041 = vmul.f32 %v2038, %v2040
  %v2042 = vadd.f32 %v2038, %v2041
  %vm2043 = vweird.f32 %v2037
  %vm2044 = vweird.f32 %v2038
  %vm2045 = vmor %vm2043, %vm2044
  %v2046 = vsel %vm2045, %v2038, %v2042
  %v2047 = vand.u32 2147483647, %v2037
  %vm2048 = vcmp.eq.f32.partialorder %v2047, 8.507059e+37
  %v2049 = vand.u32 %v2037, 2147483648
  %v2050 = vor.u32 1.1754944e-38, %v2049
  %v2051 = vsel %vm2048, %v2050, %v2046
  %v2052 = vmul.f32 1.0, %v2051
  %v2053 = vtanh.pop %v2033
  %v2054 = vmul.f32 %v2052, %v1978
  %2056 = vrot.lane.b32.xlu0 %v2053, 64
  %v2057 = vpop.permute.xlu0 %2056
  %v2059 = vmul.f32 %v2052, %v2057
  %2061 = vrot.lane.b32.xlu0 %v2059, 32
  %v2062 = vpop.permute.xlu0 %2061
  %v2064 = vadd.f32 %v2054, %v2062
  %v2065 = vtanh.pop %v2064
  %2067 = vrot.lane.b32.xlu0 %v2065, 64
  %v2068 = vpop.permute.xlu0 %2067
  %v2070 = vmul.f32 %v2052, %v2068
  %v2072 = vrot.slane %v2070, 1
  %v2073 = vrot.slane %v2070, 2
  %v2074 = vrot.slane %v2070, 3
  %v2075 = vperm.slane %v2070, 0
  %v2076 = vperm.slane %v2072, 0
  %v2077 = vperm.slane %v2073, 0
  %v2078 = vperm.slane %v2074, 0
  %2079 = vrot.lane.b32.xlu0 %v2075, 32
  %v2080 = vpop.permute.xlu0 %2079
  %2081 = vrot.lane.b32.xlu0 %v2076, 32
  %v2082 = vpop.permute.xlu0 %2081
  %2083 = vrot.lane.b32.xlu0 %v2077, 32
  %v2084 = vpop.permute.xlu0 %2083
  %2085 = vrot.lane.b32.xlu0 %v2078, 32
  %v2086 = vpop.permute.xlu0 %2085
  %2091 = vst.msk [vmem:[#allocation2 + $0x10] sm:$0x1] %vm714, %v2080
  %2092 = vst.msk [vmem:[#allocation2 + $0x48] sm:$0x1] %vm714, %v2082
  %2093 = vst.msk [vmem:[#allocation2 + $0x80] sm:$0x1] %vm714, %v2084
  %2094 = vst.msk [vmem:[#allocation2 + $0xb8] sm:$0x1] %vm714, %v2086
  %2095 = vrot.lane.b32.xlu0 %v2070, 32
  %v2096 = vpop.permute.xlu0 %2095
  %v2097 = vsel %vm63, %v2096, 0
  %2099 = vmatpush.msra.mxu0 0.0
  %2100 = vmatpush.msra.mxu0 0.0
  %2101 = vmatpush.msra.mxu0 0.0
  %2102 = vmatpush.msra.mxu0 0.0
  %2103 = vmatpush.msra.mxu0 0.0
  %2104 = vmatpush.msra.mxu0 0.0
  %2105 = vmatpush.msra.mxu0 0.0
  %2106 = vmatpush.msra.mxu0 0.0
  %2107 = vmatpush.msra.mxu0 0.0
  %2108 = vmatpush.msra.mxu0 0.0
  %2109 = vmatpush.msra.mxu0 0.0
  %2110 = vmatpush.msra.mxu0 0.0
  %2111 = vmatpush.msra.mxu0 %v48
  %2112 = vmatpush.msra.mxu0 %v47
  %2113 = vmatpush.msra.mxu0 %v46
  %2114 = vmatpush.msra.mxu0 %v45
  %2115 = vmatmul.f32.gmra.mxu0 %v2097
  %v2116 = vpop.f32.mrf.mxu0
  %v2117 = vadd.f32 0.0, %v2116
  %2118 = vdwg.mxu0
  %v2119 = vadd.f32 %v634, %v2117
  %v2120 = vxor.u32 %v2119, 2147483648
  %v2121 = vmul.f32 %v2120, 1.442695
  %v2122 = vpow.pop %v2121
  %v2123 = vadd.f32 %v2122, 1.0
  %v2124 = vrcp.pop %v2123
  %v2125 = vmul.f32 %v2123, %v2124
  %v2126 = vsub.f32 1.0, %v2125
  %v2127 = vmul.f32 %v2124, %v2126
  %v2128 = vadd.f32 %v2124, %v2127
  %vm2129 = vweird.f32 %v2123
  %vm2130 = vweird.f32 %v2124
  %vm2131 = vmor %vm2129, %vm2130
  %v2132 = vsel %vm2131, %v2124, %v2128
  %v2133 = vand.u32 2147483647, %v2123
  %vm2134 = vcmp.eq.f32.partialorder %v2133, 8.507059e+37
  %v2135 = vand.u32 %v2123, 2147483648
  %v2136 = vor.u32 1.1754944e-38, %v2135
  %v2137 = vsel %vm2134, %v2136, %v2132
  %v2138 = vmul.f32 1.0, %v2137
  %v2139 = vtanh.pop %v2119
  %v2140 = vmul.f32 %v2138, %v2064
  %2142 = vrot.lane.b32.xlu0 %v2139, 64
  %v2143 = vpop.permute.xlu0 %2142
  %v2145 = vmul.f32 %v2138, %v2143
  %2147 = vrot.lane.b32.xlu0 %v2145, 32
  %v2148 = vpop.permute.xlu0 %2147
  %v2150 = vadd.f32 %v2140, %v2148
  %v2151 = vtanh.pop %v2150
  %2153 = vrot.lane.b32.xlu0 %v2151, 64
  %v2154 = vpop.permute.xlu0 %2153
  %v2156 = vmul.f32 %v2138, %v2154
  %v2158 = vrot.slane %v2156, 1
  %v2159 = vrot.slane %v2156, 2
  %v2160 = vrot.slane %v2156, 3
  %v2161 = vperm.slane %v2156, 0
  %v2162 = vperm.slane %v2158, 0
  %v2163 = vperm.slane %v2159, 0
  %v2164 = vperm.slane %v2160, 0
  %2165 = vrot.lane.b32.xlu0 %v2161, 32
  %v2166 = vpop.permute.xlu0 %2165
  %2167 = vrot.lane.b32.xlu0 %v2162, 32
  %v2168 = vpop.permute.xlu0 %2167
  %2169 = vrot.lane.b32.xlu0 %v2163, 32
  %v2170 = vpop.permute.xlu0 %2169
  %2171 = vrot.lane.b32.xlu0 %v2164, 32
  %v2172 = vpop.permute.xlu0 %2171
  %2177 = vst.msk [vmem:[#allocation2 + $0x11] sm:$0x1] %vm714, %v2166
  %2178 = vst.msk [vmem:[#allocation2 + $0x49] sm:$0x1] %vm714, %v2168
  %2179 = vst.msk [vmem:[#allocation2 + $0x81] sm:$0x1] %vm714, %v2170
  %2180 = vst.msk [vmem:[#allocation2 + $0xb9] sm:$0x1] %vm714, %v2172
  %2181 = vrot.lane.b32.xlu0 %v2156, 32
  %v2182 = vpop.permute.xlu0 %2181
  %v2183 = vsel %vm63, %v2182, 0
  %2185 = vmatpush.msra.mxu0 0.0
  %2186 = vmatpush.msra.mxu0 0.0
  %2187 = vmatpush.msra.mxu0 0.0
  %2188 = vmatpush.msra.mxu0 0.0
  %2189 = vmatpush.msra.mxu0 0.0
  %2190 = vmatpush.msra.mxu0 0.0
  %2191 = vmatpush.msra.mxu0 0.0
  %2192 = vmatpush.msra.mxu0 0.0
  %2193 = vmatpush.msra.mxu0 0.0
  %2194 = vmatpush.msra.mxu0 0.0
  %2195 = vmatpush.msra.mxu0 0.0
  %2196 = vmatpush.msra.mxu0 0.0
  %2197 = vmatpush.msra.mxu0 %v48
  %2198 = vmatpush.msra.mxu0 %v47
  %2199 = vmatpush.msra.mxu0 %v46
  %2200 = vmatpush.msra.mxu0 %v45
  %2201 = vmatmul.f32.gmra.mxu0 %v2183
  %v2202 = vpop.f32.mrf.mxu0
  %v2203 = vadd.f32 0.0, %v2202
  %2204 = vdwg.mxu0
  %v2205 = vadd.f32 %v634, %v2203
  %v2206 = vxor.u32 %v2205, 2147483648
  %v2207 = vmul.f32 %v2206, 1.442695
  %v2208 = vpow.pop %v2207
  %v2209 = vadd.f32 %v2208, 1.0
  %v2210 = vrcp.pop %v2209
  %v2211 = vmul.f32 %v2209, %v2210
  %v2212 = vsub.f32 1.0, %v2211
  %v2213 = vmul.f32 %v2210, %v2212
  %v2214 = vadd.f32 %v2210, %v2213
  %vm2215 = vweird.f32 %v2209
  %vm2216 = vweird.f32 %v2210
  %vm2217 = vmor %vm2215, %vm2216
  %v2218 = vsel %vm2217, %v2210, %v2214
  %v2219 = vand.u32 2147483647, %v2209
  %vm2220 = vcmp.eq.f32.partialorder %v2219, 8.507059e+37
  %v2221 = vand.u32 %v2209, 2147483648
  %v2222 = vor.u32 1.1754944e-38, %v2221
  %v2223 = vsel %vm2220, %v2222, %v2218
  %v2224 = vmul.f32 1.0, %v2223
  %v2225 = vtanh.pop %v2205
  %v2226 = vmul.f32 %v2224, %v2150
  %2228 = vrot.lane.b32.xlu0 %v2225, 64
  %v2229 = vpop.permute.xlu0 %2228
  %v2231 = vmul.f32 %v2224, %v2229
  %2233 = vrot.lane.b32.xlu0 %v2231, 32
  %v2234 = vpop.permute.xlu0 %2233
  %v2236 = vadd.f32 %v2226, %v2234
  %v2237 = vtanh.pop %v2236
  %2239 = vrot.lane.b32.xlu0 %v2237, 64
  %v2240 = vpop.permute.xlu0 %2239
  %v2242 = vmul.f32 %v2224, %v2240
  %v2244 = vrot.slane %v2242, 1
  %v2245 = vrot.slane %v2242, 2
  %v2246 = vrot.slane %v2242, 3
  %v2247 = vperm.slane %v2242, 0
  %v2248 = vperm.slane %v2244, 0
  %v2249 = vperm.slane %v2245, 0
  %v2250 = vperm.slane %v2246, 0
  %2251 = vrot.lane.b32.xlu0 %v2247, 32
  %v2252 = vpop.permute.xlu0 %2251
  %2253 = vrot.lane.b32.xlu0 %v2248, 32
  %v2254 = vpop.permute.xlu0 %2253
  %2255 = vrot.lane.b32.xlu0 %v2249, 32
  %v2256 = vpop.permute.xlu0 %2255
  %2257 = vrot.lane.b32.xlu0 %v2250, 32
  %v2258 = vpop.permute.xlu0 %2257
  %2263 = vst.msk [vmem:[#allocation2 + $0x12] sm:$0x1] %vm714, %v2252
  %2264 = vst.msk [vmem:[#allocation2 + $0x4a] sm:$0x1] %vm714, %v2254
  %2265 = vst.msk [vmem:[#allocation2 + $0x82] sm:$0x1] %vm714, %v2256
  %2266 = vst.msk [vmem:[#allocation2 + $0xba] sm:$0x1] %vm714, %v2258
  %2267 = vrot.lane.b32.xlu0 %v2242, 32
  %v2268 = vpop.permute.xlu0 %2267
  %v2269 = vsel %vm63, %v2268, 0
  %2271 = vmatpush.msra.mxu0 0.0
  %2272 = vmatpush.msra.mxu0 0.0
  %2273 = vmatpush.msra.mxu0 0.0
  %2274 = vmatpush.msra.mxu0 0.0
  %2275 = vmatpush.msra.mxu0 0.0
  %2276 = vmatpush.msra.mxu0 0.0
  %2277 = vmatpush.msra.mxu0 0.0
  %2278 = vmatpush.msra.mxu0 0.0
  %2279 = vmatpush.msra.mxu0 0.0
  %2280 = vmatpush.msra.mxu0 0.0
  %2281 = vmatpush.msra.mxu0 0.0
  %2282 = vmatpush.msra.mxu0 0.0
  %2283 = vmatpush.msra.mxu0 %v48
  %2284 = vmatpush.msra.mxu0 %v47
  %2285 = vmatpush.msra.mxu0 %v46
  %2286 = vmatpush.msra.mxu0 %v45
  %2287 = vmatmul.f32.gmra.mxu0 %v2269
  %v2288 = vpop.f32.mrf.mxu0
  %v2289 = vadd.f32 0.0, %v2288
  %2290 = vdwg.mxu0
  %v2291 = vadd.f32 %v634, %v2289
  %v2292 = vxor.u32 %v2291, 2147483648
  %v2293 = vmul.f32 %v2292, 1.442695
  %v2294 = vpow.pop %v2293
  %v2295 = vadd.f32 %v2294, 1.0
  %v2296 = vrcp.pop %v2295
  %v2297 = vmul.f32 %v2295, %v2296
  %v2298 = vsub.f32 1.0, %v2297
  %v2299 = vmul.f32 %v2296, %v2298
  %v2300 = vadd.f32 %v2296, %v2299
  %vm2301 = vweird.f32 %v2295
  %vm2302 = vweird.f32 %v2296
  %vm2303 = vmor %vm2301, %vm2302
  %v2304 = vsel %vm2303, %v2296, %v2300
  %v2305 = vand.u32 2147483647, %v2295
  %vm2306 = vcmp.eq.f32.partialorder %v2305, 8.507059e+37
  %v2307 = vand.u32 %v2295, 2147483648
  %v2308 = vor.u32 1.1754944e-38, %v2307
  %v2309 = vsel %vm2306, %v2308, %v2304
  %v2310 = vmul.f32 1.0, %v2309
  %v2311 = vtanh.pop %v2291
  %v2312 = vmul.f32 %v2310, %v2236
  %2314 = vrot.lane.b32.xlu0 %v2311, 64
  %v2315 = vpop.permute.xlu0 %2314
  %v2317 = vmul.f32 %v2310, %v2315
  %2319 = vrot.lane.b32.xlu0 %v2317, 32
  %v2320 = vpop.permute.xlu0 %2319
  %v2322 = vadd.f32 %v2312, %v2320
  %v2323 = vtanh.pop %v2322
  %2325 = vrot.lane.b32.xlu0 %v2323, 64
  %v2326 = vpop.permute.xlu0 %2325
  %v2328 = vmul.f32 %v2310, %v2326
  %v2330 = vrot.slane %v2328, 1
  %v2331 = vrot.slane %v2328, 2
  %v2332 = vrot.slane %v2328, 3
  %v2333 = vperm.slane %v2328, 0
  %v2334 = vperm.slane %v2330, 0
  %v2335 = vperm.slane %v2331, 0
  %v2336 = vperm.slane %v2332, 0
  %2337 = vrot.lane.b32.xlu0 %v2333, 32
  %v2338 = vpop.permute.xlu0 %2337
  %2339 = vrot.lane.b32.xlu0 %v2334, 32
  %v2340 = vpop.permute.xlu0 %2339
  %2341 = vrot.lane.b32.xlu0 %v2335, 32
  %v2342 = vpop.permute.xlu0 %2341
  %2343 = vrot.lane.b32.xlu0 %v2336, 32
  %v2344 = vpop.permute.xlu0 %2343
  %2349 = vst.msk [vmem:[#allocation2 + $0x13] sm:$0x1] %vm714, %v2338
  %2350 = vst.msk [vmem:[#allocation2 + $0x4b] sm:$0x1] %vm714, %v2340
  %2351 = vst.msk [vmem:[#allocation2 + $0x83] sm:$0x1] %vm714, %v2342
  %2352 = vst.msk [vmem:[#allocation2 + $0xbb] sm:$0x1] %vm714, %v2344
  %2353 = vrot.lane.b32.xlu0 %v2328, 32
  %v2354 = vpop.permute.xlu0 %2353
  %v2355 = vsel %vm63, %v2354, 0
  %2357 = vmatpush.msra.mxu0 0.0
  %2358 = vmatpush.msra.mxu0 0.0
  %2359 = vmatpush.msra.mxu0 0.0
  %2360 = vmatpush.msra.mxu0 0.0
  %2361 = vmatpush.msra.mxu0 0.0
  %2362 = vmatpush.msra.mxu0 0.0
  %2363 = vmatpush.msra.mxu0 0.0
  %2364 = vmatpush.msra.mxu0 0.0
  %2365 = vmatpush.msra.mxu0 0.0
  %2366 = vmatpush.msra.mxu0 0.0
  %2367 = vmatpush.msra.mxu0 0.0
  %2368 = vmatpush.msra.mxu0 0.0
  %2369 = vmatpush.msra.mxu0 %v48
  %2370 = vmatpush.msra.mxu0 %v47
  %2371 = vmatpush.msra.mxu0 %v46
  %2372 = vmatpush.msra.mxu0 %v45
  %2373 = vmatmul.f32.gmra.mxu0 %v2355
  %v2374 = vpop.f32.mrf.mxu0
  %v2375 = vadd.f32 0.0, %v2374
  %2376 = vdwg.mxu0
  %v2377 = vadd.f32 %v634, %v2375
  %v2378 = vxor.u32 %v2377, 2147483648
  %v2379 = vmul.f32 %v2378, 1.442695
  %v2380 = vpow.pop %v2379
  %v2381 = vadd.f32 %v2380, 1.0
  %v2382 = vrcp.pop %v2381
  %v2383 = vmul.f32 %v2381, %v2382
  %v2384 = vsub.f32 1.0, %v2383
  %v2385 = vmul.f32 %v2382, %v2384
  %v2386 = vadd.f32 %v2382, %v2385
  %vm2387 = vweird.f32 %v2381
  %vm2388 = vweird.f32 %v2382
  %vm2389 = vmor %vm2387, %vm2388
  %v2390 = vsel %vm2389, %v2382, %v2386
  %v2391 = vand.u32 2147483647, %v2381
  %vm2392 = vcmp.eq.f32.partialorder %v2391, 8.507059e+37
  %v2393 = vand.u32 %v2381, 2147483648
  %v2394 = vor.u32 1.1754944e-38, %v2393
  %v2395 = vsel %vm2392, %v2394, %v2390
  %v2396 = vmul.f32 1.0, %v2395
  %v2397 = vtanh.pop %v2377
  %v2398 = vmul.f32 %v2396, %v2322
  %2400 = vrot.lane.b32.xlu0 %v2397, 64
  %v2401 = vpop.permute.xlu0 %2400
  %v2403 = vmul.f32 %v2396, %v2401
  %2405 = vrot.lane.b32.xlu0 %v2403, 32
  %v2406 = vpop.permute.xlu0 %2405
  %v2408 = vadd.f32 %v2398, %v2406
  %v2409 = vtanh.pop %v2408
  %2411 = vrot.lane.b32.xlu0 %v2409, 64
  %v2412 = vpop.permute.xlu0 %2411
  %v2414 = vmul.f32 %v2396, %v2412
  %v2416 = vrot.slane %v2414, 1
  %v2417 = vrot.slane %v2414, 2
  %v2418 = vrot.slane %v2414, 3
  %v2419 = vperm.slane %v2414, 0
  %v2420 = vperm.slane %v2416, 0
  %v2421 = vperm.slane %v2417, 0
  %v2422 = vperm.slane %v2418, 0
  %2423 = vrot.lane.b32.xlu0 %v2419, 32
  %v2424 = vpop.permute.xlu0 %2423
  %2425 = vrot.lane.b32.xlu0 %v2420, 32
  %v2426 = vpop.permute.xlu0 %2425
  %2427 = vrot.lane.b32.xlu0 %v2421, 32
  %v2428 = vpop.permute.xlu0 %2427
  %2429 = vrot.lane.b32.xlu0 %v2422, 32
  %v2430 = vpop.permute.xlu0 %2429
  %2435 = vst.msk [vmem:[#allocation2 + $0x14] sm:$0x1] %vm714, %v2424
  %2436 = vst.msk [vmem:[#allocation2 + $0x4c] sm:$0x1] %vm714, %v2426
  %2437 = vst.msk [vmem:[#allocation2 + $0x84] sm:$0x1] %vm714, %v2428
  %2438 = vst.msk [vmem:[#allocation2 + $0xbc] sm:$0x1] %vm714, %v2430
  %2439 = vrot.lane.b32.xlu0 %v2414, 32
  %v2440 = vpop.permute.xlu0 %2439
  %v2441 = vsel %vm63, %v2440, 0
  %2443 = vmatpush.msra.mxu0 0.0
  %2444 = vmatpush.msra.mxu0 0.0
  %2445 = vmatpush.msra.mxu0 0.0
  %2446 = vmatpush.msra.mxu0 0.0
  %2447 = vmatpush.msra.mxu0 0.0
  %2448 = vmatpush.msra.mxu0 0.0
  %2449 = vmatpush.msra.mxu0 0.0
  %2450 = vmatpush.msra.mxu0 0.0
  %2451 = vmatpush.msra.mxu0 0.0
  %2452 = vmatpush.msra.mxu0 0.0
  %2453 = vmatpush.msra.mxu0 0.0
  %2454 = vmatpush.msra.mxu0 0.0
  %2455 = vmatpush.msra.mxu0 %v48
  %2456 = vmatpush.msra.mxu0 %v47
  %2457 = vmatpush.msra.mxu0 %v46
  %2458 = vmatpush.msra.mxu0 %v45
  %2459 = vmatmul.f32.gmra.mxu0 %v2441
  %v2460 = vpop.f32.mrf.mxu0
  %v2461 = vadd.f32 0.0, %v2460
  %2462 = vdwg.mxu0
  %v2463 = vadd.f32 %v634, %v2461
  %v2464 = vxor.u32 %v2463, 2147483648
  %v2465 = vmul.f32 %v2464, 1.442695
  %v2466 = vpow.pop %v2465
  %v2467 = vadd.f32 %v2466, 1.0
  %v2468 = vrcp.pop %v2467
  %v2469 = vmul.f32 %v2467, %v2468
  %v2470 = vsub.f32 1.0, %v2469
  %v2471 = vmul.f32 %v2468, %v2470
  %v2472 = vadd.f32 %v2468, %v2471
  %vm2473 = vweird.f32 %v2467
  %vm2474 = vweird.f32 %v2468
  %vm2475 = vmor %vm2473, %vm2474
  %v2476 = vsel %vm2475, %v2468, %v2472
  %v2477 = vand.u32 2147483647, %v2467
  %vm2478 = vcmp.eq.f32.partialorder %v2477, 8.507059e+37
  %v2479 = vand.u32 %v2467, 2147483648
  %v2480 = vor.u32 1.1754944e-38, %v2479
  %v2481 = vsel %vm2478, %v2480, %v2476
  %v2482 = vmul.f32 1.0, %v2481
  %v2483 = vtanh.pop %v2463
  %v2484 = vmul.f32 %v2482, %v2408
  %2486 = vrot.lane.b32.xlu0 %v2483, 64
  %v2487 = vpop.permute.xlu0 %2486
  %v2489 = vmul.f32 %v2482, %v2487
  %2491 = vrot.lane.b32.xlu0 %v2489, 32
  %v2492 = vpop.permute.xlu0 %2491
  %v2494 = vadd.f32 %v2484, %v2492
  %v2495 = vtanh.pop %v2494
  %2497 = vrot.lane.b32.xlu0 %v2495, 64
  %v2498 = vpop.permute.xlu0 %2497
  %v2500 = vmul.f32 %v2482, %v2498
  %v2502 = vrot.slane %v2500, 1
  %v2503 = vrot.slane %v2500, 2
  %v2504 = vrot.slane %v2500, 3
  %v2505 = vperm.slane %v2500, 0
  %v2506 = vperm.slane %v2502, 0
  %v2507 = vperm.slane %v2503, 0
  %v2508 = vperm.slane %v2504, 0
  %2509 = vrot.lane.b32.xlu0 %v2505, 32
  %v2510 = vpop.permute.xlu0 %2509
  %2511 = vrot.lane.b32.xlu0 %v2506, 32
  %v2512 = vpop.permute.xlu0 %2511
  %2513 = vrot.lane.b32.xlu0 %v2507, 32
  %v2514 = vpop.permute.xlu0 %2513
  %2515 = vrot.lane.b32.xlu0 %v2508, 32
  %v2516 = vpop.permute.xlu0 %2515
  %2521 = vst.msk [vmem:[#allocation2 + $0x15] sm:$0x1] %vm714, %v2510
  %2522 = vst.msk [vmem:[#allocation2 + $0x4d] sm:$0x1] %vm714, %v2512
  %2523 = vst.msk [vmem:[#allocation2 + $0x85] sm:$0x1] %vm714, %v2514
  %2524 = vst.msk [vmem:[#allocation2 + $0xbd] sm:$0x1] %vm714, %v2516
  %2525 = vrot.lane.b32.xlu0 %v2500, 32
  %v2526 = vpop.permute.xlu0 %2525
  %v2527 = vsel %vm63, %v2526, 0
  %2529 = vmatpush.msra.mxu0 0.0
  %2530 = vmatpush.msra.mxu0 0.0
  %2531 = vmatpush.msra.mxu0 0.0
  %2532 = vmatpush.msra.mxu0 0.0
  %2533 = vmatpush.msra.mxu0 0.0
  %2534 = vmatpush.msra.mxu0 0.0
  %2535 = vmatpush.msra.mxu0 0.0
  %2536 = vmatpush.msra.mxu0 0.0
  %2537 = vmatpush.msra.mxu0 0.0
  %2538 = vmatpush.msra.mxu0 0.0
  %2539 = vmatpush.msra.mxu0 0.0
  %2540 = vmatpush.msra.mxu0 0.0
  %2541 = vmatpush.msra.mxu0 %v48
  %2542 = vmatpush.msra.mxu0 %v47
  %2543 = vmatpush.msra.mxu0 %v46
  %2544 = vmatpush.msra.mxu0 %v45
  %2545 = vmatmul.f32.gmra.mxu0 %v2527
  %v2546 = vpop.f32.mrf.mxu0
  %v2547 = vadd.f32 0.0, %v2546
  %2548 = vdwg.mxu0
  %v2549 = vadd.f32 %v634, %v2547
  %v2550 = vxor.u32 %v2549, 2147483648
  %v2551 = vmul.f32 %v2550, 1.442695
  %v2552 = vpow.pop %v2551
  %v2553 = vadd.f32 %v2552, 1.0
  %v2554 = vrcp.pop %v2553
  %v2555 = vmul.f32 %v2553, %v2554
  %v2556 = vsub.f32 1.0, %v2555
  %v2557 = vmul.f32 %v2554, %v2556
  %v2558 = vadd.f32 %v2554, %v2557
  %vm2559 = vweird.f32 %v2553
  %vm2560 = vweird.f32 %v2554
  %vm2561 = vmor %vm2559, %vm2560
  %v2562 = vsel %vm2561, %v2554, %v2558
  %v2563 = vand.u32 2147483647, %v2553
  %vm2564 = vcmp.eq.f32.partialorder %v2563, 8.507059e+37
  %v2565 = vand.u32 %v2553, 2147483648
  %v2566 = vor.u32 1.1754944e-38, %v2565
  %v2567 = vsel %vm2564, %v2566, %v2562
  %v2568 = vmul.f32 1.0, %v2567
  %v2569 = vtanh.pop %v2549
  %v2570 = vmul.f32 %v2568, %v2494
  %2572 = vrot.lane.b32.xlu0 %v2569, 64
  %v2573 = vpop.permute.xlu0 %2572
  %v2575 = vmul.f32 %v2568, %v2573
  %2577 = vrot.lane.b32.xlu0 %v2575, 32
  %v2578 = vpop.permute.xlu0 %2577
  %v2580 = vadd.f32 %v2570, %v2578
  %v2581 = vtanh.pop %v2580
  %2583 = vrot.lane.b32.xlu0 %v2581, 64
  %v2584 = vpop.permute.xlu0 %2583
  %v2586 = vmul.f32 %v2568, %v2584
  %v2588 = vrot.slane %v2586, 1
  %v2589 = vrot.slane %v2586, 2
  %v2590 = vrot.slane %v2586, 3
  %v2591 = vperm.slane %v2586, 0
  %v2592 = vperm.slane %v2588, 0
  %v2593 = vperm.slane %v2589, 0
  %v2594 = vperm.slane %v2590, 0
  %2595 = vrot.lane.b32.xlu0 %v2591, 32
  %v2596 = vpop.permute.xlu0 %2595
  %2597 = vrot.lane.b32.xlu0 %v2592, 32
  %v2598 = vpop.permute.xlu0 %2597
  %2599 = vrot.lane.b32.xlu0 %v2593, 32
  %v2600 = vpop.permute.xlu0 %2599
  %2601 = vrot.lane.b32.xlu0 %v2594, 32
  %v2602 = vpop.permute.xlu0 %2601
  %2607 = vst.msk [vmem:[#allocation2 + $0x16] sm:$0x1] %vm714, %v2596
  %2608 = vst.msk [vmem:[#allocation2 + $0x4e] sm:$0x1] %vm714, %v2598
  %2609 = vst.msk [vmem:[#allocation2 + $0x86] sm:$0x1] %vm714, %v2600
  %2610 = vst.msk [vmem:[#allocation2 + $0xbe] sm:$0x1] %vm714, %v2602
  %2611 = vrot.lane.b32.xlu0 %v2586, 32
  %v2612 = vpop.permute.xlu0 %2611
  %v2613 = vsel %vm63, %v2612, 0
  %2615 = vmatpush.msra.mxu0 0.0
  %2616 = vmatpush.msra.mxu0 0.0
  %2617 = vmatpush.msra.mxu0 0.0
  %2618 = vmatpush.msra.mxu0 0.0
  %2619 = vmatpush.msra.mxu0 0.0
  %2620 = vmatpush.msra.mxu0 0.0
  %2621 = vmatpush.msra.mxu0 0.0
  %2622 = vmatpush.msra.mxu0 0.0
  %2623 = vmatpush.msra.mxu0 0.0
  %2624 = vmatpush.msra.mxu0 0.0
  %2625 = vmatpush.msra.mxu0 0.0
  %2626 = vmatpush.msra.mxu0 0.0
  %2627 = vmatpush.msra.mxu0 %v48
  %2628 = vmatpush.msra.mxu0 %v47
  %2629 = vmatpush.msra.mxu0 %v46
  %2630 = vmatpush.msra.mxu0 %v45
  %2631 = vmatmul.f32.gmra.mxu0 %v2613
  %v2632 = vpop.f32.mrf.mxu0
  %v2633 = vadd.f32 0.0, %v2632
  %2634 = vdwg.mxu0
  %v2635 = vadd.f32 %v634, %v2633
  %v2636 = vxor.u32 %v2635, 2147483648
  %v2637 = vmul.f32 %v2636, 1.442695
  %v2638 = vpow.pop %v2637
  %v2639 = vadd.f32 %v2638, 1.0
  %v2640 = vrcp.pop %v2639
  %v2641 = vmul.f32 %v2639, %v2640
  %v2642 = vsub.f32 1.0, %v2641
  %v2643 = vmul.f32 %v2640, %v2642
  %v2644 = vadd.f32 %v2640, %v2643
  %vm2645 = vweird.f32 %v2639
  %vm2646 = vweird.f32 %v2640
  %vm2647 = vmor %vm2645, %vm2646
  %v2648 = vsel %vm2647, %v2640, %v2644
  %v2649 = vand.u32 2147483647, %v2639
  %vm2650 = vcmp.eq.f32.partialorder %v2649, 8.507059e+37
  %v2651 = vand.u32 %v2639, 2147483648
  %v2652 = vor.u32 1.1754944e-38, %v2651
  %v2653 = vsel %vm2650, %v2652, %v2648
  %v2654 = vmul.f32 1.0, %v2653
  %v2655 = vtanh.pop %v2635
  %v2656 = vmul.f32 %v2654, %v2580
  %2658 = vrot.lane.b32.xlu0 %v2655, 64
  %v2659 = vpop.permute.xlu0 %2658
  %v2661 = vmul.f32 %v2654, %v2659
  %2663 = vrot.lane.b32.xlu0 %v2661, 32
  %v2664 = vpop.permute.xlu0 %2663
  %v2666 = vadd.f32 %v2656, %v2664
  %v2667 = vtanh.pop %v2666
  %2669 = vrot.lane.b32.xlu0 %v2667, 64
  %v2670 = vpop.permute.xlu0 %2669
  %v2672 = vmul.f32 %v2654, %v2670
  %v2674 = vrot.slane %v2672, 1
  %v2675 = vrot.slane %v2672, 2
  %v2676 = vrot.slane %v2672, 3
  %v2677 = vperm.slane %v2672, 0
  %v2678 = vperm.slane %v2674, 0
  %v2679 = vperm.slane %v2675, 0
  %v2680 = vperm.slane %v2676, 0
  %2681 = vrot.lane.b32.xlu0 %v2677, 32
  %v2682 = vpop.permute.xlu0 %2681
  %2683 = vrot.lane.b32.xlu0 %v2678, 32
  %v2684 = vpop.permute.xlu0 %2683
  %2685 = vrot.lane.b32.xlu0 %v2679, 32
  %v2686 = vpop.permute.xlu0 %2685
  %2687 = vrot.lane.b32.xlu0 %v2680, 32
  %v2688 = vpop.permute.xlu0 %2687
  %2693 = vst.msk [vmem:[#allocation2 + $0x17] sm:$0x1] %vm714, %v2682
  %2694 = vst.msk [vmem:[#allocation2 + $0x4f] sm:$0x1] %vm714, %v2684
  %2695 = vst.msk [vmem:[#allocation2 + $0x87] sm:$0x1] %vm714, %v2686
  %2696 = vst.msk [vmem:[#allocation2 + $0xbf] sm:$0x1] %vm714, %v2688
  %2697 = vrot.lane.b32.xlu0 %v2672, 32
  %v2698 = vpop.permute.xlu0 %2697
  %v2699 = vsel %vm63, %v2698, 0
  %2701 = vmatpush.msra.mxu0 0.0
  %2702 = vmatpush.msra.mxu0 0.0
  %2703 = vmatpush.msra.mxu0 0.0
  %2704 = vmatpush.msra.mxu0 0.0
  %2705 = vmatpush.msra.mxu0 0.0
  %2706 = vmatpush.msra.mxu0 0.0
  %2707 = vmatpush.msra.mxu0 0.0
  %2708 = vmatpush.msra.mxu0 0.0
  %2709 = vmatpush.msra.mxu0 0.0
  %2710 = vmatpush.msra.mxu0 0.0
  %2711 = vmatpush.msra.mxu0 0.0
  %2712 = vmatpush.msra.mxu0 0.0
  %2713 = vmatpush.msra.mxu0 %v48
  %2714 = vmatpush.msra.mxu0 %v47
  %2715 = vmatpush.msra.mxu0 %v46
  %2716 = vmatpush.msra.mxu0 %v45
  %2717 = vmatmul.f32.gmra.mxu0 %v2699
  %v2718 = vpop.f32.mrf.mxu0
  %v2719 = vadd.f32 0.0, %v2718
  %2720 = vdwg.mxu0
  %v2721 = vadd.f32 %v634, %v2719
  %v2722 = vxor.u32 %v2721, 2147483648
  %v2723 = vmul.f32 %v2722, 1.442695
  %v2724 = vpow.pop %v2723
  %v2725 = vadd.f32 %v2724, 1.0
  %v2726 = vrcp.pop %v2725
  %v2727 = vmul.f32 %v2725, %v2726
  %v2728 = vsub.f32 1.0, %v2727
  %v2729 = vmul.f32 %v2726, %v2728
  %v2730 = vadd.f32 %v2726, %v2729
  %vm2731 = vweird.f32 %v2725
  %vm2732 = vweird.f32 %v2726
  %vm2733 = vmor %vm2731, %vm2732
  %v2734 = vsel %vm2733, %v2726, %v2730
  %v2735 = vand.u32 2147483647, %v2725
  %vm2736 = vcmp.eq.f32.partialorder %v2735, 8.507059e+37
  %v2737 = vand.u32 %v2725, 2147483648
  %v2738 = vor.u32 1.1754944e-38, %v2737
  %v2739 = vsel %vm2736, %v2738, %v2734
  %v2740 = vmul.f32 1.0, %v2739
  %v2741 = vtanh.pop %v2721
  %v2742 = vmul.f32 %v2740, %v2666
  %2744 = vrot.lane.b32.xlu0 %v2741, 64
  %v2745 = vpop.permute.xlu0 %2744
  %v2747 = vmul.f32 %v2740, %v2745
  %2749 = vrot.lane.b32.xlu0 %v2747, 32
  %v2750 = vpop.permute.xlu0 %2749
  %v2752 = vadd.f32 %v2742, %v2750
  %v2753 = vtanh.pop %v2752
  %2755 = vrot.lane.b32.xlu0 %v2753, 64
  %v2756 = vpop.permute.xlu0 %2755
  %v2758 = vmul.f32 %v2740, %v2756
  %v2760 = vrot.slane %v2758, 1
  %v2761 = vrot.slane %v2758, 2
  %v2762 = vrot.slane %v2758, 3
  %v2763 = vperm.slane %v2758, 0
  %v2764 = vperm.slane %v2760, 0
  %v2765 = vperm.slane %v2761, 0
  %v2766 = vperm.slane %v2762, 0
  %2767 = vrot.lane.b32.xlu0 %v2763, 32
  %v2768 = vpop.permute.xlu0 %2767
  %2769 = vrot.lane.b32.xlu0 %v2764, 32
  %v2770 = vpop.permute.xlu0 %2769
  %2771 = vrot.lane.b32.xlu0 %v2765, 32
  %v2772 = vpop.permute.xlu0 %2771
  %2773 = vrot.lane.b32.xlu0 %v2766, 32
  %v2774 = vpop.permute.xlu0 %2773
  %2779 = vst.msk [vmem:[#allocation2 + $0x18] sm:$0x1] %vm714, %v2768
  %2780 = vst.msk [vmem:[#allocation2 + $0x50] sm:$0x1] %vm714, %v2770
  %2781 = vst.msk [vmem:[#allocation2 + $0x88] sm:$0x1] %vm714, %v2772
  %2782 = vst.msk [vmem:[#allocation2 + $0xc0] sm:$0x1] %vm714, %v2774
  %2783 = vrot.lane.b32.xlu0 %v2758, 32
  %v2784 = vpop.permute.xlu0 %2783
  %v2785 = vsel %vm63, %v2784, 0
  %2787 = vmatpush.msra.mxu0 0.0
  %2788 = vmatpush.msra.mxu0 0.0
  %2789 = vmatpush.msra.mxu0 0.0
  %2790 = vmatpush.msra.mxu0 0.0
  %2791 = vmatpush.msra.mxu0 0.0
  %2792 = vmatpush.msra.mxu0 0.0
  %2793 = vmatpush.msra.mxu0 0.0
  %2794 = vmatpush.msra.mxu0 0.0
  %2795 = vmatpush.msra.mxu0 0.0
  %2796 = vmatpush.msra.mxu0 0.0
  %2797 = vmatpush.msra.mxu0 0.0
  %2798 = vmatpush.msra.mxu0 0.0
  %2799 = vmatpush.msra.mxu0 %v48
  %2800 = vmatpush.msra.mxu0 %v47
  %2801 = vmatpush.msra.mxu0 %v46
  %2802 = vmatpush.msra.mxu0 %v45
  %2803 = vmatmul.f32.gmra.mxu0 %v2785
  %v2804 = vpop.f32.mrf.mxu0
  %v2805 = vadd.f32 0.0, %v2804
  %2806 = vdwg.mxu0
  %v2807 = vadd.f32 %v634, %v2805
  %v2808 = vxor.u32 %v2807, 2147483648
  %v2809 = vmul.f32 %v2808, 1.442695
  %v2810 = vpow.pop %v2809
  %v2811 = vadd.f32 %v2810, 1.0
  %v2812 = vrcp.pop %v2811
  %v2813 = vmul.f32 %v2811, %v2812
  %v2814 = vsub.f32 1.0, %v2813
  %v2815 = vmul.f32 %v2812, %v2814
  %v2816 = vadd.f32 %v2812, %v2815
  %vm2817 = vweird.f32 %v2811
  %vm2818 = vweird.f32 %v2812
  %vm2819 = vmor %vm2817, %vm2818
  %v2820 = vsel %vm2819, %v2812, %v2816
  %v2821 = vand.u32 2147483647, %v2811
  %vm2822 = vcmp.eq.f32.partialorder %v2821, 8.507059e+37
  %v2823 = vand.u32 %v2811, 2147483648
  %v2824 = vor.u32 1.1754944e-38, %v2823
  %v2825 = vsel %vm2822, %v2824, %v2820
  %v2826 = vmul.f32 1.0, %v2825
  %v2827 = vtanh.pop %v2807
  %v2828 = vmul.f32 %v2826, %v2752
  %2830 = vrot.lane.b32.xlu0 %v2827, 64
  %v2831 = vpop.permute.xlu0 %2830
  %v2833 = vmul.f32 %v2826, %v2831
  %2835 = vrot.lane.b32.xlu0 %v2833, 32
  %v2836 = vpop.permute.xlu0 %2835
  %v2838 = vadd.f32 %v2828, %v2836
  %v2839 = vtanh.pop %v2838
  %2841 = vrot.lane.b32.xlu0 %v2839, 64
  %v2842 = vpop.permute.xlu0 %2841
  %v2844 = vmul.f32 %v2826, %v2842
  %v2846 = vrot.slane %v2844, 1
  %v2847 = vrot.slane %v2844, 2
  %v2848 = vrot.slane %v2844, 3
  %v2849 = vperm.slane %v2844, 0
  %v2850 = vperm.slane %v2846, 0
  %v2851 = vperm.slane %v2847, 0
  %v2852 = vperm.slane %v2848, 0
  %2853 = vrot.lane.b32.xlu0 %v2849, 32
  %v2854 = vpop.permute.xlu0 %2853
  %2855 = vrot.lane.b32.xlu0 %v2850, 32
  %v2856 = vpop.permute.xlu0 %2855
  %2857 = vrot.lane.b32.xlu0 %v2851, 32
  %v2858 = vpop.permute.xlu0 %2857
  %2859 = vrot.lane.b32.xlu0 %v2852, 32
  %v2860 = vpop.permute.xlu0 %2859
  %2865 = vst.msk [vmem:[#allocation2 + $0x19] sm:$0x1] %vm714, %v2854
  %2866 = vst.msk [vmem:[#allocation2 + $0x51] sm:$0x1] %vm714, %v2856
  %2867 = vst.msk [vmem:[#allocation2 + $0x89] sm:$0x1] %vm714, %v2858
  %2868 = vst.msk [vmem:[#allocation2 + $0xc1] sm:$0x1] %vm714, %v2860
  %2869 = vrot.lane.b32.xlu0 %v2844, 32
  %v2870 = vpop.permute.xlu0 %2869
  %v2871 = vsel %vm63, %v2870, 0
  %2873 = vmatpush.msra.mxu0 0.0
  %2874 = vmatpush.msra.mxu0 0.0
  %2875 = vmatpush.msra.mxu0 0.0
  %2876 = vmatpush.msra.mxu0 0.0
  %2877 = vmatpush.msra.mxu0 0.0
  %2878 = vmatpush.msra.mxu0 0.0
  %2879 = vmatpush.msra.mxu0 0.0
  %2880 = vmatpush.msra.mxu0 0.0
  %2881 = vmatpush.msra.mxu0 0.0
  %2882 = vmatpush.msra.mxu0 0.0
  %2883 = vmatpush.msra.mxu0 0.0
  %2884 = vmatpush.msra.mxu0 0.0
  %2885 = vmatpush.msra.mxu0 %v48
  %2886 = vmatpush.msra.mxu0 %v47
  %2887 = vmatpush.msra.mxu0 %v46
  %2888 = vmatpush.msra.mxu0 %v45
  %2889 = vmatmul.f32.gmra.mxu0 %v2871
  %v2890 = vpop.f32.mrf.mxu0
  %v2891 = vadd.f32 0.0, %v2890
  %2892 = vdwg.mxu0
  %v2893 = vadd.f32 %v634, %v2891
  %v2894 = vxor.u32 %v2893, 2147483648
  %v2895 = vmul.f32 %v2894, 1.442695
  %v2896 = vpow.pop %v2895
  %v2897 = vadd.f32 %v2896, 1.0
  %v2898 = vrcp.pop %v2897
  %v2899 = vmul.f32 %v2897, %v2898
  %v2900 = vsub.f32 1.0, %v2899
  %v2901 = vmul.f32 %v2898, %v2900
  %v2902 = vadd.f32 %v2898, %v2901
  %vm2903 = vweird.f32 %v2897
  %vm2904 = vweird.f32 %v2898
  %vm2905 = vmor %vm2903, %vm2904
  %v2906 = vsel %vm2905, %v2898, %v2902
  %v2907 = vand.u32 2147483647, %v2897
  %vm2908 = vcmp.eq.f32.partialorder %v2907, 8.507059e+37
  %v2909 = vand.u32 %v2897, 2147483648
  %v2910 = vor.u32 1.1754944e-38, %v2909
  %v2911 = vsel %vm2908, %v2910, %v2906
  %v2912 = vmul.f32 1.0, %v2911
  %v2913 = vtanh.pop %v2893
  %v2914 = vmul.f32 %v2912, %v2838
  %2916 = vrot.lane.b32.xlu0 %v2913, 64
  %v2917 = vpop.permute.xlu0 %2916
  %v2919 = vmul.f32 %v2912, %v2917
  %2921 = vrot.lane.b32.xlu0 %v2919, 32
  %v2922 = vpop.permute.xlu0 %2921
  %v2924 = vadd.f32 %v2914, %v2922
  %v2925 = vtanh.pop %v2924
  %2927 = vrot.lane.b32.xlu0 %v2925, 64
  %v2928 = vpop.permute.xlu0 %2927
  %v2930 = vmul.f32 %v2912, %v2928
  %v2932 = vrot.slane %v2930, 1
  %v2933 = vrot.slane %v2930, 2
  %v2934 = vrot.slane %v2930, 3
  %v2935 = vperm.slane %v2930, 0
  %v2936 = vperm.slane %v2932, 0
  %v2937 = vperm.slane %v2933, 0
  %v2938 = vperm.slane %v2934, 0
  %2939 = vrot.lane.b32.xlu0 %v2935, 32
  %v2940 = vpop.permute.xlu0 %2939
  %2941 = vrot.lane.b32.xlu0 %v2936, 32
  %v2942 = vpop.permute.xlu0 %2941
  %2943 = vrot.lane.b32.xlu0 %v2937, 32
  %v2944 = vpop.permute.xlu0 %2943
  %2945 = vrot.lane.b32.xlu0 %v2938, 32
  %v2946 = vpop.permute.xlu0 %2945
  %2951 = vst.msk [vmem:[#allocation2 + $0x1a] sm:$0x1] %vm714, %v2940
  %2952 = vst.msk [vmem:[#allocation2 + $0x52] sm:$0x1] %vm714, %v2942
  %2953 = vst.msk [vmem:[#allocation2 + $0x8a] sm:$0x1] %vm714, %v2944
  %2954 = vst.msk [vmem:[#allocation2 + $0xc2] sm:$0x1] %vm714, %v2946
  %2955 = vrot.lane.b32.xlu0 %v2930, 32
  %v2956 = vpop.permute.xlu0 %2955
  %v2957 = vsel %vm63, %v2956, 0
  %2959 = vmatpush.msra.mxu0 0.0
  %2960 = vmatpush.msra.mxu0 0.0
  %2961 = vmatpush.msra.mxu0 0.0
  %2962 = vmatpush.msra.mxu0 0.0
  %2963 = vmatpush.msra.mxu0 0.0
  %2964 = vmatpush.msra.mxu0 0.0
  %2965 = vmatpush.msra.mxu0 0.0
  %2966 = vmatpush.msra.mxu0 0.0
  %2967 = vmatpush.msra.mxu0 0.0
  %2968 = vmatpush.msra.mxu0 0.0
  %2969 = vmatpush.msra.mxu0 0.0
  %2970 = vmatpush.msra.mxu0 0.0
  %2971 = vmatpush.msra.mxu0 %v48
  %2972 = vmatpush.msra.mxu0 %v47
  %2973 = vmatpush.msra.mxu0 %v46
  %2974 = vmatpush.msra.mxu0 %v45
  %2975 = vmatmul.f32.gmra.mxu0 %v2957
  %v2976 = vpop.f32.mrf.mxu0
  %v2977 = vadd.f32 0.0, %v2976
  %2978 = vdwg.mxu0
  %v2979 = vadd.f32 %v634, %v2977
  %v2980 = vxor.u32 %v2979, 2147483648
  %v2981 = vmul.f32 %v2980, 1.442695
  %v2982 = vpow.pop %v2981
  %v2983 = vadd.f32 %v2982, 1.0
  %v2984 = vrcp.pop %v2983
  %v2985 = vmul.f32 %v2983, %v2984
  %v2986 = vsub.f32 1.0, %v2985
  %v2987 = vmul.f32 %v2984, %v2986
  %v2988 = vadd.f32 %v2984, %v2987
  %vm2989 = vweird.f32 %v2983
  %vm2990 = vweird.f32 %v2984
  %vm2991 = vmor %vm2989, %vm2990
  %v2992 = vsel %vm2991, %v2984, %v2988
  %v2993 = vand.u32 2147483647, %v2983
  %vm2994 = vcmp.eq.f32.partialorder %v2993, 8.507059e+37
  %v2995 = vand.u32 %v2983, 2147483648
  %v2996 = vor.u32 1.1754944e-38, %v2995
  %v2997 = vsel %vm2994, %v2996, %v2992
  %v2998 = vmul.f32 1.0, %v2997
  %v2999 = vtanh.pop %v2979
  %v3000 = vmul.f32 %v2998, %v2924
  %3002 = vrot.lane.b32.xlu0 %v2999, 64
  %v3003 = vpop.permute.xlu0 %3002
  %v3005 = vmul.f32 %v2998, %v3003
  %3007 = vrot.lane.b32.xlu0 %v3005, 32
  %v3008 = vpop.permute.xlu0 %3007
  %v3010 = vadd.f32 %v3000, %v3008
  %v3011 = vtanh.pop %v3010
  %3013 = vrot.lane.b32.xlu0 %v3011, 64
  %v3014 = vpop.permute.xlu0 %3013
  %v3016 = vmul.f32 %v2998, %v3014
  %v3018 = vrot.slane %v3016, 1
  %v3019 = vrot.slane %v3016, 2
  %v3020 = vrot.slane %v3016, 3
  %v3021 = vperm.slane %v3016, 0
  %v3022 = vperm.slane %v3018, 0
  %v3023 = vperm.slane %v3019, 0
  %v3024 = vperm.slane %v3020, 0
  %3025 = vrot.lane.b32.xlu0 %v3021, 32
  %v3026 = vpop.permute.xlu0 %3025
  %3027 = vrot.lane.b32.xlu0 %v3022, 32
  %v3028 = vpop.permute.xlu0 %3027
  %3029 = vrot.lane.b32.xlu0 %v3023, 32
  %v3030 = vpop.permute.xlu0 %3029
  %3031 = vrot.lane.b32.xlu0 %v3024, 32
  %v3032 = vpop.permute.xlu0 %3031
  %3037 = vst.msk [vmem:[#allocation2 + $0x1b] sm:$0x1] %vm714, %v3026
  %3038 = vst.msk [vmem:[#allocation2 + $0x53] sm:$0x1] %vm714, %v3028
  %3039 = vst.msk [vmem:[#allocation2 + $0x8b] sm:$0x1] %vm714, %v3030
  %3040 = vst.msk [vmem:[#allocation2 + $0xc3] sm:$0x1] %vm714, %v3032
  %3041 = vrot.lane.b32.xlu0 %v3016, 32
  %v3042 = vpop.permute.xlu0 %3041
  %v3043 = vsel %vm63, %v3042, 0
  %3045 = vmatpush.msra.mxu0 0.0
  %3046 = vmatpush.msra.mxu0 0.0
  %3047 = vmatpush.msra.mxu0 0.0
  %3048 = vmatpush.msra.mxu0 0.0
  %3049 = vmatpush.msra.mxu0 0.0
  %3050 = vmatpush.msra.mxu0 0.0
  %3051 = vmatpush.msra.mxu0 0.0
  %3052 = vmatpush.msra.mxu0 0.0
  %3053 = vmatpush.msra.mxu0 0.0
  %3054 = vmatpush.msra.mxu0 0.0
  %3055 = vmatpush.msra.mxu0 0.0
  %3056 = vmatpush.msra.mxu0 0.0
  %3057 = vmatpush.msra.mxu0 %v48
  %3058 = vmatpush.msra.mxu0 %v47
  %3059 = vmatpush.msra.mxu0 %v46
  %3060 = vmatpush.msra.mxu0 %v45
  %3061 = vmatmul.f32.gmra.mxu0 %v3043
  %v3062 = vpop.f32.mrf.mxu0
  %v3063 = vadd.f32 0.0, %v3062
  %3064 = vdwg.mxu0
  %v3065 = vadd.f32 %v634, %v3063
  %v3066 = vxor.u32 %v3065, 2147483648
  %v3067 = vmul.f32 %v3066, 1.442695
  %v3068 = vpow.pop %v3067
  %v3069 = vadd.f32 %v3068, 1.0
  %v3070 = vrcp.pop %v3069
  %v3071 = vmul.f32 %v3069, %v3070
  %v3072 = vsub.f32 1.0, %v3071
  %v3073 = vmul.f32 %v3070, %v3072
  %v3074 = vadd.f32 %v3070, %v3073
  %vm3075 = vweird.f32 %v3069
  %vm3076 = vweird.f32 %v3070
  %vm3077 = vmor %vm3075, %vm3076
  %v3078 = vsel %vm3077, %v3070, %v3074
  %v3079 = vand.u32 2147483647, %v3069
  %vm3080 = vcmp.eq.f32.partialorder %v3079, 8.507059e+37
  %v3081 = vand.u32 %v3069, 2147483648
  %v3082 = vor.u32 1.1754944e-38, %v3081
  %v3083 = vsel %vm3080, %v3082, %v3078
  %v3084 = vmul.f32 1.0, %v3083
  %v3085 = vtanh.pop %v3065
  %v3086 = vmul.f32 %v3084, %v3010
  %3088 = vrot.lane.b32.xlu0 %v3085, 64
  %v3089 = vpop.permute.xlu0 %3088
  %v3091 = vmul.f32 %v3084, %v3089
  %3093 = vrot.lane.b32.xlu0 %v3091, 32
  %v3094 = vpop.permute.xlu0 %3093
  %v3096 = vadd.f32 %v3086, %v3094
  %v3097 = vtanh.pop %v3096
  %3099 = vrot.lane.b32.xlu0 %v3097, 64
  %v3100 = vpop.permute.xlu0 %3099
  %v3102 = vmul.f32 %v3084, %v3100
  %v3104 = vrot.slane %v3102, 1
  %v3105 = vrot.slane %v3102, 2
  %v3106 = vrot.slane %v3102, 3
  %v3107 = vperm.slane %v3102, 0
  %v3108 = vperm.slane %v3104, 0
  %v3109 = vperm.slane %v3105, 0
  %v3110 = vperm.slane %v3106, 0
  %3111 = vrot.lane.b32.xlu0 %v3107, 32
  %v3112 = vpop.permute.xlu0 %3111
  %3113 = vrot.lane.b32.xlu0 %v3108, 32
  %v3114 = vpop.permute.xlu0 %3113
  %3115 = vrot.lane.b32.xlu0 %v3109, 32
  %v3116 = vpop.permute.xlu0 %3115
  %3117 = vrot.lane.b32.xlu0 %v3110, 32
  %v3118 = vpop.permute.xlu0 %3117
  %3123 = vst.msk [vmem:[#allocation2 + $0x1c] sm:$0x1] %vm714, %v3112
  %3124 = vst.msk [vmem:[#allocation2 + $0x54] sm:$0x1] %vm714, %v3114
  %3125 = vst.msk [vmem:[#allocation2 + $0x8c] sm:$0x1] %vm714, %v3116
  %3126 = vst.msk [vmem:[#allocation2 + $0xc4] sm:$0x1] %vm714, %v3118
  %3127 = vrot.lane.b32.xlu0 %v3102, 32
  %v3128 = vpop.permute.xlu0 %3127
  %v3129 = vsel %vm63, %v3128, 0
  %3131 = vmatpush.msra.mxu0 0.0
  %3132 = vmatpush.msra.mxu0 0.0
  %3133 = vmatpush.msra.mxu0 0.0
  %3134 = vmatpush.msra.mxu0 0.0
  %3135 = vmatpush.msra.mxu0 0.0
  %3136 = vmatpush.msra.mxu0 0.0
  %3137 = vmatpush.msra.mxu0 0.0
  %3138 = vmatpush.msra.mxu0 0.0
  %3139 = vmatpush.msra.mxu0 0.0
  %3140 = vmatpush.msra.mxu0 0.0
  %3141 = vmatpush.msra.mxu0 0.0
  %3142 = vmatpush.msra.mxu0 0.0
  %3143 = vmatpush.msra.mxu0 %v48
  %3144 = vmatpush.msra.mxu0 %v47
  %3145 = vmatpush.msra.mxu0 %v46
  %3146 = vmatpush.msra.mxu0 %v45
  %3147 = vmatmul.f32.gmra.mxu0 %v3129
  %v3148 = vpop.f32.mrf.mxu0
  %v3149 = vadd.f32 0.0, %v3148
  %3150 = vdwg.mxu0
  %v3151 = vadd.f32 %v634, %v3149
  %v3152 = vxor.u32 %v3151, 2147483648
  %v3153 = vmul.f32 %v3152, 1.442695
  %v3154 = vpow.pop %v3153
  %v3155 = vadd.f32 %v3154, 1.0
  %v3156 = vrcp.pop %v3155
  %v3157 = vmul.f32 %v3155, %v3156
  %v3158 = vsub.f32 1.0, %v3157
  %v3159 = vmul.f32 %v3156, %v3158
  %v3160 = vadd.f32 %v3156, %v3159
  %vm3161 = vweird.f32 %v3155
  %vm3162 = vweird.f32 %v3156
  %vm3163 = vmor %vm3161, %vm3162
  %v3164 = vsel %vm3163, %v3156, %v3160
  %v3165 = vand.u32 2147483647, %v3155
  %vm3166 = vcmp.eq.f32.partialorder %v3165, 8.507059e+37
  %v3167 = vand.u32 %v3155, 2147483648
  %v3168 = vor.u32 1.1754944e-38, %v3167
  %v3169 = vsel %vm3166, %v3168, %v3164
  %v3170 = vmul.f32 1.0, %v3169
  %v3171 = vtanh.pop %v3151
  %v3172 = vmul.f32 %v3170, %v3096
  %3174 = vrot.lane.b32.xlu0 %v3171, 64
  %v3175 = vpop.permute.xlu0 %3174
  %v3177 = vmul.f32 %v3170, %v3175
  %3179 = vrot.lane.b32.xlu0 %v3177, 32
  %v3180 = vpop.permute.xlu0 %3179
  %v3182 = vadd.f32 %v3172, %v3180
  %v3183 = vtanh.pop %v3182
  %3185 = vrot.lane.b32.xlu0 %v3183, 64
  %v3186 = vpop.permute.xlu0 %3185
  %v3188 = vmul.f32 %v3170, %v3186
  %v3190 = vrot.slane %v3188, 1
  %v3191 = vrot.slane %v3188, 2
  %v3192 = vrot.slane %v3188, 3
  %v3193 = vperm.slane %v3188, 0
  %v3194 = vperm.slane %v3190, 0
  %v3195 = vperm.slane %v3191, 0
  %v3196 = vperm.slane %v3192, 0
  %3197 = vrot.lane.b32.xlu0 %v3193, 32
  %v3198 = vpop.permute.xlu0 %3197
  %3199 = vrot.lane.b32.xlu0 %v3194, 32
  %v3200 = vpop.permute.xlu0 %3199
  %3201 = vrot.lane.b32.xlu0 %v3195, 32
  %v3202 = vpop.permute.xlu0 %3201
  %3203 = vrot.lane.b32.xlu0 %v3196, 32
  %v3204 = vpop.permute.xlu0 %3203
  %3209 = vst.msk [vmem:[#allocation2 + $0x1d] sm:$0x1] %vm714, %v3198
  %3210 = vst.msk [vmem:[#allocation2 + $0x55] sm:$0x1] %vm714, %v3200
  %3211 = vst.msk [vmem:[#allocation2 + $0x8d] sm:$0x1] %vm714, %v3202
  %3212 = vst.msk [vmem:[#allocation2 + $0xc5] sm:$0x1] %vm714, %v3204
  %3213 = vrot.lane.b32.xlu0 %v3188, 32
  %v3214 = vpop.permute.xlu0 %3213
  %v3215 = vsel %vm63, %v3214, 0
  %3217 = vmatpush.msra.mxu0 0.0
  %3218 = vmatpush.msra.mxu0 0.0
  %3219 = vmatpush.msra.mxu0 0.0
  %3220 = vmatpush.msra.mxu0 0.0
  %3221 = vmatpush.msra.mxu0 0.0
  %3222 = vmatpush.msra.mxu0 0.0
  %3223 = vmatpush.msra.mxu0 0.0
  %3224 = vmatpush.msra.mxu0 0.0
  %3225 = vmatpush.msra.mxu0 0.0
  %3226 = vmatpush.msra.mxu0 0.0
  %3227 = vmatpush.msra.mxu0 0.0
  %3228 = vmatpush.msra.mxu0 0.0
  %3229 = vmatpush.msra.mxu0 %v48
  %3230 = vmatpush.msra.mxu0 %v47
  %3231 = vmatpush.msra.mxu0 %v46
  %3232 = vmatpush.msra.mxu0 %v45
  %3233 = vmatmul.f32.gmra.mxu0 %v3215
  %v3234 = vpop.f32.mrf.mxu0
  %v3235 = vadd.f32 0.0, %v3234
  %3236 = vdwg.mxu0
  %v3237 = vadd.f32 %v634, %v3235
  %v3238 = vxor.u32 %v3237, 2147483648
  %v3239 = vmul.f32 %v3238, 1.442695
  %v3240 = vpow.pop %v3239
  %v3241 = vadd.f32 %v3240, 1.0
  %v3242 = vrcp.pop %v3241
  %v3243 = vmul.f32 %v3241, %v3242
  %v3244 = vsub.f32 1.0, %v3243
  %v3245 = vmul.f32 %v3242, %v3244
  %v3246 = vadd.f32 %v3242, %v3245
  %vm3247 = vweird.f32 %v3241
  %vm3248 = vweird.f32 %v3242
  %vm3249 = vmor %vm3247, %vm3248
  %v3250 = vsel %vm3249, %v3242, %v3246
  %v3251 = vand.u32 2147483647, %v3241
  %vm3252 = vcmp.eq.f32.partialorder %v3251, 8.507059e+37
  %v3253 = vand.u32 %v3241, 2147483648
  %v3254 = vor.u32 1.1754944e-38, %v3253
  %v3255 = vsel %vm3252, %v3254, %v3250
  %v3256 = vmul.f32 1.0, %v3255
  %v3257 = vtanh.pop %v3237
  %v3258 = vmul.f32 %v3256, %v3182
  %3260 = vrot.lane.b32.xlu0 %v3257, 64
  %v3261 = vpop.permute.xlu0 %3260
  %v3263 = vmul.f32 %v3256, %v3261
  %3265 = vrot.lane.b32.xlu0 %v3263, 32
  %v3266 = vpop.permute.xlu0 %3265
  %v3268 = vadd.f32 %v3258, %v3266
  %v3269 = vtanh.pop %v3268
  %3271 = vrot.lane.b32.xlu0 %v3269, 64
  %v3272 = vpop.permute.xlu0 %3271
  %v3274 = vmul.f32 %v3256, %v3272
  %v3276 = vrot.slane %v3274, 1
  %v3277 = vrot.slane %v3274, 2
  %v3278 = vrot.slane %v3274, 3
  %v3279 = vperm.slane %v3274, 0
  %v3280 = vperm.slane %v3276, 0
  %v3281 = vperm.slane %v3277, 0
  %v3282 = vperm.slane %v3278, 0
  %3283 = vrot.lane.b32.xlu0 %v3279, 32
  %v3284 = vpop.permute.xlu0 %3283
  %3285 = vrot.lane.b32.xlu0 %v3280, 32
  %v3286 = vpop.permute.xlu0 %3285
  %3287 = vrot.lane.b32.xlu0 %v3281, 32
  %v3288 = vpop.permute.xlu0 %3287
  %3289 = vrot.lane.b32.xlu0 %v3282, 32
  %v3290 = vpop.permute.xlu0 %3289
  %3295 = vst.msk [vmem:[#allocation2 + $0x1e] sm:$0x1] %vm714, %v3284
  %3296 = vst.msk [vmem:[#allocation2 + $0x56] sm:$0x1] %vm714, %v3286
  %3297 = vst.msk [vmem:[#allocation2 + $0x8e] sm:$0x1] %vm714, %v3288
  %3298 = vst.msk [vmem:[#allocation2 + $0xc6] sm:$0x1] %vm714, %v3290
  %3299 = vrot.lane.b32.xlu0 %v3274, 32
  %v3300 = vpop.permute.xlu0 %3299
  %v3301 = vsel %vm63, %v3300, 0
  %3303 = vmatpush.msra.mxu0 0.0
  %3304 = vmatpush.msra.mxu0 0.0
  %3305 = vmatpush.msra.mxu0 0.0
  %3306 = vmatpush.msra.mxu0 0.0
  %3307 = vmatpush.msra.mxu0 0.0
  %3308 = vmatpush.msra.mxu0 0.0
  %3309 = vmatpush.msra.mxu0 0.0
  %3310 = vmatpush.msra.mxu0 0.0
  %3311 = vmatpush.msra.mxu0 0.0
  %3312 = vmatpush.msra.mxu0 0.0
  %3313 = vmatpush.msra.mxu0 0.0
  %3314 = vmatpush.msra.mxu0 0.0
  %3315 = vmatpush.msra.mxu0 %v48
  %3316 = vmatpush.msra.mxu0 %v47
  %3317 = vmatpush.msra.mxu0 %v46
  %3318 = vmatpush.msra.mxu0 %v45
  %3319 = vmatmul.f32.gmra.mxu0 %v3301
  %v3320 = vpop.f32.mrf.mxu0
  %v3321 = vadd.f32 0.0, %v3320
  %3322 = vdwg.mxu0
  %v3323 = vadd.f32 %v634, %v3321
  %v3324 = vxor.u32 %v3323, 2147483648
  %v3325 = vmul.f32 %v3324, 1.442695
  %v3326 = vpow.pop %v3325
  %v3327 = vadd.f32 %v3326, 1.0
  %v3328 = vrcp.pop %v3327
  %v3329 = vmul.f32 %v3327, %v3328
  %v3330 = vsub.f32 1.0, %v3329
  %v3331 = vmul.f32 %v3328, %v3330
  %v3332 = vadd.f32 %v3328, %v3331
  %vm3333 = vweird.f32 %v3327
  %vm3334 = vweird.f32 %v3328
  %vm3335 = vmor %vm3333, %vm3334
  %v3336 = vsel %vm3335, %v3328, %v3332
  %v3337 = vand.u32 2147483647, %v3327
  %vm3338 = vcmp.eq.f32.partialorder %v3337, 8.507059e+37
  %v3339 = vand.u32 %v3327, 2147483648
  %v3340 = vor.u32 1.1754944e-38, %v3339
  %v3341 = vsel %vm3338, %v3340, %v3336
  %v3342 = vmul.f32 1.0, %v3341
  %v3343 = vtanh.pop %v3323
  %v3344 = vmul.f32 %v3342, %v3268
  %3346 = vrot.lane.b32.xlu0 %v3343, 64
  %v3347 = vpop.permute.xlu0 %3346
  %v3349 = vmul.f32 %v3342, %v3347
  %3351 = vrot.lane.b32.xlu0 %v3349, 32
  %v3352 = vpop.permute.xlu0 %3351
  %v3354 = vadd.f32 %v3344, %v3352
  %v3355 = vtanh.pop %v3354
  %3357 = vrot.lane.b32.xlu0 %v3355, 64
  %v3358 = vpop.permute.xlu0 %3357
  %v3360 = vmul.f32 %v3342, %v3358
  %v3362 = vrot.slane %v3360, 1
  %v3363 = vrot.slane %v3360, 2
  %v3364 = vrot.slane %v3360, 3
  %v3365 = vperm.slane %v3360, 0
  %v3366 = vperm.slane %v3362, 0
  %v3367 = vperm.slane %v3363, 0
  %v3368 = vperm.slane %v3364, 0
  %3369 = vrot.lane.b32.xlu0 %v3365, 32
  %v3370 = vpop.permute.xlu0 %3369
  %3371 = vrot.lane.b32.xlu0 %v3366, 32
  %v3372 = vpop.permute.xlu0 %3371
  %3373 = vrot.lane.b32.xlu0 %v3367, 32
  %v3374 = vpop.permute.xlu0 %3373
  %3375 = vrot.lane.b32.xlu0 %v3368, 32
  %v3376 = vpop.permute.xlu0 %3375
  %3381 = vst.msk [vmem:[#allocation2 + $0x1f] sm:$0x1] %vm714, %v3370
  %3382 = vst.msk [vmem:[#allocation2 + $0x57] sm:$0x1] %vm714, %v3372
  %3383 = vst.msk [vmem:[#allocation2 + $0x8f] sm:$0x1] %vm714, %v3374
  %3384 = vst.msk [vmem:[#allocation2 + $0xc7] sm:$0x1] %vm714, %v3376
  %3385 = vrot.lane.b32.xlu0 %v3360, 32
  %v3386 = vpop.permute.xlu0 %3385
  %v3387 = vsel %vm63, %v3386, 0
  %3389 = vmatpush.msra.mxu0 0.0
  %3390 = vmatpush.msra.mxu0 0.0
  %3391 = vmatpush.msra.mxu0 0.0
  %3392 = vmatpush.msra.mxu0 0.0
  %3393 = vmatpush.msra.mxu0 0.0
  %3394 = vmatpush.msra.mxu0 0.0
  %3395 = vmatpush.msra.mxu0 0.0
  %3396 = vmatpush.msra.mxu0 0.0
  %3397 = vmatpush.msra.mxu0 0.0
  %3398 = vmatpush.msra.mxu0 0.0
  %3399 = vmatpush.msra.mxu0 0.0
  %3400 = vmatpush.msra.mxu0 0.0
  %3401 = vmatpush.msra.mxu0 %v48
  %3402 = vmatpush.msra.mxu0 %v47
  %3403 = vmatpush.msra.mxu0 %v46
  %3404 = vmatpush.msra.mxu0 %v45
  %3405 = vmatmul.f32.gmra.mxu0 %v3387
  %v3406 = vpop.f32.mrf.mxu0
  %v3407 = vadd.f32 0.0, %v3406
  %3408 = vdwg.mxu0
  %v3409 = vadd.f32 %v634, %v3407
  %v3410 = vxor.u32 %v3409, 2147483648
  %v3411 = vmul.f32 %v3410, 1.442695
  %v3412 = vpow.pop %v3411
  %v3413 = vadd.f32 %v3412, 1.0
  %v3414 = vrcp.pop %v3413
  %v3415 = vmul.f32 %v3413, %v3414
  %v3416 = vsub.f32 1.0, %v3415
  %v3417 = vmul.f32 %v3414, %v3416
  %v3418 = vadd.f32 %v3414, %v3417
  %vm3419 = vweird.f32 %v3413
  %vm3420 = vweird.f32 %v3414
  %vm3421 = vmor %vm3419, %vm3420
  %v3422 = vsel %vm3421, %v3414, %v3418
  %v3423 = vand.u32 2147483647, %v3413
  %vm3424 = vcmp.eq.f32.partialorder %v3423, 8.507059e+37
  %v3425 = vand.u32 %v3413, 2147483648
  %v3426 = vor.u32 1.1754944e-38, %v3425
  %v3427 = vsel %vm3424, %v3426, %v3422
  %v3428 = vmul.f32 1.0, %v3427
  %v3429 = vtanh.pop %v3409
  %v3430 = vmul.f32 %v3428, %v3354
  %3432 = vrot.lane.b32.xlu0 %v3429, 64
  %v3433 = vpop.permute.xlu0 %3432
  %v3435 = vmul.f32 %v3428, %v3433
  %3437 = vrot.lane.b32.xlu0 %v3435, 32
  %v3438 = vpop.permute.xlu0 %3437
  %v3440 = vadd.f32 %v3430, %v3438
  %v3441 = vtanh.pop %v3440
  %3443 = vrot.lane.b32.xlu0 %v3441, 64
  %v3444 = vpop.permute.xlu0 %3443
  %v3446 = vmul.f32 %v3428, %v3444
  %v3448 = vrot.slane %v3446, 1
  %v3449 = vrot.slane %v3446, 2
  %v3450 = vrot.slane %v3446, 3
  %v3451 = vperm.slane %v3446, 0
  %v3452 = vperm.slane %v3448, 0
  %v3453 = vperm.slane %v3449, 0
  %v3454 = vperm.slane %v3450, 0
  %3455 = vrot.lane.b32.xlu0 %v3451, 32
  %v3456 = vpop.permute.xlu0 %3455
  %3457 = vrot.lane.b32.xlu0 %v3452, 32
  %v3458 = vpop.permute.xlu0 %3457
  %3459 = vrot.lane.b32.xlu0 %v3453, 32
  %v3460 = vpop.permute.xlu0 %3459
  %3461 = vrot.lane.b32.xlu0 %v3454, 32
  %v3462 = vpop.permute.xlu0 %3461
  %3467 = vst.msk [vmem:[#allocation2 + $0x20] sm:$0x1] %vm714, %v3456
  %3468 = vst.msk [vmem:[#allocation2 + $0x58] sm:$0x1] %vm714, %v3458
  %3469 = vst.msk [vmem:[#allocation2 + $0x90] sm:$0x1] %vm714, %v3460
  %3470 = vst.msk [vmem:[#allocation2 + $0xc8] sm:$0x1] %vm714, %v3462
  %3471 = vrot.lane.b32.xlu0 %v3446, 32
  %v3472 = vpop.permute.xlu0 %3471
  %v3473 = vsel %vm63, %v3472, 0
  %3475 = vmatpush.msra.mxu0 0.0
  %3476 = vmatpush.msra.mxu0 0.0
  %3477 = vmatpush.msra.mxu0 0.0
  %3478 = vmatpush.msra.mxu0 0.0
  %3479 = vmatpush.msra.mxu0 0.0
  %3480 = vmatpush.msra.mxu0 0.0
  %3481 = vmatpush.msra.mxu0 0.0
  %3482 = vmatpush.msra.mxu0 0.0
  %3483 = vmatpush.msra.mxu0 0.0
  %3484 = vmatpush.msra.mxu0 0.0
  %3485 = vmatpush.msra.mxu0 0.0
  %3486 = vmatpush.msra.mxu0 0.0
  %3487 = vmatpush.msra.mxu0 %v48
  %3488 = vmatpush.msra.mxu0 %v47
  %3489 = vmatpush.msra.mxu0 %v46
  %3490 = vmatpush.msra.mxu0 %v45
  %3491 = vmatmul.f32.gmra.mxu0 %v3473
  %v3492 = vpop.f32.mrf.mxu0
  %v3493 = vadd.f32 0.0, %v3492
  %3494 = vdwg.mxu0
  %v3495 = vadd.f32 %v634, %v3493
  %v3496 = vxor.u32 %v3495, 2147483648
  %v3497 = vmul.f32 %v3496, 1.442695
  %v3498 = vpow.pop %v3497
  %v3499 = vadd.f32 %v3498, 1.0
  %v3500 = vrcp.pop %v3499
  %v3501 = vmul.f32 %v3499, %v3500
  %v3502 = vsub.f32 1.0, %v3501
  %v3503 = vmul.f32 %v3500, %v3502
  %v3504 = vadd.f32 %v3500, %v3503
  %vm3505 = vweird.f32 %v3499
  %vm3506 = vweird.f32 %v3500
  %vm3507 = vmor %vm3505, %vm3506
  %v3508 = vsel %vm3507, %v3500, %v3504
  %v3509 = vand.u32 2147483647, %v3499
  %vm3510 = vcmp.eq.f32.partialorder %v3509, 8.507059e+37
  %v3511 = vand.u32 %v3499, 2147483648
  %v3512 = vor.u32 1.1754944e-38, %v3511
  %v3513 = vsel %vm3510, %v3512, %v3508
  %v3514 = vmul.f32 1.0, %v3513
  %v3515 = vtanh.pop %v3495
  %v3516 = vmul.f32 %v3514, %v3440
  %3518 = vrot.lane.b32.xlu0 %v3515, 64
  %v3519 = vpop.permute.xlu0 %3518
  %v3521 = vmul.f32 %v3514, %v3519
  %3523 = vrot.lane.b32.xlu0 %v3521, 32
  %v3524 = vpop.permute.xlu0 %3523
  %v3526 = vadd.f32 %v3516, %v3524
  %v3527 = vtanh.pop %v3526
  %3529 = vrot.lane.b32.xlu0 %v3527, 64
  %v3530 = vpop.permute.xlu0 %3529
  %v3532 = vmul.f32 %v3514, %v3530
  %v3534 = vrot.slane %v3532, 1
  %v3535 = vrot.slane %v3532, 2
  %v3536 = vrot.slane %v3532, 3
  %v3537 = vperm.slane %v3532, 0
  %v3538 = vperm.slane %v3534, 0
  %v3539 = vperm.slane %v3535, 0
  %v3540 = vperm.slane %v3536, 0
  %3541 = vrot.lane.b32.xlu0 %v3537, 32
  %v3542 = vpop.permute.xlu0 %3541
  %3543 = vrot.lane.b32.xlu0 %v3538, 32
  %v3544 = vpop.permute.xlu0 %3543
  %3545 = vrot.lane.b32.xlu0 %v3539, 32
  %v3546 = vpop.permute.xlu0 %3545
  %3547 = vrot.lane.b32.xlu0 %v3540, 32
  %v3548 = vpop.permute.xlu0 %3547
  %3553 = vst.msk [vmem:[#allocation2 + $0x21] sm:$0x1] %vm714, %v3542
  %3554 = vst.msk [vmem:[#allocation2 + $0x59] sm:$0x1] %vm714, %v3544
  %3555 = vst.msk [vmem:[#allocation2 + $0x91] sm:$0x1] %vm714, %v3546
  %3556 = vst.msk [vmem:[#allocation2 + $0xc9] sm:$0x1] %vm714, %v3548
  %3557 = vrot.lane.b32.xlu0 %v3532, 32
  %v3558 = vpop.permute.xlu0 %3557
  %v3559 = vsel %vm63, %v3558, 0
  %3561 = vmatpush.msra.mxu0 0.0
  %3562 = vmatpush.msra.mxu0 0.0
  %3563 = vmatpush.msra.mxu0 0.0
  %3564 = vmatpush.msra.mxu0 0.0
  %3565 = vmatpush.msra.mxu0 0.0
  %3566 = vmatpush.msra.mxu0 0.0
  %3567 = vmatpush.msra.mxu0 0.0
  %3568 = vmatpush.msra.mxu0 0.0
  %3569 = vmatpush.msra.mxu0 0.0
  %3570 = vmatpush.msra.mxu0 0.0
  %3571 = vmatpush.msra.mxu0 0.0
  %3572 = vmatpush.msra.mxu0 0.0
  %3573 = vmatpush.msra.mxu0 %v48
  %3574 = vmatpush.msra.mxu0 %v47
  %3575 = vmatpush.msra.mxu0 %v46
  %3576 = vmatpush.msra.mxu0 %v45
  %3577 = vmatmul.f32.gmra.mxu0 %v3559
  %v3578 = vpop.f32.mrf.mxu0
  %v3579 = vadd.f32 0.0, %v3578
  %3580 = vdwg.mxu0
  %v3581 = vadd.f32 %v634, %v3579
  %v3582 = vxor.u32 %v3581, 2147483648
  %v3583 = vmul.f32 %v3582, 1.442695
  %v3584 = vpow.pop %v3583
  %v3585 = vadd.f32 %v3584, 1.0
  %v3586 = vrcp.pop %v3585
  %v3587 = vmul.f32 %v3585, %v3586
  %v3588 = vsub.f32 1.0, %v3587
  %v3589 = vmul.f32 %v3586, %v3588
  %v3590 = vadd.f32 %v3586, %v3589
  %vm3591 = vweird.f32 %v3585
  %vm3592 = vweird.f32 %v3586
  %vm3593 = vmor %vm3591, %vm3592
  %v3594 = vsel %vm3593, %v3586, %v3590
  %v3595 = vand.u32 2147483647, %v3585
  %vm3596 = vcmp.eq.f32.partialorder %v3595, 8.507059e+37
  %v3597 = vand.u32 %v3585, 2147483648
  %v3598 = vor.u32 1.1754944e-38, %v3597
  %v3599 = vsel %vm3596, %v3598, %v3594
  %v3600 = vmul.f32 1.0, %v3599
  %v3601 = vtanh.pop %v3581
  %v3602 = vmul.f32 %v3600, %v3526
  %3604 = vrot.lane.b32.xlu0 %v3601, 64
  %v3605 = vpop.permute.xlu0 %3604
  %v3607 = vmul.f32 %v3600, %v3605
  %3609 = vrot.lane.b32.xlu0 %v3607, 32
  %v3610 = vpop.permute.xlu0 %3609
  %v3612 = vadd.f32 %v3602, %v3610
  %v3613 = vtanh.pop %v3612
  %3615 = vrot.lane.b32.xlu0 %v3613, 64
  %v3616 = vpop.permute.xlu0 %3615
  %v3618 = vmul.f32 %v3600, %v3616
  %v3620 = vrot.slane %v3618, 1
  %v3621 = vrot.slane %v3618, 2
  %v3622 = vrot.slane %v3618, 3
  %v3623 = vperm.slane %v3618, 0
  %v3624 = vperm.slane %v3620, 0
  %v3625 = vperm.slane %v3621, 0
  %v3626 = vperm.slane %v3622, 0
  %3627 = vrot.lane.b32.xlu0 %v3623, 32
  %v3628 = vpop.permute.xlu0 %3627
  %3629 = vrot.lane.b32.xlu0 %v3624, 32
  %v3630 = vpop.permute.xlu0 %3629
  %3631 = vrot.lane.b32.xlu0 %v3625, 32
  %v3632 = vpop.permute.xlu0 %3631
  %3633 = vrot.lane.b32.xlu0 %v3626, 32
  %v3634 = vpop.permute.xlu0 %3633
  %3639 = vst.msk [vmem:[#allocation2 + $0x22] sm:$0x1] %vm714, %v3628
  %3640 = vst.msk [vmem:[#allocation2 + $0x5a] sm:$0x1] %vm714, %v3630
  %3641 = vst.msk [vmem:[#allocation2 + $0x92] sm:$0x1] %vm714, %v3632
  %3642 = vst.msk [vmem:[#allocation2 + $0xca] sm:$0x1] %vm714, %v3634
  %3643 = vrot.lane.b32.xlu0 %v3618, 32
  %v3644 = vpop.permute.xlu0 %3643
  %v3645 = vsel %vm63, %v3644, 0
  %3647 = vmatpush.msra.mxu0 0.0
  %3648 = vmatpush.msra.mxu0 0.0
  %3649 = vmatpush.msra.mxu0 0.0
  %3650 = vmatpush.msra.mxu0 0.0
  %3651 = vmatpush.msra.mxu0 0.0
  %3652 = vmatpush.msra.mxu0 0.0
  %3653 = vmatpush.msra.mxu0 0.0
  %3654 = vmatpush.msra.mxu0 0.0
  %3655 = vmatpush.msra.mxu0 0.0
  %3656 = vmatpush.msra.mxu0 0.0
  %3657 = vmatpush.msra.mxu0 0.0
  %3658 = vmatpush.msra.mxu0 0.0
  %3659 = vmatpush.msra.mxu0 %v48
  %3660 = vmatpush.msra.mxu0 %v47
  %3661 = vmatpush.msra.mxu0 %v46
  %3662 = vmatpush.msra.mxu0 %v45
  %3663 = vmatmul.f32.gmra.mxu0 %v3645
  %v3664 = vpop.f32.mrf.mxu0
  %v3665 = vadd.f32 0.0, %v3664
  %3666 = vdwg.mxu0
  %v3667 = vadd.f32 %v634, %v3665
  %v3668 = vxor.u32 %v3667, 2147483648
  %v3669 = vmul.f32 %v3668, 1.442695
  %v3670 = vpow.pop %v3669
  %v3671 = vadd.f32 %v3670, 1.0
  %v3672 = vrcp.pop %v3671
  %v3673 = vmul.f32 %v3671, %v3672
  %v3674 = vsub.f32 1.0, %v3673
  %v3675 = vmul.f32 %v3672, %v3674
  %v3676 = vadd.f32 %v3672, %v3675
  %vm3677 = vweird.f32 %v3671
  %vm3678 = vweird.f32 %v3672
  %vm3679 = vmor %vm3677, %vm3678
  %v3680 = vsel %vm3679, %v3672, %v3676
  %v3681 = vand.u32 2147483647, %v3671
  %vm3682 = vcmp.eq.f32.partialorder %v3681, 8.507059e+37
  %v3683 = vand.u32 %v3671, 2147483648
  %v3684 = vor.u32 1.1754944e-38, %v3683
  %v3685 = vsel %vm3682, %v3684, %v3680
  %v3686 = vmul.f32 1.0, %v3685
  %v3687 = vtanh.pop %v3667
  %v3688 = vmul.f32 %v3686, %v3612
  %3690 = vrot.lane.b32.xlu0 %v3687, 64
  %v3691 = vpop.permute.xlu0 %3690
  %v3693 = vmul.f32 %v3686, %v3691
  %3695 = vrot.lane.b32.xlu0 %v3693, 32
  %v3696 = vpop.permute.xlu0 %3695
  %v3698 = vadd.f32 %v3688, %v3696
  %v3699 = vtanh.pop %v3698
  %3701 = vrot.lane.b32.xlu0 %v3699, 64
  %v3702 = vpop.permute.xlu0 %3701
  %v3704 = vmul.f32 %v3686, %v3702
  %v3706 = vrot.slane %v3704, 1
  %v3707 = vrot.slane %v3704, 2
  %v3708 = vrot.slane %v3704, 3
  %v3709 = vperm.slane %v3704, 0
  %v3710 = vperm.slane %v3706, 0
  %v3711 = vperm.slane %v3707, 0
  %v3712 = vperm.slane %v3708, 0
  %3713 = vrot.lane.b32.xlu0 %v3709, 32
  %v3714 = vpop.permute.xlu0 %3713
  %3715 = vrot.lane.b32.xlu0 %v3710, 32
  %v3716 = vpop.permute.xlu0 %3715
  %3717 = vrot.lane.b32.xlu0 %v3711, 32
  %v3718 = vpop.permute.xlu0 %3717
  %3719 = vrot.lane.b32.xlu0 %v3712, 32
  %v3720 = vpop.permute.xlu0 %3719
  %3725 = vst.msk [vmem:[#allocation2 + $0x23] sm:$0x1] %vm714, %v3714
  %3726 = vst.msk [vmem:[#allocation2 + $0x5b] sm:$0x1] %vm714, %v3716
  %3727 = vst.msk [vmem:[#allocation2 + $0x93] sm:$0x1] %vm714, %v3718
  %3728 = vst.msk [vmem:[#allocation2 + $0xcb] sm:$0x1] %vm714, %v3720
  %3729 = vrot.lane.b32.xlu0 %v3704, 32
  %v3730 = vpop.permute.xlu0 %3729
  %v3731 = vsel %vm63, %v3730, 0
  %3733 = vmatpush.msra.mxu0 0.0
  %3734 = vmatpush.msra.mxu0 0.0
  %3735 = vmatpush.msra.mxu0 0.0
  %3736 = vmatpush.msra.mxu0 0.0
  %3737 = vmatpush.msra.mxu0 0.0
  %3738 = vmatpush.msra.mxu0 0.0
  %3739 = vmatpush.msra.mxu0 0.0
  %3740 = vmatpush.msra.mxu0 0.0
  %3741 = vmatpush.msra.mxu0 0.0
  %3742 = vmatpush.msra.mxu0 0.0
  %3743 = vmatpush.msra.mxu0 0.0
  %3744 = vmatpush.msra.mxu0 0.0
  %3745 = vmatpush.msra.mxu0 %v48
  %3746 = vmatpush.msra.mxu0 %v47
  %3747 = vmatpush.msra.mxu0 %v46
  %3748 = vmatpush.msra.mxu0 %v45
  %3749 = vmatmul.f32.gmra.mxu0 %v3731
  %v3750 = vpop.f32.mrf.mxu0
  %v3751 = vadd.f32 0.0, %v3750
  %3752 = vdwg.mxu0
  %v3753 = vadd.f32 %v634, %v3751
  %v3754 = vxor.u32 %v3753, 2147483648
  %v3755 = vmul.f32 %v3754, 1.442695
  %v3756 = vpow.pop %v3755
  %v3757 = vadd.f32 %v3756, 1.0
  %v3758 = vrcp.pop %v3757
  %v3759 = vmul.f32 %v3757, %v3758
  %v3760 = vsub.f32 1.0, %v3759
  %v3761 = vmul.f32 %v3758, %v3760
  %v3762 = vadd.f32 %v3758, %v3761
  %vm3763 = vweird.f32 %v3757
  %vm3764 = vweird.f32 %v3758
  %vm3765 = vmor %vm3763, %vm3764
  %v3766 = vsel %vm3765, %v3758, %v3762
  %v3767 = vand.u32 2147483647, %v3757
  %vm3768 = vcmp.eq.f32.partialorder %v3767, 8.507059e+37
  %v3769 = vand.u32 %v3757, 2147483648
  %v3770 = vor.u32 1.1754944e-38, %v3769
  %v3771 = vsel %vm3768, %v3770, %v3766
  %v3772 = vmul.f32 1.0, %v3771
  %v3773 = vtanh.pop %v3753
  %v3774 = vmul.f32 %v3772, %v3698
  %3776 = vrot.lane.b32.xlu0 %v3773, 64
  %v3777 = vpop.permute.xlu0 %3776
  %v3779 = vmul.f32 %v3772, %v3777
  %3781 = vrot.lane.b32.xlu0 %v3779, 32
  %v3782 = vpop.permute.xlu0 %3781
  %v3784 = vadd.f32 %v3774, %v3782
  %v3785 = vtanh.pop %v3784
  %3787 = vrot.lane.b32.xlu0 %v3785, 64
  %v3788 = vpop.permute.xlu0 %3787
  %v3790 = vmul.f32 %v3772, %v3788
  %v3792 = vrot.slane %v3790, 1
  %v3793 = vrot.slane %v3790, 2
  %v3794 = vrot.slane %v3790, 3
  %v3795 = vperm.slane %v3790, 0
  %v3796 = vperm.slane %v3792, 0
  %v3797 = vperm.slane %v3793, 0
  %v3798 = vperm.slane %v3794, 0
  %3799 = vrot.lane.b32.xlu0 %v3795, 32
  %v3800 = vpop.permute.xlu0 %3799
  %3801 = vrot.lane.b32.xlu0 %v3796, 32
  %v3802 = vpop.permute.xlu0 %3801
  %3803 = vrot.lane.b32.xlu0 %v3797, 32
  %v3804 = vpop.permute.xlu0 %3803
  %3805 = vrot.lane.b32.xlu0 %v3798, 32
  %v3806 = vpop.permute.xlu0 %3805
  %3811 = vst.msk [vmem:[#allocation2 + $0x24] sm:$0x1] %vm714, %v3800
  %3812 = vst.msk [vmem:[#allocation2 + $0x5c] sm:$0x1] %vm714, %v3802
  %3813 = vst.msk [vmem:[#allocation2 + $0x94] sm:$0x1] %vm714, %v3804
  %3814 = vst.msk [vmem:[#allocation2 + $0xcc] sm:$0x1] %vm714, %v3806
  %3815 = vrot.lane.b32.xlu0 %v3790, 32
  %v3816 = vpop.permute.xlu0 %3815
  %v3817 = vsel %vm63, %v3816, 0
  %3819 = vmatpush.msra.mxu0 0.0
  %3820 = vmatpush.msra.mxu0 0.0
  %3821 = vmatpush.msra.mxu0 0.0
  %3822 = vmatpush.msra.mxu0 0.0
  %3823 = vmatpush.msra.mxu0 0.0
  %3824 = vmatpush.msra.mxu0 0.0
  %3825 = vmatpush.msra.mxu0 0.0
  %3826 = vmatpush.msra.mxu0 0.0
  %3827 = vmatpush.msra.mxu0 0.0
  %3828 = vmatpush.msra.mxu0 0.0
  %3829 = vmatpush.msra.mxu0 0.0
  %3830 = vmatpush.msra.mxu0 0.0
  %3831 = vmatpush.msra.mxu0 %v48
  %3832 = vmatpush.msra.mxu0 %v47
  %3833 = vmatpush.msra.mxu0 %v46
  %3834 = vmatpush.msra.mxu0 %v45
  %3835 = vmatmul.f32.gmra.mxu0 %v3817
  %v3836 = vpop.f32.mrf.mxu0
  %v3837 = vadd.f32 0.0, %v3836
  %3838 = vdwg.mxu0
  %v3839 = vadd.f32 %v634, %v3837
  %v3840 = vxor.u32 %v3839, 2147483648
  %v3841 = vmul.f32 %v3840, 1.442695
  %v3842 = vpow.pop %v3841
  %v3843 = vadd.f32 %v3842, 1.0
  %v3844 = vrcp.pop %v3843
  %v3845 = vmul.f32 %v3843, %v3844
  %v3846 = vsub.f32 1.0, %v3845
  %v3847 = vmul.f32 %v3844, %v3846
  %v3848 = vadd.f32 %v3844, %v3847
  %vm3849 = vweird.f32 %v3843
  %vm3850 = vweird.f32 %v3844
  %vm3851 = vmor %vm3849, %vm3850
  %v3852 = vsel %vm3851, %v3844, %v3848
  %v3853 = vand.u32 2147483647, %v3843
  %vm3854 = vcmp.eq.f32.partialorder %v3853, 8.507059e+37
  %v3855 = vand.u32 %v3843, 2147483648
  %v3856 = vor.u32 1.1754944e-38, %v3855
  %v3857 = vsel %vm3854, %v3856, %v3852
  %v3858 = vmul.f32 1.0, %v3857
  %v3859 = vtanh.pop %v3839
  %v3860 = vmul.f32 %v3858, %v3784
  %3862 = vrot.lane.b32.xlu0 %v3859, 64
  %v3863 = vpop.permute.xlu0 %3862
  %v3865 = vmul.f32 %v3858, %v3863
  %3867 = vrot.lane.b32.xlu0 %v3865, 32
  %v3868 = vpop.permute.xlu0 %3867
  %v3870 = vadd.f32 %v3860, %v3868
  %v3871 = vtanh.pop %v3870
  %3873 = vrot.lane.b32.xlu0 %v3871, 64
  %v3874 = vpop.permute.xlu0 %3873
  %v3876 = vmul.f32 %v3858, %v3874
  %v3878 = vrot.slane %v3876, 1
  %v3879 = vrot.slane %v3876, 2
  %v3880 = vrot.slane %v3876, 3
  %v3881 = vperm.slane %v3876, 0
  %v3882 = vperm.slane %v3878, 0
  %v3883 = vperm.slane %v3879, 0
  %v3884 = vperm.slane %v3880, 0
  %3885 = vrot.lane.b32.xlu0 %v3881, 32
  %v3886 = vpop.permute.xlu0 %3885
  %3887 = vrot.lane.b32.xlu0 %v3882, 32
  %v3888 = vpop.permute.xlu0 %3887
  %3889 = vrot.lane.b32.xlu0 %v3883, 32
  %v3890 = vpop.permute.xlu0 %3889
  %3891 = vrot.lane.b32.xlu0 %v3884, 32
  %v3892 = vpop.permute.xlu0 %3891
  %3897 = vst.msk [vmem:[#allocation2 + $0x25] sm:$0x1] %vm714, %v3886
  %3898 = vst.msk [vmem:[#allocation2 + $0x5d] sm:$0x1] %vm714, %v3888
  %3899 = vst.msk [vmem:[#allocation2 + $0x95] sm:$0x1] %vm714, %v3890
  %3900 = vst.msk [vmem:[#allocation2 + $0xcd] sm:$0x1] %vm714, %v3892
  %3901 = vrot.lane.b32.xlu0 %v3876, 32
  %v3902 = vpop.permute.xlu0 %3901
  %v3903 = vsel %vm63, %v3902, 0
  %3905 = vmatpush.msra.mxu0 0.0
  %3906 = vmatpush.msra.mxu0 0.0
  %3907 = vmatpush.msra.mxu0 0.0
  %3908 = vmatpush.msra.mxu0 0.0
  %3909 = vmatpush.msra.mxu0 0.0
  %3910 = vmatpush.msra.mxu0 0.0
  %3911 = vmatpush.msra.mxu0 0.0
  %3912 = vmatpush.msra.mxu0 0.0
  %3913 = vmatpush.msra.mxu0 0.0
  %3914 = vmatpush.msra.mxu0 0.0
  %3915 = vmatpush.msra.mxu0 0.0
  %3916 = vmatpush.msra.mxu0 0.0
  %3917 = vmatpush.msra.mxu0 %v48
  %3918 = vmatpush.msra.mxu0 %v47
  %3919 = vmatpush.msra.mxu0 %v46
  %3920 = vmatpush.msra.mxu0 %v45
  %3921 = vmatmul.f32.gmra.mxu0 %v3903
  %v3922 = vpop.f32.mrf.mxu0
  %v3923 = vadd.f32 0.0, %v3922
  %3924 = vdwg.mxu0
  %v3925 = vadd.f32 %v634, %v3923
  %v3926 = vxor.u32 %v3925, 2147483648
  %v3927 = vmul.f32 %v3926, 1.442695
  %v3928 = vpow.pop %v3927
  %v3929 = vadd.f32 %v3928, 1.0
  %v3930 = vrcp.pop %v3929
  %v3931 = vmul.f32 %v3929, %v3930
  %v3932 = vsub.f32 1.0, %v3931
  %v3933 = vmul.f32 %v3930, %v3932
  %v3934 = vadd.f32 %v3930, %v3933
  %vm3935 = vweird.f32 %v3929
  %vm3936 = vweird.f32 %v3930
  %vm3937 = vmor %vm3935, %vm3936
  %v3938 = vsel %vm3937, %v3930, %v3934
  %v3939 = vand.u32 2147483647, %v3929
  %vm3940 = vcmp.eq.f32.partialorder %v3939, 8.507059e+37
  %v3941 = vand.u32 %v3929, 2147483648
  %v3942 = vor.u32 1.1754944e-38, %v3941
  %v3943 = vsel %vm3940, %v3942, %v3938
  %v3944 = vmul.f32 1.0, %v3943
  %v3945 = vtanh.pop %v3925
  %v3946 = vmul.f32 %v3944, %v3870
  %3948 = vrot.lane.b32.xlu0 %v3945, 64
  %v3949 = vpop.permute.xlu0 %3948
  %v3951 = vmul.f32 %v3944, %v3949
  %3953 = vrot.lane.b32.xlu0 %v3951, 32
  %v3954 = vpop.permute.xlu0 %3953
  %v3956 = vadd.f32 %v3946, %v3954
  %v3957 = vtanh.pop %v3956
  %3959 = vrot.lane.b32.xlu0 %v3957, 64
  %v3960 = vpop.permute.xlu0 %3959
  %v3962 = vmul.f32 %v3944, %v3960
  %v3964 = vrot.slane %v3962, 1
  %v3965 = vrot.slane %v3962, 2
  %v3966 = vrot.slane %v3962, 3
  %v3967 = vperm.slane %v3962, 0
  %v3968 = vperm.slane %v3964, 0
  %v3969 = vperm.slane %v3965, 0
  %v3970 = vperm.slane %v3966, 0
  %3971 = vrot.lane.b32.xlu0 %v3967, 32
  %v3972 = vpop.permute.xlu0 %3971
  %3973 = vrot.lane.b32.xlu0 %v3968, 32
  %v3974 = vpop.permute.xlu0 %3973
  %3975 = vrot.lane.b32.xlu0 %v3969, 32
  %v3976 = vpop.permute.xlu0 %3975
  %3977 = vrot.lane.b32.xlu0 %v3970, 32
  %v3978 = vpop.permute.xlu0 %3977
  %3983 = vst.msk [vmem:[#allocation2 + $0x26] sm:$0x1] %vm714, %v3972
  %3984 = vst.msk [vmem:[#allocation2 + $0x5e] sm:$0x1] %vm714, %v3974
  %3985 = vst.msk [vmem:[#allocation2 + $0x96] sm:$0x1] %vm714, %v3976
  %3986 = vst.msk [vmem:[#allocation2 + $0xce] sm:$0x1] %vm714, %v3978
  %3987 = vrot.lane.b32.xlu0 %v3962, 32
  %v3988 = vpop.permute.xlu0 %3987
  %v3989 = vsel %vm63, %v3988, 0
  %3991 = vmatpush.msra.mxu0 0.0
  %3992 = vmatpush.msra.mxu0 0.0
  %3993 = vmatpush.msra.mxu0 0.0
  %3994 = vmatpush.msra.mxu0 0.0
  %3995 = vmatpush.msra.mxu0 0.0
  %3996 = vmatpush.msra.mxu0 0.0
  %3997 = vmatpush.msra.mxu0 0.0
  %3998 = vmatpush.msra.mxu0 0.0
  %3999 = vmatpush.msra.mxu0 0.0
  %4000 = vmatpush.msra.mxu0 0.0
  %4001 = vmatpush.msra.mxu0 0.0
  %4002 = vmatpush.msra.mxu0 0.0
  %4003 = vmatpush.msra.mxu0 %v48
  %4004 = vmatpush.msra.mxu0 %v47
  %4005 = vmatpush.msra.mxu0 %v46
  %4006 = vmatpush.msra.mxu0 %v45
  %4007 = vmatmul.f32.gmra.mxu0 %v3989
  %v4008 = vpop.f32.mrf.mxu0
  %v4009 = vadd.f32 0.0, %v4008
  %4010 = vdwg.mxu0
  %v4011 = vadd.f32 %v634, %v4009
  %v4012 = vxor.u32 %v4011, 2147483648
  %v4013 = vmul.f32 %v4012, 1.442695
  %v4014 = vpow.pop %v4013
  %v4015 = vadd.f32 %v4014, 1.0
  %v4016 = vrcp.pop %v4015
  %v4017 = vmul.f32 %v4015, %v4016
  %v4018 = vsub.f32 1.0, %v4017
  %v4019 = vmul.f32 %v4016, %v4018
  %v4020 = vadd.f32 %v4016, %v4019
  %vm4021 = vweird.f32 %v4015
  %vm4022 = vweird.f32 %v4016
  %vm4023 = vmor %vm4021, %vm4022
  %v4024 = vsel %vm4023, %v4016, %v4020
  %v4025 = vand.u32 2147483647, %v4015
  %vm4026 = vcmp.eq.f32.partialorder %v4025, 8.507059e+37
  %v4027 = vand.u32 %v4015, 2147483648
  %v4028 = vor.u32 1.1754944e-38, %v4027
  %v4029 = vsel %vm4026, %v4028, %v4024
  %v4030 = vmul.f32 1.0, %v4029
  %v4031 = vtanh.pop %v4011
  %v4032 = vmul.f32 %v4030, %v3956
  %4034 = vrot.lane.b32.xlu0 %v4031, 64
  %v4035 = vpop.permute.xlu0 %4034
  %v4037 = vmul.f32 %v4030, %v4035
  %4039 = vrot.lane.b32.xlu0 %v4037, 32
  %v4040 = vpop.permute.xlu0 %4039
  %v4042 = vadd.f32 %v4032, %v4040
  %v4043 = vtanh.pop %v4042
  %4045 = vrot.lane.b32.xlu0 %v4043, 64
  %v4046 = vpop.permute.xlu0 %4045
  %v4048 = vmul.f32 %v4030, %v4046
  %v4050 = vrot.slane %v4048, 1
  %v4051 = vrot.slane %v4048, 2
  %v4052 = vrot.slane %v4048, 3
  %v4053 = vperm.slane %v4048, 0
  %v4054 = vperm.slane %v4050, 0
  %v4055 = vperm.slane %v4051, 0
  %v4056 = vperm.slane %v4052, 0
  %4057 = vrot.lane.b32.xlu0 %v4053, 32
  %v4058 = vpop.permute.xlu0 %4057
  %4059 = vrot.lane.b32.xlu0 %v4054, 32
  %v4060 = vpop.permute.xlu0 %4059
  %4061 = vrot.lane.b32.xlu0 %v4055, 32
  %v4062 = vpop.permute.xlu0 %4061
  %4063 = vrot.lane.b32.xlu0 %v4056, 32
  %v4064 = vpop.permute.xlu0 %4063
  %4069 = vst.msk [vmem:[#allocation2 + $0x27] sm:$0x1] %vm714, %v4058
  %4070 = vst.msk [vmem:[#allocation2 + $0x5f] sm:$0x1] %vm714, %v4060
  %4071 = vst.msk [vmem:[#allocation2 + $0x97] sm:$0x1] %vm714, %v4062
  %4072 = vst.msk [vmem:[#allocation2 + $0xcf] sm:$0x1] %vm714, %v4064
  %4073 = vrot.lane.b32.xlu0 %v4048, 32
  %v4074 = vpop.permute.xlu0 %4073
  %v4075 = vsel %vm63, %v4074, 0
  %4077 = vmatpush.msra.mxu0 0.0
  %4078 = vmatpush.msra.mxu0 0.0
  %4079 = vmatpush.msra.mxu0 0.0
  %4080 = vmatpush.msra.mxu0 0.0
  %4081 = vmatpush.msra.mxu0 0.0
  %4082 = vmatpush.msra.mxu0 0.0
  %4083 = vmatpush.msra.mxu0 0.0
  %4084 = vmatpush.msra.mxu0 0.0
  %4085 = vmatpush.msra.mxu0 0.0
  %4086 = vmatpush.msra.mxu0 0.0
  %4087 = vmatpush.msra.mxu0 0.0
  %4088 = vmatpush.msra.mxu0 0.0
  %4089 = vmatpush.msra.mxu0 %v48
  %4090 = vmatpush.msra.mxu0 %v47
  %4091 = vmatpush.msra.mxu0 %v46
  %4092 = vmatpush.msra.mxu0 %v45
  %4093 = vmatmul.f32.gmra.mxu0 %v4075
  %v4094 = vpop.f32.mrf.mxu0
  %v4095 = vadd.f32 0.0, %v4094
  %4096 = vdwg.mxu0
  %v4097 = vadd.f32 %v634, %v4095
  %v4098 = vxor.u32 %v4097, 2147483648
  %v4099 = vmul.f32 %v4098, 1.442695
  %v4100 = vpow.pop %v4099
  %v4101 = vadd.f32 %v4100, 1.0
  %v4102 = vrcp.pop %v4101
  %v4103 = vmul.f32 %v4101, %v4102
  %v4104 = vsub.f32 1.0, %v4103
  %v4105 = vmul.f32 %v4102, %v4104
  %v4106 = vadd.f32 %v4102, %v4105
  %vm4107 = vweird.f32 %v4101
  %vm4108 = vweird.f32 %v4102
  %vm4109 = vmor %vm4107, %vm4108
  %v4110 = vsel %vm4109, %v4102, %v4106
  %v4111 = vand.u32 2147483647, %v4101
  %vm4112 = vcmp.eq.f32.partialorder %v4111, 8.507059e+37
  %v4113 = vand.u32 %v4101, 2147483648
  %v4114 = vor.u32 1.1754944e-38, %v4113
  %v4115 = vsel %vm4112, %v4114, %v4110
  %v4116 = vmul.f32 1.0, %v4115
  %v4117 = vtanh.pop %v4097
  %v4118 = vmul.f32 %v4116, %v4042
  %4120 = vrot.lane.b32.xlu0 %v4117, 64
  %v4121 = vpop.permute.xlu0 %4120
  %v4123 = vmul.f32 %v4116, %v4121
  %4125 = vrot.lane.b32.xlu0 %v4123, 32
  %v4126 = vpop.permute.xlu0 %4125
  %v4128 = vadd.f32 %v4118, %v4126
  %v4129 = vtanh.pop %v4128
  %4131 = vrot.lane.b32.xlu0 %v4129, 64
  %v4132 = vpop.permute.xlu0 %4131
  %v4134 = vmul.f32 %v4116, %v4132
  %v4136 = vrot.slane %v4134, 1
  %v4137 = vrot.slane %v4134, 2
  %v4138 = vrot.slane %v4134, 3
  %v4139 = vperm.slane %v4134, 0
  %v4140 = vperm.slane %v4136, 0
  %v4141 = vperm.slane %v4137, 0
  %v4142 = vperm.slane %v4138, 0
  %4143 = vrot.lane.b32.xlu0 %v4139, 32
  %v4144 = vpop.permute.xlu0 %4143
  %4145 = vrot.lane.b32.xlu0 %v4140, 32
  %v4146 = vpop.permute.xlu0 %4145
  %4147 = vrot.lane.b32.xlu0 %v4141, 32
  %v4148 = vpop.permute.xlu0 %4147
  %4149 = vrot.lane.b32.xlu0 %v4142, 32
  %v4150 = vpop.permute.xlu0 %4149
  %4155 = vst.msk [vmem:[#allocation2 + $0x28] sm:$0x1] %vm714, %v4144
  %4156 = vst.msk [vmem:[#allocation2 + $0x60] sm:$0x1] %vm714, %v4146
  %4157 = vst.msk [vmem:[#allocation2 + $0x98] sm:$0x1] %vm714, %v4148
  %4158 = vst.msk [vmem:[#allocation2 + $0xd0] sm:$0x1] %vm714, %v4150
  %4159 = vrot.lane.b32.xlu0 %v4134, 32
  %v4160 = vpop.permute.xlu0 %4159
  %v4161 = vsel %vm63, %v4160, 0
  %4163 = vmatpush.msra.mxu0 0.0
  %4164 = vmatpush.msra.mxu0 0.0
  %4165 = vmatpush.msra.mxu0 0.0
  %4166 = vmatpush.msra.mxu0 0.0
  %4167 = vmatpush.msra.mxu0 0.0
  %4168 = vmatpush.msra.mxu0 0.0
  %4169 = vmatpush.msra.mxu0 0.0
  %4170 = vmatpush.msra.mxu0 0.0
  %4171 = vmatpush.msra.mxu0 0.0
  %4172 = vmatpush.msra.mxu0 0.0
  %4173 = vmatpush.msra.mxu0 0.0
  %4174 = vmatpush.msra.mxu0 0.0
  %4175 = vmatpush.msra.mxu0 %v48
  %4176 = vmatpush.msra.mxu0 %v47
  %4177 = vmatpush.msra.mxu0 %v46
  %4178 = vmatpush.msra.mxu0 %v45
  %4179 = vmatmul.f32.gmra.mxu0 %v4161
  %v4180 = vpop.f32.mrf.mxu0
  %v4181 = vadd.f32 0.0, %v4180
  %4182 = vdwg.mxu0
  %v4183 = vadd.f32 %v634, %v4181
  %v4184 = vxor.u32 %v4183, 2147483648
  %v4185 = vmul.f32 %v4184, 1.442695
  %v4186 = vpow.pop %v4185
  %v4187 = vadd.f32 %v4186, 1.0
  %v4188 = vrcp.pop %v4187
  %v4189 = vmul.f32 %v4187, %v4188
  %v4190 = vsub.f32 1.0, %v4189
  %v4191 = vmul.f32 %v4188, %v4190
  %v4192 = vadd.f32 %v4188, %v4191
  %vm4193 = vweird.f32 %v4187
  %vm4194 = vweird.f32 %v4188
  %vm4195 = vmor %vm4193, %vm4194
  %v4196 = vsel %vm4195, %v4188, %v4192
  %v4197 = vand.u32 2147483647, %v4187
  %vm4198 = vcmp.eq.f32.partialorder %v4197, 8.507059e+37
  %v4199 = vand.u32 %v4187, 2147483648
  %v4200 = vor.u32 1.1754944e-38, %v4199
  %v4201 = vsel %vm4198, %v4200, %v4196
  %v4202 = vmul.f32 1.0, %v4201
  %v4203 = vtanh.pop %v4183
  %v4204 = vmul.f32 %v4202, %v4128
  %4206 = vrot.lane.b32.xlu0 %v4203, 64
  %v4207 = vpop.permute.xlu0 %4206
  %v4209 = vmul.f32 %v4202, %v4207
  %4211 = vrot.lane.b32.xlu0 %v4209, 32
  %v4212 = vpop.permute.xlu0 %4211
  %v4214 = vadd.f32 %v4204, %v4212
  %v4215 = vtanh.pop %v4214
  %4217 = vrot.lane.b32.xlu0 %v4215, 64
  %v4218 = vpop.permute.xlu0 %4217
  %v4220 = vmul.f32 %v4202, %v4218
  %v4222 = vrot.slane %v4220, 1
  %v4223 = vrot.slane %v4220, 2
  %v4224 = vrot.slane %v4220, 3
  %v4225 = vperm.slane %v4220, 0
  %v4226 = vperm.slane %v4222, 0
  %v4227 = vperm.slane %v4223, 0
  %v4228 = vperm.slane %v4224, 0
  %4229 = vrot.lane.b32.xlu0 %v4225, 32
  %v4230 = vpop.permute.xlu0 %4229
  %4231 = vrot.lane.b32.xlu0 %v4226, 32
  %v4232 = vpop.permute.xlu0 %4231
  %4233 = vrot.lane.b32.xlu0 %v4227, 32
  %v4234 = vpop.permute.xlu0 %4233
  %4235 = vrot.lane.b32.xlu0 %v4228, 32
  %v4236 = vpop.permute.xlu0 %4235
  %4241 = vst.msk [vmem:[#allocation2 + $0x29] sm:$0x1] %vm714, %v4230
  %4242 = vst.msk [vmem:[#allocation2 + $0x61] sm:$0x1] %vm714, %v4232
  %4243 = vst.msk [vmem:[#allocation2 + $0x99] sm:$0x1] %vm714, %v4234
  %4244 = vst.msk [vmem:[#allocation2 + $0xd1] sm:$0x1] %vm714, %v4236
  %4245 = vrot.lane.b32.xlu0 %v4220, 32
  %v4246 = vpop.permute.xlu0 %4245
  %v4247 = vsel %vm63, %v4246, 0
  %4249 = vmatpush.msra.mxu0 0.0
  %4250 = vmatpush.msra.mxu0 0.0
  %4251 = vmatpush.msra.mxu0 0.0
  %4252 = vmatpush.msra.mxu0 0.0
  %4253 = vmatpush.msra.mxu0 0.0
  %4254 = vmatpush.msra.mxu0 0.0
  %4255 = vmatpush.msra.mxu0 0.0
  %4256 = vmatpush.msra.mxu0 0.0
  %4257 = vmatpush.msra.mxu0 0.0
  %4258 = vmatpush.msra.mxu0 0.0
  %4259 = vmatpush.msra.mxu0 0.0
  %4260 = vmatpush.msra.mxu0 0.0
  %4261 = vmatpush.msra.mxu0 %v48
  %4262 = vmatpush.msra.mxu0 %v47
  %4263 = vmatpush.msra.mxu0 %v46
  %4264 = vmatpush.msra.mxu0 %v45
  %4265 = vmatmul.f32.gmra.mxu0 %v4247
  %v4266 = vpop.f32.mrf.mxu0
  %v4267 = vadd.f32 0.0, %v4266
  %4268 = vdwg.mxu0
  %v4269 = vadd.f32 %v634, %v4267
  %v4270 = vxor.u32 %v4269, 2147483648
  %v4271 = vmul.f32 %v4270, 1.442695
  %v4272 = vpow.pop %v4271
  %v4273 = vadd.f32 %v4272, 1.0
  %v4274 = vrcp.pop %v4273
  %v4275 = vmul.f32 %v4273, %v4274
  %v4276 = vsub.f32 1.0, %v4275
  %v4277 = vmul.f32 %v4274, %v4276
  %v4278 = vadd.f32 %v4274, %v4277
  %vm4279 = vweird.f32 %v4273
  %vm4280 = vweird.f32 %v4274
  %vm4281 = vmor %vm4279, %vm4280
  %v4282 = vsel %vm4281, %v4274, %v4278
  %v4283 = vand.u32 2147483647, %v4273
  %vm4284 = vcmp.eq.f32.partialorder %v4283, 8.507059e+37
  %v4285 = vand.u32 %v4273, 2147483648
  %v4286 = vor.u32 1.1754944e-38, %v4285
  %v4287 = vsel %vm4284, %v4286, %v4282
  %v4288 = vmul.f32 1.0, %v4287
  %v4289 = vtanh.pop %v4269
  %v4290 = vmul.f32 %v4288, %v4214
  %4292 = vrot.lane.b32.xlu0 %v4289, 64
  %v4293 = vpop.permute.xlu0 %4292
  %v4295 = vmul.f32 %v4288, %v4293
  %4297 = vrot.lane.b32.xlu0 %v4295, 32
  %v4298 = vpop.permute.xlu0 %4297
  %v4300 = vadd.f32 %v4290, %v4298
  %v4301 = vtanh.pop %v4300
  %4303 = vrot.lane.b32.xlu0 %v4301, 64
  %v4304 = vpop.permute.xlu0 %4303
  %v4306 = vmul.f32 %v4288, %v4304
  %v4308 = vrot.slane %v4306, 1
  %v4309 = vrot.slane %v4306, 2
  %v4310 = vrot.slane %v4306, 3
  %v4311 = vperm.slane %v4306, 0
  %v4312 = vperm.slane %v4308, 0
  %v4313 = vperm.slane %v4309, 0
  %v4314 = vperm.slane %v4310, 0
  %4315 = vrot.lane.b32.xlu0 %v4311, 32
  %v4316 = vpop.permute.xlu0 %4315
  %4317 = vrot.lane.b32.xlu0 %v4312, 32
  %v4318 = vpop.permute.xlu0 %4317
  %4319 = vrot.lane.b32.xlu0 %v4313, 32
  %v4320 = vpop.permute.xlu0 %4319
  %4321 = vrot.lane.b32.xlu0 %v4314, 32
  %v4322 = vpop.permute.xlu0 %4321
  %4327 = vst.msk [vmem:[#allocation2 + $0x2a] sm:$0x1] %vm714, %v4316
  %4328 = vst.msk [vmem:[#allocation2 + $0x62] sm:$0x1] %vm714, %v4318
  %4329 = vst.msk [vmem:[#allocation2 + $0x9a] sm:$0x1] %vm714, %v4320
  %4330 = vst.msk [vmem:[#allocation2 + $0xd2] sm:$0x1] %vm714, %v4322
  %4331 = vrot.lane.b32.xlu0 %v4306, 32
  %v4332 = vpop.permute.xlu0 %4331
  %v4333 = vsel %vm63, %v4332, 0
  %4335 = vmatpush.msra.mxu0 0.0
  %4336 = vmatpush.msra.mxu0 0.0
  %4337 = vmatpush.msra.mxu0 0.0
  %4338 = vmatpush.msra.mxu0 0.0
  %4339 = vmatpush.msra.mxu0 0.0
  %4340 = vmatpush.msra.mxu0 0.0
  %4341 = vmatpush.msra.mxu0 0.0
  %4342 = vmatpush.msra.mxu0 0.0
  %4343 = vmatpush.msra.mxu0 0.0
  %4344 = vmatpush.msra.mxu0 0.0
  %4345 = vmatpush.msra.mxu0 0.0
  %4346 = vmatpush.msra.mxu0 0.0
  %4347 = vmatpush.msra.mxu0 %v48
  %4348 = vmatpush.msra.mxu0 %v47
  %4349 = vmatpush.msra.mxu0 %v46
  %4350 = vmatpush.msra.mxu0 %v45
  %4351 = vmatmul.f32.gmra.mxu0 %v4333
  %v4352 = vpop.f32.mrf.mxu0
  %v4353 = vadd.f32 0.0, %v4352
  %4354 = vdwg.mxu0
  %v4355 = vadd.f32 %v634, %v4353
  %v4356 = vxor.u32 %v4355, 2147483648
  %v4357 = vmul.f32 %v4356, 1.442695
  %v4358 = vpow.pop %v4357
  %v4359 = vadd.f32 %v4358, 1.0
  %v4360 = vrcp.pop %v4359
  %v4361 = vmul.f32 %v4359, %v4360
  %v4362 = vsub.f32 1.0, %v4361
  %v4363 = vmul.f32 %v4360, %v4362
  %v4364 = vadd.f32 %v4360, %v4363
  %vm4365 = vweird.f32 %v4359
  %vm4366 = vweird.f32 %v4360
  %vm4367 = vmor %vm4365, %vm4366
  %v4368 = vsel %vm4367, %v4360, %v4364
  %v4369 = vand.u32 2147483647, %v4359
  %vm4370 = vcmp.eq.f32.partialorder %v4369, 8.507059e+37
  %v4371 = vand.u32 %v4359, 2147483648
  %v4372 = vor.u32 1.1754944e-38, %v4371
  %v4373 = vsel %vm4370, %v4372, %v4368
  %v4374 = vmul.f32 1.0, %v4373
  %v4375 = vtanh.pop %v4355
  %v4376 = vmul.f32 %v4374, %v4300
  %4378 = vrot.lane.b32.xlu0 %v4375, 64
  %v4379 = vpop.permute.xlu0 %4378
  %v4381 = vmul.f32 %v4374, %v4379
  %4383 = vrot.lane.b32.xlu0 %v4381, 32
  %v4384 = vpop.permute.xlu0 %4383
  %v4386 = vadd.f32 %v4376, %v4384
  %v4387 = vtanh.pop %v4386
  %4389 = vrot.lane.b32.xlu0 %v4387, 64
  %v4390 = vpop.permute.xlu0 %4389
  %v4392 = vmul.f32 %v4374, %v4390
  %v4394 = vrot.slane %v4392, 1
  %v4395 = vrot.slane %v4392, 2
  %v4396 = vrot.slane %v4392, 3
  %v4397 = vperm.slane %v4392, 0
  %v4398 = vperm.slane %v4394, 0
  %v4399 = vperm.slane %v4395, 0
  %v4400 = vperm.slane %v4396, 0
  %4401 = vrot.lane.b32.xlu0 %v4397, 32
  %v4402 = vpop.permute.xlu0 %4401
  %4403 = vrot.lane.b32.xlu0 %v4398, 32
  %v4404 = vpop.permute.xlu0 %4403
  %4405 = vrot.lane.b32.xlu0 %v4399, 32
  %v4406 = vpop.permute.xlu0 %4405
  %4407 = vrot.lane.b32.xlu0 %v4400, 32
  %v4408 = vpop.permute.xlu0 %4407
  %4413 = vst.msk [vmem:[#allocation2 + $0x2b] sm:$0x1] %vm714, %v4402
  %4414 = vst.msk [vmem:[#allocation2 + $0x63] sm:$0x1] %vm714, %v4404
  %4415 = vst.msk [vmem:[#allocation2 + $0x9b] sm:$0x1] %vm714, %v4406
  %4416 = vst.msk [vmem:[#allocation2 + $0xd3] sm:$0x1] %vm714, %v4408
  %4417 = vrot.lane.b32.xlu0 %v4392, 32
  %v4418 = vpop.permute.xlu0 %4417
  %v4419 = vsel %vm63, %v4418, 0
  %4421 = vmatpush.msra.mxu0 0.0
  %4422 = vmatpush.msra.mxu0 0.0
  %4423 = vmatpush.msra.mxu0 0.0
  %4424 = vmatpush.msra.mxu0 0.0
  %4425 = vmatpush.msra.mxu0 0.0
  %4426 = vmatpush.msra.mxu0 0.0
  %4427 = vmatpush.msra.mxu0 0.0
  %4428 = vmatpush.msra.mxu0 0.0
  %4429 = vmatpush.msra.mxu0 0.0
  %4430 = vmatpush.msra.mxu0 0.0
  %4431 = vmatpush.msra.mxu0 0.0
  %4432 = vmatpush.msra.mxu0 0.0
  %4433 = vmatpush.msra.mxu0 %v48
  %4434 = vmatpush.msra.mxu0 %v47
  %4435 = vmatpush.msra.mxu0 %v46
  %4436 = vmatpush.msra.mxu0 %v45
  %4437 = vmatmul.f32.gmra.mxu0 %v4419
  %v4438 = vpop.f32.mrf.mxu0
  %v4439 = vadd.f32 0.0, %v4438
  %4440 = vdwg.mxu0
  %v4441 = vadd.f32 %v634, %v4439
  %v4442 = vxor.u32 %v4441, 2147483648
  %v4443 = vmul.f32 %v4442, 1.442695
  %v4444 = vpow.pop %v4443
  %v4445 = vadd.f32 %v4444, 1.0
  %v4446 = vrcp.pop %v4445
  %v4447 = vmul.f32 %v4445, %v4446
  %v4448 = vsub.f32 1.0, %v4447
  %v4449 = vmul.f32 %v4446, %v4448
  %v4450 = vadd.f32 %v4446, %v4449
  %vm4451 = vweird.f32 %v4445
  %vm4452 = vweird.f32 %v4446
  %vm4453 = vmor %vm4451, %vm4452
  %v4454 = vsel %vm4453, %v4446, %v4450
  %v4455 = vand.u32 2147483647, %v4445
  %vm4456 = vcmp.eq.f32.partialorder %v4455, 8.507059e+37
  %v4457 = vand.u32 %v4445, 2147483648
  %v4458 = vor.u32 1.1754944e-38, %v4457
  %v4459 = vsel %vm4456, %v4458, %v4454
  %v4460 = vmul.f32 1.0, %v4459
  %v4461 = vtanh.pop %v4441
  %v4462 = vmul.f32 %v4460, %v4386
  %4464 = vrot.lane.b32.xlu0 %v4461, 64
  %v4465 = vpop.permute.xlu0 %4464
  %v4467 = vmul.f32 %v4460, %v4465
  %4469 = vrot.lane.b32.xlu0 %v4467, 32
  %v4470 = vpop.permute.xlu0 %4469
  %v4472 = vadd.f32 %v4462, %v4470
  %v4473 = vtanh.pop %v4472
  %4475 = vrot.lane.b32.xlu0 %v4473, 64
  %v4476 = vpop.permute.xlu0 %4475
  %v4478 = vmul.f32 %v4460, %v4476
  %v4480 = vrot.slane %v4478, 1
  %v4481 = vrot.slane %v4478, 2
  %v4482 = vrot.slane %v4478, 3
  %v4483 = vperm.slane %v4478, 0
  %v4484 = vperm.slane %v4480, 0
  %v4485 = vperm.slane %v4481, 0
  %v4486 = vperm.slane %v4482, 0
  %4487 = vrot.lane.b32.xlu0 %v4483, 32
  %v4488 = vpop.permute.xlu0 %4487
  %4489 = vrot.lane.b32.xlu0 %v4484, 32
  %v4490 = vpop.permute.xlu0 %4489
  %4491 = vrot.lane.b32.xlu0 %v4485, 32
  %v4492 = vpop.permute.xlu0 %4491
  %4493 = vrot.lane.b32.xlu0 %v4486, 32
  %v4494 = vpop.permute.xlu0 %4493
  %4499 = vst.msk [vmem:[#allocation2 + $0x2c] sm:$0x1] %vm714, %v4488
  %4500 = vst.msk [vmem:[#allocation2 + $0x64] sm:$0x1] %vm714, %v4490
  %4501 = vst.msk [vmem:[#allocation2 + $0x9c] sm:$0x1] %vm714, %v4492
  %4502 = vst.msk [vmem:[#allocation2 + $0xd4] sm:$0x1] %vm714, %v4494
  %4503 = vrot.lane.b32.xlu0 %v4478, 32
  %v4504 = vpop.permute.xlu0 %4503
  %v4505 = vsel %vm63, %v4504, 0
  %4507 = vmatpush.msra.mxu0 0.0
  %4508 = vmatpush.msra.mxu0 0.0
  %4509 = vmatpush.msra.mxu0 0.0
  %4510 = vmatpush.msra.mxu0 0.0
  %4511 = vmatpush.msra.mxu0 0.0
  %4512 = vmatpush.msra.mxu0 0.0
  %4513 = vmatpush.msra.mxu0 0.0
  %4514 = vmatpush.msra.mxu0 0.0
  %4515 = vmatpush.msra.mxu0 0.0
  %4516 = vmatpush.msra.mxu0 0.0
  %4517 = vmatpush.msra.mxu0 0.0
  %4518 = vmatpush.msra.mxu0 0.0
  %4519 = vmatpush.msra.mxu0 %v48
  %4520 = vmatpush.msra.mxu0 %v47
  %4521 = vmatpush.msra.mxu0 %v46
  %4522 = vmatpush.msra.mxu0 %v45
  %4523 = vmatmul.f32.gmra.mxu0 %v4505
  %v4524 = vpop.f32.mrf.mxu0
  %v4525 = vadd.f32 0.0, %v4524
  %4526 = vdwg.mxu0
  %v4527 = vadd.f32 %v634, %v4525
  %v4528 = vxor.u32 %v4527, 2147483648
  %v4529 = vmul.f32 %v4528, 1.442695
  %v4530 = vpow.pop %v4529
  %v4531 = vadd.f32 %v4530, 1.0
  %v4532 = vrcp.pop %v4531
  %v4533 = vmul.f32 %v4531, %v4532
  %v4534 = vsub.f32 1.0, %v4533
  %v4535 = vmul.f32 %v4532, %v4534
  %v4536 = vadd.f32 %v4532, %v4535
  %vm4537 = vweird.f32 %v4531
  %vm4538 = vweird.f32 %v4532
  %vm4539 = vmor %vm4537, %vm4538
  %v4540 = vsel %vm4539, %v4532, %v4536
  %v4541 = vand.u32 2147483647, %v4531
  %vm4542 = vcmp.eq.f32.partialorder %v4541, 8.507059e+37
  %v4543 = vand.u32 %v4531, 2147483648
  %v4544 = vor.u32 1.1754944e-38, %v4543
  %v4545 = vsel %vm4542, %v4544, %v4540
  %v4546 = vmul.f32 1.0, %v4545
  %v4547 = vtanh.pop %v4527
  %v4548 = vmul.f32 %v4546, %v4472
  %4550 = vrot.lane.b32.xlu0 %v4547, 64
  %v4551 = vpop.permute.xlu0 %4550
  %v4553 = vmul.f32 %v4546, %v4551
  %4555 = vrot.lane.b32.xlu0 %v4553, 32
  %v4556 = vpop.permute.xlu0 %4555
  %v4558 = vadd.f32 %v4548, %v4556
  %v4559 = vtanh.pop %v4558
  %4561 = vrot.lane.b32.xlu0 %v4559, 64
  %v4562 = vpop.permute.xlu0 %4561
  %v4564 = vmul.f32 %v4546, %v4562
  %v4566 = vrot.slane %v4564, 1
  %v4567 = vrot.slane %v4564, 2
  %v4568 = vrot.slane %v4564, 3
  %v4569 = vperm.slane %v4564, 0
  %v4570 = vperm.slane %v4566, 0
  %v4571 = vperm.slane %v4567, 0
  %v4572 = vperm.slane %v4568, 0
  %4573 = vrot.lane.b32.xlu0 %v4569, 32
  %v4574 = vpop.permute.xlu0 %4573
  %4575 = vrot.lane.b32.xlu0 %v4570, 32
  %v4576 = vpop.permute.xlu0 %4575
  %4577 = vrot.lane.b32.xlu0 %v4571, 32
  %v4578 = vpop.permute.xlu0 %4577
  %4579 = vrot.lane.b32.xlu0 %v4572, 32
  %v4580 = vpop.permute.xlu0 %4579
  %4585 = vst.msk [vmem:[#allocation2 + $0x2d] sm:$0x1] %vm714, %v4574
  %4586 = vst.msk [vmem:[#allocation2 + $0x65] sm:$0x1] %vm714, %v4576
  %4587 = vst.msk [vmem:[#allocation2 + $0x9d] sm:$0x1] %vm714, %v4578
  %4588 = vst.msk [vmem:[#allocation2 + $0xd5] sm:$0x1] %vm714, %v4580
  %4589 = vrot.lane.b32.xlu0 %v4564, 32
  %v4590 = vpop.permute.xlu0 %4589
  %v4591 = vsel %vm63, %v4590, 0
  %4593 = vmatpush.msra.mxu0 0.0
  %4594 = vmatpush.msra.mxu0 0.0
  %4595 = vmatpush.msra.mxu0 0.0
  %4596 = vmatpush.msra.mxu0 0.0
  %4597 = vmatpush.msra.mxu0 0.0
  %4598 = vmatpush.msra.mxu0 0.0
  %4599 = vmatpush.msra.mxu0 0.0
  %4600 = vmatpush.msra.mxu0 0.0
  %4601 = vmatpush.msra.mxu0 0.0
  %4602 = vmatpush.msra.mxu0 0.0
  %4603 = vmatpush.msra.mxu0 0.0
  %4604 = vmatpush.msra.mxu0 0.0
  %4605 = vmatpush.msra.mxu0 %v48
  %4606 = vmatpush.msra.mxu0 %v47
  %4607 = vmatpush.msra.mxu0 %v46
  %4608 = vmatpush.msra.mxu0 %v45
  %4609 = vmatmul.f32.gmra.mxu0 %v4591
  %v4610 = vpop.f32.mrf.mxu0
  %v4611 = vadd.f32 0.0, %v4610
  %4612 = vdwg.mxu0
  %v4613 = vadd.f32 %v634, %v4611
  %v4614 = vxor.u32 %v4613, 2147483648
  %v4615 = vmul.f32 %v4614, 1.442695
  %v4616 = vpow.pop %v4615
  %v4617 = vadd.f32 %v4616, 1.0
  %v4618 = vrcp.pop %v4617
  %v4619 = vmul.f32 %v4617, %v4618
  %v4620 = vsub.f32 1.0, %v4619
  %v4621 = vmul.f32 %v4618, %v4620
  %v4622 = vadd.f32 %v4618, %v4621
  %vm4623 = vweird.f32 %v4617
  %vm4624 = vweird.f32 %v4618
  %vm4625 = vmor %vm4623, %vm4624
  %v4626 = vsel %vm4625, %v4618, %v4622
  %v4627 = vand.u32 2147483647, %v4617
  %vm4628 = vcmp.eq.f32.partialorder %v4627, 8.507059e+37
  %v4629 = vand.u32 %v4617, 2147483648
  %v4630 = vor.u32 1.1754944e-38, %v4629
  %v4631 = vsel %vm4628, %v4630, %v4626
  %v4632 = vmul.f32 1.0, %v4631
  %v4633 = vtanh.pop %v4613
  %v4634 = vmul.f32 %v4632, %v4558
  %4636 = vrot.lane.b32.xlu0 %v4633, 64
  %v4637 = vpop.permute.xlu0 %4636
  %v4639 = vmul.f32 %v4632, %v4637
  %4641 = vrot.lane.b32.xlu0 %v4639, 32
  %v4642 = vpop.permute.xlu0 %4641
  %v4644 = vadd.f32 %v4634, %v4642
  %v4645 = vtanh.pop %v4644
  %4647 = vrot.lane.b32.xlu0 %v4645, 64
  %v4648 = vpop.permute.xlu0 %4647
  %v4650 = vmul.f32 %v4632, %v4648
  %v4652 = vrot.slane %v4650, 1
  %v4653 = vrot.slane %v4650, 2
  %v4654 = vrot.slane %v4650, 3
  %v4655 = vperm.slane %v4650, 0
  %v4656 = vperm.slane %v4652, 0
  %v4657 = vperm.slane %v4653, 0
  %v4658 = vperm.slane %v4654, 0
  %4659 = vrot.lane.b32.xlu0 %v4655, 32
  %v4660 = vpop.permute.xlu0 %4659
  %4661 = vrot.lane.b32.xlu0 %v4656, 32
  %v4662 = vpop.permute.xlu0 %4661
  %4663 = vrot.lane.b32.xlu0 %v4657, 32
  %v4664 = vpop.permute.xlu0 %4663
  %4665 = vrot.lane.b32.xlu0 %v4658, 32
  %v4666 = vpop.permute.xlu0 %4665
  %4671 = vst.msk [vmem:[#allocation2 + $0x2e] sm:$0x1] %vm714, %v4660
  %4672 = vst.msk [vmem:[#allocation2 + $0x66] sm:$0x1] %vm714, %v4662
  %4673 = vst.msk [vmem:[#allocation2 + $0x9e] sm:$0x1] %vm714, %v4664
  %4674 = vst.msk [vmem:[#allocation2 + $0xd6] sm:$0x1] %vm714, %v4666
  %4675 = vrot.lane.b32.xlu0 %v4650, 32
  %v4676 = vpop.permute.xlu0 %4675
  %v4677 = vsel %vm63, %v4676, 0
  %4679 = vmatpush.msra.mxu0 0.0
  %4680 = vmatpush.msra.mxu0 0.0
  %4681 = vmatpush.msra.mxu0 0.0
  %4682 = vmatpush.msra.mxu0 0.0
  %4683 = vmatpush.msra.mxu0 0.0
  %4684 = vmatpush.msra.mxu0 0.0
  %4685 = vmatpush.msra.mxu0 0.0
  %4686 = vmatpush.msra.mxu0 0.0
  %4687 = vmatpush.msra.mxu0 0.0
  %4688 = vmatpush.msra.mxu0 0.0
  %4689 = vmatpush.msra.mxu0 0.0
  %4690 = vmatpush.msra.mxu0 0.0
  %4691 = vmatpush.msra.mxu0 %v48
  %4692 = vmatpush.msra.mxu0 %v47
  %4693 = vmatpush.msra.mxu0 %v46
  %4694 = vmatpush.msra.mxu0 %v45
  %4695 = vmatmul.f32.gmra.mxu0 %v4677
  %v4696 = vpop.f32.mrf.mxu0
  %v4697 = vadd.f32 0.0, %v4696
  %4698 = vdwg.mxu0
  %v4699 = vadd.f32 %v634, %v4697
  %v4700 = vxor.u32 %v4699, 2147483648
  %v4701 = vmul.f32 %v4700, 1.442695
  %v4702 = vpow.pop %v4701
  %v4703 = vadd.f32 %v4702, 1.0
  %v4704 = vrcp.pop %v4703
  %v4705 = vmul.f32 %v4703, %v4704
  %v4706 = vsub.f32 1.0, %v4705
  %v4707 = vmul.f32 %v4704, %v4706
  %v4708 = vadd.f32 %v4704, %v4707
  %vm4709 = vweird.f32 %v4703
  %vm4710 = vweird.f32 %v4704
  %vm4711 = vmor %vm4709, %vm4710
  %v4712 = vsel %vm4711, %v4704, %v4708
  %v4713 = vand.u32 2147483647, %v4703
  %vm4714 = vcmp.eq.f32.partialorder %v4713, 8.507059e+37
  %v4715 = vand.u32 %v4703, 2147483648
  %v4716 = vor.u32 1.1754944e-38, %v4715
  %v4717 = vsel %vm4714, %v4716, %v4712
  %v4718 = vmul.f32 1.0, %v4717
  %v4719 = vtanh.pop %v4699
  %v4720 = vmul.f32 %v4718, %v4644
  %4722 = vrot.lane.b32.xlu0 %v4719, 64
  %v4723 = vpop.permute.xlu0 %4722
  %v4725 = vmul.f32 %v4718, %v4723
  %4727 = vrot.lane.b32.xlu0 %v4725, 32
  %v4728 = vpop.permute.xlu0 %4727
  %v4730 = vadd.f32 %v4720, %v4728
  %v4731 = vtanh.pop %v4730
  %4733 = vrot.lane.b32.xlu0 %v4731, 64
  %v4734 = vpop.permute.xlu0 %4733
  %v4736 = vmul.f32 %v4718, %v4734
  %v4738 = vrot.slane %v4736, 1
  %v4739 = vrot.slane %v4736, 2
  %v4740 = vrot.slane %v4736, 3
  %v4741 = vperm.slane %v4736, 0
  %v4742 = vperm.slane %v4738, 0
  %v4743 = vperm.slane %v4739, 0
  %v4744 = vperm.slane %v4740, 0
  %4745 = vrot.lane.b32.xlu0 %v4741, 32
  %v4746 = vpop.permute.xlu0 %4745
  %4747 = vrot.lane.b32.xlu0 %v4742, 32
  %v4748 = vpop.permute.xlu0 %4747
  %4749 = vrot.lane.b32.xlu0 %v4743, 32
  %v4750 = vpop.permute.xlu0 %4749
  %4751 = vrot.lane.b32.xlu0 %v4744, 32
  %v4752 = vpop.permute.xlu0 %4751
  %4757 = vst.msk [vmem:[#allocation2 + $0x2f] sm:$0x1] %vm714, %v4746
  %4758 = vst.msk [vmem:[#allocation2 + $0x67] sm:$0x1] %vm714, %v4748
  %4759 = vst.msk [vmem:[#allocation2 + $0x9f] sm:$0x1] %vm714, %v4750
  %4760 = vst.msk [vmem:[#allocation2 + $0xd7] sm:$0x1] %vm714, %v4752
  %4761 = vrot.lane.b32.xlu0 %v4736, 32
  %v4762 = vpop.permute.xlu0 %4761
  %v4763 = vsel %vm63, %v4762, 0
  %4765 = vmatpush.msra.mxu0 0.0
  %4766 = vmatpush.msra.mxu0 0.0
  %4767 = vmatpush.msra.mxu0 0.0
  %4768 = vmatpush.msra.mxu0 0.0
  %4769 = vmatpush.msra.mxu0 0.0
  %4770 = vmatpush.msra.mxu0 0.0
  %4771 = vmatpush.msra.mxu0 0.0
  %4772 = vmatpush.msra.mxu0 0.0
  %4773 = vmatpush.msra.mxu0 0.0
  %4774 = vmatpush.msra.mxu0 0.0
  %4775 = vmatpush.msra.mxu0 0.0
  %4776 = vmatpush.msra.mxu0 0.0
  %4777 = vmatpush.msra.mxu0 %v48
  %4778 = vmatpush.msra.mxu0 %v47
  %4779 = vmatpush.msra.mxu0 %v46
  %4780 = vmatpush.msra.mxu0 %v45
  %4781 = vmatmul.f32.gmra.mxu0 %v4763
  %v4782 = vpop.f32.mrf.mxu0
  %v4783 = vadd.f32 0.0, %v4782
  %4784 = vdwg.mxu0
  %v4785 = vadd.f32 %v634, %v4783
  %v4786 = vxor.u32 %v4785, 2147483648
  %v4787 = vmul.f32 %v4786, 1.442695
  %v4788 = vpow.pop %v4787
  %v4789 = vadd.f32 %v4788, 1.0
  %v4790 = vrcp.pop %v4789
  %v4791 = vmul.f32 %v4789, %v4790
  %v4792 = vsub.f32 1.0, %v4791
  %v4793 = vmul.f32 %v4790, %v4792
  %v4794 = vadd.f32 %v4790, %v4793
  %vm4795 = vweird.f32 %v4789
  %vm4796 = vweird.f32 %v4790
  %vm4797 = vmor %vm4795, %vm4796
  %v4798 = vsel %vm4797, %v4790, %v4794
  %v4799 = vand.u32 2147483647, %v4789
  %vm4800 = vcmp.eq.f32.partialorder %v4799, 8.507059e+37
  %v4801 = vand.u32 %v4789, 2147483648
  %v4802 = vor.u32 1.1754944e-38, %v4801
  %v4803 = vsel %vm4800, %v4802, %v4798
  %v4804 = vmul.f32 1.0, %v4803
  %v4805 = vtanh.pop %v4785
  %v4806 = vmul.f32 %v4804, %v4730
  %4808 = vrot.lane.b32.xlu0 %v4805, 64
  %v4809 = vpop.permute.xlu0 %4808
  %v4811 = vmul.f32 %v4804, %v4809
  %4813 = vrot.lane.b32.xlu0 %v4811, 32
  %v4814 = vpop.permute.xlu0 %4813
  %v4816 = vadd.f32 %v4806, %v4814
  %v4817 = vtanh.pop %v4816
  %4819 = vrot.lane.b32.xlu0 %v4817, 64
  %v4820 = vpop.permute.xlu0 %4819
  %v4822 = vmul.f32 %v4804, %v4820
  %v4824 = vrot.slane %v4822, 1
  %v4825 = vrot.slane %v4822, 2
  %v4826 = vrot.slane %v4822, 3
  %v4827 = vperm.slane %v4822, 0
  %v4828 = vperm.slane %v4824, 0
  %v4829 = vperm.slane %v4825, 0
  %v4830 = vperm.slane %v4826, 0
  %4831 = vrot.lane.b32.xlu0 %v4827, 32
  %v4832 = vpop.permute.xlu0 %4831
  %4833 = vrot.lane.b32.xlu0 %v4828, 32
  %v4834 = vpop.permute.xlu0 %4833
  %4835 = vrot.lane.b32.xlu0 %v4829, 32
  %v4836 = vpop.permute.xlu0 %4835
  %4837 = vrot.lane.b32.xlu0 %v4830, 32
  %v4838 = vpop.permute.xlu0 %4837
  %4843 = vst.msk [vmem:[#allocation2 + $0x30] sm:$0x1] %vm714, %v4832
  %4844 = vst.msk [vmem:[#allocation2 + $0x68] sm:$0x1] %vm714, %v4834
  %4845 = vst.msk [vmem:[#allocation2 + $0xa0] sm:$0x1] %vm714, %v4836
  %4846 = vst.msk [vmem:[#allocation2 + $0xd8] sm:$0x1] %vm714, %v4838
  %v4847 = vld [vmem:[#allocation2] sm:$0xff]
  %v4848 = vld [vmem:[#allocation2 + $0x8] sm:$0xff]
  %v4849 = vld [vmem:[#allocation2 + $0x10] sm:$0xff]
  %v4850 = vld [vmem:[#allocation2 + $0x18] sm:$0xff]
  %v4851 = vld [vmem:[#allocation2 + $0x20] sm:$0xff]
  %v4852 = vld [vmem:[#allocation2 + $0x28] sm:$0xff]
  %v4853 = vld [vmem:[#allocation2 + $0x30] sm:$0x1]
  %v4854 = vld [vmem:[#allocation2 + $0x38] sm:$0xff]
  %v4855 = vld [vmem:[#allocation2 + $0x40] sm:$0xff]
  %v4856 = vld [vmem:[#allocation2 + $0x48] sm:$0xff]
  %v4857 = vld [vmem:[#allocation2 + $0x50] sm:$0xff]
  %v4858 = vld [vmem:[#allocation2 + $0x58] sm:$0xff]
  %v4859 = vld [vmem:[#allocation2 + $0x60] sm:$0xff]
  %v4860 = vld [vmem:[#allocation2 + $0x68] sm:$0x1]
  %v4861 = vld [vmem:[#allocation2 + $0x70] sm:$0xff]
  %v4862 = vld [vmem:[#allocation2 + $0x78] sm:$0xff]
  %v4863 = vld [vmem:[#allocation2 + $0x80] sm:$0xff]
  %v4864 = vld [vmem:[#allocation2 + $0x88] sm:$0xff]
  %v4865 = vld [vmem:[#allocation2 + $0x90] sm:$0xff]
  %v4866 = vld [vmem:[#allocation2 + $0x98] sm:$0xff]
  %v4867 = vld [vmem:[#allocation2 + $0xa0] sm:$0x1]
  %v4868 = vld [vmem:[#allocation2 + $0xa8] sm:$0xff]
  %v4869 = vld [vmem:[#allocation2 + $0xb0] sm:$0xff]
  %v4870 = vld [vmem:[#allocation2 + $0xb8] sm:$0xff]
  %v4871 = vld [vmem:[#allocation2 + $0xc0] sm:$0xff]
  %v4872 = vld [vmem:[#allocation2 + $0xc8] sm:$0xff]
  %v4873 = vld [vmem:[#allocation2 + $0xd0] sm:$0xff]
  %v4874 = vld [vmem:[#allocation2 + $0xd8] sm:$0x1]
  %v4875 = vld [vmem:[%s7] sm:$0x1]
  %v4877 = vperm.slane %v4875, 0
  %v4879 = vmul.f32 %v4847, %v4877
  %v4880 = vmul.f32 %v4848, %v4877
  %v4881 = vmul.f32 %v4849, %v4877
  %v4882 = vmul.f32 %v4850, %v4877
  %v4883 = vmul.f32 %v4851, %v4877
  %v4884 = vmul.f32 %v4852, %v4877
  %v4885 = vmul.f32 %v4853, %v4877
  %v4886 = vmul.f32 %v4854, %v4877
  %v4887 = vmul.f32 %v4855, %v4877
  %v4888 = vmul.f32 %v4856, %v4877
  %v4889 = vmul.f32 %v4857, %v4877
  %v4890 = vmul.f32 %v4858, %v4877
  %v4891 = vmul.f32 %v4859, %v4877
  %v4892 = vmul.f32 %v4860, %v4877
  %v4893 = vmul.f32 %v4861, %v4877
  %v4894 = vmul.f32 %v4862, %v4877
  %v4895 = vmul.f32 %v4863, %v4877
  %v4896 = vmul.f32 %v4864, %v4877
  %v4897 = vmul.f32 %v4865, %v4877
  %v4898 = vmul.f32 %v4866, %v4877
  %v4899 = vmul.f32 %v4867, %v4877
  %v4900 = vmul.f32 %v4868, %v4877
  %v4901 = vmul.f32 %v4869, %v4877
  %v4902 = vmul.f32 %v4870, %v4877
  %v4903 = vmul.f32 %v4871, %v4877
  %v4904 = vmul.f32 %v4872, %v4877
  %v4905 = vmul.f32 %v4873, %v4877
  %v4906 = vmul.f32 %v4874, %v4877
  %v4907 = vsel %vm63, %v4879, 0.0
  %4908 = vadd.xlane.f32.xlu0 %v4907
  %v4909 = vpop.xlane.xlu0 %4908
  %v4910 = vsel %vm63, %v4880, 0.0
  %4911 = vadd.xlane.f32.xlu0 %v4910
  %v4912 = vpop.xlane.xlu0 %4911
  %v4913 = vsel %vm63, %v4881, 0.0
  %4914 = vadd.xlane.f32.xlu0 %v4913
  %v4915 = vpop.xlane.xlu0 %4914
  %v4916 = vsel %vm63, %v4882, 0.0
  %4917 = vadd.xlane.f32.xlu0 %v4916
  %v4918 = vpop.xlane.xlu0 %4917
  %v4919 = vsel %vm63, %v4883, 0.0
  %4920 = vadd.xlane.f32.xlu0 %v4919
  %v4921 = vpop.xlane.xlu0 %4920
  %v4922 = vsel %vm63, %v4884, 0.0
  %4923 = vadd.xlane.f32.xlu0 %v4922
  %v4924 = vpop.xlane.xlu0 %4923
  %v4925 = vsel %vm714, %v4885, 0.0
  %4926 = vadd.xlane.f32.xlu0 %v4925
  %v4927 = vpop.xlane.xlu0 %4926
  %v4928 = vsel %vm63, %v4886, 0.0
  %4929 = vadd.xlane.f32.xlu0 %v4928
  %v4930 = vpop.xlane.xlu0 %4929
  %v4931 = vsel %vm63, %v4887, 0.0
  %4932 = vadd.xlane.f32.xlu0 %v4931
  %v4933 = vpop.xlane.xlu0 %4932
  %v4934 = vsel %vm63, %v4888, 0.0
  %4935 = vadd.xlane.f32.xlu0 %v4934
  %v4936 = vpop.xlane.xlu0 %4935
  %v4937 = vsel %vm63, %v4889, 0.0
  %4938 = vadd.xlane.f32.xlu0 %v4937
  %v4939 = vpop.xlane.xlu0 %4938
  %v4940 = vsel %vm63, %v4890, 0.0
  %4941 = vadd.xlane.f32.xlu0 %v4940
  %v4942 = vpop.xlane.xlu0 %4941
  %v4943 = vsel %vm63, %v4891, 0.0
  %4944 = vadd.xlane.f32.xlu0 %v4943
  %v4945 = vpop.xlane.xlu0 %4944
  %v4946 = vsel %vm714, %v4892, 0.0
  %4947 = vadd.xlane.f32.xlu0 %v4946
  %v4948 = vpop.xlane.xlu0 %4947
  %v4949 = vsel %vm63, %v4893, 0.0
  %4950 = vadd.xlane.f32.xlu0 %v4949
  %v4951 = vpop.xlane.xlu0 %4950
  %v4952 = vsel %vm63, %v4894, 0.0
  %4953 = vadd.xlane.f32.xlu0 %v4952
  %v4954 = vpop.xlane.xlu0 %4953
  %v4955 = vsel %vm63, %v4895, 0.0
  %4956 = vadd.xlane.f32.xlu0 %v4955
  %v4957 = vpop.xlane.xlu0 %4956
  %v4958 = vsel %vm63, %v4896, 0.0
  %4959 = vadd.xlane.f32.xlu0 %v4958
  %v4960 = vpop.xlane.xlu0 %4959
  %v4961 = vsel %vm63, %v4897, 0.0
  %4962 = vadd.xlane.f32.xlu0 %v4961
  %v4963 = vpop.xlane.xlu0 %4962
  %v4964 = vsel %vm63, %v4898, 0.0
  %4965 = vadd.xlane.f32.xlu0 %v4964
  %v4966 = vpop.xlane.xlu0 %4965
  %v4967 = vsel %vm714, %v4899, 0.0
  %4968 = vadd.xlane.f32.xlu0 %v4967
  %v4969 = vpop.xlane.xlu0 %4968
  %v4970 = vsel %vm63, %v4900, 0.0
  %4971 = vadd.xlane.f32.xlu0 %v4970
  %v4972 = vpop.xlane.xlu0 %4971
  %v4973 = vsel %vm63, %v4901, 0.0
  %4974 = vadd.xlane.f32.xlu0 %v4973
  %v4975 = vpop.xlane.xlu0 %4974
  %v4976 = vsel %vm63, %v4902, 0.0
  %4977 = vadd.xlane.f32.xlu0 %v4976
  %v4978 = vpop.xlane.xlu0 %4977
  %v4979 = vsel %vm63, %v4903, 0.0
  %4980 = vadd.xlane.f32.xlu0 %v4979
  %v4981 = vpop.xlane.xlu0 %4980
  %v4982 = vsel %vm63, %v4904, 0.0
  %4983 = vadd.xlane.f32.xlu0 %v4982
  %v4984 = vpop.xlane.xlu0 %4983
  %v4985 = vsel %vm63, %v4905, 0.0
  %4986 = vadd.xlane.f32.xlu0 %v4985
  %v4987 = vpop.xlane.xlu0 %4986
  %v4988 = vsel %vm714, %v4906, 0.0
  %4989 = vadd.xlane.f32.xlu0 %v4988
  %v4990 = vpop.xlane.xlu0 %4989
  %v4991 = vpack.c.bf16 %v4912, %v4909
  %v4992 = vpack.c.bf16 %v4918, %v4915
  %v4993 = vpack.c.bf16 %v4924, %v4921
  %v4994 = vpack.c.bf16 %v4927, %v4927
  %v4995 = vpack.c.bf16 %v4933, %v4930
  %v4996 = vpack.c.bf16 %v4939, %v4936
  %v4997 = vpack.c.bf16 %v4945, %v4942
  %v4998 = vpack.c.bf16 %v4948, %v4948
  %v4999 = vpack.c.bf16 %v4954, %v4951
  %v5000 = vpack.c.bf16 %v4960, %v4957
  %v5001 = vpack.c.bf16 %v4966, %v4963
  %v5002 = vpack.c.bf16 %v4969, %v4969
  %v5003 = vpack.c.bf16 %v4975, %v4972
  %v5004 = vpack.c.bf16 %v4981, %v4978
  %v5005 = vpack.c.bf16 %v4987, %v4984
  %v5006 = vpack.c.bf16 %v4990, %v4990
  %v5007 = vld [vmem:[%s8] sm:$0xff]
  %v5008 = vld [vmem:[%s8 + $0x8] sm:$0xff]
  %v5009 = vld [vmem:[%s8 + $0x10] sm:$0xff]
  %v5010 = vld [vmem:[%s8 + $0x18] sm:$0xff]
  %v5011 = vld [vmem:[%s8 + $0x20] sm:$0xff]
  %v5012 = vld [vmem:[%s8 + $0x28] sm:$0xff]
  %v5013 = vld [vmem:[%s8 + $0x30] sm:$0xff]
  %v5014 = vld [vmem:[%s8 + $0x38] sm:$0xff]
  %v5015 = vld [vmem:[%s8 + $0x40] sm:$0xff]
  %v5016 = vld [vmem:[%s8 + $0x48] sm:$0xff]
  %v5017 = vld [vmem:[%s8 + $0x50] sm:$0xff]
  %v5018 = vld [vmem:[%s8 + $0x58] sm:$0xff]
  %v5019 = vld [vmem:[%s8 + $0x60] sm:$0x11]
  %v5020 = vld [vmem:[%s8 + $0x68] sm:$0x11]
  %v5037 = vunpack.c.l.b16 %v4991
  %v5038 = vunpack.c.h.b16 %v4991
  %v5039 = vunpack.c.l.b16 %v4992
  %v5040 = vunpack.c.h.b16 %v4992
  %v5041 = vunpack.c.l.b16 %v4993
  %v5042 = vunpack.c.h.b16 %v4993
  %v5043 = vunpack.c.l.b16 %v4994
  %v5044 = vunpack.c.l.b16 %v4995
  %v5045 = vunpack.c.h.b16 %v4995
  %v5046 = vunpack.c.l.b16 %v4996
  %v5047 = vunpack.c.h.b16 %v4996
  %v5048 = vunpack.c.l.b16 %v4997
  %v5049 = vunpack.c.h.b16 %v4997
  %v5050 = vunpack.c.l.b16 %v4998
  %v5051 = vunpack.c.l.b16 %v4999
  %v5052 = vunpack.c.h.b16 %v4999
  %v5053 = vunpack.c.l.b16 %v5000
  %v5054 = vunpack.c.h.b16 %v5000
  %v5055 = vunpack.c.l.b16 %v5001
  %v5056 = vunpack.c.h.b16 %v5001
  %v5057 = vunpack.c.l.b16 %v5002
  %v5058 = vunpack.c.l.b16 %v5003
  %v5059 = vunpack.c.h.b16 %v5003
  %v5060 = vunpack.c.l.b16 %v5004
  %v5061 = vunpack.c.h.b16 %v5004
  %v5062 = vunpack.c.l.b16 %v5005
  %v5063 = vunpack.c.h.b16 %v5005
  %v5064 = vunpack.c.l.b16 %v5006
  %v5065 = vlaneseq
  %v5066 = vand.u32 %v5065, 127
  %v5067 = vperm.slane %v5037, %v5066
  %v5068 = vadd.s32 %v5066, 4294967288
  %v5069 = vperm.slane %v5038, %v5068
  %vm5070 = vcmask 130112
  %v5071 = vsel %vm5070, %v5069, %v5067
  %v5072 = vadd.s32 %v5066, 4294967280
  %v5073 = vperm.slane %v5039, %v5072
  %vm5074 = vcmask 195712
  %v5075 = vsel %vm5074, %v5073, %v5071
  %v5076 = vadd.s32 %v5066, 4294967272
  %v5077 = vperm.slane %v5040, %v5076
  %vm5078 = vcmask 261312
  %v5079 = vsel %vm5078, %v5077, %v5075
  %v5080 = vadd.s32 %v5066, 4294967264
  %v5081 = vperm.slane %v5041, %v5080
  %vm5082 = vcmask 326912
  %v5083 = vsel %vm5082, %v5081, %v5079
  %v5084 = vadd.s32 %v5066, 4294967256
  %v5085 = vperm.slane %v5042, %v5084
  %vm5086 = vcmask 392512
  %v5087 = vsel %vm5086, %v5085, %v5083
  %v5088 = vadd.s32 %v5066, 4294967248
  %v5089 = vperm.slane %v5043, %v5088
  %vm5090 = vcmask 458112
  %v5091 = vsel %vm5090, %v5089, %v5087
  %v5092 = vperm.slane %v5044, %v5066
  %v5093 = vperm.slane %v5045, %v5068
  %v5094 = vsel %vm5070, %v5093, %v5092
  %v5095 = vperm.slane %v5046, %v5072
  %v5096 = vsel %vm5074, %v5095, %v5094
  %v5097 = vperm.slane %v5047, %v5076
  %v5098 = vsel %vm5078, %v5097, %v5096
  %v5099 = vperm.slane %v5048, %v5080
  %v5100 = vsel %vm5082, %v5099, %v5098
  %v5101 = vperm.slane %v5049, %v5084
  %v5102 = vsel %vm5086, %v5101, %v5100
  %v5103 = vperm.slane %v5050, %v5088
  %v5104 = vsel %vm5090, %v5103, %v5102
  %v5105 = vperm.slane %v5051, %v5066
  %v5106 = vperm.slane %v5052, %v5068
  %v5107 = vsel %vm5070, %v5106, %v5105
  %v5108 = vperm.slane %v5053, %v5072
  %v5109 = vsel %vm5074, %v5108, %v5107
  %v5110 = vperm.slane %v5054, %v5076
  %v5111 = vsel %vm5078, %v5110, %v5109
  %v5112 = vperm.slane %v5055, %v5080
  %v5113 = vsel %vm5082, %v5112, %v5111
  %v5114 = vperm.slane %v5056, %v5084
  %v5115 = vsel %vm5086, %v5114, %v5113
  %v5116 = vperm.slane %v5057, %v5088
  %v5117 = vsel %vm5090, %v5116, %v5115
  %v5118 = vperm.slane %v5058, %v5066
  %v5119 = vperm.slane %v5059, %v5068
  %v5120 = vsel %vm5070, %v5119, %v5118
  %v5121 = vperm.slane %v5060, %v5072
  %v5122 = vsel %vm5074, %v5121, %v5120
  %v5123 = vperm.slane %v5061, %v5076
  %v5124 = vsel %vm5078, %v5123, %v5122
  %v5125 = vperm.slane %v5062, %v5080
  %v5126 = vsel %vm5082, %v5125, %v5124
  %v5127 = vperm.slane %v5063, %v5084
  %v5128 = vsel %vm5086, %v5127, %v5126
  %v5129 = vperm.slane %v5064, %v5088
  %v5130 = vsel %vm5090, %v5129, %v5128
  %vm5131 = vcmask 1041409
  %v5132 = vsel %vm5131, %v5104, %v5091
  %vm5133 = vcmask 1042434
  %v5134 = vsel %vm5133, %v5117, %v5132
  %vm5135 = vcmask 1043459
  %v5136 = vsel %vm5135, %v5130, %v5134
  %v5137 = vpack.c.b16 %v5136, %v5136
  %v5152 = vunpack.c.l.b16 %v5007
  %v5153 = vunpack.c.h.b16 %v5007
  %v5154 = vunpack.c.l.b16 %v5008
  %v5155 = vunpack.c.h.b16 %v5008
  %v5156 = vunpack.c.l.b16 %v5009
  %v5157 = vunpack.c.h.b16 %v5009
  %v5158 = vunpack.c.l.b16 %v5010
  %v5159 = vunpack.c.h.b16 %v5010
  %v5160 = vunpack.c.l.b16 %v5011
  %v5161 = vunpack.c.h.b16 %v5011
  %v5162 = vunpack.c.l.b16 %v5012
  %v5163 = vunpack.c.h.b16 %v5012
  %v5164 = vunpack.c.l.b16 %v5013
  %v5165 = vunpack.c.h.b16 %v5013
  %v5166 = vunpack.c.l.b16 %v5014
  %v5167 = vunpack.c.h.b16 %v5014
  %v5168 = vunpack.c.l.b16 %v5015
  %v5169 = vunpack.c.h.b16 %v5015
  %v5170 = vunpack.c.l.b16 %v5016
  %v5171 = vunpack.c.h.b16 %v5016
  %v5172 = vunpack.c.l.b16 %v5017
  %v5173 = vunpack.c.h.b16 %v5017
  %v5174 = vunpack.c.l.b16 %v5018
  %v5175 = vunpack.c.h.b16 %v5018
  %v5176 = vunpack.c.l.b16 %v5019
  %v5177 = vunpack.c.h.b16 %v5019
  %v5178 = vunpack.c.l.b16 %v5020
  %v5179 = vunpack.c.h.b16 %v5020
  %v5180 = vpack.c.b16 %v5156, %v5152
  %v5181 = vpack.c.b16 %v5157, %v5153
  %v5182 = vpack.c.b16 %v5158, %v5154
  %v5183 = vpack.c.b16 %v5159, %v5155
  %v5184 = vpack.c.b16 %v5164, %v5160
  %v5185 = vpack.c.b16 %v5165, %v5161
  %v5186 = vpack.c.b16 %v5166, %v5162
  %v5187 = vpack.c.b16 %v5167, %v5163
  %v5188 = vpack.c.b16 %v5172, %v5168
  %v5189 = vpack.c.b16 %v5173, %v5169
  %v5190 = vpack.c.b16 %v5174, %v5170
  %v5191 = vpack.c.b16 %v5175, %v5171
  %v5192 = vpack.c.b16 %v5176, %v5176
  %v5193 = vpack.c.b16 %v5177, %v5177
  %v5194 = vpack.c.b16 %v5178, %v5178
  %v5195 = vpack.c.b16 %v5179, %v5179
  %vm5208 = vcmask 400384
  %v5210 = vsel %vm5208, %v5137, 0
  %vm5212 = vcmask 1040384
  %v5213 = vsel 0, 4294967295, 65535
  %v5214 = vsel %vm5212, %v5213, 0
  %v5216 = vand.u32 %v5192, %v5214
  %v5219 = vand.u32 %v5193, %v5214
  %v5222 = vand.u32 %v5194, %v5214
  %v5225 = vand.u32 %v5195, %v5214
  %5227 = vmatpush.bf16.msra.mxu0 0
  %5228 = vmatpush.bf16.msra.mxu0 0
  %5229 = vmatpush.bf16.msra.mxu0 0
  %5230 = vmatpush.bf16.msra.mxu0 0
  %5231 = vmatpush.bf16.msra.mxu0 %v5216
  %5232 = vmatpush.bf16.msra.mxu0 %v5188
  %5233 = vmatpush.bf16.msra.mxu0 %v5184
  %5234 = vmatpush.bf16.msra.mxu0 %v5180
  %5235 = vmatmul.bf16.gmra.mxu0 %v5210
  %v5236 = vpop.f32.mrf.mxu0
  %v5237 = vadd.f32 0.0, %v5236
  %v5238 = vpop.f32.mrf.mxu0
  %5239 = vdwg.mxu0
  %5240 = vmatpush.bf16.msra.mxu0 0
  %5241 = vmatpush.bf16.msra.mxu0 0
  %5242 = vmatpush.bf16.msra.mxu0 0
  %5243 = vmatpush.bf16.msra.mxu0 0
  %5244 = vmatpush.bf16.msra.mxu0 %v5219
  %5245 = vmatpush.bf16.msra.mxu0 %v5189
  %5246 = vmatpush.bf16.msra.mxu0 %v5185
  %5247 = vmatpush.bf16.msra.mxu0 %v5181
  %5248 = vmatmul.bf16.gmra.mxu0 %v5210
  %v5249 = vpop.f32.mrf.mxu0
  %v5250 = vadd.f32 0.0, %v5249
  %v5251 = vpop.f32.mrf.mxu0
  %5252 = vdwg.mxu0
  %5253 = vmatpush.bf16.msra.mxu0 0
  %5254 = vmatpush.bf16.msra.mxu0 0
  %5255 = vmatpush.bf16.msra.mxu0 0
  %5256 = vmatpush.bf16.msra.mxu0 0
  %5257 = vmatpush.bf16.msra.mxu0 %v5222
  %5258 = vmatpush.bf16.msra.mxu0 %v5190
  %5259 = vmatpush.bf16.msra.mxu0 %v5186
  %5260 = vmatpush.bf16.msra.mxu0 %v5182
  %5261 = vmatmul.bf16.gmra.mxu0 %v5210
  %v5262 = vpop.f32.mrf.mxu0
  %v5263 = vadd.f32 0.0, %v5262
  %v5264 = vpop.f32.mrf.mxu0
  %5265 = vdwg.mxu0
  %5266 = vmatpush.bf16.msra.mxu0 0
  %5267 = vmatpush.bf16.msra.mxu0 0
  %5268 = vmatpush.bf16.msra.mxu0 0
  %5269 = vmatpush.bf16.msra.mxu0 0
  %5270 = vmatpush.bf16.msra.mxu0 %v5225
  %5271 = vmatpush.bf16.msra.mxu0 %v5191
  %5272 = vmatpush.bf16.msra.mxu0 %v5187
  %5273 = vmatpush.bf16.msra.mxu0 %v5183
  %5274 = vmatmul.bf16.gmra.mxu0 %v5210
  %v5275 = vpop.f32.mrf.mxu0
  %v5276 = vadd.f32 0.0, %v5275
  %v5277 = vpop.f32.mrf.mxu0
  %5278 = vdwg.mxu0
  %v5279 = vtanh.pop %v5237
  %v5280 = vtanh.pop %v5250
  %v5281 = vtanh.pop %v5263
  %v5282 = vtanh.pop %v5276
  %v5287 = vrot.slane %v5280, 4
  %v5288 = vrot.slane %v5282, 4
  %vm5289 = vcmask 1043456
  %v5290 = vsel %vm5289, %v5279, %v5287
  %v5291 = vsel %vm5289, %v5281, %v5288
  %5294 = vst [vmem:[%s9] sm:$0xff] %v5290
  %5295 = vst [vmem:[%s9 + $0x8] sm:$0xff] %v5291
  // Predicated region
  $region38: #{hypernet_forward.1} parent=0 // pred_check
    _
  $region39: #{hypernet_forward.1} parent=0 // pred_check_branch
    %5297 = sbr.rel (0) target = $region41
  $region40: #{hypernet_forward.1} parent=0 // pred_region
    _
  $region41: #{hypernet_forward.1} parent=0 // pred_fallthru
    _
  // Predicated region
  $region42: #{hypernet_forward.1} parent=0 // pred_check
    _
  $region43: #{hypernet_forward.1} parent=0 // pred_check_branch
    %5299 = sbr.rel (0) target = $region45
  $region44: #{hypernet_forward.1} parent=0 // pred_region
    _
  $region45: #{hypernet_forward.1} parent=0 // pred_fallthru
    _

</llo_original>
